<compile_context>
chip_gen: v6e
topology: v6e:2x2x1
jax: 0.10.0
libtpu: 0.0.40
codegen_flags: <defaults>
</compile_context>

<pallas_src>
import math
import functools

import numpy as np
import jax
import jax.numpy as jnp
from jax.experimental import pallas as pl
from jax.experimental.pallas import tpu as pltpu


# ----------------------------------------------------------------------------- helpers

def _guard(W):
    """Zero guard rows above/below each flat (H*W) image: >= W+1 and a multiple of 8."""
    return ((W + 8) // 8) * 8


def _pick_batch_tile(B):
    """Samples folded into the matmul M dim; keep >= 2 grid steps when possible (v7x: 2 TCs)."""
    for bt in (8, 4, 2):
        if B % bt == 0 and B // bt >= 2:
            return bt
    return 1


def _log_sigmoid(x):
    # numerically stable log(sigmoid(x)) using only exp/log/abs/min
    return jnp.minimum(x, 0.0) - jnp.log(1.0 + jnp.exp(-jnp.abs(x)))


def _rep_spec(shape):
    zero = (0,) * len(shape)
    return pl.BlockSpec(shape, lambda b: zero)


# ----------------------------------------------------------------------------- in-kernel conv

def _conv3x3_im2col(x2d, w, pad_ref, mask_l, mask_r, *, H, W, BT, Cin):
    """3x3 'same' conv (cross-correlation) on a batch-flattened (BT*H*W, Cin) activation.

    x2d is written once into a per-sample zero-guarded f32 VMEM scratch; the 9 shifted
    windows are packed into a single (BT*HW, 9*Cin) im2col slab (masking only the 6
    taps that can wrap across the left/right image edge) and contracted with ONE MXU
    matmul of K = 9*Cin.  Returns (BT*HW, Cout) f32.
    """
    HW = H * W
    G = _guard(W)
    pad_ref[:, G:G + HW, :] = x2d.reshape(BT, HW, Cin)
    blocks = []
    for kh in range(3):
        for kw in range(3):
            off = G + (kh - 1) * W + (kw - 1)
            win = pad_ref[:, off:off + HW, :]              # (BT, HW, Cin)
            if kw == 0:
                win = win * mask_l                         # left-edge wrap
            elif kw == 2:
                win = win * mask_r                         # right-edge wrap
            blocks.append(win.reshape(BT * HW, Cin))
    patches = jnp.concatenate(blocks, axis=-1)             # (BT*HW, 9*Cin)
    return jnp.dot(patches, w, preferred_element_type=jnp.float32)


# ----------------------------------------------------------------------------- level kernel

def _level_kernel(z_ref, wai_ref, bai_ref, w1_ref, b1_ref, s1_ref,
                  w2_ref, b2_ref, s2_ref, w3_ref, b3_ref, s3_ref, *rest,
                  H, W, C, hc, K, BT, has_split):
    """One whole flow level: K fused FlowSteps (+ optional Split2d prior), z resident in VMEM."""
    if has_split:
        wsp_ref, bsp_ref, ssp_ref, zo_ref, ld_ref, pad1_ref, pad2_ref = rest
    else:
        zo_ref, ld_ref, pad1_ref, pad2_ref = rest

    HW = H * W
    Cp = C // 2
    M = BT * HW
    G = _guard(W)
    f32 = jnp.float32

    # Zero only the guard bands (the interior is always overwritten before being read).
    # Scratch is per-TensorCore, so this runs every invocation instead of being gated on
    # program_id -- safe under "parallel" grid sharding on v7x.
    pad1_ref[:, :G, :] = jnp.zeros((BT, G, Cp), f32)
    pad1_ref[:, G + HW:, :] = jnp.zeros((BT, G, Cp), f32)
    pad2_ref[:, :G, :] = jnp.zeros((BT, G, hc), f32)
    pad2_ref[:, G + HW:, :] = jnp.zeros((BT, G, hc), f32)

    # Only the 6 taps with kw != 1 can wrap across the left/right image edge -> 2 masks.
    col = jax.lax.broadcasted_iota(jnp.int32, (1, HW, 1), 1) % W
    mask_l = (col != 0).astype(f32)
    mask_r = (col != W - 1).astype(f32)

    conv = functools.partial(_conv3x3_im2col, mask_l=mask_l, mask_r=mask_r,
                             H=H, W=W, BT=BT)

    z = z_ref[...].reshape(M, C)
    z1 = z[:, :Cp]
    z2 = z[:, Cp:]
    ld = jnp.zeros((M, 1), f32)                            # per-pixel logdet contributions

    for s in range(K):
        # ActNorm2d folded into the invertible 1x1 conv; split-weight matmul keeps
        # (z1, z2) separate across steps (no channel concatenation needed).
        wa = wai_ref[s]                                    # (C, C)
        za = (jnp.dot(z1, wa[:Cp, :], preferred_element_type=f32)
              + jnp.dot(z2, wa[Cp:, :], preferred_element_type=f32)
              + bai_ref[s])
        z1 = za[:, :Cp]
        z2 = za[:, Cp:]

        # coupling block: 3x3 conv+ActNorm+ReLU -> 1x1 conv+ActNorm+ReLU -> Conv2dZeros(3x3)
        h = conv(z1, w1_ref[s], pad1_ref, Cin=Cp)
        h = jnp.maximum((h + b1_ref[s]) * s1_ref[s], 0.0)
        h = jnp.dot(h, w2_ref[s], preferred_element_type=f32)
        h = jnp.maximum((h + b2_ref[s]) * s2_ref[s], 0.0)
        h = conv(h, w3_ref[s], pad2_ref, Cin=hc)
        h = (h + b3_ref[s]) * s3_ref[s]

        # 'cross' split made contiguous by column-permuting Conv2dZeros params at prep time
        shift = h[:, :Cp]
        log_scale = _log_sigmoid(h[:, Cp:] + 2.0)
        z2 = (z2 + shift) * jnp.exp(log_scale)
        ld = ld + jnp.sum(log_scale, axis=-1, keepdims=True)

    if has_split:
        # Split2d prior: Conv2dZeros(3x3) on z1 -> (mean, logs); Gaussian logp(z2)
        h = conv(z1, wsp_ref[...], pad1_ref, Cin=Cp)
        h = (h + bsp_ref[...]) * ssp_ref[...]
        mean = h[:, :Cp]
        logs = h[:, Cp:]
        ll = -0.5 * (2.0 * logs + (z2 - mean) ** 2 * jnp.exp(-2.0 * logs)
                     + math.log(2.0 * math.pi))
        ld = ld + jnp.sum(ll, axis=-1, keepdims=True)
        zo_ref[...] = z1.reshape(BT, HW, Cp)
    else:
        # two slice stores instead of a concatenate
        zo_ref[:, :, :Cp] = z1.reshape(BT, HW, Cp)
        zo_ref[:, :, Cp:] = z2.reshape(BT, HW, Cp)

    ld_ref[...] = ld.reshape(BT, HW, 1)


# ----------------------------------------------------------------------------- wrapper

def flow_level_pallas(zf, ops):
    """Run one whole flow level (K FlowSteps + optional Split2d) as a single pallas_call."""
    B, HW, C = zf.shape
    H, W, hc, K = ops['H'], ops['W'], ops['hc'], ops['K']
    Cp = C // 2
    has_split = 'wsp' in ops
    Cout = Cp if has_split else C
    G = _guard(W)
    BT = _pick_batch_tile(B)

    kern = functools.partial(_level_kernel, H=H, W=W, C=C, hc=hc, K=K, BT=BT,
                             has_split=has_split)

    w_names = ['wai', 'bai', 'w1', 'b1', 's1', 'w2', 'b2', 's2', 'w3', 'b3', 's3']
    if has_split:
        w_names += ['wsp', 'bsp', 'ssp']
    w_args = [ops[n] for n in w_names]

    zo, ldpix = pl.pallas_call(
        kern,
        grid=(B // BT,),
        out_shape=(jax.ShapeDtypeStruct((B, HW, Cout), jnp.float32),
                   jax.ShapeDtypeStruct((B, HW, 1), jnp.float32)),
        in_specs=[pl.BlockSpec((BT, HW, C), lambda b: (b, 0, 0))]
                 + [_rep_spec(a.shape) for a in w_args],
        out_specs=(pl.BlockSpec((BT, HW, Cout), lambda b: (b, 0, 0)),
                   pl.BlockSpec((BT, HW, 1), lambda b: (b, 0, 0))),
        scratch_shapes=[pltpu.VMEM((BT, HW + 2 * G, Cp), jnp.float32),
                        pltpu.VMEM((BT, HW + 2 * G, hc), jnp.float32)],
        compiler_params=pltpu.CompilerParams(dimension_semantics=("parallel",)),
    )(zf, *w_args)

    return zo, jnp.sum(ldpix[..., 0], axis=-1)


# ----------------------------------------------------------------------------- parameter prep
# Hoisted out of the jit'd forward: run once (eagerly) per parameter set.

def _cross_perm(C):
    """Permutation that turns split_feature(., 'cross') into contiguous channel halves."""
    return np.concatenate([np.arange(0, C, 2), np.arange(1, C, 2)])


def _prep_level(level, C, H, W, hidden_channels):
    Cp = C // 2
    hc = hidden_channels
    K = len(level['steps'])
    perm = _cross_perm(C)
    names = ('wai', 'bai', 'w1', 'b1', 's1', 'w2', 'b2', 's2', 'w3', 'b3', 's3')
    acc = {n: [] for n in names}
    ld_const = jnp.zeros((), jnp.float32)
    for step in level['steps']:
        s_an = jnp.exp(step['an_logs'])
        # fold ActNorm2d into the invertible 1x1 conv:  ((z + b)*s) @ W^T = z @ W' + b'
        acc['wai'].append(s_an[:, None] * step['inv_w'].T)                       # (C, C)
        acc['bai'].append(((step['an_bias'] * s_an) @ step['inv_w'].T).reshape(1, C))
        acc['w1'].append(step['c1_w'].reshape(9 * Cp, hc))                       # im2col layout
        acc['b1'].append(step['c1_bias'].reshape(1, hc))
        acc['s1'].append(jnp.exp(step['c1_logs']).reshape(1, hc))
        acc['w2'].append(step['c2_w'])
        acc['b2'].append(step['c2_bias'].reshape(1, hc))
        acc['s2'].append(jnp.exp(step['c2_logs']).reshape(1, hc))
        acc['w3'].append(step['c3_w'].reshape(9 * hc, C)[:, perm])               # 'cross' -> contiguous
        acc['b3'].append(step['c3_b'][perm].reshape(1, C))
        acc['s3'].append(jnp.exp(3.0 * step['c3_logs'])[perm].reshape(1, C))
        # data-independent logdet terms of ActNorm2d and InvertibleConv1x1
        ld_const = ld_const + (H * W) * (jnp.sum(step['an_logs'])
                                         + jnp.linalg.slogdet(step['inv_w'])[1])
    ops = {n: jnp.stack(v).astype(jnp.float32) for n, v in acc.items()}
    ops.update(H=H, W=W, hc=hc, K=K, ld_const=ld_const.astype(jnp.float32))
    if 'split' in level:
        sp = level['split']
        ops['wsp'] = sp['w'].reshape(9 * Cp, C)[:, perm].astype(jnp.float32)
        ops['bsp'] = sp['b'][perm].reshape(1, C).astype(jnp.float32)
        ops['ssp'] = jnp.exp(3.0 * sp['logs'])[perm].reshape(1, C).astype(jnp.float32)
    return ops


def prepare_flownet(params, image_shape, hidden_channels):
    H, W, C = image_shape
    levels = []
    for level in params:
        C, H, W = C * 4, H // 2, W // 2
        levels.append(_prep_level(level, C, H, W, hidden_channels))
        if 'split' in level:
            C = C // 2
    return levels


# ----------------------------------------------------------------------------- glue

def squeeze2d_nhwc(x, factor=2):
    # matches NCHW squeeze2d channel ordering: out_c = c*factor^2 + fh*factor + fw
    B, H, W, C = x.shape
    x = x.reshape(B, H // factor, factor, W // factor, factor, C)
    x = jnp.transpose(x, (0, 1, 3, 5, 2, 4))
    return x.reshape(B, H // factor, W // factor, C * factor * factor)


def init_params(key, image_shape, hidden_channels, K, L):
    # TODO(synk): ActNorm2d's data-dependent init is not reproduced; params are synthetic.
    H, W, C = image_shape
    params = []
    for l in range(L):
        C, H, W = C * 4, H // 2, W // 2
        steps = []
        for _ in range(K):
            key, *ks = jax.random.split(key, 13)
            ks = iter(ks)
            q, _ = jnp.linalg.qr(jax.random.normal(next(ks), (C, C), jnp.float32))
            step = {
                'an_bias': 0.05 * jax.random.normal(next(ks), (C,), jnp.float32),
                'an_logs': 0.05 * jax.random.normal(next(ks), (C,), jnp.float32),
                'inv_w': q,
                'c1_w': 0.05 * jax.random.normal(next(ks), (3, 3, C // 2, hidden_channels), jnp.float32),
                'c1_bias': 0.05 * jax.random.normal(next(ks), (hidden_channels,), jnp.float32),
                'c1_logs': 0.05 * jax.random.normal(next(ks), (hidden_channels,), jnp.float32),
                'c2_w': 0.05 * jax.random.normal(next(ks), (hidden_channels, hidden_channels), jnp.float32),
                'c2_bias': 0.05 * jax.random.normal(next(ks), (hidden_channels,), jnp.float32),
                'c2_logs': 0.05 * jax.random.normal(next(ks), (hidden_channels,), jnp.float32),
                'c3_w': 0.05 * jax.random.normal(next(ks), (3, 3, hidden_channels, C), jnp.float32),
                'c3_b': 0.05 * jax.random.normal(next(ks), (C,), jnp.float32),
                'c3_logs': 0.05 * jax.random.normal(next(ks), (C,), jnp.float32),
            }
            steps.append(step)
        level = {'steps': steps}
        if l < L - 1:
            key, k1, k2, k3 = jax.random.split(key, 4)
            level['split'] = {
                'w': 0.05 * jax.random.normal(k1, (3, 3, C // 2, C), jnp.float32),
                'b': 0.05 * jax.random.normal(k2, (C,), jnp.float32),
                'logs': 0.05 * jax.random.normal(k3, (C,), jnp.float32),
            }
            C = C // 2
        params.append(level)
    return params


# ----------------------------------------------------------------------------- FlowNet encode

def flownet_encode(levels, x, y_onehot, logdet=0.0):
    # x: (B, H, W, C) NHWC.  y_onehot unused (extra_condition=False, sp_condition=False).
    B = x.shape[0]
    z = x.astype(jnp.float32)
    ld = jnp.full((B,), logdet, jnp.float32)
    for ops in levels:
        z = squeeze2d_nhwc(z, 2)                       # SqueezeLayer(factor=2)
        _, H, W, C = z.shape
        zf = z.reshape(B, H * W, C)                    # lane-dense flat layout for the kernel
        zf, dld = flow_level_pallas(zf, ops)           # K FlowSteps (+ Split2d) fused
        ld = ld + dld + ops['ld_const']
        z = zf.reshape(B, H, W, zf.shape[-1])
    return z, ld


# ----------------------------------------------------------------------------- pure-JAX reference

def _conv3x3_ref(x, w, b, s, relu=False):
    B, H, W, Cin = x.shape
    Cout = w.shape[-1]
    xp = jnp.pad(x, ((0, 0), (1, 1), (1, 1), (0, 0)))
    cols = [xp[:, kh:kh + H, kw:kw + W, :] for kh in range(3) for kw in range(3)]
    xcol = jnp.concatenate(cols, axis=-1).reshape(B * H * W, 9 * Cin)
    y = (xcol @ w.reshape(9 * Cin, Cout) + b) * s
    if relu:
        y = jnp.maximum(y, 0.0)
    return y.reshape(B, H, W, Cout)


def flownet_reference(params, x, logdet=0.0):
    B = x.shape[0]
    z = x.astype(jnp.float32)
    ld = jnp.full((B,), logdet, jnp.float32)
    for level in params:
        z = squeeze2d_nhwc(z, 2)
        _, H, W, C = z.shape
        pixels = H * W
        for step in level['steps']:
            z = (z + step['an_bias']) * jnp.exp(step['an_logs'])
            ld = ld + pixels * jnp.sum(step['an_logs'])
            z = jnp.einsum('bhwi,oi->bhwo', z, step['inv_w'])
            ld = ld + pixels * jnp.linalg.slogdet(step['inv_w'])[1]
            z1, z2 = z[..., :C // 2], z[..., C // 2:]
            h = _conv3x3_ref(z1, step['c1_w'], step['c1_bias'], jnp.exp(step['c1_logs']), relu=True)
            h = jnp.maximum((jnp.einsum('bhwi,io->bhwo', h, step['c2_w'])
                             + step['c2_bias']) * jnp.exp(step['c2_logs']), 0.0)
            h = _conv3x3_ref(h, step['c3_w'], step['c3_b'], jnp.exp(3.0 * step['c3_logs']), relu=False)
            shift, sraw = h[..., 0::2], h[..., 1::2]
            scale = jax.nn.sigmoid(sraw + 2.0)
            z2 = (z2 + shift) * scale
            ld = ld + jnp.sum(jnp.log(scale), axis=(1, 2, 3))
            z = jnp.concatenate([z1, z2], axis=-1)
        if 'split' in level:
            sp = level['split']
            z1, z2 = z[..., :C // 2], z[..., C // 2:]
            h = _conv3x3_ref(z1, sp['w'], sp['b'], jnp.exp(3.0 * sp['logs']), relu=False)
            mean, logs = h[..., 0::2], h[..., 1::2]
            ll = -0.5 * (2.0 * logs + (z2 - mean) ** 2 * jnp.exp(-2.0 * logs)
                         + math.log(2.0 * math.pi))
            ld = ld + jnp.sum(ll, axis=(1, 2, 3))
            z = z1
    return z, ld


# ----------------------------------------------------------------------------- main

if __name__ == "__main__":
    key = jax.random.PRNGKey(0)
    pkey, xkey = jax.random.split(key)

    B = 2
    H, W, C = 16, 16, 4          # image_shape = (H, W, C)
    hidden_channels = 32
    K, L = 2, 2
    num_classes = 10

    params = init_params(pkey, (H, W, C), hidden_channels, K, L)
    levels = prepare_flownet(params, (H, W, C), hidden_channels)   # hoisted prep: eager, once

    # layout: NHWC input (equivalent PyTorch NCHW input would be x.transpose(0, 3, 1, 2))
    x = jax.random.normal(xkey, (B, H, W, C), jnp.float32)
    y_onehot = jax.nn.one_hot(jnp.arange(B) % num_classes, num_classes, dtype=jnp.float32)

    encode = jax.jit(lambda xx, yy: flownet_encode(levels, xx, yy, 0.0))
    z, logdet = encode(x, y_onehot)
    jax.block_until_ready((z, logdet))

    # level 1: C 4->16, 16x16->8x8, split -> 8 ch; level 2: 8->32 ch, 8x8->4x4
    assert z.shape == (B, 4, 4, 32), z.shape
    assert logdet.shape == (B,), logdet.shape
    assert bool(jnp.all(jnp.isfinite(z))) and bool(jnp.all(jnp.isfinite(logdet)))

    # cross-check against a pure-JAX f32 reference of the same forward pass
    z_ref, ld_ref = jax.jit(flownet_reference)(params, x, 0.0)
    assert bool(jnp.allclose(z, z_ref, rtol=5e-2, atol=5e-2)), \
        float(jnp.max(jnp.abs(z - z_ref)))
    assert bool(jnp.allclose(logdet, ld_ref, rtol=5e-2, atol=1.0)), \
        (np.asarray(logdet), np.asarray(ld_ref))

    print("KERNEL_OK")
</pallas_src>

<mosaic_0001>
module attributes {stable_mosaic.version = 11 : i64} {
  func.func @_level_kernel(%arg0: i32, %arg1: memref<1x64x16xf32, #tpu.memory_space<vmem>>, %arg2: memref<2x16x16xf32, #tpu.memory_space<vmem>>, %arg3: memref<2x1x16xf32, #tpu.memory_space<vmem>>, %arg4: memref<2x72x32xf32, #tpu.memory_space<vmem>>, %arg5: memref<2x1x32xf32, #tpu.memory_space<vmem>>, %arg6: memref<2x1x32xf32, #tpu.memory_space<vmem>>, %arg7: memref<2x32x32xf32, #tpu.memory_space<vmem>>, %arg8: memref<2x1x32xf32, #tpu.memory_space<vmem>>, %arg9: memref<2x1x32xf32, #tpu.memory_space<vmem>>, %arg10: memref<2x288x16xf32, #tpu.memory_space<vmem>>, %arg11: memref<2x1x16xf32, #tpu.memory_space<vmem>>, %arg12: memref<2x1x16xf32, #tpu.memory_space<vmem>>, %arg13: memref<72x16xf32, #tpu.memory_space<vmem>>, %arg14: memref<1x16xf32, #tpu.memory_space<vmem>>, %arg15: memref<1x16xf32, #tpu.memory_space<vmem>>, %arg16: memref<1x64x8xf32, #tpu.memory_space<vmem>>, %arg17: memref<1x64x1xf32, #tpu.memory_space<vmem>>, %arg18: memref<1x96x8xf32, #tpu.memory_space<vmem>>, %arg19: memref<1x96x32xf32, #tpu.memory_space<vmem>>) attributes {dimension_semantics = [#tpu.dimension_semantics<parallel>], iteration_bounds = array<i64: 2>, scalar_prefetch = 0 : i64, scratch_operands = 2 : i64, tpu.core_type = #tpu.core_type<tc>, window_params = [{transform_indices = @transform_0, window_bounds = array<i64: 1, 64, 16>}, {pipeline_mode = #tpu.pipeline_mode<synchronous>, transform_indices = @transform_1, window_bounds = array<i64: 2, 16, 16>}, {pipeline_mode = #tpu.pipeline_mode<synchronous>, transform_indices = @transform_2, window_bounds = array<i64: 2, 1, 16>}, {pipeline_mode = #tpu.pipeline_mode<synchronous>, transform_indices = @transform_3, window_bounds = array<i64: 2, 72, 32>}, {pipeline_mode = #tpu.pipeline_mode<synchronous>, transform_indices = @transform_4, window_bounds = array<i64: 2, 1, 32>}, {pipeline_mode = #tpu.pipeline_mode<synchronous>, transform_indices = @transform_5, window_bounds = array<i64: 2, 1, 32>}, {pipeline_mode = #tpu.pipeline_mode<synchronous>, transform_indices = @transform_6, window_bounds = array<i64: 2, 32, 32>}, {pipeline_mode = #tpu.pipeline_mode<synchronous>, transform_indices = @transform_7, window_bounds = array<i64: 2, 1, 32>}, {pipeline_mode = #tpu.pipeline_mode<synchronous>, transform_indices = @transform_8, window_bounds = array<i64: 2, 1, 32>}, {pipeline_mode = #tpu.pipeline_mode<synchronous>, transform_indices = @transform_9, window_bounds = array<i64: 2, 288, 16>}, {pipeline_mode = #tpu.pipeline_mode<synchronous>, transform_indices = @transform_10, window_bounds = array<i64: 2, 1, 16>}, {pipeline_mode = #tpu.pipeline_mode<synchronous>, transform_indices = @transform_11, window_bounds = array<i64: 2, 1, 16>}, {pipeline_mode = #tpu.pipeline_mode<synchronous>, transform_indices = @transform_12, window_bounds = array<i64: 72, 16>}, {pipeline_mode = #tpu.pipeline_mode<synchronous>, transform_indices = @transform_13, window_bounds = array<i64: 1, 16>}, {pipeline_mode = #tpu.pipeline_mode<synchronous>, transform_indices = @transform_14, window_bounds = array<i64: 1, 16>}, {transform_indices = @transform_15, window_bounds = array<i64: 1, 64, 8>}, {transform_indices = @transform_16, window_bounds = array<i64: 1, 64, 1>}]} {
    %cst = arith.constant 0.000000e+00 : f32
    %0 = vector.broadcast %cst : f32 to vector<1x16x8xf32>
    %c0 = arith.constant 0 : index
    %c0_0 = arith.constant 0 : index
    %c0_1 = arith.constant 0 : index
    %1 = vector.load %arg18[%c0, %c0_0, %c0_1] : memref<1x96x8xf32, #tpu.memory_space<vmem>>, vector<1x16x8xf32>
    tpu.vector_store %arg18[%c0, %c0_0, %c0_1], %0 {strides = array<i32>} : memref<1x96x8xf32, #tpu.memory_space<vmem>>, vector<1x16x8xf32>,
    %cst_2 = arith.constant 0.000000e+00 : f32
    %2 = vector.broadcast %cst_2 : f32 to vector<1x16x8xf32>
    %c0_3 = arith.constant 0 : index
    %c80 = arith.constant 80 : index
    %c0_4 = arith.constant 0 : index
    %3 = vector.load %arg18[%c0_3, %c80, %c0_4] : memref<1x96x8xf32, #tpu.memory_space<vmem>>, vector<1x16x8xf32>
    tpu.vector_store %arg18[%c0_3, %c80, %c0_4], %2 {strides = array<i32>} : memref<1x96x8xf32, #tpu.memory_space<vmem>>, vector<1x16x8xf32>,
    %cst_5 = arith.constant 0.000000e+00 : f32
    %4 = vector.broadcast %cst_5 : f32 to vector<1x16x32xf32>
    %c0_6 = arith.constant 0 : index
    %c0_7 = arith.constant 0 : index
    %c0_8 = arith.constant 0 : index
    %5 = vector.load %arg19[%c0_6, %c0_7, %c0_8] : memref<1x96x32xf32, #tpu.memory_space<vmem>>, vector<1x16x32xf32>
    tpu.vector_store %arg19[%c0_6, %c0_7, %c0_8], %4 {strides = array<i32>} : memref<1x96x32xf32, #tpu.memory_space<vmem>>, vector<1x16x32xf32>,
    %cst_9 = arith.constant 0.000000e+00 : f32
    %6 = vector.broadcast %cst_9 : f32 to vector<1x16x32xf32>
    %c0_10 = arith.constant 0 : index
    %c80_11 = arith.constant 80 : index
    %c0_12 = arith.constant 0 : index
    %7 = vector.load %arg19[%c0_10, %c80_11, %c0_12] : memref<1x96x32xf32, #tpu.memory_space<vmem>>, vector<1x16x32xf32>
    tpu.vector_store %arg19[%c0_10, %c80_11, %c0_12], %6 {strides = array<i32>} : memref<1x96x32xf32, #tpu.memory_space<vmem>>, vector<1x16x32xf32>,
    %8 = tpu.iota {dimensions = array<i32: 1>} : vector<1x64x1xi32>
    %c8_i32 = arith.constant 8 : i32
    %c0_i32 = arith.constant 0 : i32
    %9 = arith.cmpi eq, %c8_i32, %c0_i32 : i32
    %c1_i32 = arith.constant 1 : i32
    %10 = arith.select %9, %c1_i32, %c8_i32 : i32
    %11 = vector.broadcast %10 : i32 to vector<1x64x1xi32>
    %12 = arith.remsi %8, %11 : vector<1x64x1xi32>
    %c0_i32_13 = arith.constant 0 : i32
    %13 = vector.broadcast %c0_i32_13 : i32 to vector<1x64x1xi32>
    %14 = arith.cmpi ne, %12, %13 : vector<1x64x1xi32>
    %c0_i32_14 = arith.constant 0 : i32
    %15 = vector.broadcast %c0_i32_14 : i32 to vector<1x64x1xi32>
    %16 = arith.cmpi slt, %12, %15 : vector<1x64x1xi32>
    %c0_i32_15 = arith.constant 0 : i32
    %17 = arith.cmpi slt, %10, %c0_i32_15 : i32
    %18 = vector.broadcast %17 : i1 to vector<1x64x1xi1>
    %19 = vector.broadcast %18 : vector<1x64x1xi1> to vector<1x64x1xi1>
    %20 = arith.xori %16, %19 : vector<1x64x1xi1>
    %21 = arith.andi %20, %14 : vector<1x64x1xi1>
    %22 = vector.broadcast %10 : i32 to vector<1x64x1xi32>
    %23 = arith.addi %12, %22 : vector<1x64x1xi32>
    %24 = arith.select %21, %23, %12 : vector<1x64x1xi1>, vector<1x64x1xi32>
    %c0_i32_16 = arith.constant 0 : i32
    %25 = vector.broadcast %c0_i32_16 : i32 to vector<1x64x1xi32>
    %26 = arith.cmpi ne, %24, %25 : vector<1x64x1xi32>
    %27 = arith.extui %26 : vector<1x64x1xi1> to vector<1x64x1xi32>
    %28 = arith.sitofp %27 : vector<1x64x1xi32> to vector<1x64x1xf32>
    %c7_i32 = arith.constant 7 : i32
    %29 = vector.broadcast %c7_i32 : i32 to vector<1x64x1xi32>
    %30 = arith.cmpi ne, %24, %29 : vector<1x64x1xi32>
    %31 = arith.extui %30 : vector<1x64x1xi1> to vector<1x64x1xi32>
    %32 = arith.sitofp %31 : vector<1x64x1xi32> to vector<1x64x1xf32>
    %c0_17 = arith.constant 0 : index
    %c0_18 = arith.constant 0 : index
    %c0_19 = arith.constant 0 : index
    %33 = vector.load %arg1[%c0_17, %c0_18, %c0_19] : memref<1x64x16xf32, #tpu.memory_space<vmem>>, vector<1x64x16xf32>
    %34 = vector.shape_cast %33 : vector<1x64x16xf32> to vector<64x16xf32>
    %35 = vector.extract_strided_slice %34 {offsets = [0, 0], sizes = [64, 8], strides = [1, 1]} : vector<64x16xf32> to vector<64x8xf32>
    %36 = vector.extract_strided_slice %34 {offsets = [0, 8], sizes = [64, 8], strides = [1, 1]} : vector<64x16xf32> to vector<64x8xf32>
    %cst_20 = arith.constant 0.000000e+00 : f32
    %37 = vector.broadcast %cst_20 : f32 to vector<64x1xf32>
    %c0_21 = arith.constant 0 : index
    %c0_22 = arith.constant 0 : index
    %c0_23 = arith.constant 0 : index
    %38 = vector.load %arg2[%c0_21, %c0_22, %c0_23] : memref<2x16x16xf32, #tpu.memory_space<vmem>>, vector<1x16x16xf32>
    %39 = vector.shape_cast %38 : vector<1x16x16xf32> to vector<16x16xf32>
    %40 = vector.extract_strided_slice %39 {offsets = [0, 0], sizes = [8, 16], strides = [1, 1]} : vector<16x16xf32> to vector<8x16xf32>
    %cst_24 = arith.constant dense<0.000000e+00> : vector<64x16xf32>
    %41 = tpu.matmul %35, %40, %cst_24 {dimension_numbers = #tpu.dot_dimension_numbers<[1], [0], [0], [1], [0, 0, 1, 1], [], []>} : vector<64x8xf32>, vector<8x16xf32>, vector<64x16xf32> -> vector<64x16xf32>
    %42 = vector.extract_strided_slice %39 {offsets = [8, 0], sizes = [8, 16], strides = [1, 1]} : vector<16x16xf32> to vector<8x16xf32>
    %cst_25 = arith.constant dense<0.000000e+00> : vector<64x16xf32>
    %43 = tpu.matmul %36, %42, %cst_25 {dimension_numbers = #tpu.dot_dimension_numbers<[1], [0], [0], [1], [0, 0, 1, 1], [], []>} : vector<64x8xf32>, vector<8x16xf32>, vector<64x16xf32> -> vector<64x16xf32>
    %44 = arith.addf %41, %43 : vector<64x16xf32>
    %c0_26 = arith.constant 0 : index
    %c0_27 = arith.constant 0 : index
    %c0_28 = arith.constant 0 : index
    %45 = vector.load %arg3[%c0_26, %c0_27, %c0_28] : memref<2x1x16xf32, #tpu.memory_space<vmem>>, vector<1x1x16xf32>
    %46 = vector.shape_cast %45 : vector<1x1x16xf32> to vector<1x16xf32>
    %47 = vector.broadcast %46 : vector<1x16xf32> to vector<64x16xf32>
    %48 = arith.addf %44, %47 : vector<64x16xf32>
    %49 = vector.extract_strided_slice %48 {offsets = [0, 0], sizes = [64, 8], strides = [1, 1]} : vector<64x16xf32> to vector<64x8xf32>
    %50 = vector.extract_strided_slice %48 {offsets = [0, 8], sizes = [64, 8], strides = [1, 1]} : vector<64x16xf32> to vector<64x8xf32>
    %c0_29 = arith.constant 0 : index
    %c0_30 = arith.constant 0 : index
    %c0_31 = arith.constant 0 : index
    %51 = vector.load %arg4[%c0_29, %c0_30, %c0_31] : memref<2x72x32xf32, #tpu.memory_space<vmem>>, vector<1x72x32xf32>
    %52 = vector.shape_cast %51 : vector<1x72x32xf32> to vector<72x32xf32>
    %53 = vector.shape_cast %49 : vector<64x8xf32> to vector<1x64x8xf32>
    %c0_32 = arith.constant 0 : index
    %c16 = arith.constant 16 : index
    %c0_33 = arith.constant 0 : index
    %54 = vector.load %arg18[%c0_32, %c16, %c0_33] : memref<1x96x8xf32, #tpu.memory_space<vmem>>, vector<1x64x8xf32>
    tpu.vector_store %arg18[%c0_32, %c16, %c0_33], %53 {strides = array<i32>} : memref<1x96x8xf32, #tpu.memory_space<vmem>>, vector<1x64x8xf32>,
    %c0_34 = arith.constant 0 : index
    %c7 = arith.constant 7 : index
    %c0_35 = arith.constant 0 : index
    %55 = vector.load %arg18[%c0_34, %c7, %c0_35] : memref<1x96x8xf32, #tpu.memory_space<vmem>>, vector<1x64x8xf32>
    %56 = vector.broadcast %28 : vector<1x64x1xf32> to vector<1x64x8xf32>
    %57 = arith.mulf %55, %56 : vector<1x64x8xf32>
    %58 = vector.shape_cast %57 : vector<1x64x8xf32> to vector<64x8xf32>
    %c0_36 = arith.constant 0 : index
    %c8 = arith.constant 8 : index
    %c0_37 = arith.constant 0 : index
    %59 = vector.load %arg18[%c0_36, %c8, %c0_37] : memref<1x96x8xf32, #tpu.memory_space<vmem>>, vector<1x64x8xf32>
    %60 = vector.shape_cast %59 : vector<1x64x8xf32> to vector<64x8xf32>
    %c0_38 = arith.constant 0 : index
    %c9 = arith.constant 9 : index
    %c0_39 = arith.constant 0 : index
    %61 = vector.load %arg18[%c0_38, %c9, %c0_39] : memref<1x96x8xf32, #tpu.memory_space<vmem>>, vector<1x64x8xf32>
    %62 = vector.broadcast %32 : vector<1x64x1xf32> to vector<1x64x8xf32>
    %63 = arith.mulf %61, %62 : vector<1x64x8xf32>
    %64 = vector.shape_cast %63 : vector<1x64x8xf32> to vector<64x8xf32>
    %c0_40 = arith.constant 0 : index
    %c15 = arith.constant 15 : index
    %c0_41 = arith.constant 0 : index
    %65 = vector.load %arg18[%c0_40, %c15, %c0_41] : memref<1x96x8xf32, #tpu.memory_space<vmem>>, vector<1x64x8xf32>
    %66 = vector.broadcast %28 : vector<1x64x1xf32> to vector<1x64x8xf32>
    %67 = arith.mulf %65, %66 : vector<1x64x8xf32>
    %68 = vector.shape_cast %67 : vector<1x64x8xf32> to vector<64x8xf32>
    %c0_42 = arith.constant 0 : index
    %c16_43 = arith.constant 16 : index
    %c0_44 = arith.constant 0 : index
    %69 = vector.load %arg18[%c0_42, %c16_43, %c0_44] : memref<1x96x8xf32, #tpu.memory_space<vmem>>, vector<1x64x8xf32>
    %70 = vector.shape_cast %69 : vector<1x64x8xf32> to vector<64x8xf32>
    %c0_45 = arith.constant 0 : index
    %c17 = arith.constant 17 : index
    %c0_46 = arith.constant 0 : index
    %71 = vector.load %arg18[%c0_45, %c17, %c0_46] : memref<1x96x8xf32, #tpu.memory_space<vmem>>, vector<1x64x8xf32>
    %72 = vector.broadcast %32 : vector<1x64x1xf32> to vector<1x64x8xf32>
    %73 = arith.mulf %71, %72 : vector<1x64x8xf32>
    %74 = vector.shape_cast %73 : vector<1x64x8xf32> to vector<64x8xf32>
    %c0_47 = arith.constant 0 : index
    %c23 = arith.constant 23 : index
    %c0_48 = arith.constant 0 : index
    %75 = vector.load %arg18[%c0_47, %c23, %c0_48] : memref<1x96x8xf32, #tpu.memory_space<vmem>>, vector<1x64x8xf32>
    %76 = vector.broadcast %28 : vector<1x64x1xf32> to vector<1x64x8xf32>
    %77 = arith.mulf %75, %76 : vector<1x64x8xf32>
    %78 = vector.shape_cast %77 : vector<1x64x8xf32> to vector<64x8xf32>
    %c0_49 = arith.constant 0 : index
    %c24 = arith.constant 24 : index
    %c0_50 = arith.constant 0 : index
    %79 = vector.load %arg18[%c0_49, %c24, %c0_50] : memref<1x96x8xf32, #tpu.memory_space<vmem>>, vector<1x64x8xf32>
    %80 = vector.shape_cast %79 : vector<1x64x8xf32> to vector<64x8xf32>
    %c0_51 = arith.constant 0 : index
    %c25 = arith.constant 25 : index
    %c0_52 = arith.constant 0 : index
    %81 = vector.load %arg18[%c0_51, %c25, %c0_52] : memref<1x96x8xf32, #tpu.memory_space<vmem>>, vector<1x64x8xf32>
    %82 = vector.broadcast %32 : vector<1x64x1xf32> to vector<1x64x8xf32>
    %83 = arith.mulf %81, %82 : vector<1x64x8xf32>
    %84 = vector.shape_cast %83 : vector<1x64x8xf32> to vector<64x8xf32>
    %85 = tpu.concatenate %58, %60, %64, %68, %70, %74, %78, %80, %84 in 1 : vector<64x8xf32>, vector<64x8xf32>, vector<64x8xf32>, vector<64x8xf32>, vector<64x8xf32>, vector<64x8xf32>, vector<64x8xf32>, vector<64x8xf32>, vector<64x8xf32> -> vector<64x72xf32>
    %cst_53 = arith.constant dense<0.000000e+00> : vector<64x32xf32>
    %86 = tpu.matmul %85, %52, %cst_53 {dimension_numbers = #tpu.dot_dimension_numbers<[1], [0], [0], [1], [0, 0, 1, 1], [], []>} : vector<64x72xf32>, vector<72x32xf32>, vector<64x32xf32> -> vector<64x32xf32>
    %c0_54 = arith.constant 0 : index
    %c0_55 = arith.constant 0 : index
    %c0_56 = arith.constant 0 : index
    %87 = vector.load %arg5[%c0_54, %c0_55, %c0_56] : memref<2x1x32xf32, #tpu.memory_space<vmem>>, vector<1x1x32xf32>
    %88 = vector.shape_cast %87 : vector<1x1x32xf32> to vector<1x32xf32>
    %89 = vector.broadcast %88 : vector<1x32xf32> to vector<64x32xf32>
    %90 = arith.addf %86, %89 : vector<64x32xf32>
    %c0_57 = arith.constant 0 : index
    %c0_58 = arith.constant 0 : index
    %c0_59 = arith.constant 0 : index
    %91 = vector.load %arg6[%c0_57, %c0_58, %c0_59] : memref<2x1x32xf32, #tpu.memory_space<vmem>>, vector<1x1x32xf32>
    %92 = vector.shape_cast %91 : vector<1x1x32xf32> to vector<1x32xf32>
    %93 = vector.broadcast %92 : vector<1x32xf32> to vector<64x32xf32>
    %94 = arith.mulf %90, %93 : vector<64x32xf32>
    %cst_60 = arith.constant 0.000000e+00 : f32
    %95 = vector.broadcast %cst_60 : f32 to vector<64x32xf32>
    %96 = arith.maximumf %94, %95 : vector<64x32xf32>
    %c0_61 = arith.constant 0 : index
    %c0_62 = arith.constant 0 : index
    %c0_63 = arith.constant 0 : index
    %97 = vector.load %arg7[%c0_61, %c0_62, %c0_63] : memref<2x32x32xf32, #tpu.memory_space<vmem>>, vector<1x32x32xf32>
    %98 = vector.shape_cast %97 : vector<1x32x32xf32> to vector<32x32xf32>
    %cst_64 = arith.constant dense<0.000000e+00> : vector<64x32xf32>
    %99 = tpu.matmul %96, %98, %cst_64 {dimension_numbers = #tpu.dot_dimension_numbers<[1], [0], [0], [1], [0, 0, 1, 1], [], []>} : vector<64x32xf32>, vector<32x32xf32>, vector<64x32xf32> -> vector<64x32xf32>
    %c0_65 = arith.constant 0 : index
    %c0_66 = arith.constant 0 : index
    %c0_67 = arith.constant 0 : index
    %100 = vector.load %arg8[%c0_65, %c0_66, %c0_67] : memref<2x1x32xf32, #tpu.memory_space<vmem>>, vector<1x1x32xf32>
    %101 = vector.shape_cast %100 : vector<1x1x32xf32> to vector<1x32xf32>
    %102 = vector.broadcast %101 : vector<1x32xf32> to vector<64x32xf32>
    %103 = arith.addf %99, %102 : vector<64x32xf32>
    %c0_68 = arith.constant 0 : index
    %c0_69 = arith.constant 0 : index
    %c0_70 = arith.constant 0 : index
    %104 = vector.load %arg9[%c0_68, %c0_69, %c0_70] : memref<2x1x32xf32, #tpu.memory_space<vmem>>, vector<1x1x32xf32>
    %105 = vector.shape_cast %104 : vector<1x1x32xf32> to vector<1x32xf32>
    %106 = vector.broadcast %105 : vector<1x32xf32> to vector<64x32xf32>
    %107 = arith.mulf %103, %106 : vector<64x32xf32>
    %cst_71 = arith.constant 0.000000e+00 : f32
    %108 = vector.broadcast %cst_71 : f32 to vector<64x32xf32>
    %109 = arith.maximumf %107, %108 : vector<64x32xf32>
    %c0_72 = arith.constant 0 : index
    %c0_73 = arith.constant 0 : index
    %c0_74 = arith.constant 0 : index
    %110 = vector.load %arg10[%c0_72, %c0_73, %c0_74] : memref<2x288x16xf32, #tpu.memory_space<vmem>>, vector<1x288x16xf32>
    %111 = vector.shape_cast %110 : vector<1x288x16xf32> to vector<288x16xf32>
    %112 = vector.shape_cast %109 : vector<64x32xf32> to vector<1x64x32xf32>
    %c0_75 = arith.constant 0 : index
    %c16_76 = arith.constant 16 : index
    %c0_77 = arith.constant 0 : index
    %113 = vector.load %arg19[%c0_75, %c16_76, %c0_77] : memref<1x96x32xf32, #tpu.memory_space<vmem>>, vector<1x64x32xf32>
    tpu.vector_store %arg19[%c0_75, %c16_76, %c0_77], %112 {strides = array<i32>} : memref<1x96x32xf32, #tpu.memory_space<vmem>>, vector<1x64x32xf32>,
    %c0_78 = arith.constant 0 : index
    %c7_79 = arith.constant 7 : index
    %c0_80 = arith.constant 0 : index
    %114 = vector.load %arg19[%c0_78, %c7_79, %c0_80] : memref<1x96x32xf32, #tpu.memory_space<vmem>>, vector<1x64x32xf32>
    %115 = vector.broadcast %28 : vector<1x64x1xf32> to vector<1x64x32xf32>
    %116 = arith.mulf %114, %115 : vector<1x64x32xf32>
    %117 = vector.shape_cast %116 : vector<1x64x32xf32> to vector<64x32xf32>
    %c0_81 = arith.constant 0 : index
    %c8_82 = arith.constant 8 : index
    %c0_83 = arith.constant 0 : index
    %118 = vector.load %arg19[%c0_81, %c8_82, %c0_83] : memref<1x96x32xf32, #tpu.memory_space<vmem>>, vector<1x64x32xf32>
    %119 = vector.shape_cast %118 : vector<1x64x32xf32> to vector<64x32xf32>
    %c0_84 = arith.constant 0 : index
    %c9_85 = arith.constant 9 : index
    %c0_86 = arith.constant 0 : index
    %120 = vector.load %arg19[%c0_84, %c9_85, %c0_86] : memref<1x96x32xf32, #tpu.memory_space<vmem>>, vector<1x64x32xf32>
    %121 = vector.broadcast %32 : vector<1x64x1xf32> to vector<1x64x32xf32>
    %122 = arith.mulf %120, %121 : vector<1x64x32xf32>
    %123 = vector.shape_cast %122 : vector<1x64x32xf32> to vector<64x32xf32>
    %c0_87 = arith.constant 0 : index
    %c15_88 = arith.constant 15 : index
    %c0_89 = arith.constant 0 : index
    %124 = vector.load %arg19[%c0_87, %c15_88, %c0_89] : memref<1x96x32xf32, #tpu.memory_space<vmem>>, vector<1x64x32xf32>
    %125 = vector.broadcast %28 : vector<1x64x1xf32> to vector<1x64x32xf32>
    %126 = arith.mulf %124, %125 : vector<1x64x32xf32>
    %127 = vector.shape_cast %126 : vector<1x64x32xf32> to vector<64x32xf32>
    %c0_90 = arith.constant 0 : index
    %c16_91 = arith.constant 16 : index
    %c0_92 = arith.constant 0 : index
    %128 = vector.load %arg19[%c0_90, %c16_91, %c0_92] : memref<1x96x32xf32, #tpu.memory_space<vmem>>, vector<1x64x32xf32>
    %129 = vector.shape_cast %128 : vector<1x64x32xf32> to vector<64x32xf32>
    %c0_93 = arith.constant 0 : index
    %c17_94 = arith.constant 17 : index
    %c0_95 = arith.constant 0 : index
    %130 = vector.load %arg19[%c0_93, %c17_94, %c0_95] : memref<1x96x32xf32, #tpu.memory_space<vmem>>, vector<1x64x32xf32>
    %131 = vector.broadcast %32 : vector<1x64x1xf32> to vector<1x64x32xf32>
    %132 = arith.mulf %130, %131 : vector<1x64x32xf32>
    %133 = vector.shape_cast %132 : vector<1x64x32xf32> to vector<64x32xf32>
    %c0_96 = arith.constant 0 : index
    %c23_97 = arith.constant 23 : index
    %c0_98 = arith.constant 0 : index
    %134 = vector.load %arg19[%c0_96, %c23_97, %c0_98] : memref<1x96x32xf32, #tpu.memory_space<vmem>>, vector<1x64x32xf32>
    %135 = vector.broadcast %28 : vector<1x64x1xf32> to vector<1x64x32xf32>
    %136 = arith.mulf %134, %135 : vector<1x64x32xf32>
    %137 = vector.shape_cast %136 : vector<1x64x32xf32> to vector<64x32xf32>
    %c0_99 = arith.constant 0 : index
    %c24_100 = arith.constant 24 : index
    %c0_101 = arith.constant 0 : index
    %138 = vector.load %arg19[%c0_99, %c24_100, %c0_101] : memref<1x96x32xf32, #tpu.memory_space<vmem>>, vector<1x64x32xf32>
    %139 = vector.shape_cast %138 : vector<1x64x32xf32> to vector<64x32xf32>
    %c0_102 = arith.constant 0 : index
    %c25_103 = arith.constant 25 : index
    %c0_104 = arith.constant 0 : index
    %140 = vector.load %arg19[%c0_102, %c25_103, %c0_104] : memref<1x96x32xf32, #tpu.memory_space<vmem>>, vector<1x64x32xf32>
    %141 = vector.broadcast %32 : vector<1x64x1xf32> to vector<1x64x32xf32>
    %142 = arith.mulf %140, %141 : vector<1x64x32xf32>
    %143 = vector.shape_cast %142 : vector<1x64x32xf32> to vector<64x32xf32>
    %144 = tpu.concatenate %117, %119, %123, %127, %129, %133, %137, %139, %143 in 1 : vector<64x32xf32>, vector<64x32xf32>, vector<64x32xf32>, vector<64x32xf32>, vector<64x32xf32>, vector<64x32xf32>, vector<64x32xf32>, vector<64x32xf32>, vector<64x32xf32> -> vector<64x288xf32>
    %cst_105 = arith.constant dense<0.000000e+00> : vector<64x16xf32>
    %145 = tpu.matmul %144, %111, %cst_105 {dimension_numbers = #tpu.dot_dimension_numbers<[1], [0], [0], [1], [0, 0, 1, 1], [], []>} : vector<64x288xf32>, vector<288x16xf32>, vector<64x16xf32> -> vector<64x16xf32>
    %c0_106 = arith.constant 0 : index
    %c0_107 = arith.constant 0 : index
    %c0_108 = arith.constant 0 : index
    %146 = vector.load %arg11[%c0_106, %c0_107, %c0_108] : memref<2x1x16xf32, #tpu.memory_space<vmem>>, vector<1x1x16xf32>
    %147 = vector.shape_cast %146 : vector<1x1x16xf32> to vector<1x16xf32>
    %148 = vector.broadcast %147 : vector<1x16xf32> to vector<64x16xf32>
    %149 = arith.addf %145, %148 : vector<64x16xf32>
    %c0_109 = arith.constant 0 : index
    %c0_110 = arith.constant 0 : index
    %c0_111 = arith.constant 0 : index
    %150 = vector.load %arg12[%c0_109, %c0_110, %c0_111] : memref<2x1x16xf32, #tpu.memory_space<vmem>>, vector<1x1x16xf32>
    %151 = vector.shape_cast %150 : vector<1x1x16xf32> to vector<1x16xf32>
    %152 = vector.broadcast %151 : vector<1x16xf32> to vector<64x16xf32>
    %153 = arith.mulf %149, %152 : vector<64x16xf32>
    %154 = vector.extract_strided_slice %153 {offsets = [0, 0], sizes = [64, 8], strides = [1, 1]} : vector<64x16xf32> to vector<64x8xf32>
    %155 = vector.extract_strided_slice %153 {offsets = [0, 8], sizes = [64, 8], strides = [1, 1]} : vector<64x16xf32> to vector<64x8xf32>
    %cst_112 = arith.constant 2.000000e+00 : f32
    %156 = vector.broadcast %cst_112 : f32 to vector<64x8xf32>
    %157 = arith.addf %155, %156 : vector<64x8xf32>
    %cst_113 = arith.constant 0.000000e+00 : f32
    %158 = vector.broadcast %cst_113 : f32 to vector<64x8xf32>
    %159 = arith.minimumf %157, %158 : vector<64x8xf32>
    %160 = math.absf %157 : vector<64x8xf32>
    %cst_114 = arith.constant 0.000000e+00 : f32
    %161 = vector.broadcast %cst_114 : f32 to vector<64x8xf32>
    %162 = arith.subf %161, %160 : vector<64x8xf32>
    %163 = math.exp %162 : vector<64x8xf32>
    %cst_115 = arith.constant 1.000000e+00 : f32
    %164 = vector.broadcast %cst_115 : f32 to vector<64x8xf32>
    %165 = arith.addf %164, %163 : vector<64x8xf32>
    %166 = math.log %165 : vector<64x8xf32>
    %167 = arith.subf %159, %166 : vector<64x8xf32>
    %168 = arith.addf %50, %154 : vector<64x8xf32>
    %169 = math.exp %167 : vector<64x8xf32>
    %170 = arith.mulf %168, %169 : vector<64x8xf32>
    %cst_116 = arith.constant dense<0.000000e+00> : vector<64xf32>
    %171 = vector.multi_reduction <add>, %167, %cst_116 [1] : vector<64x8xf32> to vector<64xf32>
    %172 = vector.shape_cast %171 : vector<64xf32> to vector<64x1xf32>
    %173 = arith.addf %37, %172 : vector<64x1xf32>
    %c1 = arith.constant 1 : index
    %c0_117 = arith.constant 0 : index
    %c0_118 = arith.constant 0 : index
    %174 = vector.load %arg2[%c1, %c0_117, %c0_118] : memref<2x16x16xf32, #tpu.memory_space<vmem>>, vector<1x16x16xf32>
    %175 = vector.shape_cast %174 : vector<1x16x16xf32> to vector<16x16xf32>
    %176 = vector.extract_strided_slice %175 {offsets = [0, 0], sizes = [8, 16], strides = [1, 1]} : vector<16x16xf32> to vector<8x16xf32>
    %cst_119 = arith.constant dense<0.000000e+00> : vector<64x16xf32>
    %177 = tpu.matmul %49, %176, %cst_119 {dimension_numbers = #tpu.dot_dimension_numbers<[1], [0], [0], [1], [0, 0, 1, 1], [], []>} : vector<64x8xf32>, vector<8x16xf32>, vector<64x16xf32> -> vector<64x16xf32>
    %178 = vector.extract_strided_slice %175 {offsets = [8, 0], sizes = [8, 16], strides = [1, 1]} : vector<16x16xf32> to vector<8x16xf32>
    %cst_120 = arith.constant dense<0.000000e+00> : vector<64x16xf32>
    %179 = tpu.matmul %170, %178, %cst_120 {dimension_numbers = #tpu.dot_dimension_numbers<[1], [0], [0], [1], [0, 0, 1, 1], [], []>} : vector<64x8xf32>, vector<8x16xf32>, vector<64x16xf32> -> vector<64x16xf32>
    %180 = arith.addf %177, %179 : vector<64x16xf32>
    %c1_121 = arith.constant 1 : index
    %c0_122 = arith.constant 0 : index
    %c0_123 = arith.constant 0 : index
    %181 = vector.load %arg3[%c1_121, %c0_122, %c0_123] : memref<2x1x16xf32, #tpu.memory_space<vmem>>, vector<1x1x16xf32>
    %182 = vector.shape_cast %181 : vector<1x1x16xf32> to vector<1x16xf32>
    %183 = vector.broadcast %182 : vector<1x16xf32> to vector<64x16xf32>
    %184 = arith.addf %180, %183 : vector<64x16xf32>
    %185 = vector.extract_strided_slice %184 {offsets = [0, 0], sizes = [64, 8], strides = [1, 1]} : vector<64x16xf32> to vector<64x8xf32>
    %186 = vector.extract_strided_slice %184 {offsets = [0, 8], sizes = [64, 8], strides = [1, 1]} : vector<64x16xf32> to vector<64x8xf32>
    %c1_124 = arith.constant 1 : index
    %c0_125 = arith.constant 0 : index
    %c0_126 = arith.constant 0 : index
    %187 = vector.load %arg4[%c1_124, %c0_125, %c0_126] : memref<2x72x32xf32, #tpu.memory_space<vmem>>, vector<1x72x32xf32>
    %188 = vector.shape_cast %187 : vector<1x72x32xf32> to vector<72x32xf32>
    %189 = vector.shape_cast %185 : vector<64x8xf32> to vector<1x64x8xf32>
    %c0_127 = arith.constant 0 : index
    %c16_128 = arith.constant 16 : index
    %c0_129 = arith.constant 0 : index
    %190 = vector.load %arg18[%c0_127, %c16_128, %c0_129] : memref<1x96x8xf32, #tpu.memory_space<vmem>>, vector<1x64x8xf32>
    tpu.vector_store %arg18[%c0_127, %c16_128, %c0_129], %189 {strides = array<i32>} : memref<1x96x8xf32, #tpu.memory_space<vmem>>, vector<1x64x8xf32>,
    %c0_130 = arith.constant 0 : index
    %c7_131 = arith.constant 7 : index
    %c0_132 = arith.constant 0 : index
    %191 = vector.load %arg18[%c0_130, %c7_131, %c0_132] : memref<1x96x8xf32, #tpu.memory_space<vmem>>, vector<1x64x8xf32>
    %192 = vector.broadcast %28 : vector<1x64x1xf32> to vector<1x64x8xf32>
    %193 = arith.mulf %191, %192 : vector<1x64x8xf32>
    %194 = vector.shape_cast %193 : vector<1x64x8xf32> to vector<64x8xf32>
    %c0_133 = arith.constant 0 : index
    %c8_134 = arith.constant 8 : index
    %c0_135 = arith.constant 0 : index
    %195 = vector.load %arg18[%c0_133, %c8_134, %c0_135] : memref<1x96x8xf32, #tpu.memory_space<vmem>>, vector<1x64x8xf32>
    %196 = vector.shape_cast %195 : vector<1x64x8xf32> to vector<64x8xf32>
    %c0_136 = arith.constant 0 : index
    %c9_137 = arith.constant 9 : index
    %c0_138 = arith.constant 0 : index
    %197 = vector.load %arg18[%c0_136, %c9_137, %c0_138] : memref<1x96x8xf32, #tpu.memory_space<vmem>>, vector<1x64x8xf32>
    %198 = vector.broadcast %32 : vector<1x64x1xf32> to vector<1x64x8xf32>
    %199 = arith.mulf %197, %198 : vector<1x64x8xf32>
    %200 = vector.shape_cast %199 : vector<1x64x8xf32> to vector<64x8xf32>
    %c0_139 = arith.constant 0 : index
    %c15_140 = arith.constant 15 : index
    %c0_141 = arith.constant 0 : index
    %201 = vector.load %arg18[%c0_139, %c15_140, %c0_141] : memref<1x96x8xf32, #tpu.memory_space<vmem>>, vector<1x64x8xf32>
    %202 = vector.broadcast %28 : vector<1x64x1xf32> to vector<1x64x8xf32>
    %203 = arith.mulf %201, %202 : vector<1x64x8xf32>
    %204 = vector.shape_cast %203 : vector<1x64x8xf32> to vector<64x8xf32>
    %c0_142 = arith.constant 0 : index
    %c16_143 = arith.constant 16 : index
    %c0_144 = arith.constant 0 : index
    %205 = vector.load %arg18[%c0_142, %c16_143, %c0_144] : memref<1x96x8xf32, #tpu.memory_space<vmem>>, vector<1x64x8xf32>
    %206 = vector.shape_cast %205 : vector<1x64x8xf32> to vector<64x8xf32>
    %c0_145 = arith.constant 0 : index
    %c17_146 = arith.constant 17 : index
    %c0_147 = arith.constant 0 : index
    %207 = vector.load %arg18[%c0_145, %c17_146, %c0_147] : memref<1x96x8xf32, #tpu.memory_space<vmem>>, vector<1x64x8xf32>
    %208 = vector.broadcast %32 : vector<1x64x1xf32> to vector<1x64x8xf32>
    %209 = arith.mulf %207, %208 : vector<1x64x8xf32>
    %210 = vector.shape_cast %209 : vector<1x64x8xf32> to vector<64x8xf32>
    %c0_148 = arith.constant 0 : index
    %c23_149 = arith.constant 23 : index
    %c0_150 = arith.constant 0 : index
    %211 = vector.load %arg18[%c0_148, %c23_149, %c0_150] : memref<1x96x8xf32, #tpu.memory_space<vmem>>, vector<1x64x8xf32>
    %212 = vector.broadcast %28 : vector<1x64x1xf32> to vector<1x64x8xf32>
    %213 = arith.mulf %211, %212 : vector<1x64x8xf32>
    %214 = vector.shape_cast %213 : vector<1x64x8xf32> to vector<64x8xf32>
    %c0_151 = arith.constant 0 : index
    %c24_152 = arith.constant 24 : index
    %c0_153 = arith.constant 0 : index
    %215 = vector.load %arg18[%c0_151, %c24_152, %c0_153] : memref<1x96x8xf32, #tpu.memory_space<vmem>>, vector<1x64x8xf32>
    %216 = vector.shape_cast %215 : vector<1x64x8xf32> to vector<64x8xf32>
    %c0_154 = arith.constant 0 : index
    %c25_155 = arith.constant 25 : index
    %c0_156 = arith.constant 0 : index
    %217 = vector.load %arg18[%c0_154, %c25_155, %c0_156] : memref<1x96x8xf32, #tpu.memory_space<vmem>>, vector<1x64x8xf32>
    %218 = vector.broadcast %32 : vector<1x64x1xf32> to vector<1x64x8xf32>
    %219 = arith.mulf %217, %218 : vector<1x64x8xf32>
    %220 = vector.shape_cast %219 : vector<1x64x8xf32> to vector<64x8xf32>
    %221 = tpu.concatenate %194, %196, %200, %204, %206, %210, %214, %216, %220 in 1 : vector<64x8xf32>, vector<64x8xf32>, vector<64x8xf32>, vector<64x8xf32>, vector<64x8xf32>, vector<64x8xf32>, vector<64x8xf32>, vector<64x8xf32>, vector<64x8xf32> -> vector<64x72xf32>
    %cst_157 = arith.constant dense<0.000000e+00> : vector<64x32xf32>
    %222 = tpu.matmul %221, %188, %cst_157 {dimension_numbers = #tpu.dot_dimension_numbers<[1], [0], [0], [1], [0, 0, 1, 1], [], []>} : vector<64x72xf32>, vector<72x32xf32>, vector<64x32xf32> -> vector<64x32xf32>
    %c1_158 = arith.constant 1 : index
    %c0_159 = arith.constant 0 : index
    %c0_160 = arith.constant 0 : index
    %223 = vector.load %arg5[%c1_158, %c0_159, %c0_160] : memref<2x1x32xf32, #tpu.memory_space<vmem>>, vector<1x1x32xf32>
    %224 = vector.shape_cast %223 : vector<1x1x32xf32> to vector<1x32xf32>
    %225 = vector.broadcast %224 : vector<1x32xf32> to vector<64x32xf32>
    %226 = arith.addf %222, %225 : vector<64x32xf32>
    %c1_161 = arith.constant 1 : index
    %c0_162 = arith.constant 0 : index
    %c0_163 = arith.constant 0 : index
    %227 = vector.load %arg6[%c1_161, %c0_162, %c0_163] : memref<2x1x32xf32, #tpu.memory_space<vmem>>, vector<1x1x32xf32>
    %228 = vector.shape_cast %227 : vector<1x1x32xf32> to vector<1x32xf32>
    %229 = vector.broadcast %228 : vector<1x32xf32> to vector<64x32xf32>
    %230 = arith.mulf %226, %229 : vector<64x32xf32>
    %cst_164 = arith.constant 0.000000e+00 : f32
    %231 = vector.broadcast %cst_164 : f32 to vector<64x32xf32>
    %232 = arith.maximumf %230, %231 : vector<64x32xf32>
    %c1_165 = arith.constant 1 : index
    %c0_166 = arith.constant 0 : index
    %c0_167 = arith.constant 0 : index
    %233 = vector.load %arg7[%c1_165, %c0_166, %c0_167] : memref<2x32x32xf32, #tpu.memory_space<vmem>>, vector<1x32x32xf32>
    %234 = vector.shape_cast %233 : vector<1x32x32xf32> to vector<32x32xf32>
    %cst_168 = arith.constant dense<0.000000e+00> : vector<64x32xf32>
    %235 = tpu.matmul %232, %234, %cst_168 {dimension_numbers = #tpu.dot_dimension_numbers<[1], [0], [0], [1], [0, 0, 1, 1], [], []>} : vector<64x32xf32>, vector<32x32xf32>, vector<64x32xf32> -> vector<64x32xf32>
    %c1_169 = arith.constant 1 : index
    %c0_170 = arith.constant 0 : index
    %c0_171 = arith.constant 0 : index
    %236 = vector.load %arg8[%c1_169, %c0_170, %c0_171] : memref<2x1x32xf32, #tpu.memory_space<vmem>>, vector<1x1x32xf32>
    %237 = vector.shape_cast %236 : vector<1x1x32xf32> to vector<1x32xf32>
    %238 = vector.broadcast %237 : vector<1x32xf32> to vector<64x32xf32>
    %239 = arith.addf %235, %238 : vector<64x32xf32>
    %c1_172 = arith.constant 1 : index
    %c0_173 = arith.constant 0 : index
    %c0_174 = arith.constant 0 : index
    %240 = vector.load %arg9[%c1_172, %c0_173, %c0_174] : memref<2x1x32xf32, #tpu.memory_space<vmem>>, vector<1x1x32xf32>
    %241 = vector.shape_cast %240 : vector<1x1x32xf32> to vector<1x32xf32>
    %242 = vector.broadcast %241 : vector<1x32xf32> to vector<64x32xf32>
    %243 = arith.mulf %239, %242 : vector<64x32xf32>
    %cst_175 = arith.constant 0.000000e+00 : f32
    %244 = vector.broadcast %cst_175 : f32 to vector<64x32xf32>
    %245 = arith.maximumf %243, %244 : vector<64x32xf32>
    %c1_176 = arith.constant 1 : index
    %c0_177 = arith.constant 0 : index
    %c0_178 = arith.constant 0 : index
    %246 = vector.load %arg10[%c1_176, %c0_177, %c0_178] : memref<2x288x16xf32, #tpu.memory_space<vmem>>, vector<1x288x16xf32>
    %247 = vector.shape_cast %246 : vector<1x288x16xf32> to vector<288x16xf32>
    %248 = vector.shape_cast %245 : vector<64x32xf32> to vector<1x64x32xf32>
    %c0_179 = arith.constant 0 : index
    %c16_180 = arith.constant 16 : index
    %c0_181 = arith.constant 0 : index
    %249 = vector.load %arg19[%c0_179, %c16_180, %c0_181] : memref<1x96x32xf32, #tpu.memory_space<vmem>>, vector<1x64x32xf32>
    tpu.vector_store %arg19[%c0_179, %c16_180, %c0_181], %248 {strides = array<i32>} : memref<1x96x32xf32, #tpu.memory_space<vmem>>, vector<1x64x32xf32>,
    %c0_182 = arith.constant 0 : index
    %c7_183 = arith.constant 7 : index
    %c0_184 = arith.constant 0 : index
    %250 = vector.load %arg19[%c0_182, %c7_183, %c0_184] : memref<1x96x32xf32, #tpu.memory_space<vmem>>, vector<1x64x32xf32>
    %251 = vector.broadcast %28 : vector<1x64x1xf32> to vector<1x64x32xf32>
    %252 = arith.mulf %250, %251 : vector<1x64x32xf32>
    %253 = vector.shape_cast %252 : vector<1x64x32xf32> to vector<64x32xf32>
    %c0_185 = arith.constant 0 : index
    %c8_186 = arith.constant 8 : index
    %c0_187 = arith.constant 0 : index
    %254 = vector.load %arg19[%c0_185, %c8_186, %c0_187] : memref<1x96x32xf32, #tpu.memory_space<vmem>>, vector<1x64x32xf32>
    %255 = vector.shape_cast %254 : vector<1x64x32xf32> to vector<64x32xf32>
    %c0_188 = arith.constant 0 : index
    %c9_189 = arith.constant 9 : index
    %c0_190 = arith.constant 0 : index
    %256 = vector.load %arg19[%c0_188, %c9_189, %c0_190] : memref<1x96x32xf32, #tpu.memory_space<vmem>>, vector<1x64x32xf32>
    %257 = vector.broadcast %32 : vector<1x64x1xf32> to vector<1x64x32xf32>
    %258 = arith.mulf %256, %257 : vector<1x64x32xf32>
    %259 = vector.shape_cast %258 : vector<1x64x32xf32> to vector<64x32xf32>
    %c0_191 = arith.constant 0 : index
    %c15_192 = arith.constant 15 : index
    %c0_193 = arith.constant 0 : index
    %260 = vector.load %arg19[%c0_191, %c15_192, %c0_193] : memref<1x96x32xf32, #tpu.memory_space<vmem>>, vector<1x64x32xf32>
    %261 = vector.broadcast %28 : vector<1x64x1xf32> to vector<1x64x32xf32>
    %262 = arith.mulf %260, %261 : vector<1x64x32xf32>
    %263 = vector.shape_cast %262 : vector<1x64x32xf32> to vector<64x32xf32>
    %c0_194 = arith.constant 0 : index
    %c16_195 = arith.constant 16 : index
    %c0_196 = arith.constant 0 : index
    %264 = vector.load %arg19[%c0_194, %c16_195, %c0_196] : memref<1x96x32xf32, #tpu.memory_space<vmem>>, vector<1x64x32xf32>
    %265 = vector.shape_cast %264 : vector<1x64x32xf32> to vector<64x32xf32>
    %c0_197 = arith.constant 0 : index
    %c17_198 = arith.constant 17 : index
    %c0_199 = arith.constant 0 : index
    %266 = vector.load %arg19[%c0_197, %c17_198, %c0_199] : memref<1x96x32xf32, #tpu.memory_space<vmem>>, vector<1x64x32xf32>
    %267 = vector.broadcast %32 : vector<1x64x1xf32> to vector<1x64x32xf32>
    %268 = arith.mulf %266, %267 : vector<1x64x32xf32>
    %269 = vector.shape_cast %268 : vector<1x64x32xf32> to vector<64x32xf32>
    %c0_200 = arith.constant 0 : index
    %c23_201 = arith.constant 23 : index
    %c0_202 = arith.constant 0 : index
    %270 = vector.load %arg19[%c0_200, %c23_201, %c0_202] : memref<1x96x32xf32, #tpu.memory_space<vmem>>, vector<1x64x32xf32>
    %271 = vector.broadcast %28 : vector<1x64x1xf32> to vector<1x64x32xf32>
    %272 = arith.mulf %270, %271 : vector<1x64x32xf32>
    %273 = vector.shape_cast %272 : vector<1x64x32xf32> to vector<64x32xf32>
    %c0_203 = arith.constant 0 : index
    %c24_204 = arith.constant 24 : index
    %c0_205 = arith.constant 0 : index
    %274 = vector.load %arg19[%c0_203, %c24_204, %c0_205] : memref<1x96x32xf32, #tpu.memory_space<vmem>>, vector<1x64x32xf32>
    %275 = vector.shape_cast %274 : vector<1x64x32xf32> to vector<64x32xf32>
    %c0_206 = arith.constant 0 : index
    %c25_207 = arith.constant 25 : index
    %c0_208 = arith.constant 0 : index
    %276 = vector.load %arg19[%c0_206, %c25_207, %c0_208] : memref<1x96x32xf32, #tpu.memory_space<vmem>>, vector<1x64x32xf32>
    %277 = vector.broadcast %32 : vector<1x64x1xf32> to vector<1x64x32xf32>
    %278 = arith.mulf %276, %277 : vector<1x64x32xf32>
    %279 = vector.shape_cast %278 : vector<1x64x32xf32> to vector<64x32xf32>
    %280 = tpu.concatenate %253, %255, %259, %263, %265, %269, %273, %275, %279 in 1 : vector<64x32xf32>, vector<64x32xf32>, vector<64x32xf32>, vector<64x32xf32>, vector<64x32xf32>, vector<64x32xf32>, vector<64x32xf32>, vector<64x32xf32>, vector<64x32xf32> -> vector<64x288xf32>
    %cst_209 = arith.constant dense<0.000000e+00> : vector<64x16xf32>
    %281 = tpu.matmul %280, %247, %cst_209 {dimension_numbers = #tpu.dot_dimension_numbers<[1], [0], [0], [1], [0, 0, 1, 1], [], []>} : vector<64x288xf32>, vector<288x16xf32>, vector<64x16xf32> -> vector<64x16xf32>
    %c1_210 = arith.constant 1 : index
    %c0_211 = arith.constant 0 : index
    %c0_212 = arith.constant 0 : index
    %282 = vector.load %arg11[%c1_210, %c0_211, %c0_212] : memref<2x1x16xf32, #tpu.memory_space<vmem>>, vector<1x1x16xf32>
    %283 = vector.shape_cast %282 : vector<1x1x16xf32> to vector<1x16xf32>
    %284 = vector.broadcast %283 : vector<1x16xf32> to vector<64x16xf32>
    %285 = arith.addf %281, %284 : vector<64x16xf32>
    %c1_213 = arith.constant 1 : index
    %c0_214 = arith.constant 0 : index
    %c0_215 = arith.constant 0 : index
    %286 = vector.load %arg12[%c1_213, %c0_214, %c0_215] : memref<2x1x16xf32, #tpu.memory_space<vmem>>, vector<1x1x16xf32>
    %287 = vector.shape_cast %286 : vector<1x1x16xf32> to vector<1x16xf32>
    %288 = vector.broadcast %287 : vector<1x16xf32> to vector<64x16xf32>
    %289 = arith.mulf %285, %288 : vector<64x16xf32>
    %290 = vector.extract_strided_slice %289 {offsets = [0, 0], sizes = [64, 8], strides = [1, 1]} : vector<64x16xf32> to vector<64x8xf32>
    %291 = vector.extract_strided_slice %289 {offsets = [0, 8], sizes = [64, 8], strides = [1, 1]} : vector<64x16xf32> to vector<64x8xf32>
    %cst_216 = arith.constant 2.000000e+00 : f32
    %292 = vector.broadcast %cst_216 : f32 to vector<64x8xf32>
    %293 = arith.addf %291, %292 : vector<64x8xf32>
    %cst_217 = arith.constant 0.000000e+00 : f32
    %294 = vector.broadcast %cst_217 : f32 to vector<64x8xf32>
    %295 = arith.minimumf %293, %294 : vector<64x8xf32>
    %296 = math.absf %293 : vector<64x8xf32>
    %cst_218 = arith.constant 0.000000e+00 : f32
    %297 = vector.broadcast %cst_218 : f32 to vector<64x8xf32>
    %298 = arith.subf %297, %296 : vector<64x8xf32>
    %299 = math.exp %298 : vector<64x8xf32>
    %cst_219 = arith.constant 1.000000e+00 : f32
    %300 = vector.broadcast %cst_219 : f32 to vector<64x8xf32>
    %301 = arith.addf %300, %299 : vector<64x8xf32>
    %302 = math.log %301 : vector<64x8xf32>
    %303 = arith.subf %295, %302 : vector<64x8xf32>
    %304 = arith.addf %186, %290 : vector<64x8xf32>
    %305 = math.exp %303 : vector<64x8xf32>
    %306 = arith.mulf %304, %305 : vector<64x8xf32>
    %cst_220 = arith.constant dense<0.000000e+00> : vector<64xf32>
    %307 = vector.multi_reduction <add>, %303, %cst_220 [1] : vector<64x8xf32> to vector<64xf32>
    %308 = vector.shape_cast %307 : vector<64xf32> to vector<64x1xf32>
    %309 = arith.addf %173, %308 : vector<64x1xf32>
    %c0_221 = arith.constant 0 : index
    %c0_222 = arith.constant 0 : index
    %310 = vector.load %arg13[%c0_221, %c0_222] : memref<72x16xf32, #tpu.memory_space<vmem>>, vector<72x16xf32>
    %311 = vector.shape_cast %185 : vector<64x8xf32> to vector<1x64x8xf32>
    %c0_223 = arith.constant 0 : index
    %c16_224 = arith.constant 16 : index
    %c0_225 = arith.constant 0 : index
    %312 = vector.load %arg18[%c0_223, %c16_224, %c0_225] : memref<1x96x8xf32, #tpu.memory_space<vmem>>, vector<1x64x8xf32>
    tpu.vector_store %arg18[%c0_223, %c16_224, %c0_225], %311 {strides = array<i32>} : memref<1x96x8xf32, #tpu.memory_space<vmem>>, vector<1x64x8xf32>,
    %c0_226 = arith.constant 0 : index
    %c7_227 = arith.constant 7 : index
    %c0_228 = arith.constant 0 : index
    %313 = vector.load %arg18[%c0_226, %c7_227, %c0_228] : memref<1x96x8xf32, #tpu.memory_space<vmem>>, vector<1x64x8xf32>
    %314 = vector.broadcast %28 : vector<1x64x1xf32> to vector<1x64x8xf32>
    %315 = arith.mulf %313, %314 : vector<1x64x8xf32>
    %316 = vector.shape_cast %315 : vector<1x64x8xf32> to vector<64x8xf32>
    %c0_229 = arith.constant 0 : index
    %c8_230 = arith.constant 8 : index
    %c0_231 = arith.constant 0 : index
    %317 = vector.load %arg18[%c0_229, %c8_230, %c0_231] : memref<1x96x8xf32, #tpu.memory_space<vmem>>, vector<1x64x8xf32>
    %318 = vector.shape_cast %317 : vector<1x64x8xf32> to vector<64x8xf32>
    %c0_232 = arith.constant 0 : index
    %c9_233 = arith.constant 9 : index
    %c0_234 = arith.constant 0 : index
    %319 = vector.load %arg18[%c0_232, %c9_233, %c0_234] : memref<1x96x8xf32, #tpu.memory_space<vmem>>, vector<1x64x8xf32>
    %320 = vector.broadcast %32 : vector<1x64x1xf32> to vector<1x64x8xf32>
    %321 = arith.mulf %319, %320 : vector<1x64x8xf32>
    %322 = vector.shape_cast %321 : vector<1x64x8xf32> to vector<64x8xf32>
    %c0_235 = arith.constant 0 : index
    %c15_236 = arith.constant 15 : index
    %c0_237 = arith.constant 0 : index
    %323 = vector.load %arg18[%c0_235, %c15_236, %c0_237] : memref<1x96x8xf32, #tpu.memory_space<vmem>>, vector<1x64x8xf32>
    %324 = vector.broadcast %28 : vector<1x64x1xf32> to vector<1x64x8xf32>
    %325 = arith.mulf %323, %324 : vector<1x64x8xf32>
    %326 = vector.shape_cast %325 : vector<1x64x8xf32> to vector<64x8xf32>
    %c0_238 = arith.constant 0 : index
    %c16_239 = arith.constant 16 : index
    %c0_240 = arith.constant 0 : index
    %327 = vector.load %arg18[%c0_238, %c16_239, %c0_240] : memref<1x96x8xf32, #tpu.memory_space<vmem>>, vector<1x64x8xf32>
    %328 = vector.shape_cast %327 : vector<1x64x8xf32> to vector<64x8xf32>
    %c0_241 = arith.constant 0 : index
    %c17_242 = arith.constant 17 : index
    %c0_243 = arith.constant 0 : index
    %329 = vector.load %arg18[%c0_241, %c17_242, %c0_243] : memref<1x96x8xf32, #tpu.memory_space<vmem>>, vector<1x64x8xf32>
    %330 = vector.broadcast %32 : vector<1x64x1xf32> to vector<1x64x8xf32>
    %331 = arith.mulf %329, %330 : vector<1x64x8xf32>
    %332 = vector.shape_cast %331 : vector<1x64x8xf32> to vector<64x8xf32>
    %c0_244 = arith.constant 0 : index
    %c23_245 = arith.constant 23 : index
    %c0_246 = arith.constant 0 : index
    %333 = vector.load %arg18[%c0_244, %c23_245, %c0_246] : memref<1x96x8xf32, #tpu.memory_space<vmem>>, vector<1x64x8xf32>
    %334 = vector.broadcast %28 : vector<1x64x1xf32> to vector<1x64x8xf32>
    %335 = arith.mulf %333, %334 : vector<1x64x8xf32>
    %336 = vector.shape_cast %335 : vector<1x64x8xf32> to vector<64x8xf32>
    %c0_247 = arith.constant 0 : index
    %c24_248 = arith.constant 24 : index
    %c0_249 = arith.constant 0 : index
    %337 = vector.load %arg18[%c0_247, %c24_248, %c0_249] : memref<1x96x8xf32, #tpu.memory_space<vmem>>, vector<1x64x8xf32>
    %338 = vector.shape_cast %337 : vector<1x64x8xf32> to vector<64x8xf32>
    %c0_250 = arith.constant 0 : index
    %c25_251 = arith.constant 25 : index
    %c0_252 = arith.constant 0 : index
    %339 = vector.load %arg18[%c0_250, %c25_251, %c0_252] : memref<1x96x8xf32, #tpu.memory_space<vmem>>, vector<1x64x8xf32>
    %340 = vector.broadcast %32 : vector<1x64x1xf32> to vector<1x64x8xf32>
    %341 = arith.mulf %339, %340 : vector<1x64x8xf32>
    %342 = vector.shape_cast %341 : vector<1x64x8xf32> to vector<64x8xf32>
    %343 = tpu.concatenate %316, %318, %322, %326, %328, %332, %336, %338, %342 in 1 : vector<64x8xf32>, vector<64x8xf32>, vector<64x8xf32>, vector<64x8xf32>, vector<64x8xf32>, vector<64x8xf32>, vector<64x8xf32>, vector<64x8xf32>, vector<64x8xf32> -> vector<64x72xf32>
    %cst_253 = arith.constant dense<0.000000e+00> : vector<64x16xf32>
    %344 = tpu.matmul %343, %310, %cst_253 {dimension_numbers = #tpu.dot_dimension_numbers<[1], [0], [0], [1], [0, 0, 1, 1], [], []>} : vector<64x72xf32>, vector<72x16xf32>, vector<64x16xf32> -> vector<64x16xf32>
    %c0_254 = arith.constant 0 : index
    %c0_255 = arith.constant 0 : index
    %345 = vector.load %arg14[%c0_254, %c0_255] : memref<1x16xf32, #tpu.memory_space<vmem>>, vector<1x16xf32>
    %346 = vector.broadcast %345 : vector<1x16xf32> to vector<64x16xf32>
    %347 = arith.addf %344, %346 : vector<64x16xf32>
    %c0_256 = arith.constant 0 : index
    %c0_257 = arith.constant 0 : index
    %348 = vector.load %arg15[%c0_256, %c0_257] : memref<1x16xf32, #tpu.memory_space<vmem>>, vector<1x16xf32>
    %349 = vector.broadcast %348 : vector<1x16xf32> to vector<64x16xf32>
    %350 = arith.mulf %347, %349 : vector<64x16xf32>
    %351 = vector.extract_strided_slice %350 {offsets = [0, 0], sizes = [64, 8], strides = [1, 1]} : vector<64x16xf32> to vector<64x8xf32>
    %352 = vector.extract_strided_slice %350 {offsets = [0, 8], sizes = [64, 8], strides = [1, 1]} : vector<64x16xf32> to vector<64x8xf32>
    %cst_258 = arith.constant 2.000000e+00 : f32
    %353 = vector.broadcast %cst_258 : f32 to vector<64x8xf32>
    %354 = arith.mulf %353, %352 : vector<64x8xf32>
    %355 = arith.subf %306, %351 : vector<64x8xf32>
    %356 = arith.mulf %355, %355 : vector<64x8xf32>
    %cst_259 = arith.constant -2.000000e+00 : f32
    %357 = vector.broadcast %cst_259 : f32 to vector<64x8xf32>
    %358 = arith.mulf %357, %352 : vector<64x8xf32>
    %359 = math.exp %358 : vector<64x8xf32>
    %360 = arith.mulf %356, %359 : vector<64x8xf32>
    %361 = arith.addf %354, %360 : vector<64x8xf32>
    %cst_260 = arith.constant 1.83787704 : f32
    %362 = vector.broadcast %cst_260 : f32 to vector<64x8xf32>
    %363 = arith.addf %361, %362 : vector<64x8xf32>
    %cst_261 = arith.constant -5.000000e-01 : f32
    %364 = vector.broadcast %cst_261 : f32 to vector<64x8xf32>
    %365 = arith.mulf %364, %363 : vector<64x8xf32>
    %cst_262 = arith.constant dense<0.000000e+00> : vector<64xf32>
    %366 = vector.multi_reduction <add>, %365, %cst_262 [1] : vector<64x8xf32> to vector<64xf32>
    %367 = vector.shape_cast %366 : vector<64xf32> to vector<64x1xf32>
    %368 = arith.addf %309, %367 : vector<64x1xf32>
    %369 = vector.shape_cast %185 : vector<64x8xf32> to vector<1x64x8xf32>
    %c0_263 = arith.constant 0 : index
    %c0_264 = arith.constant 0 : index
    %c0_265 = arith.constant 0 : index
    %370 = vector.load %arg16[%c0_263, %c0_264, %c0_265] : memref<1x64x8xf32, #tpu.memory_space<vmem>>, vector<1x64x8xf32>
    tpu.vector_store %arg16[%c0_263, %c0_264, %c0_265], %369 {strides = array<i32>} : memref<1x64x8xf32, #tpu.memory_space<vmem>>, vector<1x64x8xf32>,
    %371 = vector.shape_cast %368 : vector<64x1xf32> to vector<1x64x1xf32>
    %c0_266 = arith.constant 0 : index
    %c0_267 = arith.constant 0 : index
    %c0_268 = arith.constant 0 : index
    %372 = vector.load %arg17[%c0_266, %c0_267, %c0_268] : memref<1x64x1xf32, #tpu.memory_space<vmem>>, vector<1x64x1xf32>
    tpu.vector_store %arg17[%c0_266, %c0_267, %c0_268], %371 {strides = array<i32>} : memref<1x64x1xf32, #tpu.memory_space<vmem>>, vector<1x64x1xf32>,
    return
  }
  func.func @transform_0(%arg0: i32) -> (i32, i32, i32) {
    %c0_i32 = arith.constant 0 : i32
    %c0_i32_0 = arith.constant 0 : i32
    %c0_i32_1 = arith.constant 0 : i32
    return %arg0, %c0_i32, %c0_i32_0 : i32, i32, i32
  }
  func.func @transform_1(%arg0: i32) -> (i32, i32, i32) {
    %c0_i32 = arith.constant 0 : i32
    %c0_i32_0 = arith.constant 0 : i32
    %c0_i32_1 = arith.constant 0 : i32
    %c0_i32_2 = arith.constant 0 : i32
    return %c0_i32, %c0_i32_0, %c0_i32_1 : i32, i32, i32
  }
  func.func @transform_2(%arg0: i32) -> (i32, i32, i32) {
    %c0_i32 = arith.constant 0 : i32
    %c0_i32_0 = arith.constant 0 : i32
    %c0_i32_1 = arith.constant 0 : i32
    %c0_i32_2 = arith.constant 0 : i32
    return %c0_i32, %c0_i32_0, %c0_i32_1 : i32, i32, i32
  }
  func.func @transform_3(%arg0: i32) -> (i32, i32, i32) {
    %c0_i32 = arith.constant 0 : i32
    %c0_i32_0 = arith.constant 0 : i32
    %c0_i32_1 = arith.constant 0 : i32
    %c0_i32_2 = arith.constant 0 : i32
    return %c0_i32, %c0_i32_0, %c0_i32_1 : i32, i32, i32
  }
  func.func @transform_4(%arg0: i32) -> (i32, i32, i32) {
    %c0_i32 = arith.constant 0 : i32
    %c0_i32_0 = arith.constant 0 : i32
    %c0_i32_1 = arith.constant 0 : i32
    %c0_i32_2 = arith.constant 0 : i32
    return %c0_i32, %c0_i32_0, %c0_i32_1 : i32, i32, i32
  }
  func.func @transform_5(%arg0: i32) -> (i32, i32, i32) {
    %c0_i32 = arith.constant 0 : i32
    %c0_i32_0 = arith.constant 0 : i32
    %c0_i32_1 = arith.constant 0 : i32
    %c0_i32_2 = arith.constant 0 : i32
    return %c0_i32, %c0_i32_0, %c0_i32_1 : i32, i32, i32
  }
  func.func @transform_6(%arg0: i32) -> (i32, i32, i32) {
    %c0_i32 = arith.constant 0 : i32
    %c0_i32_0 = arith.constant 0 : i32
    %c0_i32_1 = arith.constant 0 : i32
    %c0_i32_2 = arith.constant 0 : i32
    return %c0_i32, %c0_i32_0, %c0_i32_1 : i32, i32, i32
  }
  func.func @transform_7(%arg0: i32) -> (i32, i32, i32) {
    %c0_i32 = arith.constant 0 : i32
    %c0_i32_0 = arith.constant 0 : i32
    %c0_i32_1 = arith.constant 0 : i32
    %c0_i32_2 = arith.constant 0 : i32
    return %c0_i32, %c0_i32_0, %c0_i32_1 : i32, i32, i32
  }
  func.func @transform_8(%arg0: i32) -> (i32, i32, i32) {
    %c0_i32 = arith.constant 0 : i32
    %c0_i32_0 = arith.constant 0 : i32
    %c0_i32_1 = arith.constant 0 : i32
    %c0_i32_2 = arith.constant 0 : i32
    return %c0_i32, %c0_i32_0, %c0_i32_1 : i32, i32, i32
  }
  func.func @transform_9(%arg0: i32) -> (i32, i32, i32) {
    %c0_i32 = arith.constant 0 : i32
    %c0_i32_0 = arith.constant 0 : i32
    %c0_i32_1 = arith.constant 0 : i32
    %c0_i32_2 = arith.constant 0 : i32
    return %c0_i32, %c0_i32_0, %c0_i32_1 : i32, i32, i32
  }
  func.func @transform_10(%arg0: i32) -> (i32, i32, i32) {
    %c0_i32 = arith.constant 0 : i32
    %c0_i32_0 = arith.constant 0 : i32
    %c0_i32_1 = arith.constant 0 : i32
    %c0_i32_2 = arith.constant 0 : i32
    return %c0_i32, %c0_i32_0, %c0_i32_1 : i32, i32, i32
  }
  func.func @transform_11(%arg0: i32) -> (i32, i32, i32) {
    %c0_i32 = arith.constant 0 : i32
    %c0_i32_0 = arith.constant 0 : i32
    %c0_i32_1 = arith.constant 0 : i32
    %c0_i32_2 = arith.constant 0 : i32
    return %c0_i32, %c0_i32_0, %c0_i32_1 : i32, i32, i32
  }
  func.func @transform_12(%arg0: i32) -> (i32, i32) {
    %c0_i32 = arith.constant 0 : i32
    %c0_i32_0 = arith.constant 0 : i32
    %c0_i32_1 = arith.constant 0 : i32
    return %c0_i32, %c0_i32_0 : i32, i32
  }
  func.func @transform_13(%arg0: i32) -> (i32, i32) {
    %c0_i32 = arith.constant 0 : i32
    %c0_i32_0 = arith.constant 0 : i32
    %c0_i32_1 = arith.constant 0 : i32
    return %c0_i32, %c0_i32_0 : i32, i32
  }
  func.func @transform_14(%arg0: i32) -> (i32, i32) {
    %c0_i32 = arith.constant 0 : i32
    %c0_i32_0 = arith.constant 0 : i32
    %c0_i32_1 = arith.constant 0 : i32
    return %c0_i32, %c0_i32_0 : i32, i32
  }
  func.func @transform_15(%arg0: i32) -> (i32, i32, i32) {
    %c0_i32 = arith.constant 0 : i32
    %c0_i32_0 = arith.constant 0 : i32
    %c0_i32_1 = arith.constant 0 : i32
    return %arg0, %c0_i32, %c0_i32_0 : i32, i32, i32
  }
  func.func @transform_16(%arg0: i32) -> (i32, i32, i32) {
    %c0_i32 = arith.constant 0 : i32
    %c0_i32_0 = arith.constant 0 : i32
    %c0_i32_1 = arith.constant 0 : i32
    return %arg0, %c0_i32, %c0_i32_0 : i32, i32, i32
  }
}

module attributes {stable_mosaic.version = 11 : i64} {
  func.func @_level_kernel(%arg0: i32, %arg1: memref<1x16x32xf32, #tpu.memory_space<vmem>>, %arg2: memref<2x32x32xf32, #tpu.memory_space<vmem>>, %arg3: memref<2x1x32xf32, #tpu.memory_space<vmem>>, %arg4: memref<2x144x32xf32, #tpu.memory_space<vmem>>, %arg5: memref<2x1x32xf32, #tpu.memory_space<vmem>>, %arg6: memref<2x1x32xf32, #tpu.memory_space<vmem>>, %arg7: memref<2x32x32xf32, #tpu.memory_space<vmem>>, %arg8: memref<2x1x32xf32, #tpu.memory_space<vmem>>, %arg9: memref<2x1x32xf32, #tpu.memory_space<vmem>>, %arg10: memref<2x288x32xf32, #tpu.memory_space<vmem>>, %arg11: memref<2x1x32xf32, #tpu.memory_space<vmem>>, %arg12: memref<2x1x32xf32, #tpu.memory_space<vmem>>, %arg13: memref<1x16x32xf32, #tpu.memory_space<vmem>>, %arg14: memref<1x16x1xf32, #tpu.memory_space<vmem>>, %arg15: memref<1x32x16xf32, #tpu.memory_space<vmem>>, %arg16: memref<1x32x32xf32, #tpu.memory_space<vmem>>) attributes {dimension_semantics = [#tpu.dimension_semantics<parallel>], iteration_bounds = array<i64: 2>, scalar_prefetch = 0 : i64, scratch_operands = 2 : i64, tpu.core_type = #tpu.core_type<tc>, window_params = [{transform_indices = @transform_0, window_bounds = array<i64: 1, 16, 32>}, {pipeline_mode = #tpu.pipeline_mode<synchronous>, transform_indices = @transform_1, window_bounds = array<i64: 2, 32, 32>}, {pipeline_mode = #tpu.pipeline_mode<synchronous>, transform_indices = @transform_2, window_bounds = array<i64: 2, 1, 32>}, {pipeline_mode = #tpu.pipeline_mode<synchronous>, transform_indices = @transform_3, window_bounds = array<i64: 2, 144, 32>}, {pipeline_mode = #tpu.pipeline_mode<synchronous>, transform_indices = @transform_4, window_bounds = array<i64: 2, 1, 32>}, {pipeline_mode = #tpu.pipeline_mode<synchronous>, transform_indices = @transform_5, window_bounds = array<i64: 2, 1, 32>}, {pipeline_mode = #tpu.pipeline_mode<synchronous>, transform_indices = @transform_6, window_bounds = array<i64: 2, 32, 32>}, {pipeline_mode = #tpu.pipeline_mode<synchronous>, transform_indices = @transform_7, window_bounds = array<i64: 2, 1, 32>}, {pipeline_mode = #tpu.pipeline_mode<synchronous>, transform_indices = @transform_8, window_bounds = array<i64: 2, 1, 32>}, {pipeline_mode = #tpu.pipeline_mode<synchronous>, transform_indices = @transform_9, window_bounds = array<i64: 2, 288, 32>}, {pipeline_mode = #tpu.pipeline_mode<synchronous>, transform_indices = @transform_10, window_bounds = array<i64: 2, 1, 32>}, {pipeline_mode = #tpu.pipeline_mode<synchronous>, transform_indices = @transform_11, window_bounds = array<i64: 2, 1, 32>}, {transform_indices = @transform_12, window_bounds = array<i64: 1, 16, 32>}, {transform_indices = @transform_13, window_bounds = array<i64: 1, 16, 1>}]} {
    %cst = arith.constant 0.000000e+00 : f32
    %0 = vector.broadcast %cst : f32 to vector<1x8x16xf32>
    %c0 = arith.constant 0 : index
    %c0_0 = arith.constant 0 : index
    %c0_1 = arith.constant 0 : index
    %1 = vector.load %arg15[%c0, %c0_0, %c0_1] : memref<1x32x16xf32, #tpu.memory_space<vmem>>, vector<1x8x16xf32>
    tpu.vector_store %arg15[%c0, %c0_0, %c0_1], %0 {strides = array<i32>} : memref<1x32x16xf32, #tpu.memory_space<vmem>>, vector<1x8x16xf32>,
    %cst_2 = arith.constant 0.000000e+00 : f32
    %2 = vector.broadcast %cst_2 : f32 to vector<1x8x16xf32>
    %c0_3 = arith.constant 0 : index
    %c24 = arith.constant 24 : index
    %c0_4 = arith.constant 0 : index
    %3 = vector.load %arg15[%c0_3, %c24, %c0_4] : memref<1x32x16xf32, #tpu.memory_space<vmem>>, vector<1x8x16xf32>
    tpu.vector_store %arg15[%c0_3, %c24, %c0_4], %2 {strides = array<i32>} : memref<1x32x16xf32, #tpu.memory_space<vmem>>, vector<1x8x16xf32>,
    %cst_5 = arith.constant 0.000000e+00 : f32
    %4 = vector.broadcast %cst_5 : f32 to vector<1x8x32xf32>
    %c0_6 = arith.constant 0 : index
    %c0_7 = arith.constant 0 : index
    %c0_8 = arith.constant 0 : index
    %5 = vector.load %arg16[%c0_6, %c0_7, %c0_8] : memref<1x32x32xf32, #tpu.memory_space<vmem>>, vector<1x8x32xf32>
    tpu.vector_store %arg16[%c0_6, %c0_7, %c0_8], %4 {strides = array<i32>} : memref<1x32x32xf32, #tpu.memory_space<vmem>>, vector<1x8x32xf32>,
    %cst_9 = arith.constant 0.000000e+00 : f32
    %6 = vector.broadcast %cst_9 : f32 to vector<1x8x32xf32>
    %c0_10 = arith.constant 0 : index
    %c24_11 = arith.constant 24 : index
    %c0_12 = arith.constant 0 : index
    %7 = vector.load %arg16[%c0_10, %c24_11, %c0_12] : memref<1x32x32xf32, #tpu.memory_space<vmem>>, vector<1x8x32xf32>
    tpu.vector_store %arg16[%c0_10, %c24_11, %c0_12], %6 {strides = array<i32>} : memref<1x32x32xf32, #tpu.memory_space<vmem>>, vector<1x8x32xf32>,
    %8 = tpu.iota {dimensions = array<i32: 1>} : vector<1x16x1xi32>
    %c4_i32 = arith.constant 4 : i32
    %c0_i32 = arith.constant 0 : i32
    %9 = arith.cmpi eq, %c4_i32, %c0_i32 : i32
    %c1_i32 = arith.constant 1 : i32
    %10 = arith.select %9, %c1_i32, %c4_i32 : i32
    %11 = vector.broadcast %10 : i32 to vector<1x16x1xi32>
    %12 = arith.remsi %8, %11 : vector<1x16x1xi32>
    %c0_i32_13 = arith.constant 0 : i32
    %13 = vector.broadcast %c0_i32_13 : i32 to vector<1x16x1xi32>
    %14 = arith.cmpi ne, %12, %13 : vector<1x16x1xi32>
    %c0_i32_14 = arith.constant 0 : i32
    %15 = vector.broadcast %c0_i32_14 : i32 to vector<1x16x1xi32>
    %16 = arith.cmpi slt, %12, %15 : vector<1x16x1xi32>
    %c0_i32_15 = arith.constant 0 : i32
    %17 = arith.cmpi slt, %10, %c0_i32_15 : i32
    %18 = vector.broadcast %17 : i1 to vector<1x16x1xi1>
    %19 = vector.broadcast %18 : vector<1x16x1xi1> to vector<1x16x1xi1>
    %20 = arith.xori %16, %19 : vector<1x16x1xi1>
    %21 = arith.andi %20, %14 : vector<1x16x1xi1>
    %22 = vector.broadcast %10 : i32 to vector<1x16x1xi32>
    %23 = arith.addi %12, %22 : vector<1x16x1xi32>
    %24 = arith.select %21, %23, %12 : vector<1x16x1xi1>, vector<1x16x1xi32>
    %c0_i32_16 = arith.constant 0 : i32
    %25 = vector.broadcast %c0_i32_16 : i32 to vector<1x16x1xi32>
    %26 = arith.cmpi ne, %24, %25 : vector<1x16x1xi32>
    %27 = arith.extui %26 : vector<1x16x1xi1> to vector<1x16x1xi32>
    %28 = arith.sitofp %27 : vector<1x16x1xi32> to vector<1x16x1xf32>
    %c3_i32 = arith.constant 3 : i32
    %29 = vector.broadcast %c3_i32 : i32 to vector<1x16x1xi32>
    %30 = arith.cmpi ne, %24, %29 : vector<1x16x1xi32>
    %31 = arith.extui %30 : vector<1x16x1xi1> to vector<1x16x1xi32>
    %32 = arith.sitofp %31 : vector<1x16x1xi32> to vector<1x16x1xf32>
    %c0_17 = arith.constant 0 : index
    %c0_18 = arith.constant 0 : index
    %c0_19 = arith.constant 0 : index
    %33 = vector.load %arg1[%c0_17, %c0_18, %c0_19] : memref<1x16x32xf32, #tpu.memory_space<vmem>>, vector<1x16x32xf32>
    %34 = vector.shape_cast %33 : vector<1x16x32xf32> to vector<16x32xf32>
    %35 = vector.extract_strided_slice %34 {offsets = [0, 0], sizes = [16, 16], strides = [1, 1]} : vector<16x32xf32> to vector<16x16xf32>
    %36 = vector.extract_strided_slice %34 {offsets = [0, 16], sizes = [16, 16], strides = [1, 1]} : vector<16x32xf32> to vector<16x16xf32>
    %cst_20 = arith.constant 0.000000e+00 : f32
    %37 = vector.broadcast %cst_20 : f32 to vector<16x1xf32>
    %c0_21 = arith.constant 0 : index
    %c0_22 = arith.constant 0 : index
    %c0_23 = arith.constant 0 : index
    %38 = vector.load %arg2[%c0_21, %c0_22, %c0_23] : memref<2x32x32xf32, #tpu.memory_space<vmem>>, vector<1x32x32xf32>
    %39 = vector.shape_cast %38 : vector<1x32x32xf32> to vector<32x32xf32>
    %40 = vector.extract_strided_slice %39 {offsets = [0, 0], sizes = [16, 32], strides = [1, 1]} : vector<32x32xf32> to vector<16x32xf32>
    %cst_24 = arith.constant dense<0.000000e+00> : vector<16x32xf32>
    %41 = tpu.matmul %35, %40, %cst_24 {dimension_numbers = #tpu.dot_dimension_numbers<[1], [0], [0], [1], [0, 0, 1, 1], [], []>} : vector<16x16xf32>, vector<16x32xf32>, vector<16x32xf32> -> vector<16x32xf32>
    %42 = vector.extract_strided_slice %39 {offsets = [16, 0], sizes = [16, 32], strides = [1, 1]} : vector<32x32xf32> to vector<16x32xf32>
    %cst_25 = arith.constant dense<0.000000e+00> : vector<16x32xf32>
    %43 = tpu.matmul %36, %42, %cst_25 {dimension_numbers = #tpu.dot_dimension_numbers<[1], [0], [0], [1], [0, 0, 1, 1], [], []>} : vector<16x16xf32>, vector<16x32xf32>, vector<16x32xf32> -> vector<16x32xf32>
    %44 = arith.addf %41, %43 : vector<16x32xf32>
    %c0_26 = arith.constant 0 : index
    %c0_27 = arith.constant 0 : index
    %c0_28 = arith.constant 0 : index
    %45 = vector.load %arg3[%c0_26, %c0_27, %c0_28] : memref<2x1x32xf32, #tpu.memory_space<vmem>>, vector<1x1x32xf32>
    %46 = vector.shape_cast %45 : vector<1x1x32xf32> to vector<1x32xf32>
    %47 = vector.broadcast %46 : vector<1x32xf32> to vector<16x32xf32>
    %48 = arith.addf %44, %47 : vector<16x32xf32>
    %49 = vector.extract_strided_slice %48 {offsets = [0, 0], sizes = [16, 16], strides = [1, 1]} : vector<16x32xf32> to vector<16x16xf32>
    %50 = vector.extract_strided_slice %48 {offsets = [0, 16], sizes = [16, 16], strides = [1, 1]} : vector<16x32xf32> to vector<16x16xf32>
    %c0_29 = arith.constant 0 : index
    %c0_30 = arith.constant 0 : index
    %c0_31 = arith.constant 0 : index
    %51 = vector.load %arg4[%c0_29, %c0_30, %c0_31] : memref<2x144x32xf32, #tpu.memory_space<vmem>>, vector<1x144x32xf32>
    %52 = vector.shape_cast %51 : vector<1x144x32xf32> to vector<144x32xf32>
    %53 = vector.shape_cast %49 : vector<16x16xf32> to vector<1x16x16xf32>
    %c0_32 = arith.constant 0 : index
    %c8 = arith.constant 8 : index
    %c0_33 = arith.constant 0 : index
    %54 = vector.load %arg15[%c0_32, %c8, %c0_33] : memref<1x32x16xf32, #tpu.memory_space<vmem>>, vector<1x16x16xf32>
    tpu.vector_store %arg15[%c0_32, %c8, %c0_33], %53 {strides = array<i32>} : memref<1x32x16xf32, #tpu.memory_space<vmem>>, vector<1x16x16xf32>,
    %c0_34 = arith.constant 0 : index
    %c3 = arith.constant 3 : index
    %c0_35 = arith.constant 0 : index
    %55 = vector.load %arg15[%c0_34, %c3, %c0_35] : memref<1x32x16xf32, #tpu.memory_space<vmem>>, vector<1x16x16xf32>
    %56 = vector.broadcast %28 : vector<1x16x1xf32> to vector<1x16x16xf32>
    %57 = arith.mulf %55, %56 : vector<1x16x16xf32>
    %58 = vector.shape_cast %57 : vector<1x16x16xf32> to vector<16x16xf32>
    %c0_36 = arith.constant 0 : index
    %c4 = arith.constant 4 : index
    %c0_37 = arith.constant 0 : index
    %59 = vector.load %arg15[%c0_36, %c4, %c0_37] : memref<1x32x16xf32, #tpu.memory_space<vmem>>, vector<1x16x16xf32>
    %60 = vector.shape_cast %59 : vector<1x16x16xf32> to vector<16x16xf32>
    %c0_38 = arith.constant 0 : index
    %c5 = arith.constant 5 : index
    %c0_39 = arith.constant 0 : index
    %61 = vector.load %arg15[%c0_38, %c5, %c0_39] : memref<1x32x16xf32, #tpu.memory_space<vmem>>, vector<1x16x16xf32>
    %62 = vector.broadcast %32 : vector<1x16x1xf32> to vector<1x16x16xf32>
    %63 = arith.mulf %61, %62 : vector<1x16x16xf32>
    %64 = vector.shape_cast %63 : vector<1x16x16xf32> to vector<16x16xf32>
    %c0_40 = arith.constant 0 : index
    %c7 = arith.constant 7 : index
    %c0_41 = arith.constant 0 : index
    %65 = vector.load %arg15[%c0_40, %c7, %c0_41] : memref<1x32x16xf32, #tpu.memory_space<vmem>>, vector<1x16x16xf32>
    %66 = vector.broadcast %28 : vector<1x16x1xf32> to vector<1x16x16xf32>
    %67 = arith.mulf %65, %66 : vector<1x16x16xf32>
    %68 = vector.shape_cast %67 : vector<1x16x16xf32> to vector<16x16xf32>
    %c0_42 = arith.constant 0 : index
    %c8_43 = arith.constant 8 : index
    %c0_44 = arith.constant 0 : index
    %69 = vector.load %arg15[%c0_42, %c8_43, %c0_44] : memref<1x32x16xf32, #tpu.memory_space<vmem>>, vector<1x16x16xf32>
    %70 = vector.shape_cast %69 : vector<1x16x16xf32> to vector<16x16xf32>
    %c0_45 = arith.constant 0 : index
    %c9 = arith.constant 9 : index
    %c0_46 = arith.constant 0 : index
    %71 = vector.load %arg15[%c0_45, %c9, %c0_46] : memref<1x32x16xf32, #tpu.memory_space<vmem>>, vector<1x16x16xf32>
    %72 = vector.broadcast %32 : vector<1x16x1xf32> to vector<1x16x16xf32>
    %73 = arith.mulf %71, %72 : vector<1x16x16xf32>
    %74 = vector.shape_cast %73 : vector<1x16x16xf32> to vector<16x16xf32>
    %c0_47 = arith.constant 0 : index
    %c11 = arith.constant 11 : index
    %c0_48 = arith.constant 0 : index
    %75 = vector.load %arg15[%c0_47, %c11, %c0_48] : memref<1x32x16xf32, #tpu.memory_space<vmem>>, vector<1x16x16xf32>
    %76 = vector.broadcast %28 : vector<1x16x1xf32> to vector<1x16x16xf32>
    %77 = arith.mulf %75, %76 : vector<1x16x16xf32>
    %78 = vector.shape_cast %77 : vector<1x16x16xf32> to vector<16x16xf32>
    %c0_49 = arith.constant 0 : index
    %c12 = arith.constant 12 : index
    %c0_50 = arith.constant 0 : index
    %79 = vector.load %arg15[%c0_49, %c12, %c0_50] : memref<1x32x16xf32, #tpu.memory_space<vmem>>, vector<1x16x16xf32>
    %80 = vector.shape_cast %79 : vector<1x16x16xf32> to vector<16x16xf32>
    %c0_51 = arith.constant 0 : index
    %c13 = arith.constant 13 : index
    %c0_52 = arith.constant 0 : index
    %81 = vector.load %arg15[%c0_51, %c13, %c0_52] : memref<1x32x16xf32, #tpu.memory_space<vmem>>, vector<1x16x16xf32>
    %82 = vector.broadcast %32 : vector<1x16x1xf32> to vector<1x16x16xf32>
    %83 = arith.mulf %81, %82 : vector<1x16x16xf32>
    %84 = vector.shape_cast %83 : vector<1x16x16xf32> to vector<16x16xf32>
    %85 = tpu.concatenate %58, %60, %64, %68, %70, %74, %78, %80, %84 in 1 : vector<16x16xf32>, vector<16x16xf32>, vector<16x16xf32>, vector<16x16xf32>, vector<16x16xf32>, vector<16x16xf32>, vector<16x16xf32>, vector<16x16xf32>, vector<16x16xf32> -> vector<16x144xf32>
    %cst_53 = arith.constant dense<0.000000e+00> : vector<16x32xf32>
    %86 = tpu.matmul %85, %52, %cst_53 {dimension_numbers = #tpu.dot_dimension_numbers<[1], [0], [0], [1], [0, 0, 1, 1], [], []>} : vector<16x144xf32>, vector<144x32xf32>, vector<16x32xf32> -> vector<16x32xf32>
    %c0_54 = arith.constant 0 : index
    %c0_55 = arith.constant 0 : index
    %c0_56 = arith.constant 0 : index
    %87 = vector.load %arg5[%c0_54, %c0_55, %c0_56] : memref<2x1x32xf32, #tpu.memory_space<vmem>>, vector<1x1x32xf32>
    %88 = vector.shape_cast %87 : vector<1x1x32xf32> to vector<1x32xf32>
    %89 = vector.broadcast %88 : vector<1x32xf32> to vector<16x32xf32>
    %90 = arith.addf %86, %89 : vector<16x32xf32>
    %c0_57 = arith.constant 0 : index
    %c0_58 = arith.constant 0 : index
    %c0_59 = arith.constant 0 : index
    %91 = vector.load %arg6[%c0_57, %c0_58, %c0_59] : memref<2x1x32xf32, #tpu.memory_space<vmem>>, vector<1x1x32xf32>
    %92 = vector.shape_cast %91 : vector<1x1x32xf32> to vector<1x32xf32>
    %93 = vector.broadcast %92 : vector<1x32xf32> to vector<16x32xf32>
    %94 = arith.mulf %90, %93 : vector<16x32xf32>
    %cst_60 = arith.constant 0.000000e+00 : f32
    %95 = vector.broadcast %cst_60 : f32 to vector<16x32xf32>
    %96 = arith.maximumf %94, %95 : vector<16x32xf32>
    %c0_61 = arith.constant 0 : index
    %c0_62 = arith.constant 0 : index
    %c0_63 = arith.constant 0 : index
    %97 = vector.load %arg7[%c0_61, %c0_62, %c0_63] : memref<2x32x32xf32, #tpu.memory_space<vmem>>, vector<1x32x32xf32>
    %98 = vector.shape_cast %97 : vector<1x32x32xf32> to vector<32x32xf32>
    %cst_64 = arith.constant dense<0.000000e+00> : vector<16x32xf32>
    %99 = tpu.matmul %96, %98, %cst_64 {dimension_numbers = #tpu.dot_dimension_numbers<[1], [0], [0], [1], [0, 0, 1, 1], [], []>} : vector<16x32xf32>, vector<32x32xf32>, vector<16x32xf32> -> vector<16x32xf32>
    %c0_65 = arith.constant 0 : index
    %c0_66 = arith.constant 0 : index
    %c0_67 = arith.constant 0 : index
    %100 = vector.load %arg8[%c0_65, %c0_66, %c0_67] : memref<2x1x32xf32, #tpu.memory_space<vmem>>, vector<1x1x32xf32>
    %101 = vector.shape_cast %100 : vector<1x1x32xf32> to vector<1x32xf32>
    %102 = vector.broadcast %101 : vector<1x32xf32> to vector<16x32xf32>
    %103 = arith.addf %99, %102 : vector<16x32xf32>
    %c0_68 = arith.constant 0 : index
    %c0_69 = arith.constant 0 : index
    %c0_70 = arith.constant 0 : index
    %104 = vector.load %arg9[%c0_68, %c0_69, %c0_70] : memref<2x1x32xf32, #tpu.memory_space<vmem>>, vector<1x1x32xf32>
    %105 = vector.shape_cast %104 : vector<1x1x32xf32> to vector<1x32xf32>
    %106 = vector.broadcast %105 : vector<1x32xf32> to vector<16x32xf32>
    %107 = arith.mulf %103, %106 : vector<16x32xf32>
    %cst_71 = arith.constant 0.000000e+00 : f32
    %108 = vector.broadcast %cst_71 : f32 to vector<16x32xf32>
    %109 = arith.maximumf %107, %108 : vector<16x32xf32>
    %c0_72 = arith.constant 0 : index
    %c0_73 = arith.constant 0 : index
    %c0_74 = arith.constant 0 : index
    %110 = vector.load %arg10[%c0_72, %c0_73, %c0_74] : memref<2x288x32xf32, #tpu.memory_space<vmem>>, vector<1x288x32xf32>
    %111 = vector.shape_cast %110 : vector<1x288x32xf32> to vector<288x32xf32>
    %112 = vector.shape_cast %109 : vector<16x32xf32> to vector<1x16x32xf32>
    %c0_75 = arith.constant 0 : index
    %c8_76 = arith.constant 8 : index
    %c0_77 = arith.constant 0 : index
    %113 = vector.load %arg16[%c0_75, %c8_76, %c0_77] : memref<1x32x32xf32, #tpu.memory_space<vmem>>, vector<1x16x32xf32>
    tpu.vector_store %arg16[%c0_75, %c8_76, %c0_77], %112 {strides = array<i32>} : memref<1x32x32xf32, #tpu.memory_space<vmem>>, vector<1x16x32xf32>,
    %c0_78 = arith.constant 0 : index
    %c3_79 = arith.constant 3 : index
    %c0_80 = arith.constant 0 : index
    %114 = vector.load %arg16[%c0_78, %c3_79, %c0_80] : memref<1x32x32xf32, #tpu.memory_space<vmem>>, vector<1x16x32xf32>
    %115 = vector.broadcast %28 : vector<1x16x1xf32> to vector<1x16x32xf32>
    %116 = arith.mulf %114, %115 : vector<1x16x32xf32>
    %117 = vector.shape_cast %116 : vector<1x16x32xf32> to vector<16x32xf32>
    %c0_81 = arith.constant 0 : index
    %c4_82 = arith.constant 4 : index
    %c0_83 = arith.constant 0 : index
    %118 = vector.load %arg16[%c0_81, %c4_82, %c0_83] : memref<1x32x32xf32, #tpu.memory_space<vmem>>, vector<1x16x32xf32>
    %119 = vector.shape_cast %118 : vector<1x16x32xf32> to vector<16x32xf32>
    %c0_84 = arith.constant 0 : index
    %c5_85 = arith.constant 5 : index
    %c0_86 = arith.constant 0 : index
    %120 = vector.load %arg16[%c0_84, %c5_85, %c0_86] : memref<1x32x32xf32, #tpu.memory_space<vmem>>, vector<1x16x32xf32>
    %121 = vector.broadcast %32 : vector<1x16x1xf32> to vector<1x16x32xf32>
    %122 = arith.mulf %120, %121 : vector<1x16x32xf32>
    %123 = vector.shape_cast %122 : vector<1x16x32xf32> to vector<16x32xf32>
    %c0_87 = arith.constant 0 : index
    %c7_88 = arith.constant 7 : index
    %c0_89 = arith.constant 0 : index
    %124 = vector.load %arg16[%c0_87, %c7_88, %c0_89] : memref<1x32x32xf32, #tpu.memory_space<vmem>>, vector<1x16x32xf32>
    %125 = vector.broadcast %28 : vector<1x16x1xf32> to vector<1x16x32xf32>
    %126 = arith.mulf %124, %125 : vector<1x16x32xf32>
    %127 = vector.shape_cast %126 : vector<1x16x32xf32> to vector<16x32xf32>
    %c0_90 = arith.constant 0 : index
    %c8_91 = arith.constant 8 : index
    %c0_92 = arith.constant 0 : index
    %128 = vector.load %arg16[%c0_90, %c8_91, %c0_92] : memref<1x32x32xf32, #tpu.memory_space<vmem>>, vector<1x16x32xf32>
    %129 = vector.shape_cast %128 : vector<1x16x32xf32> to vector<16x32xf32>
    %c0_93 = arith.constant 0 : index
    %c9_94 = arith.constant 9 : index
    %c0_95 = arith.constant 0 : index
    %130 = vector.load %arg16[%c0_93, %c9_94, %c0_95] : memref<1x32x32xf32, #tpu.memory_space<vmem>>, vector<1x16x32xf32>
    %131 = vector.broadcast %32 : vector<1x16x1xf32> to vector<1x16x32xf32>
    %132 = arith.mulf %130, %131 : vector<1x16x32xf32>
    %133 = vector.shape_cast %132 : vector<1x16x32xf32> to vector<16x32xf32>
    %c0_96 = arith.constant 0 : index
    %c11_97 = arith.constant 11 : index
    %c0_98 = arith.constant 0 : index
    %134 = vector.load %arg16[%c0_96, %c11_97, %c0_98] : memref<1x32x32xf32, #tpu.memory_space<vmem>>, vector<1x16x32xf32>
    %135 = vector.broadcast %28 : vector<1x16x1xf32> to vector<1x16x32xf32>
    %136 = arith.mulf %134, %135 : vector<1x16x32xf32>
    %137 = vector.shape_cast %136 : vector<1x16x32xf32> to vector<16x32xf32>
    %c0_99 = arith.constant 0 : index
    %c12_100 = arith.constant 12 : index
    %c0_101 = arith.constant 0 : index
    %138 = vector.load %arg16[%c0_99, %c12_100, %c0_101] : memref<1x32x32xf32, #tpu.memory_space<vmem>>, vector<1x16x32xf32>
    %139 = vector.shape_cast %138 : vector<1x16x32xf32> to vector<16x32xf32>
    %c0_102 = arith.constant 0 : index
    %c13_103 = arith.constant 13 : index
    %c0_104 = arith.constant 0 : index
    %140 = vector.load %arg16[%c0_102, %c13_103, %c0_104] : memref<1x32x32xf32, #tpu.memory_space<vmem>>, vector<1x16x32xf32>
    %141 = vector.broadcast %32 : vector<1x16x1xf32> to vector<1x16x32xf32>
    %142 = arith.mulf %140, %141 : vector<1x16x32xf32>
    %143 = vector.shape_cast %142 : vector<1x16x32xf32> to vector<16x32xf32>
    %144 = tpu.concatenate %117, %119, %123, %127, %129, %133, %137, %139, %143 in 1 : vector<16x32xf32>, vector<16x32xf32>, vector<16x32xf32>, vector<16x32xf32>, vector<16x32xf32>, vector<16x32xf32>, vector<16x32xf32>, vector<16x32xf32>, vector<16x32xf32> -> vector<16x288xf32>
    %cst_105 = arith.constant dense<0.000000e+00> : vector<16x32xf32>
    %145 = tpu.matmul %144, %111, %cst_105 {dimension_numbers = #tpu.dot_dimension_numbers<[1], [0], [0], [1], [0, 0, 1, 1], [], []>} : vector<16x288xf32>, vector<288x32xf32>, vector<16x32xf32> -> vector<16x32xf32>
    %c0_106 = arith.constant 0 : index
    %c0_107 = arith.constant 0 : index
    %c0_108 = arith.constant 0 : index
    %146 = vector.load %arg11[%c0_106, %c0_107, %c0_108] : memref<2x1x32xf32, #tpu.memory_space<vmem>>, vector<1x1x32xf32>
    %147 = vector.shape_cast %146 : vector<1x1x32xf32> to vector<1x32xf32>
    %148 = vector.broadcast %147 : vector<1x32xf32> to vector<16x32xf32>
    %149 = arith.addf %145, %148 : vector<16x32xf32>
    %c0_109 = arith.constant 0 : index
    %c0_110 = arith.constant 0 : index
    %c0_111 = arith.constant 0 : index
    %150 = vector.load %arg12[%c0_109, %c0_110, %c0_111] : memref<2x1x32xf32, #tpu.memory_space<vmem>>, vector<1x1x32xf32>
    %151 = vector.shape_cast %150 : vector<1x1x32xf32> to vector<1x32xf32>
    %152 = vector.broadcast %151 : vector<1x32xf32> to vector<16x32xf32>
    %153 = arith.mulf %149, %152 : vector<16x32xf32>
    %154 = vector.extract_strided_slice %153 {offsets = [0, 0], sizes = [16, 16], strides = [1, 1]} : vector<16x32xf32> to vector<16x16xf32>
    %155 = vector.extract_strided_slice %153 {offsets = [0, 16], sizes = [16, 16], strides = [1, 1]} : vector<16x32xf32> to vector<16x16xf32>
    %cst_112 = arith.constant 2.000000e+00 : f32
    %156 = vector.broadcast %cst_112 : f32 to vector<16x16xf32>
    %157 = arith.addf %155, %156 : vector<16x16xf32>
    %cst_113 = arith.constant 0.000000e+00 : f32
    %158 = vector.broadcast %cst_113 : f32 to vector<16x16xf32>
    %159 = arith.minimumf %157, %158 : vector<16x16xf32>
    %160 = math.absf %157 : vector<16x16xf32>
    %cst_114 = arith.constant 0.000000e+00 : f32
    %161 = vector.broadcast %cst_114 : f32 to vector<16x16xf32>
    %162 = arith.subf %161, %160 : vector<16x16xf32>
    %163 = math.exp %162 : vector<16x16xf32>
    %cst_115 = arith.constant 1.000000e+00 : f32
    %164 = vector.broadcast %cst_115 : f32 to vector<16x16xf32>
    %165 = arith.addf %164, %163 : vector<16x16xf32>
    %166 = math.log %165 : vector<16x16xf32>
    %167 = arith.subf %159, %166 : vector<16x16xf32>
    %168 = arith.addf %50, %154 : vector<16x16xf32>
    %169 = math.exp %167 : vector<16x16xf32>
    %170 = arith.mulf %168, %169 : vector<16x16xf32>
    %cst_116 = arith.constant dense<0.000000e+00> : vector<16xf32>
    %171 = vector.multi_reduction <add>, %167, %cst_116 [1] : vector<16x16xf32> to vector<16xf32>
    %172 = vector.shape_cast %171 : vector<16xf32> to vector<16x1xf32>
    %173 = arith.addf %37, %172 : vector<16x1xf32>
    %c1 = arith.constant 1 : index
    %c0_117 = arith.constant 0 : index
    %c0_118 = arith.constant 0 : index
    %174 = vector.load %arg2[%c1, %c0_117, %c0_118] : memref<2x32x32xf32, #tpu.memory_space<vmem>>, vector<1x32x32xf32>
    %175 = vector.shape_cast %174 : vector<1x32x32xf32> to vector<32x32xf32>
    %176 = vector.extract_strided_slice %175 {offsets = [0, 0], sizes = [16, 32], strides = [1, 1]} : vector<32x32xf32> to vector<16x32xf32>
    %cst_119 = arith.constant dense<0.000000e+00> : vector<16x32xf32>
    %177 = tpu.matmul %49, %176, %cst_119 {dimension_numbers = #tpu.dot_dimension_numbers<[1], [0], [0], [1], [0, 0, 1, 1], [], []>} : vector<16x16xf32>, vector<16x32xf32>, vector<16x32xf32> -> vector<16x32xf32>
    %178 = vector.extract_strided_slice %175 {offsets = [16, 0], sizes = [16, 32], strides = [1, 1]} : vector<32x32xf32> to vector<16x32xf32>
    %cst_120 = arith.constant dense<0.000000e+00> : vector<16x32xf32>
    %179 = tpu.matmul %170, %178, %cst_120 {dimension_numbers = #tpu.dot_dimension_numbers<[1], [0], [0], [1], [0, 0, 1, 1], [], []>} : vector<16x16xf32>, vector<16x32xf32>, vector<16x32xf32> -> vector<16x32xf32>
    %180 = arith.addf %177, %179 : vector<16x32xf32>
    %c1_121 = arith.constant 1 : index
    %c0_122 = arith.constant 0 : index
    %c0_123 = arith.constant 0 : index
    %181 = vector.load %arg3[%c1_121, %c0_122, %c0_123] : memref<2x1x32xf32, #tpu.memory_space<vmem>>, vector<1x1x32xf32>
    %182 = vector.shape_cast %181 : vector<1x1x32xf32> to vector<1x32xf32>
    %183 = vector.broadcast %182 : vector<1x32xf32> to vector<16x32xf32>
    %184 = arith.addf %180, %183 : vector<16x32xf32>
    %185 = vector.extract_strided_slice %184 {offsets = [0, 0], sizes = [16, 16], strides = [1, 1]} : vector<16x32xf32> to vector<16x16xf32>
    %186 = vector.extract_strided_slice %184 {offsets = [0, 16], sizes = [16, 16], strides = [1, 1]} : vector<16x32xf32> to vector<16x16xf32>
    %c1_124 = arith.constant 1 : index
    %c0_125 = arith.constant 0 : index
    %c0_126 = arith.constant 0 : index
    %187 = vector.load %arg4[%c1_124, %c0_125, %c0_126] : memref<2x144x32xf32, #tpu.memory_space<vmem>>, vector<1x144x32xf32>
    %188 = vector.shape_cast %187 : vector<1x144x32xf32> to vector<144x32xf32>
    %189 = vector.shape_cast %185 : vector<16x16xf32> to vector<1x16x16xf32>
    %c0_127 = arith.constant 0 : index
    %c8_128 = arith.constant 8 : index
    %c0_129 = arith.constant 0 : index
    %190 = vector.load %arg15[%c0_127, %c8_128, %c0_129] : memref<1x32x16xf32, #tpu.memory_space<vmem>>, vector<1x16x16xf32>
    tpu.vector_store %arg15[%c0_127, %c8_128, %c0_129], %189 {strides = array<i32>} : memref<1x32x16xf32, #tpu.memory_space<vmem>>, vector<1x16x16xf32>,
    %c0_130 = arith.constant 0 : index
    %c3_131 = arith.constant 3 : index
    %c0_132 = arith.constant 0 : index
    %191 = vector.load %arg15[%c0_130, %c3_131, %c0_132] : memref<1x32x16xf32, #tpu.memory_space<vmem>>, vector<1x16x16xf32>
    %192 = vector.broadcast %28 : vector<1x16x1xf32> to vector<1x16x16xf32>
    %193 = arith.mulf %191, %192 : vector<1x16x16xf32>
    %194 = vector.shape_cast %193 : vector<1x16x16xf32> to vector<16x16xf32>
    %c0_133 = arith.constant 0 : index
    %c4_134 = arith.constant 4 : index
    %c0_135 = arith.constant 0 : index
    %195 = vector.load %arg15[%c0_133, %c4_134, %c0_135] : memref<1x32x16xf32, #tpu.memory_space<vmem>>, vector<1x16x16xf32>
    %196 = vector.shape_cast %195 : vector<1x16x16xf32> to vector<16x16xf32>
    %c0_136 = arith.constant 0 : index
    %c5_137 = arith.constant 5 : index
    %c0_138 = arith.constant 0 : index
    %197 = vector.load %arg15[%c0_136, %c5_137, %c0_138] : memref<1x32x16xf32, #tpu.memory_space<vmem>>, vector<1x16x16xf32>
    %198 = vector.broadcast %32 : vector<1x16x1xf32> to vector<1x16x16xf32>
    %199 = arith.mulf %197, %198 : vector<1x16x16xf32>
    %200 = vector.shape_cast %199 : vector<1x16x16xf32> to vector<16x16xf32>
    %c0_139 = arith.constant 0 : index
    %c7_140 = arith.constant 7 : index
    %c0_141 = arith.constant 0 : index
    %201 = vector.load %arg15[%c0_139, %c7_140, %c0_141] : memref<1x32x16xf32, #tpu.memory_space<vmem>>, vector<1x16x16xf32>
    %202 = vector.broadcast %28 : vector<1x16x1xf32> to vector<1x16x16xf32>
    %203 = arith.mulf %201, %202 : vector<1x16x16xf32>
    %204 = vector.shape_cast %203 : vector<1x16x16xf32> to vector<16x16xf32>
    %c0_142 = arith.constant 0 : index
    %c8_143 = arith.constant 8 : index
    %c0_144 = arith.constant 0 : index
    %205 = vector.load %arg15[%c0_142, %c8_143, %c0_144] : memref<1x32x16xf32, #tpu.memory_space<vmem>>, vector<1x16x16xf32>
    %206 = vector.shape_cast %205 : vector<1x16x16xf32> to vector<16x16xf32>
    %c0_145 = arith.constant 0 : index
    %c9_146 = arith.constant 9 : index
    %c0_147 = arith.constant 0 : index
    %207 = vector.load %arg15[%c0_145, %c9_146, %c0_147] : memref<1x32x16xf32, #tpu.memory_space<vmem>>, vector<1x16x16xf32>
    %208 = vector.broadcast %32 : vector<1x16x1xf32> to vector<1x16x16xf32>
    %209 = arith.mulf %207, %208 : vector<1x16x16xf32>
    %210 = vector.shape_cast %209 : vector<1x16x16xf32> to vector<16x16xf32>
    %c0_148 = arith.constant 0 : index
    %c11_149 = arith.constant 11 : index
    %c0_150 = arith.constant 0 : index
    %211 = vector.load %arg15[%c0_148, %c11_149, %c0_150] : memref<1x32x16xf32, #tpu.memory_space<vmem>>, vector<1x16x16xf32>
    %212 = vector.broadcast %28 : vector<1x16x1xf32> to vector<1x16x16xf32>
    %213 = arith.mulf %211, %212 : vector<1x16x16xf32>
    %214 = vector.shape_cast %213 : vector<1x16x16xf32> to vector<16x16xf32>
    %c0_151 = arith.constant 0 : index
    %c12_152 = arith.constant 12 : index
    %c0_153 = arith.constant 0 : index
    %215 = vector.load %arg15[%c0_151, %c12_152, %c0_153] : memref<1x32x16xf32, #tpu.memory_space<vmem>>, vector<1x16x16xf32>
    %216 = vector.shape_cast %215 : vector<1x16x16xf32> to vector<16x16xf32>
    %c0_154 = arith.constant 0 : index
    %c13_155 = arith.constant 13 : index
    %c0_156 = arith.constant 0 : index
    %217 = vector.load %arg15[%c0_154, %c13_155, %c0_156] : memref<1x32x16xf32, #tpu.memory_space<vmem>>, vector<1x16x16xf32>
    %218 = vector.broadcast %32 : vector<1x16x1xf32> to vector<1x16x16xf32>
    %219 = arith.mulf %217, %218 : vector<1x16x16xf32>
    %220 = vector.shape_cast %219 : vector<1x16x16xf32> to vector<16x16xf32>
    %221 = tpu.concatenate %194, %196, %200, %204, %206, %210, %214, %216, %220 in 1 : vector<16x16xf32>, vector<16x16xf32>, vector<16x16xf32>, vector<16x16xf32>, vector<16x16xf32>, vector<16x16xf32>, vector<16x16xf32>, vector<16x16xf32>, vector<16x16xf32> -> vector<16x144xf32>
    %cst_157 = arith.constant dense<0.000000e+00> : vector<16x32xf32>
    %222 = tpu.matmul %221, %188, %cst_157 {dimension_numbers = #tpu.dot_dimension_numbers<[1], [0], [0], [1], [0, 0, 1, 1], [], []>} : vector<16x144xf32>, vector<144x32xf32>, vector<16x32xf32> -> vector<16x32xf32>
    %c1_158 = arith.constant 1 : index
    %c0_159 = arith.constant 0 : index
    %c0_160 = arith.constant 0 : index
    %223 = vector.load %arg5[%c1_158, %c0_159, %c0_160] : memref<2x1x32xf32, #tpu.memory_space<vmem>>, vector<1x1x32xf32>
    %224 = vector.shape_cast %223 : vector<1x1x32xf32> to vector<1x32xf32>
    %225 = vector.broadcast %224 : vector<1x32xf32> to vector<16x32xf32>
    %226 = arith.addf %222, %225 : vector<16x32xf32>
    %c1_161 = arith.constant 1 : index
    %c0_162 = arith.constant 0 : index
    %c0_163 = arith.constant 0 : index
    %227 = vector.load %arg6[%c1_161, %c0_162, %c0_163] : memref<2x1x32xf32, #tpu.memory_space<vmem>>, vector<1x1x32xf32>
    %228 = vector.shape_cast %227 : vector<1x1x32xf32> to vector<1x32xf32>
    %229 = vector.broadcast %228 : vector<1x32xf32> to vector<16x32xf32>
    %230 = arith.mulf %226, %229 : vector<16x32xf32>
    %cst_164 = arith.constant 0.000000e+00 : f32
    %231 = vector.broadcast %cst_164 : f32 to vector<16x32xf32>
    %232 = arith.maximumf %230, %231 : vector<16x32xf32>
    %c1_165 = arith.constant 1 : index
    %c0_166 = arith.constant 0 : index
    %c0_167 = arith.constant 0 : index
    %233 = vector.load %arg7[%c1_165, %c0_166, %c0_167] : memref<2x32x32xf32, #tpu.memory_space<vmem>>, vector<1x32x32xf32>
    %234 = vector.shape_cast %233 : vector<1x32x32xf32> to vector<32x32xf32>
    %cst_168 = arith.constant dense<0.000000e+00> : vector<16x32xf32>
    %235 = tpu.matmul %232, %234, %cst_168 {dimension_numbers = #tpu.dot_dimension_numbers<[1], [0], [0], [1], [0, 0, 1, 1], [], []>} : vector<16x32xf32>, vector<32x32xf32>, vector<16x32xf32> -> vector<16x32xf32>
    %c1_169 = arith.constant 1 : index
    %c0_170 = arith.constant 0 : index
    %c0_171 = arith.constant 0 : index
    %236 = vector.load %arg8[%c1_169, %c0_170, %c0_171] : memref<2x1x32xf32, #tpu.memory_space<vmem>>, vector<1x1x32xf32>
    %237 = vector.shape_cast %236 : vector<1x1x32xf32> to vector<1x32xf32>
    %238 = vector.broadcast %237 : vector<1x32xf32> to vector<16x32xf32>
    %239 = arith.addf %235, %238 : vector<16x32xf32>
    %c1_172 = arith.constant 1 : index
    %c0_173 = arith.constant 0 : index
    %c0_174 = arith.constant 0 : index
    %240 = vector.load %arg9[%c1_172, %c0_173, %c0_174] : memref<2x1x32xf32, #tpu.memory_space<vmem>>, vector<1x1x32xf32>
    %241 = vector.shape_cast %240 : vector<1x1x32xf32> to vector<1x32xf32>
    %242 = vector.broadcast %241 : vector<1x32xf32> to vector<16x32xf32>
    %243 = arith.mulf %239, %242 : vector<16x32xf32>
    %cst_175 = arith.constant 0.000000e+00 : f32
    %244 = vector.broadcast %cst_175 : f32 to vector<16x32xf32>
    %245 = arith.maximumf %243, %244 : vector<16x32xf32>
    %c1_176 = arith.constant 1 : index
    %c0_177 = arith.constant 0 : index
    %c0_178 = arith.constant 0 : index
    %246 = vector.load %arg10[%c1_176, %c0_177, %c0_178] : memref<2x288x32xf32, #tpu.memory_space<vmem>>, vector<1x288x32xf32>
    %247 = vector.shape_cast %246 : vector<1x288x32xf32> to vector<288x32xf32>
    %248 = vector.shape_cast %245 : vector<16x32xf32> to vector<1x16x32xf32>
    %c0_179 = arith.constant 0 : index
    %c8_180 = arith.constant 8 : index
    %c0_181 = arith.constant 0 : index
    %249 = vector.load %arg16[%c0_179, %c8_180, %c0_181] : memref<1x32x32xf32, #tpu.memory_space<vmem>>, vector<1x16x32xf32>
    tpu.vector_store %arg16[%c0_179, %c8_180, %c0_181], %248 {strides = array<i32>} : memref<1x32x32xf32, #tpu.memory_space<vmem>>, vector<1x16x32xf32>,
    %c0_182 = arith.constant 0 : index
    %c3_183 = arith.constant 3 : index
    %c0_184 = arith.constant 0 : index
    %250 = vector.load %arg16[%c0_182, %c3_183, %c0_184] : memref<1x32x32xf32, #tpu.memory_space<vmem>>, vector<1x16x32xf32>
    %251 = vector.broadcast %28 : vector<1x16x1xf32> to vector<1x16x32xf32>
    %252 = arith.mulf %250, %251 : vector<1x16x32xf32>
    %253 = vector.shape_cast %252 : vector<1x16x32xf32> to vector<16x32xf32>
    %c0_185 = arith.constant 0 : index
    %c4_186 = arith.constant 4 : index
    %c0_187 = arith.constant 0 : index
    %254 = vector.load %arg16[%c0_185, %c4_186, %c0_187] : memref<1x32x32xf32, #tpu.memory_space<vmem>>, vector<1x16x32xf32>
    %255 = vector.shape_cast %254 : vector<1x16x32xf32> to vector<16x32xf32>
    %c0_188 = arith.constant 0 : index
    %c5_189 = arith.constant 5 : index
    %c0_190 = arith.constant 0 : index
    %256 = vector.load %arg16[%c0_188, %c5_189, %c0_190] : memref<1x32x32xf32, #tpu.memory_space<vmem>>, vector<1x16x32xf32>
    %257 = vector.broadcast %32 : vector<1x16x1xf32> to vector<1x16x32xf32>
    %258 = arith.mulf %256, %257 : vector<1x16x32xf32>
    %259 = vector.shape_cast %258 : vector<1x16x32xf32> to vector<16x32xf32>
    %c0_191 = arith.constant 0 : index
    %c7_192 = arith.constant 7 : index
    %c0_193 = arith.constant 0 : index
    %260 = vector.load %arg16[%c0_191, %c7_192, %c0_193] : memref<1x32x32xf32, #tpu.memory_space<vmem>>, vector<1x16x32xf32>
    %261 = vector.broadcast %28 : vector<1x16x1xf32> to vector<1x16x32xf32>
    %262 = arith.mulf %260, %261 : vector<1x16x32xf32>
    %263 = vector.shape_cast %262 : vector<1x16x32xf32> to vector<16x32xf32>
    %c0_194 = arith.constant 0 : index
    %c8_195 = arith.constant 8 : index
    %c0_196 = arith.constant 0 : index
    %264 = vector.load %arg16[%c0_194, %c8_195, %c0_196] : memref<1x32x32xf32, #tpu.memory_space<vmem>>, vector<1x16x32xf32>
    %265 = vector.shape_cast %264 : vector<1x16x32xf32> to vector<16x32xf32>
    %c0_197 = arith.constant 0 : index
    %c9_198 = arith.constant 9 : index
    %c0_199 = arith.constant 0 : index
    %266 = vector.load %arg16[%c0_197, %c9_198, %c0_199] : memref<1x32x32xf32, #tpu.memory_space<vmem>>, vector<1x16x32xf32>
    %267 = vector.broadcast %32 : vector<1x16x1xf32> to vector<1x16x32xf32>
    %268 = arith.mulf %266, %267 : vector<1x16x32xf32>
    %269 = vector.shape_cast %268 : vector<1x16x32xf32> to vector<16x32xf32>
    %c0_200 = arith.constant 0 : index
    %c11_201 = arith.constant 11 : index
    %c0_202 = arith.constant 0 : index
    %270 = vector.load %arg16[%c0_200, %c11_201, %c0_202] : memref<1x32x32xf32, #tpu.memory_space<vmem>>, vector<1x16x32xf32>
    %271 = vector.broadcast %28 : vector<1x16x1xf32> to vector<1x16x32xf32>
    %272 = arith.mulf %270, %271 : vector<1x16x32xf32>
    %273 = vector.shape_cast %272 : vector<1x16x32xf32> to vector<16x32xf32>
    %c0_203 = arith.constant 0 : index
    %c12_204 = arith.constant 12 : index
    %c0_205 = arith.constant 0 : index
    %274 = vector.load %arg16[%c0_203, %c12_204, %c0_205] : memref<1x32x32xf32, #tpu.memory_space<vmem>>, vector<1x16x32xf32>
    %275 = vector.shape_cast %274 : vector<1x16x32xf32> to vector<16x32xf32>
    %c0_206 = arith.constant 0 : index
    %c13_207 = arith.constant 13 : index
    %c0_208 = arith.constant 0 : index
    %276 = vector.load %arg16[%c0_206, %c13_207, %c0_208] : memref<1x32x32xf32, #tpu.memory_space<vmem>>, vector<1x16x32xf32>
    %277 = vector.broadcast %32 : vector<1x16x1xf32> to vector<1x16x32xf32>
    %278 = arith.mulf %276, %277 : vector<1x16x32xf32>
    %279 = vector.shape_cast %278 : vector<1x16x32xf32> to vector<16x32xf32>
    %280 = tpu.concatenate %253, %255, %259, %263, %265, %269, %273, %275, %279 in 1 : vector<16x32xf32>, vector<16x32xf32>, vector<16x32xf32>, vector<16x32xf32>, vector<16x32xf32>, vector<16x32xf32>, vector<16x32xf32>, vector<16x32xf32>, vector<16x32xf32> -> vector<16x288xf32>
    %cst_209 = arith.constant dense<0.000000e+00> : vector<16x32xf32>
    %281 = tpu.matmul %280, %247, %cst_209 {dimension_numbers = #tpu.dot_dimension_numbers<[1], [0], [0], [1], [0, 0, 1, 1], [], []>} : vector<16x288xf32>, vector<288x32xf32>, vector<16x32xf32> -> vector<16x32xf32>
    %c1_210 = arith.constant 1 : index
    %c0_211 = arith.constant 0 : index
    %c0_212 = arith.constant 0 : index
    %282 = vector.load %arg11[%c1_210, %c0_211, %c0_212] : memref<2x1x32xf32, #tpu.memory_space<vmem>>, vector<1x1x32xf32>
    %283 = vector.shape_cast %282 : vector<1x1x32xf32> to vector<1x32xf32>
    %284 = vector.broadcast %283 : vector<1x32xf32> to vector<16x32xf32>
    %285 = arith.addf %281, %284 : vector<16x32xf32>
    %c1_213 = arith.constant 1 : index
    %c0_214 = arith.constant 0 : index
    %c0_215 = arith.constant 0 : index
    %286 = vector.load %arg12[%c1_213, %c0_214, %c0_215] : memref<2x1x32xf32, #tpu.memory_space<vmem>>, vector<1x1x32xf32>
    %287 = vector.shape_cast %286 : vector<1x1x32xf32> to vector<1x32xf32>
    %288 = vector.broadcast %287 : vector<1x32xf32> to vector<16x32xf32>
    %289 = arith.mulf %285, %288 : vector<16x32xf32>
    %290 = vector.extract_strided_slice %289 {offsets = [0, 0], sizes = [16, 16], strides = [1, 1]} : vector<16x32xf32> to vector<16x16xf32>
    %291 = vector.extract_strided_slice %289 {offsets = [0, 16], sizes = [16, 16], strides = [1, 1]} : vector<16x32xf32> to vector<16x16xf32>
    %cst_216 = arith.constant 2.000000e+00 : f32
    %292 = vector.broadcast %cst_216 : f32 to vector<16x16xf32>
    %293 = arith.addf %291, %292 : vector<16x16xf32>
    %cst_217 = arith.constant 0.000000e+00 : f32
    %294 = vector.broadcast %cst_217 : f32 to vector<16x16xf32>
    %295 = arith.minimumf %293, %294 : vector<16x16xf32>
    %296 = math.absf %293 : vector<16x16xf32>
    %cst_218 = arith.constant 0.000000e+00 : f32
    %297 = vector.broadcast %cst_218 : f32 to vector<16x16xf32>
    %298 = arith.subf %297, %296 : vector<16x16xf32>
    %299 = math.exp %298 : vector<16x16xf32>
    %cst_219 = arith.constant 1.000000e+00 : f32
    %300 = vector.broadcast %cst_219 : f32 to vector<16x16xf32>
    %301 = arith.addf %300, %299 : vector<16x16xf32>
    %302 = math.log %301 : vector<16x16xf32>
    %303 = arith.subf %295, %302 : vector<16x16xf32>
    %304 = arith.addf %186, %290 : vector<16x16xf32>
    %305 = math.exp %303 : vector<16x16xf32>
    %306 = arith.mulf %304, %305 : vector<16x16xf32>
    %cst_220 = arith.constant dense<0.000000e+00> : vector<16xf32>
    %307 = vector.multi_reduction <add>, %303, %cst_220 [1] : vector<16x16xf32> to vector<16xf32>
    %308 = vector.shape_cast %307 : vector<16xf32> to vector<16x1xf32>
    %309 = arith.addf %173, %308 : vector<16x1xf32>
    %310 = vector.shape_cast %185 : vector<16x16xf32> to vector<1x16x16xf32>
    %c0_221 = arith.constant 0 : index
    %c0_222 = arith.constant 0 : index
    %c0_223 = arith.constant 0 : index
    %311 = vector.load %arg13[%c0_221, %c0_222, %c0_223] : memref<1x16x32xf32, #tpu.memory_space<vmem>>, vector<1x16x16xf32>
    tpu.vector_store %arg13[%c0_221, %c0_222, %c0_223], %310 {strides = array<i32>} : memref<1x16x32xf32, #tpu.memory_space<vmem>>, vector<1x16x16xf32>,
    %312 = vector.shape_cast %306 : vector<16x16xf32> to vector<1x16x16xf32>
    %c0_224 = arith.constant 0 : index
    %c0_225 = arith.constant 0 : index
    %c16 = arith.constant 16 : index
    %313 = vector.load %arg13[%c0_224, %c0_225, %c16] : memref<1x16x32xf32, #tpu.memory_space<vmem>>, vector<1x16x16xf32>
    tpu.vector_store %arg13[%c0_224, %c0_225, %c16], %312 {strides = array<i32>} : memref<1x16x32xf32, #tpu.memory_space<vmem>>, vector<1x16x16xf32>,
    %314 = vector.shape_cast %309 : vector<16x1xf32> to vector<1x16x1xf32>
    %c0_226 = arith.constant 0 : index
    %c0_227 = arith.constant 0 : index
    %c0_228 = arith.constant 0 : index
    %315 = vector.load %arg14[%c0_226, %c0_227, %c0_228] : memref<1x16x1xf32, #tpu.memory_space<vmem>>, vector<1x16x1xf32>
    tpu.vector_store %arg14[%c0_226, %c0_227, %c0_228], %314 {strides = array<i32>} : memref<1x16x1xf32, #tpu.memory_space<vmem>>, vector<1x16x1xf32>,
    return
  }
  func.func @transform_0(%arg0: i32) -> (i32, i32, i32) {
    %c0_i32 = arith.constant 0 : i32
    %c0_i32_0 = arith.constant 0 : i32
    %c0_i32_1 = arith.constant 0 : i32
    return %arg0, %c0_i32, %c0_i32_0 : i32, i32, i32
  }
  func.func @transform_1(%arg0: i32) -> (i32, i32, i32) {
    %c0_i32 = arith.constant 0 : i32
    %c0_i32_0 = arith.constant 0 : i32
    %c0_i32_1 = arith.constant 0 : i32
    %c0_i32_2 = arith.constant 0 : i32
    return %c0_i32, %c0_i32_0, %c0_i32_1 : i32, i32, i32
  }
  func.func @transform_2(%arg0: i32) -> (i32, i32, i32) {
    %c0_i32 = arith.constant 0 : i32
    %c0_i32_0 = arith.constant 0 : i32
    %c0_i32_1 = arith.constant 0 : i32
    %c0_i32_2 = arith.constant 0 : i32
    return %c0_i32, %c0_i32_0, %c0_i32_1 : i32, i32, i32
  }
  func.func @transform_3(%arg0: i32) -> (i32, i32, i32) {
    %c0_i32 = arith.constant 0 : i32
    %c0_i32_0 = arith.constant 0 : i32
    %c0_i32_1 = arith.constant 0 : i32
    %c0_i32_2 = arith.constant 0 : i32
    return %c0_i32, %c0_i32_0, %c0_i32_1 : i32, i32, i32
  }
  func.func @transform_4(%arg0: i32) -> (i32, i32, i32) {
    %c0_i32 = arith.constant 0 : i32
    %c0_i32_0 = arith.constant 0 : i32
    %c0_i32_1 = arith.constant 0 : i32
    %c0_i32_2 = arith.constant 0 : i32
    return %c0_i32, %c0_i32_0, %c0_i32_1 : i32, i32, i32
  }
  func.func @transform_5(%arg0: i32) -> (i32, i32, i32) {
    %c0_i32 = arith.constant 0 : i32
    %c0_i32_0 = arith.constant 0 : i32
    %c0_i32_1 = arith.constant 0 : i32
    %c0_i32_2 = arith.constant 0 : i32
    return %c0_i32, %c0_i32_0, %c0_i32_1 : i32, i32, i32
  }
  func.func @transform_6(%arg0: i32) -> (i32, i32, i32) {
    %c0_i32 = arith.constant 0 : i32
    %c0_i32_0 = arith.constant 0 : i32
    %c0_i32_1 = arith.constant 0 : i32
    %c0_i32_2 = arith.constant 0 : i32
    return %c0_i32, %c0_i32_0, %c0_i32_1 : i32, i32, i32
  }
  func.func @transform_7(%arg0: i32) -> (i32, i32, i32) {
    %c0_i32 = arith.constant 0 : i32
    %c0_i32_0 = arith.constant 0 : i32
    %c0_i32_1 = arith.constant 0 : i32
    %c0_i32_2 = arith.constant 0 : i32
    return %c0_i32, %c0_i32_0, %c0_i32_1 : i32, i32, i32
  }
  func.func @transform_8(%arg0: i32) -> (i32, i32, i32) {
    %c0_i32 = arith.constant 0 : i32
    %c0_i32_0 = arith.constant 0 : i32
    %c0_i32_1 = arith.constant 0 : i32
    %c0_i32_2 = arith.constant 0 : i32
    return %c0_i32, %c0_i32_0, %c0_i32_1 : i32, i32, i32
  }
  func.func @transform_9(%arg0: i32) -> (i32, i32, i32) {
    %c0_i32 = arith.constant 0 : i32
    %c0_i32_0 = arith.constant 0 : i32
    %c0_i32_1 = arith.constant 0 : i32
    %c0_i32_2 = arith.constant 0 : i32
    return %c0_i32, %c0_i32_0, %c0_i32_1 : i32, i32, i32
  }
  func.func @transform_10(%arg0: i32) -> (i32, i32, i32) {
    %c0_i32 = arith.constant 0 : i32
    %c0_i32_0 = arith.constant 0 : i32
    %c0_i32_1 = arith.constant 0 : i32
    %c0_i32_2 = arith.constant 0 : i32
    return %c0_i32, %c0_i32_0, %c0_i32_1 : i32, i32, i32
  }
  func.func @transform_11(%arg0: i32) -> (i32, i32, i32) {
    %c0_i32 = arith.constant 0 : i32
    %c0_i32_0 = arith.constant 0 : i32
    %c0_i32_1 = arith.constant 0 : i32
    %c0_i32_2 = arith.constant 0 : i32
    return %c0_i32, %c0_i32_0, %c0_i32_1 : i32, i32, i32
  }
  func.func @transform_12(%arg0: i32) -> (i32, i32, i32) {
    %c0_i32 = arith.constant 0 : i32
    %c0_i32_0 = arith.constant 0 : i32
    %c0_i32_1 = arith.constant 0 : i32
    return %arg0, %c0_i32, %c0_i32_0 : i32, i32, i32
  }
  func.func @transform_13(%arg0: i32) -> (i32, i32, i32) {
    %c0_i32 = arith.constant 0 : i32
    %c0_i32_0 = arith.constant 0 : i32
    %c0_i32_1 = arith.constant 0 : i32
    return %arg0, %c0_i32, %c0_i32_0 : i32, i32, i32
  }
}

</mosaic_0001>

<llo_original>
// kernel: _lambda_.3
$region0: #{_lambda_.3}
  #allocation0 [shape = 'u32[]', space=smem, size = 0x4, offset = 0x4, fixed_abs, tag = 'smem constant byte address 0x4 - core index']
  #allocation1 [shape = 'u32[144,128]{1,0:T(1,128)}', space=vmem, size = 0x12000, scoped, tag = 'internal scratch']
  #allocation2 [shape = 'f32[1,32,16]{2,1,0:T(8,128)}', space=vmem, size = 0x4000, scoped, tag = 'scratch operand']
  #allocation3 [shape = 'f32[1,32,32]{2,1,0:T(8,128)}', space=vmem, size = 0x4000, scoped, tag = 'scratch operand']
  %s0 = inlined_call_operand.vmem [shape: f32[2,16,32], index: 0, kind: input, shape index: {}]
  %s1 = inlined_call_operand.vmem [shape: f32[2,32,32], index: 1, kind: input, shape index: {}]
  %s2 = inlined_call_operand.vmem [shape: f32[2,1,32], index: 2, kind: input, shape index: {}]
  %s3 = inlined_call_operand.vmem [shape: f32[2,144,32], index: 3, kind: input, shape index: {}]
  %s4 = inlined_call_operand.vmem [shape: f32[2,1,32], index: 4, kind: input, shape index: {}]
  %s5 = inlined_call_operand.vmem [shape: f32[2,1,32], index: 5, kind: input, shape index: {}]
  %s6 = inlined_call_operand.vmem [shape: f32[2,32,32], index: 6, kind: input, shape index: {}]
  %s7 = inlined_call_operand.vmem [shape: f32[2,1,32], index: 7, kind: input, shape index: {}]
  %s8 = inlined_call_operand.vmem [shape: f32[2,1,32], index: 8, kind: input, shape index: {}]
  %s9 = inlined_call_operand.vmem [shape: f32[2,288,32], index: 9, kind: input, shape index: {}]
  %s10 = inlined_call_operand.vmem [shape: f32[2,1,32], index: 10, kind: input, shape index: {}]
  %s11 = inlined_call_operand.vmem [shape: f32[2,1,32], index: 11, kind: input, shape index: {}]
  %s12 = inlined_call_operand.hbm [shape: f32[2,16,32], index: 12, kind: output, shape index: {0}]
  %s13 = inlined_call_operand.vmem [shape: f32[2,16,1], index: 13, kind: output, shape index: {1}]
  %14 = xla_tuple %s12, %s13
  %s15 = sld [smem:[#allocation0]]
  $region89: #{_lambda_.3} parent=0
    _
  %s17 = ssub.s32 1, %s15
  %s18 = scalar_select 0, %s17, %s15
  $region1: #{_lambda_.3} parent=0
    #allocation4 [shape = 'u8[16384]{0}', space=vmem, size = 0x4000, scoped, tag = 'output window, operand 0']
    #allocation5 [shape = 's32[2]{0}', space=sflag, size = 0x8, scoped, tag = 'scoped memory for _lambda_.3']
    %19 = vsyncpa [#allocation5], 0
    %s20 = scalar_lea.sflag [#allocation5], 1
    %21 = vsyncpa %s20, 0
    loop: start=0, step=1, limit=4
    $region2: #{_lambda_.3} parent=1 // loop_pre_header
      _
    $region3: #{_lambda_.3} parent=1 // loop_header
      %s23 = sphi 0, %s27
      %p24 = scmp.ge.s32.totalorder %s23, 4
      %s33 = sphi 0, %s35
      %s36 = sphi 0, %s33
      %s37 = sphi 0, %s36
      %s53 = sphi 0, %s37
      %s57 = sphi 0, %s57
      %s59 = sphi 0, %s57
      %s60 = sphi 0, %s59
      %s74 = sphi 0, %s60
      %s78 = sphi 0, %s78
      %s80 = sphi 0, %s78
      %s81 = sphi 0, %s80
      %s95 = sphi 0, %s81
      %s99 = sphi 0, %s99
      %s101 = sphi 0, %s99
      %s102 = sphi 0, %s101
      %s116 = sphi 0, %s102
      %s120 = sphi 0, %s120
      %s122 = sphi 0, %s120
      %s123 = sphi 0, %s122
      %s137 = sphi 0, %s123
      %s141 = sphi 0, %s141
      %s143 = sphi 0, %s141
      %s144 = sphi 0, %s143
      %s158 = sphi 0, %s144
      %s162 = sphi 0, %s162
      %s164 = sphi 0, %s162
      %s165 = sphi 0, %s164
      %s179 = sphi 0, %s165
      %s183 = sphi 0, %s183
      %s185 = sphi 0, %s183
      %s186 = sphi 0, %s185
      %s200 = sphi 0, %s186
      %s204 = sphi 0, %s204
      %s206 = sphi 0, %s204
      %s207 = sphi 0, %s206
      %s221 = sphi 0, %s207
      %s225 = sphi 0, %s225
      %s227 = sphi 0, %s225
      %s228 = sphi 0, %s227
      %s242 = sphi 0, %s228
      %s246 = sphi 0, %s246
      %s248 = sphi 0, %s246
      %s249 = sphi 0, %s248
      %s263 = sphi 0, %s249
      %s267 = sphi 0, %s267
      %s269 = sphi 0, %s267
      %s270 = sphi 0, %s269
      %s284 = sphi 0, %s270
      %s290 = sphi 0, %s292
      %s293 = sphi 0, %s290
      %s294 = sphi 0, %s293
      %s310 = sphi 0, %s294
      %s316 = sphi 0, %s318
      %s319 = sphi 0, %s316
      %s320 = sphi 0, %s319
      %s336 = sphi 0, %s320
    $region4: #{_lambda_.3} parent=1 // loop_header_branch
      %26 = sbr.rel (%p24) target = $region8
    $region5: #{_lambda_.3} parent=1 // loop_body
      %s28 = ssub.s32 %s23, 1
      %s29 = ssub.s32 %s23, 2
      %s30 = sadd.s32 %s23, 1
      %s31 = ssub.s32 %s23, %s30
      %p32 = scmp.eq.s32.totalorder %s31, 0
      %s34 = sadd.s32 %s33, 1
      %s35 = scalar_select %p32, %s33, %s34
      %p38 = pneg %p32
      %p39 = scmp.eq.s32.totalorder %s23, 1
      %p40 = por %p38, %p39
      %p41 = scmp.ne.s32.totalorder %s33, %s36
      %p42 = scmp.eq.s32.totalorder %s23, 0
      %p43 = por %p41, %p42
      %p44 = scmp.ne.s32.totalorder %s33, %s36
      %p45 = scmp.eq.s32.totalorder %s28, 1
      %p46 = por %p44, %p45
      %p47 = scmp.ne.s32.totalorder %s36, %s37
      %p48 = scmp.eq.s32.totalorder %s28, 0
      %p49 = por %p47, %p48
      %p50 = scmp.ne.s32.totalorder %s36, %s37
      %p51 = scmp.eq.s32.totalorder %s29, 1
      %p52 = por %p50, %p51
      %p54 = scmp.ne.s32.totalorder %s37, %s53
      %p55 = scmp.eq.s32.totalorder %s29, 0
      %p56 = por %p54, %p55
      %s58 = sadd.s32 %s57, 1
      %p61 = scmp.eq.s32.totalorder %s23, 1
      %p62 = scmp.ne.s32.totalorder %s57, %s59
      %p63 = scmp.eq.s32.totalorder %s23, 0
      %p64 = por %p62, %p63
      %p65 = scmp.ne.s32.totalorder %s57, %s59
      %p66 = scmp.eq.s32.totalorder %s28, 1
      %p67 = por %p65, %p66
      %p68 = scmp.ne.s32.totalorder %s59, %s60
      %p69 = scmp.eq.s32.totalorder %s28, 0
      %p70 = por %p68, %p69
      %p71 = scmp.ne.s32.totalorder %s59, %s60
      %p72 = scmp.eq.s32.totalorder %s29, 1
      %p73 = por %p71, %p72
      %p75 = scmp.ne.s32.totalorder %s60, %s74
      %p76 = scmp.eq.s32.totalorder %s29, 0
      %p77 = por %p75, %p76
      %s79 = sadd.s32 %s78, 1
      %p82 = scmp.eq.s32.totalorder %s23, 1
      %p83 = scmp.ne.s32.totalorder %s78, %s80
      %p84 = scmp.eq.s32.totalorder %s23, 0
      %p85 = por %p83, %p84
      %p86 = scmp.ne.s32.totalorder %s78, %s80
      %p87 = scmp.eq.s32.totalorder %s28, 1
      %p88 = por %p86, %p87
      %p89 = scmp.ne.s32.totalorder %s80, %s81
      %p90 = scmp.eq.s32.totalorder %s28, 0
      %p91 = por %p89, %p90
      %p92 = scmp.ne.s32.totalorder %s80, %s81
      %p93 = scmp.eq.s32.totalorder %s29, 1
      %p94 = por %p92, %p93
      %p96 = scmp.ne.s32.totalorder %s81, %s95
      %p97 = scmp.eq.s32.totalorder %s29, 0
      %p98 = por %p96, %p97
      %s100 = sadd.s32 %s99, 1
      %p103 = scmp.eq.s32.totalorder %s23, 1
      %p104 = scmp.ne.s32.totalorder %s99, %s101
      %p105 = scmp.eq.s32.totalorder %s23, 0
      %p106 = por %p104, %p105
      %p107 = scmp.ne.s32.totalorder %s99, %s101
      %p108 = scmp.eq.s32.totalorder %s28, 1
      %p109 = por %p107, %p108
      %p110 = scmp.ne.s32.totalorder %s101, %s102
      %p111 = scmp.eq.s32.totalorder %s28, 0
      %p112 = por %p110, %p111
      %p113 = scmp.ne.s32.totalorder %s101, %s102
      %p114 = scmp.eq.s32.totalorder %s29, 1
      %p115 = por %p113, %p114
      %p117 = scmp.ne.s32.totalorder %s102, %s116
      %p118 = scmp.eq.s32.totalorder %s29, 0
      %p119 = por %p117, %p118
      %s121 = sadd.s32 %s120, 1
      %p124 = scmp.eq.s32.totalorder %s23, 1
      %p125 = scmp.ne.s32.totalorder %s120, %s122
      %p126 = scmp.eq.s32.totalorder %s23, 0
      %p127 = por %p125, %p126
      %p128 = scmp.ne.s32.totalorder %s120, %s122
      %p129 = scmp.eq.s32.totalorder %s28, 1
      %p130 = por %p128, %p129
      %p131 = scmp.ne.s32.totalorder %s122, %s123
      %p132 = scmp.eq.s32.totalorder %s28, 0
      %p133 = por %p131, %p132
      %p134 = scmp.ne.s32.totalorder %s122, %s123
      %p135 = scmp.eq.s32.totalorder %s29, 1
      %p136 = por %p134, %p135
      %p138 = scmp.ne.s32.totalorder %s123, %s137
      %p139 = scmp.eq.s32.totalorder %s29, 0
      %p140 = por %p138, %p139
      %s142 = sadd.s32 %s141, 1
      %p145 = scmp.eq.s32.totalorder %s23, 1
      %p146 = scmp.ne.s32.totalorder %s141, %s143
      %p147 = scmp.eq.s32.totalorder %s23, 0
      %p148 = por %p146, %p147
      %p149 = scmp.ne.s32.totalorder %s141, %s143
      %p150 = scmp.eq.s32.totalorder %s28, 1
      %p151 = por %p149, %p150
      %p152 = scmp.ne.s32.totalorder %s143, %s144
      %p153 = scmp.eq.s32.totalorder %s28, 0
      %p154 = por %p152, %p153
      %p155 = scmp.ne.s32.totalorder %s143, %s144
      %p156 = scmp.eq.s32.totalorder %s29, 1
      %p157 = por %p155, %p156
      %p159 = scmp.ne.s32.totalorder %s144, %s158
      %p160 = scmp.eq.s32.totalorder %s29, 0
      %p161 = por %p159, %p160
      %s163 = sadd.s32 %s162, 1
      %p166 = scmp.eq.s32.totalorder %s23, 1
      %p167 = scmp.ne.s32.totalorder %s162, %s164
      %p168 = scmp.eq.s32.totalorder %s23, 0
      %p169 = por %p167, %p168
      %p170 = scmp.ne.s32.totalorder %s162, %s164
      %p171 = scmp.eq.s32.totalorder %s28, 1
      %p172 = por %p170, %p171
      %p173 = scmp.ne.s32.totalorder %s164, %s165
      %p174 = scmp.eq.s32.totalorder %s28, 0
      %p175 = por %p173, %p174
      %p176 = scmp.ne.s32.totalorder %s164, %s165
      %p177 = scmp.eq.s32.totalorder %s29, 1
      %p178 = por %p176, %p177
      %p180 = scmp.ne.s32.totalorder %s165, %s179
      %p181 = scmp.eq.s32.totalorder %s29, 0
      %p182 = por %p180, %p181
      %s184 = sadd.s32 %s183, 1
      %p187 = scmp.eq.s32.totalorder %s23, 1
      %p188 = scmp.ne.s32.totalorder %s183, %s185
      %p189 = scmp.eq.s32.totalorder %s23, 0
      %p190 = por %p188, %p189
      %p191 = scmp.ne.s32.totalorder %s183, %s185
      %p192 = scmp.eq.s32.totalorder %s28, 1
      %p193 = por %p191, %p192
      %p194 = scmp.ne.s32.totalorder %s185, %s186
      %p195 = scmp.eq.s32.totalorder %s28, 0
      %p196 = por %p194, %p195
      %p197 = scmp.ne.s32.totalorder %s185, %s186
      %p198 = scmp.eq.s32.totalorder %s29, 1
      %p199 = por %p197, %p198
      %p201 = scmp.ne.s32.totalorder %s186, %s200
      %p202 = scmp.eq.s32.totalorder %s29, 0
      %p203 = por %p201, %p202
      %s205 = sadd.s32 %s204, 1
      %p208 = scmp.eq.s32.totalorder %s23, 1
      %p209 = scmp.ne.s32.totalorder %s204, %s206
      %p210 = scmp.eq.s32.totalorder %s23, 0
      %p211 = por %p209, %p210
      %p212 = scmp.ne.s32.totalorder %s204, %s206
      %p213 = scmp.eq.s32.totalorder %s28, 1
      %p214 = por %p212, %p213
      %p215 = scmp.ne.s32.totalorder %s206, %s207
      %p216 = scmp.eq.s32.totalorder %s28, 0
      %p217 = por %p215, %p216
      %p218 = scmp.ne.s32.totalorder %s206, %s207
      %p219 = scmp.eq.s32.totalorder %s29, 1
      %p220 = por %p218, %p219
      %p222 = scmp.ne.s32.totalorder %s207, %s221
      %p223 = scmp.eq.s32.totalorder %s29, 0
      %p224 = por %p222, %p223
      %s226 = sadd.s32 %s225, 1
      %p229 = scmp.eq.s32.totalorder %s23, 1
      %p230 = scmp.ne.s32.totalorder %s225, %s227
      %p231 = scmp.eq.s32.totalorder %s23, 0
      %p232 = por %p230, %p231
      %p233 = scmp.ne.s32.totalorder %s225, %s227
      %p234 = scmp.eq.s32.totalorder %s28, 1
      %p235 = por %p233, %p234
      %p236 = scmp.ne.s32.totalorder %s227, %s228
      %p237 = scmp.eq.s32.totalorder %s28, 0
      %p238 = por %p236, %p237
      %p239 = scmp.ne.s32.totalorder %s227, %s228
      %p240 = scmp.eq.s32.totalorder %s29, 1
      %p241 = por %p239, %p240
      %p243 = scmp.ne.s32.totalorder %s228, %s242
      %p244 = scmp.eq.s32.totalorder %s29, 0
      %p245 = por %p243, %p244
      %s247 = sadd.s32 %s246, 1
      %p250 = scmp.eq.s32.totalorder %s23, 1
      %p251 = scmp.ne.s32.totalorder %s246, %s248
      %p252 = scmp.eq.s32.totalorder %s23, 0
      %p253 = por %p251, %p252
      %p254 = scmp.ne.s32.totalorder %s246, %s248
      %p255 = scmp.eq.s32.totalorder %s28, 1
      %p256 = por %p254, %p255
      %p257 = scmp.ne.s32.totalorder %s248, %s249
      %p258 = scmp.eq.s32.totalorder %s28, 0
      %p259 = por %p257, %p258
      %p260 = scmp.ne.s32.totalorder %s248, %s249
      %p261 = scmp.eq.s32.totalorder %s29, 1
      %p262 = por %p260, %p261
      %p264 = scmp.ne.s32.totalorder %s249, %s263
      %p265 = scmp.eq.s32.totalorder %s29, 0
      %p266 = por %p264, %p265
      %s268 = sadd.s32 %s267, 1
      %p271 = scmp.eq.s32.totalorder %s23, 1
      %p272 = scmp.ne.s32.totalorder %s267, %s269
      %p273 = scmp.eq.s32.totalorder %s23, 0
      %p274 = por %p272, %p273
      %p275 = scmp.ne.s32.totalorder %s267, %s269
      %p276 = scmp.eq.s32.totalorder %s28, 1
      %p277 = por %p275, %p276
      %p278 = scmp.ne.s32.totalorder %s269, %s270
      %p279 = scmp.eq.s32.totalorder %s28, 0
      %p280 = por %p278, %p279
      %p281 = scmp.ne.s32.totalorder %s269, %s270
      %p282 = scmp.eq.s32.totalorder %s29, 1
      %p283 = por %p281, %p282
      %p285 = scmp.ne.s32.totalorder %s270, %s284
      %p286 = scmp.eq.s32.totalorder %s29, 0
      %p287 = por %p285, %p286
      %s288 = ssub.s32 %s23, %s30
      %p289 = scmp.eq.s32.totalorder %s288, 0
      %s291 = sadd.s32 %s290, 1
      %s292 = scalar_select %p289, %s290, %s291
      %p295 = pneg %p289
      %p296 = scmp.eq.s32.totalorder %s23, 1
      %p297 = por %p295, %p296
      %p298 = scmp.ne.s32.totalorder %s290, %s293
      %p299 = scmp.eq.s32.totalorder %s23, 0
      %p300 = por %p298, %p299
      %p301 = scmp.ne.s32.totalorder %s290, %s293
      %p302 = scmp.eq.s32.totalorder %s28, 1
      %p303 = por %p301, %p302
      %p304 = scmp.ne.s32.totalorder %s293, %s294
      %p305 = scmp.eq.s32.totalorder %s28, 0
      %p306 = por %p304, %p305
      %p307 = scmp.ne.s32.totalorder %s293, %s294
      %p308 = scmp.eq.s32.totalorder %s29, 1
      %p309 = por %p307, %p308
      %p311 = scmp.ne.s32.totalorder %s294, %s310
      %p312 = scmp.eq.s32.totalorder %s29, 0
      %p313 = por %p311, %p312
      %s314 = ssub.s32 %s23, %s30
      %p315 = scmp.eq.s32.totalorder %s314, 0
      %s317 = sadd.s32 %s316, 1
      %s318 = scalar_select %p315, %s316, %s317
      %p321 = pneg %p315
      %p322 = scmp.eq.s32.totalorder %s23, 1
      %p323 = por %p321, %p322
      %p324 = scmp.ne.s32.totalorder %s316, %s319
      %p325 = scmp.eq.s32.totalorder %s23, 0
      %p326 = por %p324, %p325
      %p327 = scmp.ne.s32.totalorder %s316, %s319
      %p328 = scmp.eq.s32.totalorder %s28, 1
      %p329 = por %p327, %p328
      %p330 = scmp.ne.s32.totalorder %s319, %s320
      %p331 = scmp.eq.s32.totalorder %s28, 0
      %p332 = por %p330, %p331
      %p333 = scmp.ne.s32.totalorder %s319, %s320
      %p334 = scmp.eq.s32.totalorder %s29, 1
      %p335 = por %p333, %p334
      %p337 = scmp.ne.s32.totalorder %s320, %s336
      %p338 = scmp.eq.s32.totalorder %s29, 0
      %p339 = por %p337, %p338
      %p340 = scmp.le.s32.totalorder 1, %s23
      %p341 = scmp.lt.s32.totalorder %s23, 3
      %p342 = pnand %p340, %p341
      %p343 = pneg %p342
      // Predicated region
      $region9: #{_lambda_.3} parent=5 // pred_check
        _
      $region10: #{_lambda_.3} parent=5 // pred_check_branch
        %345 = sbr.rel (%p342) target = $region12
      $region11: #{_lambda_.3} parent=5 // pred_region
        %s346 = ssub.s32 %s23, 1
        // Predicated region
        $region13: #{_lambda_.3} parent=11 // pred_check
          %p347 = pneg %p70
        $region14: #{_lambda_.3} parent=11 // pred_check_branch
          %349 = sbr.rel (%p347) target = $region16
        $region15: #{_lambda_.3} parent=11 // pred_region
          _
        $region16: #{_lambda_.3} parent=11 // pred_fallthru
          _
        // Predicated region
        $region17: #{_lambda_.3} parent=11 // pred_check
          %p350 = pneg %p91
        $region18: #{_lambda_.3} parent=11 // pred_check_branch
          %352 = sbr.rel (%p350) target = $region20
        $region19: #{_lambda_.3} parent=11 // pred_region
          _
        $region20: #{_lambda_.3} parent=11 // pred_fallthru
          _
        // Predicated region
        $region21: #{_lambda_.3} parent=11 // pred_check
          %p353 = pneg %p112
        $region22: #{_lambda_.3} parent=11 // pred_check_branch
          %355 = sbr.rel (%p353) target = $region24
        $region23: #{_lambda_.3} parent=11 // pred_region
          _
        $region24: #{_lambda_.3} parent=11 // pred_fallthru
          _
        // Predicated region
        $region25: #{_lambda_.3} parent=11 // pred_check
          %p356 = pneg %p133
        $region26: #{_lambda_.3} parent=11 // pred_check_branch
          %358 = sbr.rel (%p356) target = $region28
        $region27: #{_lambda_.3} parent=11 // pred_region
          _
        $region28: #{_lambda_.3} parent=11 // pred_fallthru
          _
        // Predicated region
        $region29: #{_lambda_.3} parent=11 // pred_check
          %p359 = pneg %p154
        $region30: #{_lambda_.3} parent=11 // pred_check_branch
          %361 = sbr.rel (%p359) target = $region32
        $region31: #{_lambda_.3} parent=11 // pred_region
          _
        $region32: #{_lambda_.3} parent=11 // pred_fallthru
          _
        // Predicated region
        $region33: #{_lambda_.3} parent=11 // pred_check
          %p362 = pneg %p175
        $region34: #{_lambda_.3} parent=11 // pred_check_branch
          %364 = sbr.rel (%p362) target = $region36
        $region35: #{_lambda_.3} parent=11 // pred_region
          _
        $region36: #{_lambda_.3} parent=11 // pred_fallthru
          _
        // Predicated region
        $region37: #{_lambda_.3} parent=11 // pred_check
          %p365 = pneg %p196
        $region38: #{_lambda_.3} parent=11 // pred_check_branch
          %367 = sbr.rel (%p365) target = $region40
        $region39: #{_lambda_.3} parent=11 // pred_region
          _
        $region40: #{_lambda_.3} parent=11 // pred_fallthru
          _
        // Predicated region
        $region41: #{_lambda_.3} parent=11 // pred_check
          %p368 = pneg %p217
        $region42: #{_lambda_.3} parent=11 // pred_check_branch
          %370 = sbr.rel (%p368) target = $region44
        $region43: #{_lambda_.3} parent=11 // pred_region
          _
        $region44: #{_lambda_.3} parent=11 // pred_fallthru
          _
        // Predicated region
        $region45: #{_lambda_.3} parent=11 // pred_check
          %p371 = pneg %p238
        $region46: #{_lambda_.3} parent=11 // pred_check_branch
          %373 = sbr.rel (%p371) target = $region48
        $region47: #{_lambda_.3} parent=11 // pred_region
          _
        $region48: #{_lambda_.3} parent=11 // pred_fallthru
          _
        // Predicated region
        $region49: #{_lambda_.3} parent=11 // pred_check
          %p374 = pneg %p259
        $region50: #{_lambda_.3} parent=11 // pred_check_branch
          %376 = sbr.rel (%p374) target = $region52
        $region51: #{_lambda_.3} parent=11 // pred_region
          _
        $region52: #{_lambda_.3} parent=11 // pred_fallthru
          _
        // Predicated region
        $region53: #{_lambda_.3} parent=11 // pred_check
          %p377 = pneg %p280
        $region54: #{_lambda_.3} parent=11 // pred_check_branch
          %379 = sbr.rel (%p377) target = $region56
        $region55: #{_lambda_.3} parent=11 // pred_region
          _
        $region56: #{_lambda_.3} parent=11 // pred_fallthru
          _
      $region12: #{_lambda_.3} parent=5 // pred_fallthru
        _
      %p380 = scmp.lt.s32.totalorder %s23, 2
      // Predicated region
      $region57: #{_lambda_.3} parent=5 // pred_check
        %p381 = pneg %p380
      $region58: #{_lambda_.3} parent=5 // pred_check_branch
        %383 = sbr.rel (%p381) target = $region60
      $region59: #{_lambda_.3} parent=5 // pred_region
        // Predicated region
        $region61: #{_lambda_.3} parent=59 // pred_check
          %p384 = pneg %p43
        $region62: #{_lambda_.3} parent=59 // pred_check_branch
          %386 = sbr.rel (%p384) target = $region64
        $region63: #{_lambda_.3} parent=59 // pred_region
          %p387 = scmp.lt.s32.totalorder %s23, 1
          %s388 = scalar_select %p387, %s23, 1
          %s389 = smul.addr %s388, 2
          %s390 = smul.addr %s389, 8
          %s391 = scalar_lea.vmem %s0, %s390
        $region64: #{_lambda_.3} parent=59 // pred_fallthru
          _
      $region60: #{_lambda_.3} parent=5 // pred_fallthru
        _
      %p392 = scmp.le.s32.totalorder 1, %s23
      %p393 = scmp.lt.s32.totalorder %s23, 3
      %p394 = pnand %p392, %p393
      %p395 = pneg %p394
      // Predicated region
      $region65: #{_lambda_.3} parent=5 // pred_check
        _
      $region66: #{_lambda_.3} parent=5 // pred_check_branch
        %397 = sbr.rel (%p394) target = $region68
      $region67: #{_lambda_.3} parent=5 // pred_region
        %s398 = ssub.s32 %s23, 1
        %p399 = scmp.lt.s32.totalorder %s28, 1
        %s400 = scalar_select %p399, %s28, 1
        %s401 = smul.addr %s400, 2
        %s402 = smul.addr %s401, 8
        %s403 = scalar_lea.vmem %s0, %s402
        %p404 = pneg %p49
        %p405 = pneg %p46
        %p406 = pneg %p70
        %p407 = pneg %p67
        %p408 = pneg %p91
        %p409 = pneg %p88
        %p410 = pneg %p112
        %p411 = pneg %p109
        %p412 = pneg %p133
        %p413 = pneg %p130
        %p414 = pneg %p154
        %p415 = pneg %p151
        %p416 = pneg %p175
        %p417 = pneg %p172
        %p418 = pneg %p196
        %p419 = pneg %p193
        %p420 = pneg %p217
        %p421 = pneg %p214
        %p422 = pneg %p238
        %p423 = pneg %p235
        %p424 = pneg %p259
        %p425 = pneg %p256
        %p426 = pneg %p280
        %p427 = pneg %p277
        %p428 = pneg %p306
        %p429 = pneg %p303
        %s430 = sand.u32 %s293, 1
        %s431 = scalar_lea.sflag [#allocation5], %s430
        %s432 = sand.u32 %s293, 1
        %s433 = smul.addr %s432, 16
        %s434 = scalar_lea.vmem [#allocation4], %s433
        %p435 = pneg %p332
        %p436 = pneg %p329
        %p437 = scmp.lt.s32.totalorder %s28, 1
        %s438 = scalar_select %p437, %s28, 1
        %s439 = smul.addr %s438, 2
        %s440 = smul.addr %s439, 8
        %s441 = scalar_lea.vmem %s13, %s440
        %p442 = scmp.lt.s32.totalorder %s28, 1
        %s443 = scalar_select %p442, %s28, 1
        %s444 = smul.addr %s443, 2
        %s445 = smul.addr %s444, 8
        %s446 = scalar_lea.vmem %s0, %s445
        %p447 = scmp.lt.s32.totalorder %s28, 1
        %s448 = scalar_select %p447, %s28, 1
        %s449 = smul.addr %s448, 2
        %s450 = smul.addr %s449, 8
        %s451 = scalar_lea.vmem %s13, %s450
        %vm452 = vcmask 130048
        %453 = vst.msk [vmem:[#allocation2] sm:$0xff] %vm452, 0.0
        %454 = vst.msk [vmem:[#allocation2 + $0x18] sm:$0xff] %vm452, 0.0
        %vm455 = vcmask 261120
        %456 = vst.msk [vmem:[#allocation3] sm:$0xff] %vm455, 0.0
        %457 = vst.msk [vmem:[#allocation3 + $0x18] sm:$0xff] %vm455, 0.0
        %v458 = vlaneseq
        %v459 = vshrl.u32 %v458, 7
        %v460 = vadd.s32 %v459, 8
        %vm461 = vcmp.lt.s32.totalorder %v459, 0
        %v462 = vsub.s32 0, %v459
        %v463 = vsel %vm461, %v462, %v459
        %v464 = vshrl.u32 %v463, 2
        %v465 = vand.u32 %v463, 3
        %v466 = vsub.s32 0, %v465
        %v467 = vsel %vm461, %v466, %v465
        %vm468 = vcmp.lt.s32.totalorder %v460, 0
        %v469 = vsub.s32 0, %v460
        %v470 = vsel %vm468, %v469, %v460
        %v471 = vshrl.u32 %v470, 2
        %v472 = vand.u32 %v470, 3
        %v473 = vsub.s32 0, %v472
        %v474 = vsel %vm468, %v473, %v472
        %vm475 = vcmp.ne.s32.totalorder %v467, 0
        %vm476 = vcmp.ne.s32.totalorder %v474, 0
        %vm477 = vcmp.lt.s32.totalorder %v467, 0
        %vm478 = vcmp.lt.s32.totalorder %v474, 0
        %vm479 = vmand %vm477, %vm475
        %vm480 = vmand %vm478, %vm476
        %v481 = vadd.s32 %v467, 4
        %v482 = vadd.s32 %v474, 4
        %v483 = vsel %vm479, %v481, %v467
        %v484 = vsel %vm480, %v482, %v474
        %vm485 = vcmp.ne.s32.totalorder %v483, 0
        %vm486 = vcmp.ne.s32.totalorder %v484, 0
        %v487 = vsel %vm485, 1, 0
        %v488 = vsel %vm486, 1, 0
        %v489 = vcvt.s32.f32 %v487
        %v490 = vcvt.s32.f32 %v488
        %vm491 = vcmp.ne.s32.totalorder %v483, 3
        %vm492 = vcmp.ne.s32.totalorder %v484, 3
        %v493 = vsel %vm491, 1, 0
        %v494 = vsel %vm492, 1, 0
        %v495 = vcvt.s32.f32 %v493
        %v496 = vcvt.s32.f32 %v494
        %v497 = vld [vmem:[%s446] sm:$0xff]
        %v498 = vld [vmem:[%s446 + $0x8] sm:$0xff]
        %v499 = vld [vmem:[%s1] sm:$0xff]
        %v500 = vld [vmem:[%s1 + $0x8] sm:$0xff]
        %v501 = vld [vmem:[%s1 + $0x10] sm:$0xff]
        %v502 = vld [vmem:[%s1 + $0x18] sm:$0xff]
        %505 = vrot.lane.b32.xlu0 %v497, 112
        %v506 = vpop.permute.xlu0 %505
        %507 = vrot.lane.b32.xlu0 %v498, 112
        %v508 = vpop.permute.xlu0 %507
        %v509 = vsel %vm452, %v506, 0
        %v511 = vsel %vm452, %v508, 0
        %513 = vmatprep.subr.mxu0 0.0
        %514 = vmatpush1.msra.mxu0 0.0
        %515 = vmatprep.subr.mxu0 0.0
        %516 = vmatpush1.msra.mxu0 0.0
        %517 = vmatprep.subr.mxu0 0.0
        %518 = vmatpush1.msra.mxu0 0.0
        %519 = vmatprep.subr.mxu0 0.0
        %520 = vmatpush1.msra.mxu0 0.0
        %521 = vmatprep.subr.mxu0 0.0
        %522 = vmatpush1.msra.mxu0 0.0
        %523 = vmatprep.subr.mxu0 0.0
        %524 = vmatpush1.msra.mxu0 0.0
        %525 = vmatprep.subr.mxu0 0.0
        %526 = vmatpush1.msra.mxu0 0.0
        %527 = vmatprep.subr.mxu0 0.0
        %528 = vmatpush1.msra.mxu0 0.0
        %529 = vmatprep.subr.mxu0 0.0
        %530 = vmatpush1.msra.mxu0 0.0
        %531 = vmatprep.subr.mxu0 0.0
        %532 = vmatpush1.msra.mxu0 0.0
        %533 = vmatprep.subr.mxu0 0.0
        %534 = vmatpush1.msra.mxu0 0.0
        %535 = vmatprep.subr.mxu0 0.0
        %536 = vmatpush1.msra.mxu0 0.0
        %537 = vmatprep.subr.mxu0 0.0
        %538 = vmatpush1.msra.mxu0 0.0
        %539 = vmatprep.subr.mxu0 0.0
        %540 = vmatpush1.msra.mxu0 0.0
        %541 = vmatprep.subr.mxu0 0.0
        %542 = vmatpush1.msra.mxu0 %v502
        %543 = vmatprep.subr.mxu0 0.0
        %544 = vmatpush1.msra.mxu0 %v501
        %545 = vmatprep.subr.mxu0 0.0
        %546 = vmatpush2.msra.mxu0 0.0
        %547 = vmatprep.subr.mxu0 0.0
        %548 = vmatpush2.msra.mxu0 0.0
        %549 = vmatprep.subr.mxu0 0.0
        %550 = vmatpush2.msra.mxu0 0.0
        %551 = vmatprep.subr.mxu0 0.0
        %552 = vmatpush2.msra.mxu0 0.0
        %553 = vmatprep.subr.mxu0 0.0
        %554 = vmatpush2.msra.mxu0 0.0
        %555 = vmatprep.subr.mxu0 0.0
        %556 = vmatpush2.msra.mxu0 0.0
        %557 = vmatprep.subr.mxu0 0.0
        %558 = vmatpush2.msra.mxu0 0.0
        %559 = vmatprep.subr.mxu0 0.0
        %560 = vmatpush2.msra.mxu0 0.0
        %561 = vmatprep.subr.mxu0 0.0
        %562 = vmatpush2.msra.mxu0 0.0
        %563 = vmatprep.subr.mxu0 0.0
        %564 = vmatpush2.msra.mxu0 0.0
        %565 = vmatprep.subr.mxu0 0.0
        %566 = vmatpush2.msra.mxu0 0.0
        %567 = vmatprep.subr.mxu0 0.0
        %568 = vmatpush2.msra.mxu0 0.0
        %569 = vmatprep.subr.mxu0 0.0
        %570 = vmatpush2.msra.mxu0 0.0
        %571 = vmatprep.subr.mxu0 0.0
        %572 = vmatpush2.msra.mxu0 0.0
        %573 = vmatprep.subr.mxu0 0.0
        %574 = vmatpush2.msra.mxu0 0.0
        %575 = vmatprep.subr.mxu0 0.0
        %576 = vmatpush2.msra.mxu0 0.0
        %577 = vmatprep.mubr.f32.mxu0 0.0
        %578 = vmatmul.mubr.f32.gmra.mxu0 %v509
        %v579 = vpop.f32.mrf.mxu0
        %v580 = vadd.f32 0.0, %v579
        %v581 = vpop.f32.mrf.mxu0
        %582 = vmatprep.mubr.f32.mxu0 0.0
        %583 = vmatmul.mubr.f32.gmra.mxu0 %v511
        %v584 = vpop.f32.mrf.mxu0
        %v585 = vadd.f32 0.0, %v584
        %v586 = vpop.f32.mrf.mxu0
        %587 = vdwg.mxu0
        %v588 = vsel %vm452, %v497, 0
        %v590 = vsel %vm452, %v498, 0
        %592 = vmatprep.subr.mxu0 0.0
        %593 = vmatpush1.msra.mxu0 0.0
        %594 = vmatprep.subr.mxu0 0.0
        %595 = vmatpush1.msra.mxu0 0.0
        %596 = vmatprep.subr.mxu0 0.0
        %597 = vmatpush1.msra.mxu0 0.0
        %598 = vmatprep.subr.mxu0 0.0
        %599 = vmatpush1.msra.mxu0 0.0
        %600 = vmatprep.subr.mxu0 0.0
        %601 = vmatpush1.msra.mxu0 0.0
        %602 = vmatprep.subr.mxu0 0.0
        %603 = vmatpush1.msra.mxu0 0.0
        %604 = vmatprep.subr.mxu0 0.0
        %605 = vmatpush1.msra.mxu0 0.0
        %606 = vmatprep.subr.mxu0 0.0
        %607 = vmatpush1.msra.mxu0 0.0
        %608 = vmatprep.subr.mxu0 0.0
        %609 = vmatpush1.msra.mxu0 0.0
        %610 = vmatprep.subr.mxu0 0.0
        %611 = vmatpush1.msra.mxu0 0.0
        %612 = vmatprep.subr.mxu0 0.0
        %613 = vmatpush1.msra.mxu0 0.0
        %614 = vmatprep.subr.mxu0 0.0
        %615 = vmatpush1.msra.mxu0 0.0
        %616 = vmatprep.subr.mxu0 0.0
        %617 = vmatpush1.msra.mxu0 0.0
        %618 = vmatprep.subr.mxu0 0.0
        %619 = vmatpush1.msra.mxu0 0.0
        %620 = vmatprep.subr.mxu0 0.0
        %621 = vmatpush1.msra.mxu0 %v500
        %622 = vmatprep.subr.mxu0 0.0
        %623 = vmatpush1.msra.mxu0 %v499
        %624 = vmatprep.subr.mxu0 0.0
        %625 = vmatpush2.msra.mxu0 0.0
        %626 = vmatprep.subr.mxu0 0.0
        %627 = vmatpush2.msra.mxu0 0.0
        %628 = vmatprep.subr.mxu0 0.0
        %629 = vmatpush2.msra.mxu0 0.0
        %630 = vmatprep.subr.mxu0 0.0
        %631 = vmatpush2.msra.mxu0 0.0
        %632 = vmatprep.subr.mxu0 0.0
        %633 = vmatpush2.msra.mxu0 0.0
        %634 = vmatprep.subr.mxu0 0.0
        %635 = vmatpush2.msra.mxu0 0.0
        %636 = vmatprep.subr.mxu0 0.0
        %637 = vmatpush2.msra.mxu0 0.0
        %638 = vmatprep.subr.mxu0 0.0
        %639 = vmatpush2.msra.mxu0 0.0
        %640 = vmatprep.subr.mxu0 0.0
        %641 = vmatpush2.msra.mxu0 0.0
        %642 = vmatprep.subr.mxu0 0.0
        %643 = vmatpush2.msra.mxu0 0.0
        %644 = vmatprep.subr.mxu0 0.0
        %645 = vmatpush2.msra.mxu0 0.0
        %646 = vmatprep.subr.mxu0 0.0
        %647 = vmatpush2.msra.mxu0 0.0
        %648 = vmatprep.subr.mxu0 0.0
        %649 = vmatpush2.msra.mxu0 0.0
        %650 = vmatprep.subr.mxu0 0.0
        %651 = vmatpush2.msra.mxu0 0.0
        %652 = vmatprep.subr.mxu0 0.0
        %653 = vmatpush2.msra.mxu0 0.0
        %654 = vmatprep.subr.mxu0 0.0
        %655 = vmatpush2.msra.mxu0 0.0
        %656 = vmatprep.mubr.f32.mxu0 0.0
        %657 = vmatmul.mubr.f32.gmra.mxu0 %v588
        %v658 = vpop.f32.mrf.mxu0
        %v659 = vadd.f32 %v580, %v658
        %v660 = vpop.f32.mrf.mxu0
        %661 = vmatprep.mubr.f32.mxu0 0.0
        %662 = vmatmul.mubr.f32.gmra.mxu0 %v590
        %v663 = vpop.f32.mrf.mxu0
        %v664 = vadd.f32 %v585, %v663
        %v665 = vpop.f32.mrf.mxu0
        %666 = vdwg.mxu0
        %v667 = vld [vmem:[%s2] sm:$0x1]
        %v669 = vlaneseq
        %v670 = vshrl.u32 %v669, 7
        %v671 = vsub.s32 0, %v670
        %v672 = vrot.slane %v667, %v671
        %v674 = vadd.f32 %v659, %v672
        %v675 = vadd.f32 %v664, %v672
        %v676 = vld [vmem:[%s3] sm:$0xff]
        %v677 = vld [vmem:[%s3 + $0x8] sm:$0xff]
        %v678 = vld [vmem:[%s3 + $0x10] sm:$0xff]
        %v679 = vld [vmem:[%s3 + $0x18] sm:$0xff]
        %v680 = vld [vmem:[%s3 + $0x20] sm:$0xff]
        %v681 = vld [vmem:[%s3 + $0x28] sm:$0xff]
        %v682 = vld [vmem:[%s3 + $0x30] sm:$0xff]
        %v683 = vld [vmem:[%s3 + $0x38] sm:$0xff]
        %v684 = vld [vmem:[%s3 + $0x40] sm:$0xff]
        %v685 = vld [vmem:[%s3 + $0x48] sm:$0xff]
        %v686 = vld [vmem:[%s3 + $0x50] sm:$0xff]
        %v687 = vld [vmem:[%s3 + $0x58] sm:$0xff]
        %v688 = vld [vmem:[%s3 + $0x60] sm:$0xff]
        %v689 = vld [vmem:[%s3 + $0x68] sm:$0xff]
        %v690 = vld [vmem:[%s3 + $0x70] sm:$0xff]
        %v691 = vld [vmem:[%s3 + $0x78] sm:$0xff]
        %v692 = vld [vmem:[%s3 + $0x80] sm:$0xff]
        %v693 = vld [vmem:[%s3 + $0x88] sm:$0xff]
        %694 = vst.msk [vmem:[#allocation2 + $0x8] sm:$0xff] %vm452, %v674
        %695 = vst.msk [vmem:[#allocation2 + $0x10] sm:$0xff] %vm452, %v675
        %v696 = vld [vmem:[#allocation2 + $0x3] sm:$0xff]
        %v697 = vld [vmem:[#allocation2 + $0xb] sm:$0xff]
        %v698 = vmul.f32 %v696, %v489
        %v699 = vmul.f32 %v697, %v490
        %v700 = vld [vmem:[#allocation2 + $0x4] sm:$0xff]
        %v701 = vld [vmem:[#allocation2 + $0xc] sm:$0xff]
        %v702 = vld [vmem:[#allocation2 + $0x5] sm:$0xff]
        %v703 = vld [vmem:[#allocation2 + $0xd] sm:$0xff]
        %v704 = vmul.f32 %v702, %v495
        %v705 = vmul.f32 %v703, %v496
        %v706 = vld [vmem:[#allocation2 + $0x7] sm:$0xff]
        %v707 = vld [vmem:[#allocation2 + $0xf] sm:$0xff]
        %v708 = vmul.f32 %v706, %v489
        %v709 = vmul.f32 %v707, %v490
        %v710 = vld [vmem:[#allocation2 + $0x8] sm:$0xff]
        %v711 = vld [vmem:[#allocation2 + $0x10] sm:$0xff]
        %v712 = vld [vmem:[#allocation2 + $0x9] sm:$0xff]
        %v713 = vld [vmem:[#allocation2 + $0x11] sm:$0xff]
        %v714 = vmul.f32 %v712, %v495
        %v715 = vmul.f32 %v713, %v496
        %v716 = vld [vmem:[#allocation2 + $0x13] sm:$0xff]
        %v717 = vmul.f32 %v697, %v489
        %v718 = vmul.f32 %v716, %v490
        %v719 = vld [vmem:[#allocation2 + $0x14] sm:$0xff]
        %v720 = vld [vmem:[#allocation2 + $0x15] sm:$0xff]
        %v721 = vmul.f32 %v703, %v495
        %v722 = vmul.f32 %v720, %v496
        %725 = vrot.lane.b32.xlu0 %v700, 16
        %v726 = vpop.permute.xlu0 %725
        %727 = vrot.lane.b32.xlu0 %v701, 16
        %v728 = vpop.permute.xlu0 %727
        %733 = vrot.lane.b32.xlu0 %v704, 32
        %v734 = vpop.permute.xlu0 %733
        %735 = vrot.lane.b32.xlu0 %v705, 32
        %v736 = vpop.permute.xlu0 %735
        %741 = vrot.lane.b32.xlu0 %v708, 48
        %v742 = vpop.permute.xlu0 %741
        %743 = vrot.lane.b32.xlu0 %v709, 48
        %v744 = vpop.permute.xlu0 %743
        %749 = vrot.lane.b32.xlu0 %v710, 64
        %v750 = vpop.permute.xlu0 %749
        %751 = vrot.lane.b32.xlu0 %v711, 64
        %v752 = vpop.permute.xlu0 %751
        %757 = vrot.lane.b32.xlu0 %v714, 80
        %v758 = vpop.permute.xlu0 %757
        %759 = vrot.lane.b32.xlu0 %v715, 80
        %v760 = vpop.permute.xlu0 %759
        %765 = vrot.lane.b32.xlu0 %v717, 96
        %v766 = vpop.permute.xlu0 %765
        %767 = vrot.lane.b32.xlu0 %v718, 96
        %v768 = vpop.permute.xlu0 %767
        %772 = vrot.lane.b32.xlu0 %v701, 112
        %v773 = vpop.permute.xlu0 %772
        %774 = vrot.lane.b32.xlu0 %v719, 112
        %v775 = vpop.permute.xlu0 %774
        %v778 = vsel %vm452, %v698, %v726
        %v779 = vsel %vm452, %v699, %v728
        %v780 = vsel %vm455, %v778, %v734
        %v781 = vsel %vm455, %v779, %v736
        %vm782 = vcmask 392192
        %v783 = vsel %vm782, %v780, %v742
        %v784 = vsel %vm782, %v781, %v744
        %vm785 = vcmask 523264
        %v786 = vsel %vm785, %v783, %v750
        %v787 = vsel %vm785, %v784, %v752
        %vm788 = vcmask 654336
        %v789 = vsel %vm788, %v786, %v758
        %v790 = vsel %vm788, %v787, %v760
        %vm791 = vcmask 785408
        %v792 = vsel %vm791, %v789, %v766
        %v793 = vsel %vm791, %v790, %v768
        %vm794 = vcmask 916480
        %v795 = vsel %vm794, %v792, %v773
        %v796 = vsel %vm794, %v793, %v775
        %v797 = vld [vmem:[%s4] sm:$0x1]
        %v799 = vlaneseq
        %v800 = vshrl.u32 %v799, 7
        %v801 = vsub.s32 0, %v800
        %v802 = vrot.slane %v797, %v801
        %v805 = vsel %vm452, %v721, 0
        %v808 = vsel %vm452, %v722, 0
        %810 = vmatprep.subr.mxu0 0.0
        %811 = vmatpush1.msra.mxu0 %v691
        %812 = vmatprep.subr.mxu0 0.0
        %813 = vmatpush1.msra.mxu0 %v690
        %814 = vmatprep.subr.mxu0 0.0
        %815 = vmatpush1.msra.mxu0 %v689
        %816 = vmatprep.subr.mxu0 0.0
        %817 = vmatpush1.msra.mxu0 %v688
        %818 = vmatprep.subr.mxu0 0.0
        %819 = vmatpush1.msra.mxu0 %v687
        %820 = vmatprep.subr.mxu0 0.0
        %821 = vmatpush1.msra.mxu0 %v686
        %822 = vmatprep.subr.mxu0 0.0
        %823 = vmatpush1.msra.mxu0 %v685
        %824 = vmatprep.subr.mxu0 0.0
        %825 = vmatpush1.msra.mxu0 %v684
        %826 = vmatprep.subr.mxu0 0.0
        %827 = vmatpush1.msra.mxu0 %v683
        %828 = vmatprep.subr.mxu0 0.0
        %829 = vmatpush1.msra.mxu0 %v682
        %830 = vmatprep.subr.mxu0 0.0
        %831 = vmatpush1.msra.mxu0 %v681
        %832 = vmatprep.subr.mxu0 0.0
        %833 = vmatpush1.msra.mxu0 %v680
        %834 = vmatprep.subr.mxu0 0.0
        %835 = vmatpush1.msra.mxu0 %v679
        %836 = vmatprep.subr.mxu0 0.0
        %837 = vmatpush1.msra.mxu0 %v678
        %838 = vmatprep.subr.mxu0 0.0
        %839 = vmatpush1.msra.mxu0 %v677
        %840 = vmatprep.subr.mxu0 0.0
        %841 = vmatpush1.msra.mxu0 %v676
        %842 = vmatprep.subr.mxu0 0.0
        %843 = vmatpush2.msra.mxu0 0.0
        %844 = vmatprep.subr.mxu0 0.0
        %845 = vmatpush2.msra.mxu0 0.0
        %846 = vmatprep.subr.mxu0 0.0
        %847 = vmatpush2.msra.mxu0 0.0
        %848 = vmatprep.subr.mxu0 0.0
        %849 = vmatpush2.msra.mxu0 0.0
        %850 = vmatprep.subr.mxu0 0.0
        %851 = vmatpush2.msra.mxu0 0.0
        %852 = vmatprep.subr.mxu0 0.0
        %853 = vmatpush2.msra.mxu0 0.0
        %854 = vmatprep.subr.mxu0 0.0
        %855 = vmatpush2.msra.mxu0 0.0
        %856 = vmatprep.subr.mxu0 0.0
        %857 = vmatpush2.msra.mxu0 0.0
        %858 = vmatprep.subr.mxu0 0.0
        %859 = vmatpush2.msra.mxu0 0.0
        %860 = vmatprep.subr.mxu0 0.0
        %861 = vmatpush2.msra.mxu0 0.0
        %862 = vmatprep.subr.mxu0 0.0
        %863 = vmatpush2.msra.mxu0 0.0
        %864 = vmatprep.subr.mxu0 0.0
        %865 = vmatpush2.msra.mxu0 0.0
        %866 = vmatprep.subr.mxu0 0.0
        %867 = vmatpush2.msra.mxu0 0.0
        %868 = vmatprep.subr.mxu0 0.0
        %869 = vmatpush2.msra.mxu0 0.0
        %870 = vmatprep.subr.mxu0 0.0
        %871 = vmatpush2.msra.mxu0 %v693
        %872 = vmatprep.subr.mxu0 0.0
        %873 = vmatpush2.msra.mxu0 %v692
        %874 = vmatprep.mubr.f32.mxu0 %v805
        %875 = vmatmul.mubr.f32.gmra.mxu0 %v795
        %v876 = vpop.f32.mrf.mxu0
        %v877 = vadd.f32 %v802, %v876
        %v878 = vpop.f32.mrf.mxu0
        %879 = vmatprep.mubr.f32.mxu0 %v808
        %880 = vmatmul.mubr.f32.gmra.mxu0 %v796
        %v881 = vpop.f32.mrf.mxu0
        %v882 = vadd.f32 %v802, %v881
        %v883 = vpop.f32.mrf.mxu0
        %884 = vdwg.mxu0
        %v885 = vld [vmem:[%s5] sm:$0x1]
        %v887 = vlaneseq
        %v888 = vshrl.u32 %v887, 7
        %v889 = vsub.s32 0, %v888
        %v890 = vrot.slane %v885, %v889
        %v892 = vmul.f32 %v877, %v890
        %v893 = vmul.f32 %v882, %v890
        %v894 = vmax.f32 %v892, 0.0
        %v895 = vmax.f32 %v893, 0.0
        %v896 = vld [vmem:[%s6] sm:$0xff]
        %v897 = vld [vmem:[%s6 + $0x8] sm:$0xff]
        %v898 = vld [vmem:[%s6 + $0x10] sm:$0xff]
        %v899 = vld [vmem:[%s6 + $0x18] sm:$0xff]
        %v900 = vld [vmem:[%s7] sm:$0x1]
        %v902 = vlaneseq
        %v903 = vshrl.u32 %v902, 7
        %v904 = vsub.s32 0, %v903
        %v905 = vrot.slane %v900, %v904
        %v908 = vsel %vm455, %v894, 0
        %v911 = vsel %vm455, %v895, 0
        %913 = vmatprep.subr.mxu0 0.0
        %914 = vmatpush1.msra.mxu0 0.0
        %915 = vmatprep.subr.mxu0 0.0
        %916 = vmatpush1.msra.mxu0 0.0
        %917 = vmatprep.subr.mxu0 0.0
        %918 = vmatpush1.msra.mxu0 0.0
        %919 = vmatprep.subr.mxu0 0.0
        %920 = vmatpush1.msra.mxu0 0.0
        %921 = vmatprep.subr.mxu0 0.0
        %922 = vmatpush1.msra.mxu0 0.0
        %923 = vmatprep.subr.mxu0 0.0
        %924 = vmatpush1.msra.mxu0 0.0
        %925 = vmatprep.subr.mxu0 0.0
        %926 = vmatpush1.msra.mxu0 0.0
        %927 = vmatprep.subr.mxu0 0.0
        %928 = vmatpush1.msra.mxu0 0.0
        %929 = vmatprep.subr.mxu0 0.0
        %930 = vmatpush1.msra.mxu0 0.0
        %931 = vmatprep.subr.mxu0 0.0
        %932 = vmatpush1.msra.mxu0 0.0
        %933 = vmatprep.subr.mxu0 0.0
        %934 = vmatpush1.msra.mxu0 0.0
        %935 = vmatprep.subr.mxu0 0.0
        %936 = vmatpush1.msra.mxu0 0.0
        %937 = vmatprep.subr.mxu0 0.0
        %938 = vmatpush1.msra.mxu0 %v899
        %939 = vmatprep.subr.mxu0 0.0
        %940 = vmatpush1.msra.mxu0 %v898
        %941 = vmatprep.subr.mxu0 0.0
        %942 = vmatpush1.msra.mxu0 %v897
        %943 = vmatprep.subr.mxu0 0.0
        %944 = vmatpush1.msra.mxu0 %v896
        %945 = vmatprep.subr.mxu0 0.0
        %946 = vmatpush2.msra.mxu0 0.0
        %947 = vmatprep.subr.mxu0 0.0
        %948 = vmatpush2.msra.mxu0 0.0
        %949 = vmatprep.subr.mxu0 0.0
        %950 = vmatpush2.msra.mxu0 0.0
        %951 = vmatprep.subr.mxu0 0.0
        %952 = vmatpush2.msra.mxu0 0.0
        %953 = vmatprep.subr.mxu0 0.0
        %954 = vmatpush2.msra.mxu0 0.0
        %955 = vmatprep.subr.mxu0 0.0
        %956 = vmatpush2.msra.mxu0 0.0
        %957 = vmatprep.subr.mxu0 0.0
        %958 = vmatpush2.msra.mxu0 0.0
        %959 = vmatprep.subr.mxu0 0.0
        %960 = vmatpush2.msra.mxu0 0.0
        %961 = vmatprep.subr.mxu0 0.0
        %962 = vmatpush2.msra.mxu0 0.0
        %963 = vmatprep.subr.mxu0 0.0
        %964 = vmatpush2.msra.mxu0 0.0
        %965 = vmatprep.subr.mxu0 0.0
        %966 = vmatpush2.msra.mxu0 0.0
        %967 = vmatprep.subr.mxu0 0.0
        %968 = vmatpush2.msra.mxu0 0.0
        %969 = vmatprep.subr.mxu0 0.0
        %970 = vmatpush2.msra.mxu0 0.0
        %971 = vmatprep.subr.mxu0 0.0
        %972 = vmatpush2.msra.mxu0 0.0
        %973 = vmatprep.subr.mxu0 0.0
        %974 = vmatpush2.msra.mxu0 0.0
        %975 = vmatprep.subr.mxu0 0.0
        %976 = vmatpush2.msra.mxu0 0.0
        %977 = vmatprep.mubr.f32.mxu0 0.0
        %978 = vmatmul.mubr.f32.gmra.mxu0 %v908
        %v979 = vpop.f32.mrf.mxu0
        %v980 = vadd.f32 %v905, %v979
        %v981 = vpop.f32.mrf.mxu0
        %982 = vmatprep.mubr.f32.mxu0 0.0
        %983 = vmatmul.mubr.f32.gmra.mxu0 %v911
        %v984 = vpop.f32.mrf.mxu0
        %v985 = vadd.f32 %v905, %v984
        %v986 = vpop.f32.mrf.mxu0
        %987 = vdwg.mxu0
        %v988 = vld [vmem:[%s8] sm:$0x1]
        %v990 = vlaneseq
        %v991 = vshrl.u32 %v990, 7
        %v992 = vsub.s32 0, %v991
        %v993 = vrot.slane %v988, %v992
        %v995 = vmul.f32 %v980, %v993
        %v996 = vmul.f32 %v985, %v993
        %v997 = vmax.f32 %v995, 0.0
        %v998 = vmax.f32 %v996, 0.0
        %v999 = vld [vmem:[%s9] sm:$0xff]
        %v1000 = vld [vmem:[%s9 + $0x8] sm:$0xff]
        %v1001 = vld [vmem:[%s9 + $0x10] sm:$0xff]
        %v1002 = vld [vmem:[%s9 + $0x18] sm:$0xff]
        %v1003 = vld [vmem:[%s9 + $0x20] sm:$0xff]
        %v1004 = vld [vmem:[%s9 + $0x28] sm:$0xff]
        %v1005 = vld [vmem:[%s9 + $0x30] sm:$0xff]
        %v1006 = vld [vmem:[%s9 + $0x38] sm:$0xff]
        %v1007 = vld [vmem:[%s9 + $0x40] sm:$0xff]
        %v1008 = vld [vmem:[%s9 + $0x48] sm:$0xff]
        %v1009 = vld [vmem:[%s9 + $0x50] sm:$0xff]
        %v1010 = vld [vmem:[%s9 + $0x58] sm:$0xff]
        %v1011 = vld [vmem:[%s9 + $0x60] sm:$0xff]
        %v1012 = vld [vmem:[%s9 + $0x68] sm:$0xff]
        %v1013 = vld [vmem:[%s9 + $0x70] sm:$0xff]
        %v1014 = vld [vmem:[%s9 + $0x78] sm:$0xff]
        %v1015 = vld [vmem:[%s9 + $0x80] sm:$0xff]
        %v1016 = vld [vmem:[%s9 + $0x88] sm:$0xff]
        %v1017 = vld [vmem:[%s9 + $0x90] sm:$0xff]
        %v1018 = vld [vmem:[%s9 + $0x98] sm:$0xff]
        %v1019 = vld [vmem:[%s9 + $0xa0] sm:$0xff]
        %v1020 = vld [vmem:[%s9 + $0xa8] sm:$0xff]
        %v1021 = vld [vmem:[%s9 + $0xb0] sm:$0xff]
        %v1022 = vld [vmem:[%s9 + $0xb8] sm:$0xff]
        %v1023 = vld [vmem:[%s9 + $0xc0] sm:$0xff]
        %v1024 = vld [vmem:[%s9 + $0xc8] sm:$0xff]
        %v1025 = vld [vmem:[%s9 + $0xd0] sm:$0xff]
        %v1026 = vld [vmem:[%s9 + $0xd8] sm:$0xff]
        %v1027 = vld [vmem:[%s9 + $0xe0] sm:$0xff]
        %v1028 = vld [vmem:[%s9 + $0xe8] sm:$0xff]
        %v1029 = vld [vmem:[%s9 + $0xf0] sm:$0xff]
        %v1030 = vld [vmem:[%s9 + $0xf8] sm:$0xff]
        %v1031 = vld [vmem:[%s9 + $0x100] sm:$0xff]
        %v1032 = vld [vmem:[%s9 + $0x108] sm:$0xff]
        %v1033 = vld [vmem:[%s9 + $0x110] sm:$0xff]
        %v1034 = vld [vmem:[%s9 + $0x118] sm:$0xff]
        %1035 = vst.msk [vmem:[#allocation3 + $0x8] sm:$0xff] %vm455, %v997
        %1036 = vst.msk [vmem:[#allocation3 + $0x10] sm:$0xff] %vm455, %v998
        %v1037 = vld [vmem:[#allocation3 + $0x3] sm:$0xff]
        %v1038 = vld [vmem:[#allocation3 + $0xb] sm:$0xff]
        %v1039 = vmul.f32 %v1037, %v489
        %v1040 = vmul.f32 %v1038, %v490
        %v1041 = vld [vmem:[#allocation3 + $0x4] sm:$0xff]
        %v1042 = vld [vmem:[#allocation3 + $0xc] sm:$0xff]
        %v1043 = vld [vmem:[#allocation3 + $0x5] sm:$0xff]
        %v1044 = vld [vmem:[#allocation3 + $0xd] sm:$0xff]
        %v1045 = vmul.f32 %v1043, %v495
        %v1046 = vmul.f32 %v1044, %v496
        %v1047 = vld [vmem:[#allocation3 + $0x7] sm:$0xff]
        %v1048 = vld [vmem:[#allocation3 + $0xf] sm:$0xff]
        %v1049 = vmul.f32 %v1047, %v489
        %v1050 = vmul.f32 %v1048, %v490
        %v1051 = vld [vmem:[#allocation3 + $0x8] sm:$0xff]
        %v1052 = vld [vmem:[#allocation3 + $0x10] sm:$0xff]
        %v1053 = vld [vmem:[#allocation3 + $0x9] sm:$0xff]
        %v1054 = vld [vmem:[#allocation3 + $0x11] sm:$0xff]
        %v1055 = vmul.f32 %v1053, %v495
        %v1056 = vmul.f32 %v1054, %v496
        %v1057 = vld [vmem:[#allocation3 + $0x13] sm:$0xff]
        %v1058 = vmul.f32 %v1038, %v489
        %v1059 = vmul.f32 %v1057, %v490
        %v1060 = vld [vmem:[#allocation3 + $0x14] sm:$0xff]
        %v1061 = vld [vmem:[#allocation3 + $0x15] sm:$0xff]
        %v1062 = vmul.f32 %v1044, %v495
        %v1063 = vmul.f32 %v1061, %v496
        %1066 = vrot.lane.b32.xlu0 %v1041, 32
        %v1067 = vpop.permute.xlu0 %1066
        %1068 = vrot.lane.b32.xlu0 %v1042, 32
        %v1069 = vpop.permute.xlu0 %1068
        %1074 = vrot.lane.b32.xlu0 %v1045, 64
        %v1075 = vpop.permute.xlu0 %1074
        %1076 = vrot.lane.b32.xlu0 %v1046, 64
        %v1077 = vpop.permute.xlu0 %1076
        %1082 = vrot.lane.b32.xlu0 %v1049, 96
        %v1083 = vpop.permute.xlu0 %1082
        %1084 = vrot.lane.b32.xlu0 %v1050, 96
        %v1085 = vpop.permute.xlu0 %1084
        %1090 = vrot.lane.b32.xlu0 %v1055, 32
        %v1091 = vpop.permute.xlu0 %1090
        %1092 = vrot.lane.b32.xlu0 %v1056, 32
        %v1093 = vpop.permute.xlu0 %1092
        %1098 = vrot.lane.b32.xlu0 %v1058, 64
        %v1099 = vpop.permute.xlu0 %1098
        %1100 = vrot.lane.b32.xlu0 %v1059, 64
        %v1101 = vpop.permute.xlu0 %1100
        %1105 = vrot.lane.b32.xlu0 %v1042, 96
        %v1106 = vpop.permute.xlu0 %1105
        %1107 = vrot.lane.b32.xlu0 %v1060, 96
        %v1108 = vpop.permute.xlu0 %1107
        %v1111 = vsel %vm455, %v1039, %v1067
        %v1112 = vsel %vm455, %v1040, %v1069
        %v1113 = vsel %vm785, %v1111, %v1075
        %v1114 = vsel %vm785, %v1112, %v1077
        %v1115 = vsel %vm791, %v1113, %v1083
        %v1116 = vsel %vm791, %v1114, %v1085
        %v1117 = vsel %vm455, %v1051, %v1091
        %v1118 = vsel %vm455, %v1052, %v1093
        %v1119 = vsel %vm785, %v1117, %v1099
        %v1120 = vsel %vm785, %v1118, %v1101
        %v1121 = vsel %vm791, %v1119, %v1106
        %v1122 = vsel %vm791, %v1120, %v1108
        %v1123 = vld [vmem:[%s10] sm:$0x1]
        %v1125 = vlaneseq
        %v1126 = vshrl.u32 %v1125, 7
        %v1127 = vsub.s32 0, %v1126
        %v1128 = vrot.slane %v1123, %v1127
        %v1131 = vsel %vm455, %v1062, 0
        %v1134 = vsel %vm455, %v1063, 0
        %1136 = vmatprep.subr.mxu0 0.0
        %1137 = vmatpush1.msra.mxu0 %v1014
        %1138 = vmatprep.subr.mxu0 0.0
        %1139 = vmatpush1.msra.mxu0 %v1013
        %1140 = vmatprep.subr.mxu0 0.0
        %1141 = vmatpush1.msra.mxu0 %v1012
        %1142 = vmatprep.subr.mxu0 0.0
        %1143 = vmatpush1.msra.mxu0 %v1011
        %1144 = vmatprep.subr.mxu0 0.0
        %1145 = vmatpush1.msra.mxu0 %v1010
        %1146 = vmatprep.subr.mxu0 0.0
        %1147 = vmatpush1.msra.mxu0 %v1009
        %1148 = vmatprep.subr.mxu0 0.0
        %1149 = vmatpush1.msra.mxu0 %v1008
        %1150 = vmatprep.subr.mxu0 0.0
        %1151 = vmatpush1.msra.mxu0 %v1007
        %1152 = vmatprep.subr.mxu0 0.0
        %1153 = vmatpush1.msra.mxu0 %v1006
        %1154 = vmatprep.subr.mxu0 0.0
        %1155 = vmatpush1.msra.mxu0 %v1005
        %1156 = vmatprep.subr.mxu0 0.0
        %1157 = vmatpush1.msra.mxu0 %v1004
        %1158 = vmatprep.subr.mxu0 0.0
        %1159 = vmatpush1.msra.mxu0 %v1003
        %1160 = vmatprep.subr.mxu0 0.0
        %1161 = vmatpush1.msra.mxu0 %v1002
        %1162 = vmatprep.subr.mxu0 0.0
        %1163 = vmatpush1.msra.mxu0 %v1001
        %1164 = vmatprep.subr.mxu0 0.0
        %1165 = vmatpush1.msra.mxu0 %v1000
        %1166 = vmatprep.subr.mxu0 0.0
        %1167 = vmatpush1.msra.mxu0 %v999
        %1168 = vmatprep.subr.mxu0 0.0
        %1169 = vmatpush2.msra.mxu0 %v1030
        %1170 = vmatprep.subr.mxu0 0.0
        %1171 = vmatpush2.msra.mxu0 %v1029
        %1172 = vmatprep.subr.mxu0 0.0
        %1173 = vmatpush2.msra.mxu0 %v1028
        %1174 = vmatprep.subr.mxu0 0.0
        %1175 = vmatpush2.msra.mxu0 %v1027
        %1176 = vmatprep.subr.mxu0 0.0
        %1177 = vmatpush2.msra.mxu0 %v1026
        %1178 = vmatprep.subr.mxu0 0.0
        %1179 = vmatpush2.msra.mxu0 %v1025
        %1180 = vmatprep.subr.mxu0 0.0
        %1181 = vmatpush2.msra.mxu0 %v1024
        %1182 = vmatprep.subr.mxu0 0.0
        %1183 = vmatpush2.msra.mxu0 %v1023
        %1184 = vmatprep.subr.mxu0 0.0
        %1185 = vmatpush2.msra.mxu0 %v1022
        %1186 = vmatprep.subr.mxu0 0.0
        %1187 = vmatpush2.msra.mxu0 %v1021
        %1188 = vmatprep.subr.mxu0 0.0
        %1189 = vmatpush2.msra.mxu0 %v1020
        %1190 = vmatprep.subr.mxu0 0.0
        %1191 = vmatpush2.msra.mxu0 %v1019
        %1192 = vmatprep.subr.mxu0 0.0
        %1193 = vmatpush2.msra.mxu0 %v1018
        %1194 = vmatprep.subr.mxu0 0.0
        %1195 = vmatpush2.msra.mxu0 %v1017
        %1196 = vmatprep.subr.mxu0 0.0
        %1197 = vmatpush2.msra.mxu0 %v1016
        %1198 = vmatprep.subr.mxu0 0.0
        %1199 = vmatpush2.msra.mxu0 %v1015
        %1200 = vmatprep.mubr.f32.mxu0 %v1121
        %1201 = vmatmul.mubr.f32.gmra.mxu0 %v1115
        %v1202 = vpop.f32.mrf.mxu0
        %v1203 = vadd.f32 %v1128, %v1202
        %v1204 = vpop.f32.mrf.mxu0
        %1205 = vmatprep.mubr.f32.mxu0 %v1122
        %1206 = vmatmul.mubr.f32.gmra.mxu0 %v1116
        %v1207 = vpop.f32.mrf.mxu0
        %v1208 = vadd.f32 %v1128, %v1207
        %v1209 = vpop.f32.mrf.mxu0
        %1210 = vdwg.mxu0
        %1211 = vmatprep.subr.mxu0 0.0
        %1212 = vmatpush1.msra.mxu0 0.0
        %1213 = vmatprep.subr.mxu0 0.0
        %1214 = vmatpush1.msra.mxu0 0.0
        %1215 = vmatprep.subr.mxu0 0.0
        %1216 = vmatpush1.msra.mxu0 0.0
        %1217 = vmatprep.subr.mxu0 0.0
        %1218 = vmatpush1.msra.mxu0 0.0
        %1219 = vmatprep.subr.mxu0 0.0
        %1220 = vmatpush1.msra.mxu0 0.0
        %1221 = vmatprep.subr.mxu0 0.0
        %1222 = vmatpush1.msra.mxu0 0.0
        %1223 = vmatprep.subr.mxu0 0.0
        %1224 = vmatpush1.msra.mxu0 0.0
        %1225 = vmatprep.subr.mxu0 0.0
        %1226 = vmatpush1.msra.mxu0 0.0
        %1227 = vmatprep.subr.mxu0 0.0
        %1228 = vmatpush1.msra.mxu0 0.0
        %1229 = vmatprep.subr.mxu0 0.0
        %1230 = vmatpush1.msra.mxu0 0.0
        %1231 = vmatprep.subr.mxu0 0.0
        %1232 = vmatpush1.msra.mxu0 0.0
        %1233 = vmatprep.subr.mxu0 0.0
        %1234 = vmatpush1.msra.mxu0 0.0
        %1235 = vmatprep.subr.mxu0 0.0
        %1236 = vmatpush1.msra.mxu0 %v1034
        %1237 = vmatprep.subr.mxu0 0.0
        %1238 = vmatpush1.msra.mxu0 %v1033
        %1239 = vmatprep.subr.mxu0 0.0
        %1240 = vmatpush1.msra.mxu0 %v1032
        %1241 = vmatprep.subr.mxu0 0.0
        %1242 = vmatpush1.msra.mxu0 %v1031
        %1243 = vmatprep.subr.mxu0 0.0
        %1244 = vmatpush2.msra.mxu0 0.0
        %1245 = vmatprep.subr.mxu0 0.0
        %1246 = vmatpush2.msra.mxu0 0.0
        %1247 = vmatprep.subr.mxu0 0.0
        %1248 = vmatpush2.msra.mxu0 0.0
        %1249 = vmatprep.subr.mxu0 0.0
        %1250 = vmatpush2.msra.mxu0 0.0
        %1251 = vmatprep.subr.mxu0 0.0
        %1252 = vmatpush2.msra.mxu0 0.0
        %1253 = vmatprep.subr.mxu0 0.0
        %1254 = vmatpush2.msra.mxu0 0.0
        %1255 = vmatprep.subr.mxu0 0.0
        %1256 = vmatpush2.msra.mxu0 0.0
        %1257 = vmatprep.subr.mxu0 0.0
        %1258 = vmatpush2.msra.mxu0 0.0
        %1259 = vmatprep.subr.mxu0 0.0
        %1260 = vmatpush2.msra.mxu0 0.0
        %1261 = vmatprep.subr.mxu0 0.0
        %1262 = vmatpush2.msra.mxu0 0.0
        %1263 = vmatprep.subr.mxu0 0.0
        %1264 = vmatpush2.msra.mxu0 0.0
        %1265 = vmatprep.subr.mxu0 0.0
        %1266 = vmatpush2.msra.mxu0 0.0
        %1267 = vmatprep.subr.mxu0 0.0
        %1268 = vmatpush2.msra.mxu0 0.0
        %1269 = vmatprep.subr.mxu0 0.0
        %1270 = vmatpush2.msra.mxu0 0.0
        %1271 = vmatprep.subr.mxu0 0.0
        %1272 = vmatpush2.msra.mxu0 0.0
        %1273 = vmatprep.subr.mxu0 0.0
        %1274 = vmatpush2.msra.mxu0 0.0
        %1275 = vmatprep.mubr.f32.mxu0 0.0
        %1276 = vmatmul.mubr.f32.gmra.mxu0 %v1131
        %v1277 = vpop.f32.mrf.mxu0
        %v1278 = vadd.f32 %v1203, %v1277
        %v1279 = vpop.f32.mrf.mxu0
        %1280 = vmatprep.mubr.f32.mxu0 0.0
        %1281 = vmatmul.mubr.f32.gmra.mxu0 %v1134
        %v1282 = vpop.f32.mrf.mxu0
        %v1283 = vadd.f32 %v1208, %v1282
        %v1284 = vpop.f32.mrf.mxu0
        %1285 = vdwg.mxu0
        %v1286 = vld [vmem:[%s11] sm:$0x1]
        %v1288 = vlaneseq
        %v1289 = vshrl.u32 %v1288, 7
        %v1290 = vsub.s32 0, %v1289
        %v1291 = vrot.slane %v1286, %v1290
        %v1293 = vmul.f32 %v1278, %v1291
        %v1294 = vmul.f32 %v1283, %v1291
        %v1295 = vadd.f32 %v1293, 2.0
        %v1296 = vadd.f32 %v1294, 2.0
        %v1297 = vmin.f32 %v1295, 0.0
        %v1298 = vmin.f32 %v1296, 0.0
        %v1299 = vand.u32 2147483647, %v1295
        %v1300 = vand.u32 2147483647, %v1296
        %v1301 = vsub.f32 0.0, %v1299
        %v1302 = vsub.f32 0.0, %v1300
        %v1303 = vmul.f32 %v1301, 1.442695
        %v1304 = vpow.pop %v1303
        %v1305 = vmul.f32 %v1302, 1.442695
        %v1306 = vpow.pop %v1305
        %v1307 = vadd.f32 %v1304, 1.0
        %v1308 = vadd.f32 %v1306, 1.0
        %v1309 = vlog2.pop %v1307
        %v1310 = vmul.f32 %v1309, 0.6931472
        %v1311 = vlog2.pop %v1308
        %v1312 = vmul.f32 %v1311, 0.6931472
        %v1313 = vsub.f32 %v1297, %v1310
        %v1314 = vsub.f32 %v1298, %v1312
        %1317 = vrot.lane.b32.xlu0 %v1293, 16
        %v1318 = vpop.permute.xlu0 %1317
        %1319 = vrot.lane.b32.xlu0 %v1294, 16
        %v1320 = vpop.permute.xlu0 %1319
        %v1323 = vadd.f32 %v674, %v1318
        %v1324 = vadd.f32 %v675, %v1320
        %v1325 = vmul.f32 %v1313, 1.442695
        %v1326 = vpow.pop %v1325
        %v1327 = vmul.f32 %v1314, 1.442695
        %v1328 = vpow.pop %v1327
        %v1329 = vmul.f32 %v1323, %v1326
        %v1330 = vmul.f32 %v1324, %v1328
        %1333 = vrot.lane.b32.xlu0 %v1313, 112
        %v1334 = vpop.permute.xlu0 %1333
        %1335 = vrot.lane.b32.xlu0 %v1314, 112
        %v1336 = vpop.permute.xlu0 %1335
        %v1339 = vsel %vm452, %v1334, 0.0
        %1340 = vadd.xlane.f32.xlu0 %v1339
        %v1341 = vpop.xlane.xlu0 %1340
        %v1342 = vsel %vm452, %v1336, 0.0
        %1343 = vadd.xlane.f32.xlu0 %v1342
        %v1344 = vpop.xlane.xlu0 %1343
        %v1345 = vadd.f32 %v1341, 0.0
        %v1346 = vadd.f32 %v1344, 0.0
        %s1347 = scalar_lea.vmem %s1, 32
        %v1348 = vld [vmem:[%s1347] sm:$0xff]
        %v1349 = vld [vmem:[%s1347 + $0x8] sm:$0xff]
        %v1350 = vld [vmem:[%s1347 + $0x10] sm:$0xff]
        %v1351 = vld [vmem:[%s1347 + $0x18] sm:$0xff]
        %1354 = vrot.lane.b32.xlu0 %v1329, 112
        %v1355 = vpop.permute.xlu0 %1354
        %1356 = vrot.lane.b32.xlu0 %v1330, 112
        %v1357 = vpop.permute.xlu0 %1356
        %v1358 = vsel %vm452, %v1355, 0
        %v1360 = vsel %vm452, %v1357, 0
        %1362 = vmatprep.subr.mxu0 0.0
        %1363 = vmatpush1.msra.mxu0 0.0
        %1364 = vmatprep.subr.mxu0 0.0
        %1365 = vmatpush1.msra.mxu0 0.0
        %1366 = vmatprep.subr.mxu0 0.0
        %1367 = vmatpush1.msra.mxu0 0.0
        %1368 = vmatprep.subr.mxu0 0.0
        %1369 = vmatpush1.msra.mxu0 0.0
        %1370 = vmatprep.subr.mxu0 0.0
        %1371 = vmatpush1.msra.mxu0 0.0
        %1372 = vmatprep.subr.mxu0 0.0
        %1373 = vmatpush1.msra.mxu0 0.0
        %1374 = vmatprep.subr.mxu0 0.0
        %1375 = vmatpush1.msra.mxu0 0.0
        %1376 = vmatprep.subr.mxu0 0.0
        %1377 = vmatpush1.msra.mxu0 0.0
        %1378 = vmatprep.subr.mxu0 0.0
        %1379 = vmatpush1.msra.mxu0 0.0
        %1380 = vmatprep.subr.mxu0 0.0
        %1381 = vmatpush1.msra.mxu0 0.0
        %1382 = vmatprep.subr.mxu0 0.0
        %1383 = vmatpush1.msra.mxu0 0.0
        %1384 = vmatprep.subr.mxu0 0.0
        %1385 = vmatpush1.msra.mxu0 0.0
        %1386 = vmatprep.subr.mxu0 0.0
        %1387 = vmatpush1.msra.mxu0 0.0
        %1388 = vmatprep.subr.mxu0 0.0
        %1389 = vmatpush1.msra.mxu0 0.0
        %1390 = vmatprep.subr.mxu0 0.0
        %1391 = vmatpush1.msra.mxu0 %v1351
        %1392 = vmatprep.subr.mxu0 0.0
        %1393 = vmatpush1.msra.mxu0 %v1350
        %1394 = vmatprep.subr.mxu0 0.0
        %1395 = vmatpush2.msra.mxu0 0.0
        %1396 = vmatprep.subr.mxu0 0.0
        %1397 = vmatpush2.msra.mxu0 0.0
        %1398 = vmatprep.subr.mxu0 0.0
        %1399 = vmatpush2.msra.mxu0 0.0
        %1400 = vmatprep.subr.mxu0 0.0
        %1401 = vmatpush2.msra.mxu0 0.0
        %1402 = vmatprep.subr.mxu0 0.0
        %1403 = vmatpush2.msra.mxu0 0.0
        %1404 = vmatprep.subr.mxu0 0.0
        %1405 = vmatpush2.msra.mxu0 0.0
        %1406 = vmatprep.subr.mxu0 0.0
        %1407 = vmatpush2.msra.mxu0 0.0
        %1408 = vmatprep.subr.mxu0 0.0
        %1409 = vmatpush2.msra.mxu0 0.0
        %1410 = vmatprep.subr.mxu0 0.0
        %1411 = vmatpush2.msra.mxu0 0.0
        %1412 = vmatprep.subr.mxu0 0.0
        %1413 = vmatpush2.msra.mxu0 0.0
        %1414 = vmatprep.subr.mxu0 0.0
        %1415 = vmatpush2.msra.mxu0 0.0
        %1416 = vmatprep.subr.mxu0 0.0
        %1417 = vmatpush2.msra.mxu0 0.0
        %1418 = vmatprep.subr.mxu0 0.0
        %1419 = vmatpush2.msra.mxu0 0.0
        %1420 = vmatprep.subr.mxu0 0.0
        %1421 = vmatpush2.msra.mxu0 0.0
        %1422 = vmatprep.subr.mxu0 0.0
        %1423 = vmatpush2.msra.mxu0 0.0
        %1424 = vmatprep.subr.mxu0 0.0
        %1425 = vmatpush2.msra.mxu0 0.0
        %1426 = vmatprep.mubr.f32.mxu0 0.0
        %1427 = vmatmul.mubr.f32.gmra.mxu0 %v1358
        %v1428 = vpop.f32.mrf.mxu0
        %v1429 = vadd.f32 0.0, %v1428
        %v1430 = vpop.f32.mrf.mxu0
        %1431 = vmatprep.mubr.f32.mxu0 0.0
        %1432 = vmatmul.mubr.f32.gmra.mxu0 %v1360
        %v1433 = vpop.f32.mrf.mxu0
        %v1434 = vadd.f32 0.0, %v1433
        %v1435 = vpop.f32.mrf.mxu0
        %1436 = vdwg.mxu0
        %v1438 = vsel %vm452, %v674, 0
        %v1441 = vsel %vm452, %v675, 0
        %1443 = vmatprep.subr.mxu0 0.0
        %1444 = vmatpush1.msra.mxu0 0.0
        %1445 = vmatprep.subr.mxu0 0.0
        %1446 = vmatpush1.msra.mxu0 0.0
        %1447 = vmatprep.subr.mxu0 0.0
        %1448 = vmatpush1.msra.mxu0 0.0
        %1449 = vmatprep.subr.mxu0 0.0
        %1450 = vmatpush1.msra.mxu0 0.0
        %1451 = vmatprep.subr.mxu0 0.0
        %1452 = vmatpush1.msra.mxu0 0.0
        %1453 = vmatprep.subr.mxu0 0.0
        %1454 = vmatpush1.msra.mxu0 0.0
        %1455 = vmatprep.subr.mxu0 0.0
        %1456 = vmatpush1.msra.mxu0 0.0
        %1457 = vmatprep.subr.mxu0 0.0
        %1458 = vmatpush1.msra.mxu0 0.0
        %1459 = vmatprep.subr.mxu0 0.0
        %1460 = vmatpush1.msra.mxu0 0.0
        %1461 = vmatprep.subr.mxu0 0.0
        %1462 = vmatpush1.msra.mxu0 0.0
        %1463 = vmatprep.subr.mxu0 0.0
        %1464 = vmatpush1.msra.mxu0 0.0
        %1465 = vmatprep.subr.mxu0 0.0
        %1466 = vmatpush1.msra.mxu0 0.0
        %1467 = vmatprep.subr.mxu0 0.0
        %1468 = vmatpush1.msra.mxu0 0.0
        %1469 = vmatprep.subr.mxu0 0.0
        %1470 = vmatpush1.msra.mxu0 0.0
        %1471 = vmatprep.subr.mxu0 0.0
        %1472 = vmatpush1.msra.mxu0 %v1349
        %1473 = vmatprep.subr.mxu0 0.0
        %1474 = vmatpush1.msra.mxu0 %v1348
        %1475 = vmatprep.subr.mxu0 0.0
        %1476 = vmatpush2.msra.mxu0 0.0
        %1477 = vmatprep.subr.mxu0 0.0
        %1478 = vmatpush2.msra.mxu0 0.0
        %1479 = vmatprep.subr.mxu0 0.0
        %1480 = vmatpush2.msra.mxu0 0.0
        %1481 = vmatprep.subr.mxu0 0.0
        %1482 = vmatpush2.msra.mxu0 0.0
        %1483 = vmatprep.subr.mxu0 0.0
        %1484 = vmatpush2.msra.mxu0 0.0
        %1485 = vmatprep.subr.mxu0 0.0
        %1486 = vmatpush2.msra.mxu0 0.0
        %1487 = vmatprep.subr.mxu0 0.0
        %1488 = vmatpush2.msra.mxu0 0.0
        %1489 = vmatprep.subr.mxu0 0.0
        %1490 = vmatpush2.msra.mxu0 0.0
        %1491 = vmatprep.subr.mxu0 0.0
        %1492 = vmatpush2.msra.mxu0 0.0
        %1493 = vmatprep.subr.mxu0 0.0
        %1494 = vmatpush2.msra.mxu0 0.0
        %1495 = vmatprep.subr.mxu0 0.0
        %1496 = vmatpush2.msra.mxu0 0.0
        %1497 = vmatprep.subr.mxu0 0.0
        %1498 = vmatpush2.msra.mxu0 0.0
        %1499 = vmatprep.subr.mxu0 0.0
        %1500 = vmatpush2.msra.mxu0 0.0
        %1501 = vmatprep.subr.mxu0 0.0
        %1502 = vmatpush2.msra.mxu0 0.0
        %1503 = vmatprep.subr.mxu0 0.0
        %1504 = vmatpush2.msra.mxu0 0.0
        %1505 = vmatprep.subr.mxu0 0.0
        %1506 = vmatpush2.msra.mxu0 0.0
        %1507 = vmatprep.mubr.f32.mxu0 0.0
        %1508 = vmatmul.mubr.f32.gmra.mxu0 %v1438
        %v1509 = vpop.f32.mrf.mxu0
        %v1510 = vadd.f32 %v1429, %v1509
        %v1511 = vpop.f32.mrf.mxu0
        %1512 = vmatprep.mubr.f32.mxu0 0.0
        %1513 = vmatmul.mubr.f32.gmra.mxu0 %v1441
        %v1514 = vpop.f32.mrf.mxu0
        %v1515 = vadd.f32 %v1434, %v1514
        %v1516 = vpop.f32.mrf.mxu0
        %1517 = vdwg.mxu0
        %s1518 = scalar_lea.vmem %s2, 1
        %v1519 = vld [vmem:[%s1518] sm:$0x1]
        %v1521 = vlaneseq
        %v1522 = vshrl.u32 %v1521, 7
        %v1523 = vsub.s32 0, %v1522
        %v1524 = vrot.slane %v1519, %v1523
        %v1526 = vadd.f32 %v1510, %v1524
        %v1527 = vadd.f32 %v1515, %v1524
        %s1528 = scalar_lea.vmem %s3, 144
        %v1529 = vld [vmem:[%s1528] sm:$0xff]
        %v1530 = vld [vmem:[%s1528 + $0x8] sm:$0xff]
        %v1531 = vld [vmem:[%s1528 + $0x10] sm:$0xff]
        %v1532 = vld [vmem:[%s1528 + $0x18] sm:$0xff]
        %v1533 = vld [vmem:[%s1528 + $0x20] sm:$0xff]
        %v1534 = vld [vmem:[%s1528 + $0x28] sm:$0xff]
        %v1535 = vld [vmem:[%s1528 + $0x30] sm:$0xff]
        %v1536 = vld [vmem:[%s1528 + $0x38] sm:$0xff]
        %v1537 = vld [vmem:[%s1528 + $0x40] sm:$0xff]
        %v1538 = vld [vmem:[%s1528 + $0x48] sm:$0xff]
        %v1539 = vld [vmem:[%s1528 + $0x50] sm:$0xff]
        %v1540 = vld [vmem:[%s1528 + $0x58] sm:$0xff]
        %v1541 = vld [vmem:[%s1528 + $0x60] sm:$0xff]
        %v1542 = vld [vmem:[%s1528 + $0x68] sm:$0xff]
        %v1543 = vld [vmem:[%s1528 + $0x70] sm:$0xff]
        %v1544 = vld [vmem:[%s1528 + $0x78] sm:$0xff]
        %v1545 = vld [vmem:[%s1528 + $0x80] sm:$0xff]
        %v1546 = vld [vmem:[%s1528 + $0x88] sm:$0xff]
        %1547 = vst.msk [vmem:[#allocation2 + $0x8] sm:$0xff] %vm452, %v1526
        %1548 = vst.msk [vmem:[#allocation2 + $0x10] sm:$0xff] %vm452, %v1527
        %v1549 = vld [vmem:[#allocation2 + $0x3] sm:$0xff]
        %v1550 = vld [vmem:[#allocation2 + $0xb] sm:$0xff]
        %v1551 = vmul.f32 %v1549, %v489
        %v1552 = vmul.f32 %v1550, %v490
        %v1553 = vld [vmem:[#allocation2 + $0x4] sm:$0xff]
        %v1554 = vld [vmem:[#allocation2 + $0xc] sm:$0xff]
        %v1555 = vld [vmem:[#allocation2 + $0x5] sm:$0xff]
        %v1556 = vld [vmem:[#allocation2 + $0xd] sm:$0xff]
        %v1557 = vmul.f32 %v1555, %v495
        %v1558 = vmul.f32 %v1556, %v496
        %v1559 = vld [vmem:[#allocation2 + $0x7] sm:$0xff]
        %v1560 = vld [vmem:[#allocation2 + $0xf] sm:$0xff]
        %v1561 = vmul.f32 %v1559, %v489
        %v1562 = vmul.f32 %v1560, %v490
        %v1563 = vld [vmem:[#allocation2 + $0x8] sm:$0xff]
        %v1564 = vld [vmem:[#allocation2 + $0x10] sm:$0xff]
        %v1565 = vld [vmem:[#allocation2 + $0x9] sm:$0xff]
        %v1566 = vld [vmem:[#allocation2 + $0x11] sm:$0xff]
        %v1567 = vmul.f32 %v1565, %v495
        %v1568 = vmul.f32 %v1566, %v496
        %v1569 = vld [vmem:[#allocation2 + $0x13] sm:$0xff]
        %v1570 = vmul.f32 %v1550, %v489
        %v1571 = vmul.f32 %v1569, %v490
        %v1572 = vld [vmem:[#allocation2 + $0x14] sm:$0xff]
        %v1573 = vld [vmem:[#allocation2 + $0x15] sm:$0xff]
        %v1574 = vmul.f32 %v1556, %v495
        %v1575 = vmul.f32 %v1573, %v496
        %1578 = vrot.lane.b32.xlu0 %v1553, 16
        %v1579 = vpop.permute.xlu0 %1578
        %1580 = vrot.lane.b32.xlu0 %v1554, 16
        %v1581 = vpop.permute.xlu0 %1580
        %1586 = vrot.lane.b32.xlu0 %v1557, 32
        %v1587 = vpop.permute.xlu0 %1586
        %1588 = vrot.lane.b32.xlu0 %v1558, 32
        %v1589 = vpop.permute.xlu0 %1588
        %1594 = vrot.lane.b32.xlu0 %v1561, 48
        %v1595 = vpop.permute.xlu0 %1594
        %1596 = vrot.lane.b32.xlu0 %v1562, 48
        %v1597 = vpop.permute.xlu0 %1596
        %1602 = vrot.lane.b32.xlu0 %v1563, 64
        %v1603 = vpop.permute.xlu0 %1602
        %1604 = vrot.lane.b32.xlu0 %v1564, 64
        %v1605 = vpop.permute.xlu0 %1604
        %1610 = vrot.lane.b32.xlu0 %v1567, 80
        %v1611 = vpop.permute.xlu0 %1610
        %1612 = vrot.lane.b32.xlu0 %v1568, 80
        %v1613 = vpop.permute.xlu0 %1612
        %1618 = vrot.lane.b32.xlu0 %v1570, 96
        %v1619 = vpop.permute.xlu0 %1618
        %1620 = vrot.lane.b32.xlu0 %v1571, 96
        %v1621 = vpop.permute.xlu0 %1620
        %1625 = vrot.lane.b32.xlu0 %v1554, 112
        %v1626 = vpop.permute.xlu0 %1625
        %1627 = vrot.lane.b32.xlu0 %v1572, 112
        %v1628 = vpop.permute.xlu0 %1627
        %v1631 = vsel %vm452, %v1551, %v1579
        %v1632 = vsel %vm452, %v1552, %v1581
        %v1633 = vsel %vm455, %v1631, %v1587
        %v1634 = vsel %vm455, %v1632, %v1589
        %v1635 = vsel %vm782, %v1633, %v1595
        %v1636 = vsel %vm782, %v1634, %v1597
        %v1637 = vsel %vm785, %v1635, %v1603
        %v1638 = vsel %vm785, %v1636, %v1605
        %v1639 = vsel %vm788, %v1637, %v1611
        %v1640 = vsel %vm788, %v1638, %v1613
        %v1641 = vsel %vm791, %v1639, %v1619
        %v1642 = vsel %vm791, %v1640, %v1621
        %v1643 = vsel %vm794, %v1641, %v1626
        %v1644 = vsel %vm794, %v1642, %v1628
        %s1645 = scalar_lea.vmem %s4, 1
        %v1646 = vld [vmem:[%s1645] sm:$0x1]
        %v1648 = vlaneseq
        %v1649 = vshrl.u32 %v1648, 7
        %v1650 = vsub.s32 0, %v1649
        %v1651 = vrot.slane %v1646, %v1650
        %v1654 = vsel %vm452, %v1574, 0
        %v1657 = vsel %vm452, %v1575, 0
        %1659 = vmatprep.subr.mxu0 0.0
        %1660 = vmatpush1.msra.mxu0 %v1544
        %1661 = vmatprep.subr.mxu0 0.0
        %1662 = vmatpush1.msra.mxu0 %v1543
        %1663 = vmatprep.subr.mxu0 0.0
        %1664 = vmatpush1.msra.mxu0 %v1542
        %1665 = vmatprep.subr.mxu0 0.0
        %1666 = vmatpush1.msra.mxu0 %v1541
        %1667 = vmatprep.subr.mxu0 0.0
        %1668 = vmatpush1.msra.mxu0 %v1540
        %1669 = vmatprep.subr.mxu0 0.0
        %1670 = vmatpush1.msra.mxu0 %v1539
        %1671 = vmatprep.subr.mxu0 0.0
        %1672 = vmatpush1.msra.mxu0 %v1538
        %1673 = vmatprep.subr.mxu0 0.0
        %1674 = vmatpush1.msra.mxu0 %v1537
        %1675 = vmatprep.subr.mxu0 0.0
        %1676 = vmatpush1.msra.mxu0 %v1536
        %1677 = vmatprep.subr.mxu0 0.0
        %1678 = vmatpush1.msra.mxu0 %v1535
        %1679 = vmatprep.subr.mxu0 0.0
        %1680 = vmatpush1.msra.mxu0 %v1534
        %1681 = vmatprep.subr.mxu0 0.0
        %1682 = vmatpush1.msra.mxu0 %v1533
        %1683 = vmatprep.subr.mxu0 0.0
        %1684 = vmatpush1.msra.mxu0 %v1532
        %1685 = vmatprep.subr.mxu0 0.0
        %1686 = vmatpush1.msra.mxu0 %v1531
        %1687 = vmatprep.subr.mxu0 0.0
        %1688 = vmatpush1.msra.mxu0 %v1530
        %1689 = vmatprep.subr.mxu0 0.0
        %1690 = vmatpush1.msra.mxu0 %v1529
        %1691 = vmatprep.subr.mxu0 0.0
        %1692 = vmatpush2.msra.mxu0 0.0
        %1693 = vmatprep.subr.mxu0 0.0
        %1694 = vmatpush2.msra.mxu0 0.0
        %1695 = vmatprep.subr.mxu0 0.0
        %1696 = vmatpush2.msra.mxu0 0.0
        %1697 = vmatprep.subr.mxu0 0.0
        %1698 = vmatpush2.msra.mxu0 0.0
        %1699 = vmatprep.subr.mxu0 0.0
        %1700 = vmatpush2.msra.mxu0 0.0
        %1701 = vmatprep.subr.mxu0 0.0
        %1702 = vmatpush2.msra.mxu0 0.0
        %1703 = vmatprep.subr.mxu0 0.0
        %1704 = vmatpush2.msra.mxu0 0.0
        %1705 = vmatprep.subr.mxu0 0.0
        %1706 = vmatpush2.msra.mxu0 0.0
        %1707 = vmatprep.subr.mxu0 0.0
        %1708 = vmatpush2.msra.mxu0 0.0
        %1709 = vmatprep.subr.mxu0 0.0
        %1710 = vmatpush2.msra.mxu0 0.0
        %1711 = vmatprep.subr.mxu0 0.0
        %1712 = vmatpush2.msra.mxu0 0.0
        %1713 = vmatprep.subr.mxu0 0.0
        %1714 = vmatpush2.msra.mxu0 0.0
        %1715 = vmatprep.subr.mxu0 0.0
        %1716 = vmatpush2.msra.mxu0 0.0
        %1717 = vmatprep.subr.mxu0 0.0
        %1718 = vmatpush2.msra.mxu0 0.0
        %1719 = vmatprep.subr.mxu0 0.0
        %1720 = vmatpush2.msra.mxu0 %v1546
        %1721 = vmatprep.subr.mxu0 0.0
        %1722 = vmatpush2.msra.mxu0 %v1545
        %1723 = vmatprep.mubr.f32.mxu0 %v1654
        %1724 = vmatmul.mubr.f32.gmra.mxu0 %v1643
        %v1725 = vpop.f32.mrf.mxu0
        %v1726 = vadd.f32 %v1651, %v1725
        %v1727 = vpop.f32.mrf.mxu0
        %1728 = vmatprep.mubr.f32.mxu0 %v1657
        %1729 = vmatmul.mubr.f32.gmra.mxu0 %v1644
        %v1730 = vpop.f32.mrf.mxu0
        %v1731 = vadd.f32 %v1651, %v1730
        %v1732 = vpop.f32.mrf.mxu0
        %1733 = vdwg.mxu0
        %s1734 = scalar_lea.vmem %s5, 1
        %v1735 = vld [vmem:[%s1734] sm:$0x1]
        %v1737 = vlaneseq
        %v1738 = vshrl.u32 %v1737, 7
        %v1739 = vsub.s32 0, %v1738
        %v1740 = vrot.slane %v1735, %v1739
        %v1742 = vmul.f32 %v1726, %v1740
        %v1743 = vmul.f32 %v1731, %v1740
        %v1744 = vmax.f32 %v1742, 0.0
        %v1745 = vmax.f32 %v1743, 0.0
        %s1746 = scalar_lea.vmem %s6, 32
        %v1747 = vld [vmem:[%s1746] sm:$0xff]
        %v1748 = vld [vmem:[%s1746 + $0x8] sm:$0xff]
        %v1749 = vld [vmem:[%s1746 + $0x10] sm:$0xff]
        %v1750 = vld [vmem:[%s1746 + $0x18] sm:$0xff]
        %s1751 = scalar_lea.vmem %s7, 1
        %v1752 = vld [vmem:[%s1751] sm:$0x1]
        %v1754 = vlaneseq
        %v1755 = vshrl.u32 %v1754, 7
        %v1756 = vsub.s32 0, %v1755
        %v1757 = vrot.slane %v1752, %v1756
        %v1760 = vsel %vm455, %v1744, 0
        %v1763 = vsel %vm455, %v1745, 0
        %1765 = vmatprep.subr.mxu0 0.0
        %1766 = vmatpush1.msra.mxu0 0.0
        %1767 = vmatprep.subr.mxu0 0.0
        %1768 = vmatpush1.msra.mxu0 0.0
        %1769 = vmatprep.subr.mxu0 0.0
        %1770 = vmatpush1.msra.mxu0 0.0
        %1771 = vmatprep.subr.mxu0 0.0
        %1772 = vmatpush1.msra.mxu0 0.0
        %1773 = vmatprep.subr.mxu0 0.0
        %1774 = vmatpush1.msra.mxu0 0.0
        %1775 = vmatprep.subr.mxu0 0.0
        %1776 = vmatpush1.msra.mxu0 0.0
        %1777 = vmatprep.subr.mxu0 0.0
        %1778 = vmatpush1.msra.mxu0 0.0
        %1779 = vmatprep.subr.mxu0 0.0
        %1780 = vmatpush1.msra.mxu0 0.0
        %1781 = vmatprep.subr.mxu0 0.0
        %1782 = vmatpush1.msra.mxu0 0.0
        %1783 = vmatprep.subr.mxu0 0.0
        %1784 = vmatpush1.msra.mxu0 0.0
        %1785 = vmatprep.subr.mxu0 0.0
        %1786 = vmatpush1.msra.mxu0 0.0
        %1787 = vmatprep.subr.mxu0 0.0
        %1788 = vmatpush1.msra.mxu0 0.0
        %1789 = vmatprep.subr.mxu0 0.0
        %1790 = vmatpush1.msra.mxu0 %v1750
        %1791 = vmatprep.subr.mxu0 0.0
        %1792 = vmatpush1.msra.mxu0 %v1749
        %1793 = vmatprep.subr.mxu0 0.0
        %1794 = vmatpush1.msra.mxu0 %v1748
        %1795 = vmatprep.subr.mxu0 0.0
        %1796 = vmatpush1.msra.mxu0 %v1747
        %1797 = vmatprep.subr.mxu0 0.0
        %1798 = vmatpush2.msra.mxu0 0.0
        %1799 = vmatprep.subr.mxu0 0.0
        %1800 = vmatpush2.msra.mxu0 0.0
        %1801 = vmatprep.subr.mxu0 0.0
        %1802 = vmatpush2.msra.mxu0 0.0
        %1803 = vmatprep.subr.mxu0 0.0
        %1804 = vmatpush2.msra.mxu0 0.0
        %1805 = vmatprep.subr.mxu0 0.0
        %1806 = vmatpush2.msra.mxu0 0.0
        %1807 = vmatprep.subr.mxu0 0.0
        %1808 = vmatpush2.msra.mxu0 0.0
        %1809 = vmatprep.subr.mxu0 0.0
        %1810 = vmatpush2.msra.mxu0 0.0
        %1811 = vmatprep.subr.mxu0 0.0
        %1812 = vmatpush2.msra.mxu0 0.0
        %1813 = vmatprep.subr.mxu0 0.0
        %1814 = vmatpush2.msra.mxu0 0.0
        %1815 = vmatprep.subr.mxu0 0.0
        %1816 = vmatpush2.msra.mxu0 0.0
        %1817 = vmatprep.subr.mxu0 0.0
        %1818 = vmatpush2.msra.mxu0 0.0
        %1819 = vmatprep.subr.mxu0 0.0
        %1820 = vmatpush2.msra.mxu0 0.0
        %1821 = vmatprep.subr.mxu0 0.0
        %1822 = vmatpush2.msra.mxu0 0.0
        %1823 = vmatprep.subr.mxu0 0.0
        %1824 = vmatpush2.msra.mxu0 0.0
        %1825 = vmatprep.subr.mxu0 0.0
        %1826 = vmatpush2.msra.mxu0 0.0
        %1827 = vmatprep.subr.mxu0 0.0
        %1828 = vmatpush2.msra.mxu0 0.0
        %1829 = vmatprep.mubr.f32.mxu0 0.0
        %1830 = vmatmul.mubr.f32.gmra.mxu0 %v1760
        %v1831 = vpop.f32.mrf.mxu0
        %v1832 = vadd.f32 %v1757, %v1831
        %v1833 = vpop.f32.mrf.mxu0
        %1834 = vmatprep.mubr.f32.mxu0 0.0
        %1835 = vmatmul.mubr.f32.gmra.mxu0 %v1763
        %v1836 = vpop.f32.mrf.mxu0
        %v1837 = vadd.f32 %v1757, %v1836
        %v1838 = vpop.f32.mrf.mxu0
        %1839 = vdwg.mxu0
        %s1840 = scalar_lea.vmem %s8, 1
        %v1841 = vld [vmem:[%s1840] sm:$0x1]
        %v1843 = vlaneseq
        %v1844 = vshrl.u32 %v1843, 7
        %v1845 = vsub.s32 0, %v1844
        %v1846 = vrot.slane %v1841, %v1845
        %v1848 = vmul.f32 %v1832, %v1846
        %v1849 = vmul.f32 %v1837, %v1846
        %v1850 = vmax.f32 %v1848, 0.0
        %v1851 = vmax.f32 %v1849, 0.0
        %s1852 = scalar_lea.vmem %s9, 288
        %v1853 = vld [vmem:[%s1852] sm:$0xff]
        %v1854 = vld [vmem:[%s1852 + $0x8] sm:$0xff]
        %v1855 = vld [vmem:[%s1852 + $0x10] sm:$0xff]
        %v1856 = vld [vmem:[%s1852 + $0x18] sm:$0xff]
        %v1857 = vld [vmem:[%s1852 + $0x20] sm:$0xff]
        %v1858 = vld [vmem:[%s1852 + $0x28] sm:$0xff]
        %v1859 = vld [vmem:[%s1852 + $0x30] sm:$0xff]
        %v1860 = vld [vmem:[%s1852 + $0x38] sm:$0xff]
        %v1861 = vld [vmem:[%s1852 + $0x40] sm:$0xff]
        %v1862 = vld [vmem:[%s1852 + $0x48] sm:$0xff]
        %v1863 = vld [vmem:[%s1852 + $0x50] sm:$0xff]
        %v1864 = vld [vmem:[%s1852 + $0x58] sm:$0xff]
        %v1865 = vld [vmem:[%s1852 + $0x60] sm:$0xff]
        %v1866 = vld [vmem:[%s1852 + $0x68] sm:$0xff]
        %v1867 = vld [vmem:[%s1852 + $0x70] sm:$0xff]
        %v1868 = vld [vmem:[%s1852 + $0x78] sm:$0xff]
        %v1869 = vld [vmem:[%s1852 + $0x80] sm:$0xff]
        %v1870 = vld [vmem:[%s1852 + $0x88] sm:$0xff]
        %v1871 = vld [vmem:[%s1852 + $0x90] sm:$0xff]
        %v1872 = vld [vmem:[%s1852 + $0x98] sm:$0xff]
        %v1873 = vld [vmem:[%s1852 + $0xa0] sm:$0xff]
        %v1874 = vld [vmem:[%s1852 + $0xa8] sm:$0xff]
        %v1875 = vld [vmem:[%s1852 + $0xb0] sm:$0xff]
        %v1876 = vld [vmem:[%s1852 + $0xb8] sm:$0xff]
        %v1877 = vld [vmem:[%s1852 + $0xc0] sm:$0xff]
        %v1878 = vld [vmem:[%s1852 + $0xc8] sm:$0xff]
        %v1879 = vld [vmem:[%s1852 + $0xd0] sm:$0xff]
        %v1880 = vld [vmem:[%s1852 + $0xd8] sm:$0xff]
        %v1881 = vld [vmem:[%s1852 + $0xe0] sm:$0xff]
        %v1882 = vld [vmem:[%s1852 + $0xe8] sm:$0xff]
        %v1883 = vld [vmem:[%s1852 + $0xf0] sm:$0xff]
        %v1884 = vld [vmem:[%s1852 + $0xf8] sm:$0xff]
        %v1885 = vld [vmem:[%s1852 + $0x100] sm:$0xff]
        %v1886 = vld [vmem:[%s1852 + $0x108] sm:$0xff]
        %v1887 = vld [vmem:[%s1852 + $0x110] sm:$0xff]
        %v1888 = vld [vmem:[%s1852 + $0x118] sm:$0xff]
        %1889 = vst.msk [vmem:[#allocation3 + $0x8] sm:$0xff] %vm455, %v1850
        %1890 = vst.msk [vmem:[#allocation3 + $0x10] sm:$0xff] %vm455, %v1851
        %v1891 = vld [vmem:[#allocation3 + $0x3] sm:$0xff]
        %v1892 = vld [vmem:[#allocation3 + $0xb] sm:$0xff]
        %v1893 = vmul.f32 %v1891, %v489
        %v1894 = vmul.f32 %v1892, %v490
        %v1895 = vld [vmem:[#allocation3 + $0x4] sm:$0xff]
        %v1896 = vld [vmem:[#allocation3 + $0xc] sm:$0xff]
        %v1897 = vld [vmem:[#allocation3 + $0x5] sm:$0xff]
        %v1898 = vld [vmem:[#allocation3 + $0xd] sm:$0xff]
        %v1899 = vmul.f32 %v1897, %v495
        %v1900 = vmul.f32 %v1898, %v496
        %v1901 = vld [vmem:[#allocation3 + $0x7] sm:$0xff]
        %v1902 = vld [vmem:[#allocation3 + $0xf] sm:$0xff]
        %v1903 = vmul.f32 %v1901, %v489
        %v1904 = vmul.f32 %v1902, %v490
        %v1905 = vld [vmem:[#allocation3 + $0x8] sm:$0xff]
        %v1906 = vld [vmem:[#allocation3 + $0x10] sm:$0xff]
        %v1907 = vld [vmem:[#allocation3 + $0x9] sm:$0xff]
        %v1908 = vld [vmem:[#allocation3 + $0x11] sm:$0xff]
        %v1909 = vmul.f32 %v1907, %v495
        %v1910 = vmul.f32 %v1908, %v496
        %v1911 = vld [vmem:[#allocation3 + $0x13] sm:$0xff]
        %v1912 = vmul.f32 %v1892, %v489
        %v1913 = vmul.f32 %v1911, %v490
        %v1914 = vld [vmem:[#allocation3 + $0x14] sm:$0xff]
        %v1915 = vld [vmem:[#allocation3 + $0x15] sm:$0xff]
        %v1916 = vmul.f32 %v1898, %v495
        %v1917 = vmul.f32 %v1915, %v496
        %1920 = vrot.lane.b32.xlu0 %v1895, 32
        %v1921 = vpop.permute.xlu0 %1920
        %1922 = vrot.lane.b32.xlu0 %v1896, 32
        %v1923 = vpop.permute.xlu0 %1922
        %1928 = vrot.lane.b32.xlu0 %v1899, 64
        %v1929 = vpop.permute.xlu0 %1928
        %1930 = vrot.lane.b32.xlu0 %v1900, 64
        %v1931 = vpop.permute.xlu0 %1930
        %1936 = vrot.lane.b32.xlu0 %v1903, 96
        %v1937 = vpop.permute.xlu0 %1936
        %1938 = vrot.lane.b32.xlu0 %v1904, 96
        %v1939 = vpop.permute.xlu0 %1938
        %1944 = vrot.lane.b32.xlu0 %v1909, 32
        %v1945 = vpop.permute.xlu0 %1944
        %1946 = vrot.lane.b32.xlu0 %v1910, 32
        %v1947 = vpop.permute.xlu0 %1946
        %1952 = vrot.lane.b32.xlu0 %v1912, 64
        %v1953 = vpop.permute.xlu0 %1952
        %1954 = vrot.lane.b32.xlu0 %v1913, 64
        %v1955 = vpop.permute.xlu0 %1954
        %1959 = vrot.lane.b32.xlu0 %v1896, 96
        %v1960 = vpop.permute.xlu0 %1959
        %1961 = vrot.lane.b32.xlu0 %v1914, 96
        %v1962 = vpop.permute.xlu0 %1961
        %v1965 = vsel %vm455, %v1893, %v1921
        %v1966 = vsel %vm455, %v1894, %v1923
        %v1967 = vsel %vm785, %v1965, %v1929
        %v1968 = vsel %vm785, %v1966, %v1931
        %v1969 = vsel %vm791, %v1967, %v1937
        %v1970 = vsel %vm791, %v1968, %v1939
        %v1971 = vsel %vm455, %v1905, %v1945
        %v1972 = vsel %vm455, %v1906, %v1947
        %v1973 = vsel %vm785, %v1971, %v1953
        %v1974 = vsel %vm785, %v1972, %v1955
        %v1975 = vsel %vm791, %v1973, %v1960
        %v1976 = vsel %vm791, %v1974, %v1962
        %s1977 = scalar_lea.vmem %s10, 1
        %v1978 = vld [vmem:[%s1977] sm:$0x1]
        %v1980 = vlaneseq
        %v1981 = vshrl.u32 %v1980, 7
        %v1982 = vsub.s32 0, %v1981
        %v1983 = vrot.slane %v1978, %v1982
        %v1986 = vsel %vm455, %v1916, 0
        %v1989 = vsel %vm455, %v1917, 0
        %1991 = vmatprep.subr.mxu0 0.0
        %1992 = vmatpush1.msra.mxu0 %v1868
        %1993 = vmatprep.subr.mxu0 0.0
        %1994 = vmatpush1.msra.mxu0 %v1867
        %1995 = vmatprep.subr.mxu0 0.0
        %1996 = vmatpush1.msra.mxu0 %v1866
        %1997 = vmatprep.subr.mxu0 0.0
        %1998 = vmatpush1.msra.mxu0 %v1865
        %1999 = vmatprep.subr.mxu0 0.0
        %2000 = vmatpush1.msra.mxu0 %v1864
        %2001 = vmatprep.subr.mxu0 0.0
        %2002 = vmatpush1.msra.mxu0 %v1863
        %2003 = vmatprep.subr.mxu0 0.0
        %2004 = vmatpush1.msra.mxu0 %v1862
        %2005 = vmatprep.subr.mxu0 0.0
        %2006 = vmatpush1.msra.mxu0 %v1861
        %2007 = vmatprep.subr.mxu0 0.0
        %2008 = vmatpush1.msra.mxu0 %v1860
        %2009 = vmatprep.subr.mxu0 0.0
        %2010 = vmatpush1.msra.mxu0 %v1859
        %2011 = vmatprep.subr.mxu0 0.0
        %2012 = vmatpush1.msra.mxu0 %v1858
        %2013 = vmatprep.subr.mxu0 0.0
        %2014 = vmatpush1.msra.mxu0 %v1857
        %2015 = vmatprep.subr.mxu0 0.0
        %2016 = vmatpush1.msra.mxu0 %v1856
        %2017 = vmatprep.subr.mxu0 0.0
        %2018 = vmatpush1.msra.mxu0 %v1855
        %2019 = vmatprep.subr.mxu0 0.0
        %2020 = vmatpush1.msra.mxu0 %v1854
        %2021 = vmatprep.subr.mxu0 0.0
        %2022 = vmatpush1.msra.mxu0 %v1853
        %2023 = vmatprep.subr.mxu0 0.0
        %2024 = vmatpush2.msra.mxu0 %v1884
        %2025 = vmatprep.subr.mxu0 0.0
        %2026 = vmatpush2.msra.mxu0 %v1883
        %2027 = vmatprep.subr.mxu0 0.0
        %2028 = vmatpush2.msra.mxu0 %v1882
        %2029 = vmatprep.subr.mxu0 0.0
        %2030 = vmatpush2.msra.mxu0 %v1881
        %2031 = vmatprep.subr.mxu0 0.0
        %2032 = vmatpush2.msra.mxu0 %v1880
        %2033 = vmatprep.subr.mxu0 0.0
        %2034 = vmatpush2.msra.mxu0 %v1879
        %2035 = vmatprep.subr.mxu0 0.0
        %2036 = vmatpush2.msra.mxu0 %v1878
        %2037 = vmatprep.subr.mxu0 0.0
        %2038 = vmatpush2.msra.mxu0 %v1877
        %2039 = vmatprep.subr.mxu0 0.0
        %2040 = vmatpush2.msra.mxu0 %v1876
        %2041 = vmatprep.subr.mxu0 0.0
        %2042 = vmatpush2.msra.mxu0 %v1875
        %2043 = vmatprep.subr.mxu0 0.0
        %2044 = vmatpush2.msra.mxu0 %v1874
        %2045 = vmatprep.subr.mxu0 0.0
        %2046 = vmatpush2.msra.mxu0 %v1873
        %2047 = vmatprep.subr.mxu0 0.0
        %2048 = vmatpush2.msra.mxu0 %v1872
        %2049 = vmatprep.subr.mxu0 0.0
        %2050 = vmatpush2.msra.mxu0 %v1871
        %2051 = vmatprep.subr.mxu0 0.0
        %2052 = vmatpush2.msra.mxu0 %v1870
        %2053 = vmatprep.subr.mxu0 0.0
        %2054 = vmatpush2.msra.mxu0 %v1869
        %2055 = vmatprep.mubr.f32.mxu0 %v1975
        %2056 = vmatmul.mubr.f32.gmra.mxu0 %v1969
        %v2057 = vpop.f32.mrf.mxu0
        %v2058 = vadd.f32 %v1983, %v2057
        %v2059 = vpop.f32.mrf.mxu0
        %2060 = vmatprep.mubr.f32.mxu0 %v1976
        %2061 = vmatmul.mubr.f32.gmra.mxu0 %v1970
        %v2062 = vpop.f32.mrf.mxu0
        %v2063 = vadd.f32 %v1983, %v2062
        %v2064 = vpop.f32.mrf.mxu0
        %2065 = vdwg.mxu0
        %2066 = vmatprep.subr.mxu0 0.0
        %2067 = vmatpush1.msra.mxu0 0.0
        %2068 = vmatprep.subr.mxu0 0.0
        %2069 = vmatpush1.msra.mxu0 0.0
        %2070 = vmatprep.subr.mxu0 0.0
        %2071 = vmatpush1.msra.mxu0 0.0
        %2072 = vmatprep.subr.mxu0 0.0
        %2073 = vmatpush1.msra.mxu0 0.0
        %2074 = vmatprep.subr.mxu0 0.0
        %2075 = vmatpush1.msra.mxu0 0.0
        %2076 = vmatprep.subr.mxu0 0.0
        %2077 = vmatpush1.msra.mxu0 0.0
        %2078 = vmatprep.subr.mxu0 0.0
        %2079 = vmatpush1.msra.mxu0 0.0
        %2080 = vmatprep.subr.mxu0 0.0
        %2081 = vmatpush1.msra.mxu0 0.0
        %2082 = vmatprep.subr.mxu0 0.0
        %2083 = vmatpush1.msra.mxu0 0.0
        %2084 = vmatprep.subr.mxu0 0.0
        %2085 = vmatpush1.msra.mxu0 0.0
        %2086 = vmatprep.subr.mxu0 0.0
        %2087 = vmatpush1.msra.mxu0 0.0
        %2088 = vmatprep.subr.mxu0 0.0
        %2089 = vmatpush1.msra.mxu0 0.0
        %2090 = vmatprep.subr.mxu0 0.0
        %2091 = vmatpush1.msra.mxu0 %v1888
        %2092 = vmatprep.subr.mxu0 0.0
        %2093 = vmatpush1.msra.mxu0 %v1887
        %2094 = vmatprep.subr.mxu0 0.0
        %2095 = vmatpush1.msra.mxu0 %v1886
        %2096 = vmatprep.subr.mxu0 0.0
        %2097 = vmatpush1.msra.mxu0 %v1885
        %2098 = vmatprep.subr.mxu0 0.0
        %2099 = vmatpush2.msra.mxu0 0.0
        %2100 = vmatprep.subr.mxu0 0.0
        %2101 = vmatpush2.msra.mxu0 0.0
        %2102 = vmatprep.subr.mxu0 0.0
        %2103 = vmatpush2.msra.mxu0 0.0
        %2104 = vmatprep.subr.mxu0 0.0
        %2105 = vmatpush2.msra.mxu0 0.0
        %2106 = vmatprep.subr.mxu0 0.0
        %2107 = vmatpush2.msra.mxu0 0.0
        %2108 = vmatprep.subr.mxu0 0.0
        %2109 = vmatpush2.msra.mxu0 0.0
        %2110 = vmatprep.subr.mxu0 0.0
        %2111 = vmatpush2.msra.mxu0 0.0
        %2112 = vmatprep.subr.mxu0 0.0
        %2113 = vmatpush2.msra.mxu0 0.0
        %2114 = vmatprep.subr.mxu0 0.0
        %2115 = vmatpush2.msra.mxu0 0.0
        %2116 = vmatprep.subr.mxu0 0.0
        %2117 = vmatpush2.msra.mxu0 0.0
        %2118 = vmatprep.subr.mxu0 0.0
        %2119 = vmatpush2.msra.mxu0 0.0
        %2120 = vmatprep.subr.mxu0 0.0
        %2121 = vmatpush2.msra.mxu0 0.0
        %2122 = vmatprep.subr.mxu0 0.0
        %2123 = vmatpush2.msra.mxu0 0.0
        %2124 = vmatprep.subr.mxu0 0.0
        %2125 = vmatpush2.msra.mxu0 0.0
        %2126 = vmatprep.subr.mxu0 0.0
        %2127 = vmatpush2.msra.mxu0 0.0
        %2128 = vmatprep.subr.mxu0 0.0
        %2129 = vmatpush2.msra.mxu0 0.0
        %2130 = vmatprep.mubr.f32.mxu0 0.0
        %2131 = vmatmul.mubr.f32.gmra.mxu0 %v1986
        %v2132 = vpop.f32.mrf.mxu0
        %v2133 = vadd.f32 %v2058, %v2132
        %v2134 = vpop.f32.mrf.mxu0
        %2135 = vmatprep.mubr.f32.mxu0 0.0
        %2136 = vmatmul.mubr.f32.gmra.mxu0 %v1989
        %v2137 = vpop.f32.mrf.mxu0
        %v2138 = vadd.f32 %v2063, %v2137
        %v2139 = vpop.f32.mrf.mxu0
        %2140 = vdwg.mxu0
        %s2141 = scalar_lea.vmem %s11, 1
        %v2142 = vld [vmem:[%s2141] sm:$0x1]
        %v2144 = vlaneseq
        %v2145 = vshrl.u32 %v2144, 7
        %v2146 = vsub.s32 0, %v2145
        %v2147 = vrot.slane %v2142, %v2146
        %v2149 = vmul.f32 %v2133, %v2147
        %v2150 = vmul.f32 %v2138, %v2147
        %v2151 = vadd.f32 %v2149, 2.0
        %v2152 = vadd.f32 %v2150, 2.0
        %v2153 = vmin.f32 %v2151, 0.0
        %v2154 = vmin.f32 %v2152, 0.0
        %v2155 = vand.u32 2147483647, %v2151
        %v2156 = vand.u32 2147483647, %v2152
        %v2157 = vsub.f32 0.0, %v2155
        %v2158 = vsub.f32 0.0, %v2156
        %v2159 = vmul.f32 %v2157, 1.442695
        %v2160 = vpow.pop %v2159
        %v2161 = vmul.f32 %v2158, 1.442695
        %v2162 = vpow.pop %v2161
        %v2163 = vadd.f32 %v2160, 1.0
        %v2164 = vadd.f32 %v2162, 1.0
        %v2165 = vlog2.pop %v2163
        %v2166 = vmul.f32 %v2165, 0.6931472
        %v2167 = vlog2.pop %v2164
        %v2168 = vmul.f32 %v2167, 0.6931472
        %v2169 = vsub.f32 %v2153, %v2166
        %v2170 = vsub.f32 %v2154, %v2168
        %2173 = vrot.lane.b32.xlu0 %v2149, 16
        %v2174 = vpop.permute.xlu0 %2173
        %2175 = vrot.lane.b32.xlu0 %v2150, 16
        %v2176 = vpop.permute.xlu0 %2175
        %v2179 = vadd.f32 %v1526, %v2174
        %v2180 = vadd.f32 %v1527, %v2176
        %v2181 = vmul.f32 %v2169, 1.442695
        %v2182 = vpow.pop %v2181
        %v2183 = vmul.f32 %v2170, 1.442695
        %v2184 = vpow.pop %v2183
        %v2185 = vmul.f32 %v2179, %v2182
        %v2186 = vmul.f32 %v2180, %v2184
        %2189 = vrot.lane.b32.xlu0 %v2169, 112
        %v2190 = vpop.permute.xlu0 %2189
        %2191 = vrot.lane.b32.xlu0 %v2170, 112
        %v2192 = vpop.permute.xlu0 %2191
        %v2195 = vsel %vm452, %v2190, 0.0
        %2196 = vadd.xlane.f32.xlu0 %v2195
        %v2197 = vpop.xlane.xlu0 %2196
        %v2198 = vsel %vm452, %v2192, 0.0
        %2199 = vadd.xlane.f32.xlu0 %v2198
        %v2200 = vpop.xlane.xlu0 %2199
        %v2201 = vadd.f32 %v1345, %v2197
        %v2202 = vadd.f32 %v1346, %v2200
        %2203 = vst.msk [vmem:[%s434] sm:$0xff] %vm452, %v1526
        %2204 = vst.msk [vmem:[%s434 + $0x8] sm:$0xff] %vm452, %v1527
        %vm2205 = vcmask 261248
        %2206 = vst.msk [vmem:[%s434] sm:$0xff] %vm2205, %v2185
        %2207 = vst.msk [vmem:[%s434 + $0x8] sm:$0xff] %vm2205, %v2186
        %vm2208 = vcmask 7168
        %2209 = vst.msk [vmem:[%s451] sm:$0xff] %vm2208, %v2201
        %2210 = vst.msk [vmem:[%s451 + $0x8] sm:$0xff] %vm2208, %v2202
        %s2211 = sand.u32 %s293, 1
        %s2212 = scalar_lea.sflag [#allocation5], %s2211
        %s2213 = sand.u32 %s293, 1
        %s2214 = smul.addr %s2213, 16
        %s2215 = scalar_lea.vmem [#allocation4], %s2214
        %p2216 = scmp.lt.s32.totalorder %s28, 1
        %s2217 = scalar_select %p2216, %s28, 1
        %s2218 = smul.addr %s2217, 2
        %s2219 = smul.addr %s2218, 8
        %s2220 = scalar_lea.vmem %s13, %s2219
        // Predicated region
        $region69: #{_lambda_.3} parent=67 // pred_check
          %p2221 = pneg %p303
        $region70: #{_lambda_.3} parent=67 // pred_check_branch
          %2223 = sbr.rel (%p2221) target = $region72
        $region71: #{_lambda_.3} parent=67 // pred_region
          %s2225 = ssub.s32 256, 256
          %2226 = vsyncadd %s2212, %s2225
          %s2227 = smul.addr %s28, 2
          %s2228 = smul.addr %s2227, 128
          %s2229 = scalar_lea.hbm %s12, %s2228
          %s2230 = sshll.u32 %s2215, 4
          %s2231 = int_to_ptr.vmem [resolvable:$true] %s2230
          %2236 = dma.vmem_to_hbm [thread:$0]  %s2231, 256, %s2229, %s2212, 128, 128, 8
        $region72: #{_lambda_.3} parent=67 // pred_fallthru
          _
        // Predicated region
        $region73: #{_lambda_.3} parent=67 // pred_check
          %p2237 = pneg %p329
        $region74: #{_lambda_.3} parent=67 // pred_check_branch
          %2239 = sbr.rel (%p2237) target = $region76
        $region75: #{_lambda_.3} parent=67 // pred_region
          _
        $region76: #{_lambda_.3} parent=67 // pred_fallthru
          _
      $region68: #{_lambda_.3} parent=5 // pred_fallthru
        _
      %p2240 = scmp.le.s32.totalorder 2, %s23
      // Predicated region
      $region77: #{_lambda_.3} parent=5 // pred_check
        %p2241 = pneg %p2240
      $region78: #{_lambda_.3} parent=5 // pred_check_branch
        %2243 = sbr.rel (%p2241) target = $region80
      $region79: #{_lambda_.3} parent=5 // pred_region
        %s2244 = ssub.s32 %s23, 2
        // Predicated region
        $region81: #{_lambda_.3} parent=79 // pred_check
          %p2245 = pneg %p309
        $region82: #{_lambda_.3} parent=79 // pred_check_branch
          %2247 = sbr.rel (%p2245) target = $region84
        $region83: #{_lambda_.3} parent=79 // pred_region
          %s2248 = sand.u32 %s294, 1
          %s2249 = scalar_lea.sflag [#allocation5], %s2248
          %s2250 = sand.u32 %s294, 1
          %s2251 = smul.addr %s2250, 16
          %s2252 = scalar_lea.vmem [#allocation4], %s2251
          %2253 = dma.done %s2249, 256
        $region84: #{_lambda_.3} parent=79 // pred_fallthru
          _
        // Predicated region
        $region85: #{_lambda_.3} parent=79 // pred_check
          %p2254 = pneg %p335
        $region86: #{_lambda_.3} parent=79 // pred_check_branch
          %2256 = sbr.rel (%p2254) target = $region88
        $region87: #{_lambda_.3} parent=79 // pred_region
          %p2257 = scmp.lt.s32.totalorder %s29, 1
          %s2258 = scalar_select %p2257, %s29, 1
          %s2259 = smul.addr %s2258, 2
          %s2260 = smul.addr %s2259, 8
          %s2261 = scalar_lea.vmem %s13, %s2260
        $region88: #{_lambda_.3} parent=79 // pred_fallthru
          _
      $region80: #{_lambda_.3} parent=5 // pred_fallthru
        _
    $region6: #{_lambda_.3} parent=1 // loop_footer
      %s27 = sadd.s32 1, %s23
    $region7: #{_lambda_.3} parent=1 // loop_footer_branch
      %22 = sbr.rel target = $region3
    $region8: #{_lambda_.3} parent=1 // loop_exit
      _
    %2262 = vsyncpa [#allocation5], 1
    %s2263 = scalar_lea.sflag [#allocation5], 1
    %2264 = vsyncpa %s2263, 1

// kernel: _lambda_.2
$region0: #{_lambda_.2}
  #allocation0 [shape = 'u32[]', space=smem, size = 0x4, offset = 0x4, fixed_abs, tag = 'smem constant byte address 0x4 - core index']
  #allocation1 [shape = 'u32[144,128]{1,0:T(1,128)}', space=vmem, size = 0x12000, scoped, tag = 'internal scratch']
  #allocation2 [shape = 'f32[1,96,8]{2,1,0:T(8,128)}', space=vmem, size = 0xc000, scoped, tag = 'scratch operand']
  #allocation3 [shape = 'f32[1,96,32]{2,1,0:T(8,128)}', space=vmem, size = 0xc000, scoped, tag = 'scratch operand']
  %s0 = inlined_call_operand.vmem [shape: f32[2,64,16], index: 0, kind: input, shape index: {}]
  %s1 = inlined_call_operand.vmem [shape: f32[2,16,16], index: 1, kind: input, shape index: {}]
  %s2 = inlined_call_operand.vmem [shape: f32[2,1,16], index: 2, kind: input, shape index: {}]
  %s3 = inlined_call_operand.vmem [shape: f32[2,72,32], index: 3, kind: input, shape index: {}]
  %s4 = inlined_call_operand.vmem [shape: f32[2,1,32], index: 4, kind: input, shape index: {}]
  %s5 = inlined_call_operand.vmem [shape: f32[2,1,32], index: 5, kind: input, shape index: {}]
  %s6 = inlined_call_operand.vmem [shape: f32[2,32,32], index: 6, kind: input, shape index: {}]
  %s7 = inlined_call_operand.vmem [shape: f32[2,1,32], index: 7, kind: input, shape index: {}]
  %s8 = inlined_call_operand.vmem [shape: f32[2,1,32], index: 8, kind: input, shape index: {}]
  %s9 = inlined_call_operand.vmem [shape: f32[2,288,16], index: 9, kind: input, shape index: {}]
  %s10 = inlined_call_operand.vmem [shape: f32[2,1,16], index: 10, kind: input, shape index: {}]
  %s11 = inlined_call_operand.vmem [shape: f32[2,1,16], index: 11, kind: input, shape index: {}]
  %s12 = inlined_call_operand.vmem [shape: f32[72,16], index: 12, kind: input, shape index: {}]
  %s13 = inlined_call_operand.vmem [shape: f32[1,16], index: 13, kind: input, shape index: {}]
  %s14 = inlined_call_operand.vmem [shape: f32[1,16], index: 14, kind: input, shape index: {}]
  %s15 = inlined_call_operand.vmem [shape: f32[2,64,8], index: 15, kind: output, shape index: {0}]
  %s16 = inlined_call_operand.vmem [shape: f32[2,64,1], index: 16, kind: output, shape index: {1}]
  %17 = xla_tuple %s15, %s16
  %s18 = sld [smem:[#allocation0]]
  $region101: #{_lambda_.2} parent=0
    _
  %s20 = ssub.s32 1, %s18
  %s21 = scalar_select 0, %s20, %s18
  loop: start=0, step=1, limit=4
  $region2: #{_lambda_.2} parent=0 // loop_pre_header
    _
  $region3: #{_lambda_.2} parent=0 // loop_header
    %s23 = sphi 0, %s27
    %p24 = scmp.ge.s32.totalorder %s23, 4
    %s33 = sphi 0, %s35
    %s36 = sphi 0, %s33
    %s37 = sphi 0, %s36
    %s53 = sphi 0, %s37
    %s57 = sphi 0, %s57
    %s59 = sphi 0, %s57
    %s60 = sphi 0, %s59
    %s74 = sphi 0, %s60
    %s78 = sphi 0, %s78
    %s80 = sphi 0, %s78
    %s81 = sphi 0, %s80
    %s95 = sphi 0, %s81
    %s99 = sphi 0, %s99
    %s101 = sphi 0, %s99
    %s102 = sphi 0, %s101
    %s116 = sphi 0, %s102
    %s120 = sphi 0, %s120
    %s122 = sphi 0, %s120
    %s123 = sphi 0, %s122
    %s137 = sphi 0, %s123
    %s141 = sphi 0, %s141
    %s143 = sphi 0, %s141
    %s144 = sphi 0, %s143
    %s158 = sphi 0, %s144
    %s162 = sphi 0, %s162
    %s164 = sphi 0, %s162
    %s165 = sphi 0, %s164
    %s179 = sphi 0, %s165
    %s183 = sphi 0, %s183
    %s185 = sphi 0, %s183
    %s186 = sphi 0, %s185
    %s200 = sphi 0, %s186
    %s204 = sphi 0, %s204
    %s206 = sphi 0, %s204
    %s207 = sphi 0, %s206
    %s221 = sphi 0, %s207
    %s225 = sphi 0, %s225
    %s227 = sphi 0, %s225
    %s228 = sphi 0, %s227
    %s242 = sphi 0, %s228
    %s246 = sphi 0, %s246
    %s248 = sphi 0, %s246
    %s249 = sphi 0, %s248
    %s263 = sphi 0, %s249
    %s267 = sphi 0, %s267
    %s269 = sphi 0, %s267
    %s270 = sphi 0, %s269
    %s284 = sphi 0, %s270
    %s288 = sphi 0, %s288
    %s290 = sphi 0, %s288
    %s291 = sphi 0, %s290
    %s305 = sphi 0, %s291
    %s309 = sphi 0, %s309
    %s311 = sphi 0, %s309
    %s312 = sphi 0, %s311
    %s326 = sphi 0, %s312
    %s330 = sphi 0, %s330
    %s332 = sphi 0, %s330
    %s333 = sphi 0, %s332
    %s347 = sphi 0, %s333
    %s353 = sphi 0, %s355
    %s356 = sphi 0, %s353
    %s357 = sphi 0, %s356
    %s373 = sphi 0, %s357
    %s379 = sphi 0, %s381
    %s382 = sphi 0, %s379
    %s383 = sphi 0, %s382
    %s399 = sphi 0, %s383
  $region4: #{_lambda_.2} parent=0 // loop_header_branch
    %26 = sbr.rel (%p24) target = $region8
  $region5: #{_lambda_.2} parent=0 // loop_body
    %s28 = ssub.s32 %s23, 1
    %s29 = ssub.s32 %s23, 2
    %s30 = sadd.s32 %s23, 1
    %s31 = ssub.s32 %s23, %s30
    %p32 = scmp.eq.s32.totalorder %s31, 0
    %s34 = sadd.s32 %s33, 1
    %s35 = scalar_select %p32, %s33, %s34
    %p38 = pneg %p32
    %p39 = scmp.eq.s32.totalorder %s23, 1
    %p40 = por %p38, %p39
    %p41 = scmp.ne.s32.totalorder %s33, %s36
    %p42 = scmp.eq.s32.totalorder %s23, 0
    %p43 = por %p41, %p42
    %p44 = scmp.ne.s32.totalorder %s33, %s36
    %p45 = scmp.eq.s32.totalorder %s28, 1
    %p46 = por %p44, %p45
    %p47 = scmp.ne.s32.totalorder %s36, %s37
    %p48 = scmp.eq.s32.totalorder %s28, 0
    %p49 = por %p47, %p48
    %p50 = scmp.ne.s32.totalorder %s36, %s37
    %p51 = scmp.eq.s32.totalorder %s29, 1
    %p52 = por %p50, %p51
    %p54 = scmp.ne.s32.totalorder %s37, %s53
    %p55 = scmp.eq.s32.totalorder %s29, 0
    %p56 = por %p54, %p55
    %s58 = sadd.s32 %s57, 1
    %p61 = scmp.eq.s32.totalorder %s23, 1
    %p62 = scmp.ne.s32.totalorder %s57, %s59
    %p63 = scmp.eq.s32.totalorder %s23, 0
    %p64 = por %p62, %p63
    %p65 = scmp.ne.s32.totalorder %s57, %s59
    %p66 = scmp.eq.s32.totalorder %s28, 1
    %p67 = por %p65, %p66
    %p68 = scmp.ne.s32.totalorder %s59, %s60
    %p69 = scmp.eq.s32.totalorder %s28, 0
    %p70 = por %p68, %p69
    %p71 = scmp.ne.s32.totalorder %s59, %s60
    %p72 = scmp.eq.s32.totalorder %s29, 1
    %p73 = por %p71, %p72
    %p75 = scmp.ne.s32.totalorder %s60, %s74
    %p76 = scmp.eq.s32.totalorder %s29, 0
    %p77 = por %p75, %p76
    %s79 = sadd.s32 %s78, 1
    %p82 = scmp.eq.s32.totalorder %s23, 1
    %p83 = scmp.ne.s32.totalorder %s78, %s80
    %p84 = scmp.eq.s32.totalorder %s23, 0
    %p85 = por %p83, %p84
    %p86 = scmp.ne.s32.totalorder %s78, %s80
    %p87 = scmp.eq.s32.totalorder %s28, 1
    %p88 = por %p86, %p87
    %p89 = scmp.ne.s32.totalorder %s80, %s81
    %p90 = scmp.eq.s32.totalorder %s28, 0
    %p91 = por %p89, %p90
    %p92 = scmp.ne.s32.totalorder %s80, %s81
    %p93 = scmp.eq.s32.totalorder %s29, 1
    %p94 = por %p92, %p93
    %p96 = scmp.ne.s32.totalorder %s81, %s95
    %p97 = scmp.eq.s32.totalorder %s29, 0
    %p98 = por %p96, %p97
    %s100 = sadd.s32 %s99, 1
    %p103 = scmp.eq.s32.totalorder %s23, 1
    %p104 = scmp.ne.s32.totalorder %s99, %s101
    %p105 = scmp.eq.s32.totalorder %s23, 0
    %p106 = por %p104, %p105
    %p107 = scmp.ne.s32.totalorder %s99, %s101
    %p108 = scmp.eq.s32.totalorder %s28, 1
    %p109 = por %p107, %p108
    %p110 = scmp.ne.s32.totalorder %s101, %s102
    %p111 = scmp.eq.s32.totalorder %s28, 0
    %p112 = por %p110, %p111
    %p113 = scmp.ne.s32.totalorder %s101, %s102
    %p114 = scmp.eq.s32.totalorder %s29, 1
    %p115 = por %p113, %p114
    %p117 = scmp.ne.s32.totalorder %s102, %s116
    %p118 = scmp.eq.s32.totalorder %s29, 0
    %p119 = por %p117, %p118
    %s121 = sadd.s32 %s120, 1
    %p124 = scmp.eq.s32.totalorder %s23, 1
    %p125 = scmp.ne.s32.totalorder %s120, %s122
    %p126 = scmp.eq.s32.totalorder %s23, 0
    %p127 = por %p125, %p126
    %p128 = scmp.ne.s32.totalorder %s120, %s122
    %p129 = scmp.eq.s32.totalorder %s28, 1
    %p130 = por %p128, %p129
    %p131 = scmp.ne.s32.totalorder %s122, %s123
    %p132 = scmp.eq.s32.totalorder %s28, 0
    %p133 = por %p131, %p132
    %p134 = scmp.ne.s32.totalorder %s122, %s123
    %p135 = scmp.eq.s32.totalorder %s29, 1
    %p136 = por %p134, %p135
    %p138 = scmp.ne.s32.totalorder %s123, %s137
    %p139 = scmp.eq.s32.totalorder %s29, 0
    %p140 = por %p138, %p139
    %s142 = sadd.s32 %s141, 1
    %p145 = scmp.eq.s32.totalorder %s23, 1
    %p146 = scmp.ne.s32.totalorder %s141, %s143
    %p147 = scmp.eq.s32.totalorder %s23, 0
    %p148 = por %p146, %p147
    %p149 = scmp.ne.s32.totalorder %s141, %s143
    %p150 = scmp.eq.s32.totalorder %s28, 1
    %p151 = por %p149, %p150
    %p152 = scmp.ne.s32.totalorder %s143, %s144
    %p153 = scmp.eq.s32.totalorder %s28, 0
    %p154 = por %p152, %p153
    %p155 = scmp.ne.s32.totalorder %s143, %s144
    %p156 = scmp.eq.s32.totalorder %s29, 1
    %p157 = por %p155, %p156
    %p159 = scmp.ne.s32.totalorder %s144, %s158
    %p160 = scmp.eq.s32.totalorder %s29, 0
    %p161 = por %p159, %p160
    %s163 = sadd.s32 %s162, 1
    %p166 = scmp.eq.s32.totalorder %s23, 1
    %p167 = scmp.ne.s32.totalorder %s162, %s164
    %p168 = scmp.eq.s32.totalorder %s23, 0
    %p169 = por %p167, %p168
    %p170 = scmp.ne.s32.totalorder %s162, %s164
    %p171 = scmp.eq.s32.totalorder %s28, 1
    %p172 = por %p170, %p171
    %p173 = scmp.ne.s32.totalorder %s164, %s165
    %p174 = scmp.eq.s32.totalorder %s28, 0
    %p175 = por %p173, %p174
    %p176 = scmp.ne.s32.totalorder %s164, %s165
    %p177 = scmp.eq.s32.totalorder %s29, 1
    %p178 = por %p176, %p177
    %p180 = scmp.ne.s32.totalorder %s165, %s179
    %p181 = scmp.eq.s32.totalorder %s29, 0
    %p182 = por %p180, %p181
    %s184 = sadd.s32 %s183, 1
    %p187 = scmp.eq.s32.totalorder %s23, 1
    %p188 = scmp.ne.s32.totalorder %s183, %s185
    %p189 = scmp.eq.s32.totalorder %s23, 0
    %p190 = por %p188, %p189
    %p191 = scmp.ne.s32.totalorder %s183, %s185
    %p192 = scmp.eq.s32.totalorder %s28, 1
    %p193 = por %p191, %p192
    %p194 = scmp.ne.s32.totalorder %s185, %s186
    %p195 = scmp.eq.s32.totalorder %s28, 0
    %p196 = por %p194, %p195
    %p197 = scmp.ne.s32.totalorder %s185, %s186
    %p198 = scmp.eq.s32.totalorder %s29, 1
    %p199 = por %p197, %p198
    %p201 = scmp.ne.s32.totalorder %s186, %s200
    %p202 = scmp.eq.s32.totalorder %s29, 0
    %p203 = por %p201, %p202
    %s205 = sadd.s32 %s204, 1
    %p208 = scmp.eq.s32.totalorder %s23, 1
    %p209 = scmp.ne.s32.totalorder %s204, %s206
    %p210 = scmp.eq.s32.totalorder %s23, 0
    %p211 = por %p209, %p210
    %p212 = scmp.ne.s32.totalorder %s204, %s206
    %p213 = scmp.eq.s32.totalorder %s28, 1
    %p214 = por %p212, %p213
    %p215 = scmp.ne.s32.totalorder %s206, %s207
    %p216 = scmp.eq.s32.totalorder %s28, 0
    %p217 = por %p215, %p216
    %p218 = scmp.ne.s32.totalorder %s206, %s207
    %p219 = scmp.eq.s32.totalorder %s29, 1
    %p220 = por %p218, %p219
    %p222 = scmp.ne.s32.totalorder %s207, %s221
    %p223 = scmp.eq.s32.totalorder %s29, 0
    %p224 = por %p222, %p223
    %s226 = sadd.s32 %s225, 1
    %p229 = scmp.eq.s32.totalorder %s23, 1
    %p230 = scmp.ne.s32.totalorder %s225, %s227
    %p231 = scmp.eq.s32.totalorder %s23, 0
    %p232 = por %p230, %p231
    %p233 = scmp.ne.s32.totalorder %s225, %s227
    %p234 = scmp.eq.s32.totalorder %s28, 1
    %p235 = por %p233, %p234
    %p236 = scmp.ne.s32.totalorder %s227, %s228
    %p237 = scmp.eq.s32.totalorder %s28, 0
    %p238 = por %p236, %p237
    %p239 = scmp.ne.s32.totalorder %s227, %s228
    %p240 = scmp.eq.s32.totalorder %s29, 1
    %p241 = por %p239, %p240
    %p243 = scmp.ne.s32.totalorder %s228, %s242
    %p244 = scmp.eq.s32.totalorder %s29, 0
    %p245 = por %p243, %p244
    %s247 = sadd.s32 %s246, 1
    %p250 = scmp.eq.s32.totalorder %s23, 1
    %p251 = scmp.ne.s32.totalorder %s246, %s248
    %p252 = scmp.eq.s32.totalorder %s23, 0
    %p253 = por %p251, %p252
    %p254 = scmp.ne.s32.totalorder %s246, %s248
    %p255 = scmp.eq.s32.totalorder %s28, 1
    %p256 = por %p254, %p255
    %p257 = scmp.ne.s32.totalorder %s248, %s249
    %p258 = scmp.eq.s32.totalorder %s28, 0
    %p259 = por %p257, %p258
    %p260 = scmp.ne.s32.totalorder %s248, %s249
    %p261 = scmp.eq.s32.totalorder %s29, 1
    %p262 = por %p260, %p261
    %p264 = scmp.ne.s32.totalorder %s249, %s263
    %p265 = scmp.eq.s32.totalorder %s29, 0
    %p266 = por %p264, %p265
    %s268 = sadd.s32 %s267, 1
    %p271 = scmp.eq.s32.totalorder %s23, 1
    %p272 = scmp.ne.s32.totalorder %s267, %s269
    %p273 = scmp.eq.s32.totalorder %s23, 0
    %p274 = por %p272, %p273
    %p275 = scmp.ne.s32.totalorder %s267, %s269
    %p276 = scmp.eq.s32.totalorder %s28, 1
    %p277 = por %p275, %p276
    %p278 = scmp.ne.s32.totalorder %s269, %s270
    %p279 = scmp.eq.s32.totalorder %s28, 0
    %p280 = por %p278, %p279
    %p281 = scmp.ne.s32.totalorder %s269, %s270
    %p282 = scmp.eq.s32.totalorder %s29, 1
    %p283 = por %p281, %p282
    %p285 = scmp.ne.s32.totalorder %s270, %s284
    %p286 = scmp.eq.s32.totalorder %s29, 0
    %p287 = por %p285, %p286
    %s289 = sadd.s32 %s288, 1
    %p292 = scmp.eq.s32.totalorder %s23, 1
    %p293 = scmp.ne.s32.totalorder %s288, %s290
    %p294 = scmp.eq.s32.totalorder %s23, 0
    %p295 = por %p293, %p294
    %p296 = scmp.ne.s32.totalorder %s288, %s290
    %p297 = scmp.eq.s32.totalorder %s28, 1
    %p298 = por %p296, %p297
    %p299 = scmp.ne.s32.totalorder %s290, %s291
    %p300 = scmp.eq.s32.totalorder %s28, 0
    %p301 = por %p299, %p300
    %p302 = scmp.ne.s32.totalorder %s290, %s291
    %p303 = scmp.eq.s32.totalorder %s29, 1
    %p304 = por %p302, %p303
    %p306 = scmp.ne.s32.totalorder %s291, %s305
    %p307 = scmp.eq.s32.totalorder %s29, 0
    %p308 = por %p306, %p307
    %s310 = sadd.s32 %s309, 1
    %p313 = scmp.eq.s32.totalorder %s23, 1
    %p314 = scmp.ne.s32.totalorder %s309, %s311
    %p315 = scmp.eq.s32.totalorder %s23, 0
    %p316 = por %p314, %p315
    %p317 = scmp.ne.s32.totalorder %s309, %s311
    %p318 = scmp.eq.s32.totalorder %s28, 1
    %p319 = por %p317, %p318
    %p320 = scmp.ne.s32.totalorder %s311, %s312
    %p321 = scmp.eq.s32.totalorder %s28, 0
    %p322 = por %p320, %p321
    %p323 = scmp.ne.s32.totalorder %s311, %s312
    %p324 = scmp.eq.s32.totalorder %s29, 1
    %p325 = por %p323, %p324
    %p327 = scmp.ne.s32.totalorder %s312, %s326
    %p328 = scmp.eq.s32.totalorder %s29, 0
    %p329 = por %p327, %p328
    %s331 = sadd.s32 %s330, 1
    %p334 = scmp.eq.s32.totalorder %s23, 1
    %p335 = scmp.ne.s32.totalorder %s330, %s332
    %p336 = scmp.eq.s32.totalorder %s23, 0
    %p337 = por %p335, %p336
    %p338 = scmp.ne.s32.totalorder %s330, %s332
    %p339 = scmp.eq.s32.totalorder %s28, 1
    %p340 = por %p338, %p339
    %p341 = scmp.ne.s32.totalorder %s332, %s333
    %p342 = scmp.eq.s32.totalorder %s28, 0
    %p343 = por %p341, %p342
    %p344 = scmp.ne.s32.totalorder %s332, %s333
    %p345 = scmp.eq.s32.totalorder %s29, 1
    %p346 = por %p344, %p345
    %p348 = scmp.ne.s32.totalorder %s333, %s347
    %p349 = scmp.eq.s32.totalorder %s29, 0
    %p350 = por %p348, %p349
    %s351 = ssub.s32 %s23, %s30
    %p352 = scmp.eq.s32.totalorder %s351, 0
    %s354 = sadd.s32 %s353, 1
    %s355 = scalar_select %p352, %s353, %s354
    %p358 = pneg %p352
    %p359 = scmp.eq.s32.totalorder %s23, 1
    %p360 = por %p358, %p359
    %p361 = scmp.ne.s32.totalorder %s353, %s356
    %p362 = scmp.eq.s32.totalorder %s23, 0
    %p363 = por %p361, %p362
    %p364 = scmp.ne.s32.totalorder %s353, %s356
    %p365 = scmp.eq.s32.totalorder %s28, 1
    %p366 = por %p364, %p365
    %p367 = scmp.ne.s32.totalorder %s356, %s357
    %p368 = scmp.eq.s32.totalorder %s28, 0
    %p369 = por %p367, %p368
    %p370 = scmp.ne.s32.totalorder %s356, %s357
    %p371 = scmp.eq.s32.totalorder %s29, 1
    %p372 = por %p370, %p371
    %p374 = scmp.ne.s32.totalorder %s357, %s373
    %p375 = scmp.eq.s32.totalorder %s29, 0
    %p376 = por %p374, %p375
    %s377 = ssub.s32 %s23, %s30
    %p378 = scmp.eq.s32.totalorder %s377, 0
    %s380 = sadd.s32 %s379, 1
    %s381 = scalar_select %p378, %s379, %s380
    %p384 = pneg %p378
    %p385 = scmp.eq.s32.totalorder %s23, 1
    %p386 = por %p384, %p385
    %p387 = scmp.ne.s32.totalorder %s379, %s382
    %p388 = scmp.eq.s32.totalorder %s23, 0
    %p389 = por %p387, %p388
    %p390 = scmp.ne.s32.totalorder %s379, %s382
    %p391 = scmp.eq.s32.totalorder %s28, 1
    %p392 = por %p390, %p391
    %p393 = scmp.ne.s32.totalorder %s382, %s383
    %p394 = scmp.eq.s32.totalorder %s28, 0
    %p395 = por %p393, %p394
    %p396 = scmp.ne.s32.totalorder %s382, %s383
    %p397 = scmp.eq.s32.totalorder %s29, 1
    %p398 = por %p396, %p397
    %p400 = scmp.ne.s32.totalorder %s383, %s399
    %p401 = scmp.eq.s32.totalorder %s29, 0
    %p402 = por %p400, %p401
    %p403 = scmp.le.s32.totalorder 1, %s23
    %p404 = scmp.lt.s32.totalorder %s23, 3
    %p405 = pnand %p403, %p404
    %p406 = pneg %p405
    // Predicated region
    $region9: #{_lambda_.2} parent=5 // pred_check
      _
    $region10: #{_lambda_.2} parent=5 // pred_check_branch
      %408 = sbr.rel (%p405) target = $region12
    $region11: #{_lambda_.2} parent=5 // pred_region
      %s409 = ssub.s32 %s23, 1
      // Predicated region
      $region13: #{_lambda_.2} parent=11 // pred_check
        %p410 = pneg %p70
      $region14: #{_lambda_.2} parent=11 // pred_check_branch
        %412 = sbr.rel (%p410) target = $region16
      $region15: #{_lambda_.2} parent=11 // pred_region
        _
      $region16: #{_lambda_.2} parent=11 // pred_fallthru
        _
      // Predicated region
      $region17: #{_lambda_.2} parent=11 // pred_check
        %p413 = pneg %p91
      $region18: #{_lambda_.2} parent=11 // pred_check_branch
        %415 = sbr.rel (%p413) target = $region20
      $region19: #{_lambda_.2} parent=11 // pred_region
        _
      $region20: #{_lambda_.2} parent=11 // pred_fallthru
        _
      // Predicated region
      $region21: #{_lambda_.2} parent=11 // pred_check
        %p416 = pneg %p112
      $region22: #{_lambda_.2} parent=11 // pred_check_branch
        %418 = sbr.rel (%p416) target = $region24
      $region23: #{_lambda_.2} parent=11 // pred_region
        _
      $region24: #{_lambda_.2} parent=11 // pred_fallthru
        _
      // Predicated region
      $region25: #{_lambda_.2} parent=11 // pred_check
        %p419 = pneg %p133
      $region26: #{_lambda_.2} parent=11 // pred_check_branch
        %421 = sbr.rel (%p419) target = $region28
      $region27: #{_lambda_.2} parent=11 // pred_region
        _
      $region28: #{_lambda_.2} parent=11 // pred_fallthru
        _
      // Predicated region
      $region29: #{_lambda_.2} parent=11 // pred_check
        %p422 = pneg %p154
      $region30: #{_lambda_.2} parent=11 // pred_check_branch
        %424 = sbr.rel (%p422) target = $region32
      $region31: #{_lambda_.2} parent=11 // pred_region
        _
      $region32: #{_lambda_.2} parent=11 // pred_fallthru
        _
      // Predicated region
      $region33: #{_lambda_.2} parent=11 // pred_check
        %p425 = pneg %p175
      $region34: #{_lambda_.2} parent=11 // pred_check_branch
        %427 = sbr.rel (%p425) target = $region36
      $region35: #{_lambda_.2} parent=11 // pred_region
        _
      $region36: #{_lambda_.2} parent=11 // pred_fallthru
        _
      // Predicated region
      $region37: #{_lambda_.2} parent=11 // pred_check
        %p428 = pneg %p196
      $region38: #{_lambda_.2} parent=11 // pred_check_branch
        %430 = sbr.rel (%p428) target = $region40
      $region39: #{_lambda_.2} parent=11 // pred_region
        _
      $region40: #{_lambda_.2} parent=11 // pred_fallthru
        _
      // Predicated region
      $region41: #{_lambda_.2} parent=11 // pred_check
        %p431 = pneg %p217
      $region42: #{_lambda_.2} parent=11 // pred_check_branch
        %433 = sbr.rel (%p431) target = $region44
      $region43: #{_lambda_.2} parent=11 // pred_region
        _
      $region44: #{_lambda_.2} parent=11 // pred_fallthru
        _
      // Predicated region
      $region45: #{_lambda_.2} parent=11 // pred_check
        %p434 = pneg %p238
      $region46: #{_lambda_.2} parent=11 // pred_check_branch
        %436 = sbr.rel (%p434) target = $region48
      $region47: #{_lambda_.2} parent=11 // pred_region
        _
      $region48: #{_lambda_.2} parent=11 // pred_fallthru
        _
      // Predicated region
      $region49: #{_lambda_.2} parent=11 // pred_check
        %p437 = pneg %p259
      $region50: #{_lambda_.2} parent=11 // pred_check_branch
        %439 = sbr.rel (%p437) target = $region52
      $region51: #{_lambda_.2} parent=11 // pred_region
        _
      $region52: #{_lambda_.2} parent=11 // pred_fallthru
        _
      // Predicated region
      $region53: #{_lambda_.2} parent=11 // pred_check
        %p440 = pneg %p280
      $region54: #{_lambda_.2} parent=11 // pred_check_branch
        %442 = sbr.rel (%p440) target = $region56
      $region55: #{_lambda_.2} parent=11 // pred_region
        _
      $region56: #{_lambda_.2} parent=11 // pred_fallthru
        _
      // Predicated region
      $region57: #{_lambda_.2} parent=11 // pred_check
        %p443 = pneg %p301
      $region58: #{_lambda_.2} parent=11 // pred_check_branch
        %445 = sbr.rel (%p443) target = $region60
      $region59: #{_lambda_.2} parent=11 // pred_region
        _
      $region60: #{_lambda_.2} parent=11 // pred_fallthru
        _
      // Predicated region
      $region61: #{_lambda_.2} parent=11 // pred_check
        %p446 = pneg %p322
      $region62: #{_lambda_.2} parent=11 // pred_check_branch
        %448 = sbr.rel (%p446) target = $region64
      $region63: #{_lambda_.2} parent=11 // pred_region
        _
      $region64: #{_lambda_.2} parent=11 // pred_fallthru
        _
      // Predicated region
      $region65: #{_lambda_.2} parent=11 // pred_check
        %p449 = pneg %p343
      $region66: #{_lambda_.2} parent=11 // pred_check_branch
        %451 = sbr.rel (%p449) target = $region68
      $region67: #{_lambda_.2} parent=11 // pred_region
        _
      $region68: #{_lambda_.2} parent=11 // pred_fallthru
        _
    $region12: #{_lambda_.2} parent=5 // pred_fallthru
      _
    %p452 = scmp.lt.s32.totalorder %s23, 2
    // Predicated region
    $region69: #{_lambda_.2} parent=5 // pred_check
      %p453 = pneg %p452
    $region70: #{_lambda_.2} parent=5 // pred_check_branch
      %455 = sbr.rel (%p453) target = $region72
    $region71: #{_lambda_.2} parent=5 // pred_region
      // Predicated region
      $region73: #{_lambda_.2} parent=71 // pred_check
        %p456 = pneg %p43
      $region74: #{_lambda_.2} parent=71 // pred_check_branch
        %458 = sbr.rel (%p456) target = $region76
      $region75: #{_lambda_.2} parent=71 // pred_region
        %p459 = scmp.lt.s32.totalorder %s23, 1
        %s460 = scalar_select %p459, %s23, 1
        %s461 = smul.addr %s460, 8
        %s462 = smul.addr %s461, 8
        %s463 = scalar_lea.vmem %s0, %s462
      $region76: #{_lambda_.2} parent=71 // pred_fallthru
        _
    $region72: #{_lambda_.2} parent=5 // pred_fallthru
      _
    %p464 = scmp.le.s32.totalorder 1, %s23
    %p465 = scmp.lt.s32.totalorder %s23, 3
    %p466 = pnand %p464, %p465
    %p467 = pneg %p466
    // Predicated region
    $region77: #{_lambda_.2} parent=5 // pred_check
      _
    $region78: #{_lambda_.2} parent=5 // pred_check_branch
      %469 = sbr.rel (%p466) target = $region80
    $region79: #{_lambda_.2} parent=5 // pred_region
      %s470 = ssub.s32 %s23, 1
      %p471 = scmp.lt.s32.totalorder %s28, 1
      %s472 = scalar_select %p471, %s28, 1
      %s473 = smul.addr %s472, 8
      %s474 = smul.addr %s473, 8
      %s475 = scalar_lea.vmem %s0, %s474
      %p476 = pneg %p49
      %p477 = pneg %p46
      %p478 = pneg %p70
      %p479 = pneg %p67
      %p480 = pneg %p91
      %p481 = pneg %p88
      %p482 = pneg %p112
      %p483 = pneg %p109
      %p484 = pneg %p133
      %p485 = pneg %p130
      %p486 = pneg %p154
      %p487 = pneg %p151
      %p488 = pneg %p175
      %p489 = pneg %p172
      %p490 = pneg %p196
      %p491 = pneg %p193
      %p492 = pneg %p217
      %p493 = pneg %p214
      %p494 = pneg %p238
      %p495 = pneg %p235
      %p496 = pneg %p259
      %p497 = pneg %p256
      %p498 = pneg %p280
      %p499 = pneg %p277
      %p500 = pneg %p301
      %p501 = pneg %p298
      %p502 = pneg %p322
      %p503 = pneg %p319
      %p504 = pneg %p343
      %p505 = pneg %p340
      %p506 = pneg %p369
      %p507 = pneg %p366
      %p508 = scmp.lt.s32.totalorder %s28, 1
      %s509 = scalar_select %p508, %s28, 1
      %s510 = smul.addr %s509, 8
      %s511 = smul.addr %s510, 8
      %s512 = scalar_lea.vmem %s15, %s511
      %p513 = pneg %p395
      %p514 = pneg %p392
      %p515 = scmp.lt.s32.totalorder %s28, 1
      %s516 = scalar_select %p515, %s28, 1
      %s517 = smul.addr %s516, 8
      %s518 = smul.addr %s517, 8
      %s519 = scalar_lea.vmem %s16, %s518
      %p520 = scmp.lt.s32.totalorder %s28, 1
      %s521 = scalar_select %p520, %s28, 1
      %s522 = smul.addr %s521, 8
      %s523 = smul.addr %s522, 8
      %s524 = scalar_lea.vmem %s0, %s523
      %p525 = scmp.lt.s32.totalorder %s28, 1
      %s526 = scalar_select %p525, %s28, 1
      %s527 = smul.addr %s526, 8
      %s528 = smul.addr %s527, 8
      %s529 = scalar_lea.vmem %s15, %s528
      %p530 = scmp.lt.s32.totalorder %s28, 1
      %s531 = scalar_select %p530, %s28, 1
      %s532 = smul.addr %s531, 8
      %s533 = smul.addr %s532, 8
      %s534 = scalar_lea.vmem %s16, %s533
      %vm535 = vcmask 64512
      %536 = vst.msk [vmem:[#allocation2] sm:$0xff] %vm535, 0.0
      %537 = vst.msk [vmem:[#allocation2 + $0x8] sm:$0xff] %vm535, 0.0
      %538 = vst.msk [vmem:[#allocation2 + $0x50] sm:$0xff] %vm535, 0.0
      %539 = vst.msk [vmem:[#allocation2 + $0x58] sm:$0xff] %vm535, 0.0
      %vm540 = vcmask 261120
      %541 = vst.msk [vmem:[#allocation3] sm:$0xff] %vm540, 0.0
      %542 = vst.msk [vmem:[#allocation3 + $0x8] sm:$0xff] %vm540, 0.0
      %543 = vst.msk [vmem:[#allocation3 + $0x50] sm:$0xff] %vm540, 0.0
      %544 = vst.msk [vmem:[#allocation3 + $0x58] sm:$0xff] %vm540, 0.0
      %v545 = vlaneseq
      %v546 = vshrl.u32 %v545, 7
      %v547 = vadd.s32 %v546, 8
      %v548 = vadd.s32 %v546, 16
      %v549 = vadd.s32 %v546, 24
      %v550 = vadd.s32 %v546, 32
      %v551 = vadd.s32 %v546, 40
      %v552 = vadd.s32 %v546, 48
      %v553 = vadd.s32 %v546, 56
      %vm554 = vcmp.lt.s32.totalorder %v546, 0
      %v555 = vsub.s32 0, %v546
      %v556 = vsel %vm554, %v555, %v546
      %v557 = vshrl.u32 %v556, 3
      %v558 = vand.u32 %v556, 7
      %v559 = vsub.s32 0, %v558
      %v560 = vsel %vm554, %v559, %v558
      %vm561 = vcmp.lt.s32.totalorder %v547, 0
      %v562 = vsub.s32 0, %v547
      %v563 = vsel %vm561, %v562, %v547
      %v564 = vshrl.u32 %v563, 3
      %v565 = vand.u32 %v563, 7
      %v566 = vsub.s32 0, %v565
      %v567 = vsel %vm561, %v566, %v565
      %vm568 = vcmp.lt.s32.totalorder %v548, 0
      %v569 = vsub.s32 0, %v548
      %v570 = vsel %vm568, %v569, %v548
      %v571 = vshrl.u32 %v570, 3
      %v572 = vand.u32 %v570, 7
      %v573 = vsub.s32 0, %v572
      %v574 = vsel %vm568, %v573, %v572
      %vm575 = vcmp.lt.s32.totalorder %v549, 0
      %v576 = vsub.s32 0, %v549
      %v577 = vsel %vm575, %v576, %v549
      %v578 = vshrl.u32 %v577, 3
      %v579 = vand.u32 %v577, 7
      %v580 = vsub.s32 0, %v579
      %v581 = vsel %vm575, %v580, %v579
      %vm582 = vcmp.lt.s32.totalorder %v550, 0
      %v583 = vsub.s32 0, %v550
      %v584 = vsel %vm582, %v583, %v550
      %v585 = vshrl.u32 %v584, 3
      %v586 = vand.u32 %v584, 7
      %v587 = vsub.s32 0, %v586
      %v588 = vsel %vm582, %v587, %v586
      %vm589 = vcmp.lt.s32.totalorder %v551, 0
      %v590 = vsub.s32 0, %v551
      %v591 = vsel %vm589, %v590, %v551
      %v592 = vshrl.u32 %v591, 3
      %v593 = vand.u32 %v591, 7
      %v594 = vsub.s32 0, %v593
      %v595 = vsel %vm589, %v594, %v593
      %vm596 = vcmp.lt.s32.totalorder %v552, 0
      %v597 = vsub.s32 0, %v552
      %v598 = vsel %vm596, %v597, %v552
      %v599 = vshrl.u32 %v598, 3
      %v600 = vand.u32 %v598, 7
      %v601 = vsub.s32 0, %v600
      %v602 = vsel %vm596, %v601, %v600
      %vm603 = vcmp.lt.s32.totalorder %v553, 0
      %v604 = vsub.s32 0, %v553
      %v605 = vsel %vm603, %v604, %v553
      %v606 = vshrl.u32 %v605, 3
      %v607 = vand.u32 %v605, 7
      %v608 = vsub.s32 0, %v607
      %v609 = vsel %vm603, %v608, %v607
      %vm610 = vcmp.ne.s32.totalorder %v560, 0
      %vm611 = vcmp.ne.s32.totalorder %v567, 0
      %vm612 = vcmp.ne.s32.totalorder %v574, 0
      %vm613 = vcmp.ne.s32.totalorder %v581, 0
      %vm614 = vcmp.ne.s32.totalorder %v588, 0
      %vm615 = vcmp.ne.s32.totalorder %v595, 0
      %vm616 = vcmp.ne.s32.totalorder %v602, 0
      %vm617 = vcmp.ne.s32.totalorder %v609, 0
      %vm618 = vcmp.lt.s32.totalorder %v560, 0
      %vm619 = vcmp.lt.s32.totalorder %v567, 0
      %vm620 = vcmp.lt.s32.totalorder %v574, 0
      %vm621 = vcmp.lt.s32.totalorder %v581, 0
      %vm622 = vcmp.lt.s32.totalorder %v588, 0
      %vm623 = vcmp.lt.s32.totalorder %v595, 0
      %vm624 = vcmp.lt.s32.totalorder %v602, 0
      %vm625 = vcmp.lt.s32.totalorder %v609, 0
      %vm626 = vmand %vm618, %vm610
      %vm627 = vmand %vm619, %vm611
      %vm628 = vmand %vm620, %vm612
      %vm629 = vmand %vm621, %vm613
      %vm630 = vmand %vm622, %vm614
      %vm631 = vmand %vm623, %vm615
      %vm632 = vmand %vm624, %vm616
      %vm633 = vmand %vm625, %vm617
      %v634 = vadd.s32 %v560, 8
      %v635 = vadd.s32 %v567, 8
      %v636 = vadd.s32 %v574, 8
      %v637 = vadd.s32 %v581, 8
      %v638 = vadd.s32 %v588, 8
      %v639 = vadd.s32 %v595, 8
      %v640 = vadd.s32 %v602, 8
      %v641 = vadd.s32 %v609, 8
      %v642 = vsel %vm626, %v634, %v560
      %v643 = vsel %vm627, %v635, %v567
      %v644 = vsel %vm628, %v636, %v574
      %v645 = vsel %vm629, %v637, %v581
      %v646 = vsel %vm630, %v638, %v588
      %v647 = vsel %vm631, %v639, %v595
      %v648 = vsel %vm632, %v640, %v602
      %v649 = vsel %vm633, %v641, %v609
      %vm650 = vcmp.ne.s32.totalorder %v642, 0
      %vm651 = vcmp.ne.s32.totalorder %v643, 0
      %vm652 = vcmp.ne.s32.totalorder %v644, 0
      %vm653 = vcmp.ne.s32.totalorder %v645, 0
      %vm654 = vcmp.ne.s32.totalorder %v646, 0
      %vm655 = vcmp.ne.s32.totalorder %v647, 0
      %vm656 = vcmp.ne.s32.totalorder %v648, 0
      %vm657 = vcmp.ne.s32.totalorder %v649, 0
      %v658 = vsel %vm650, 1, 0
      %v659 = vsel %vm651, 1, 0
      %v660 = vsel %vm652, 1, 0
      %v661 = vsel %vm653, 1, 0
      %v662 = vsel %vm654, 1, 0
      %v663 = vsel %vm655, 1, 0
      %v664 = vsel %vm656, 1, 0
      %v665 = vsel %vm657, 1, 0
      %v666 = vcvt.s32.f32 %v658
      %v667 = vcvt.s32.f32 %v659
      %v668 = vcvt.s32.f32 %v660
      %v669 = vcvt.s32.f32 %v661
      %v670 = vcvt.s32.f32 %v662
      %v671 = vcvt.s32.f32 %v663
      %v672 = vcvt.s32.f32 %v664
      %v673 = vcvt.s32.f32 %v665
      %vm674 = vcmp.ne.s32.totalorder %v642, 7
      %vm675 = vcmp.ne.s32.totalorder %v643, 7
      %vm676 = vcmp.ne.s32.totalorder %v644, 7
      %vm677 = vcmp.ne.s32.totalorder %v645, 7
      %vm678 = vcmp.ne.s32.totalorder %v646, 7
      %vm679 = vcmp.ne.s32.totalorder %v647, 7
      %vm680 = vcmp.ne.s32.totalorder %v648, 7
      %vm681 = vcmp.ne.s32.totalorder %v649, 7
      %v682 = vsel %vm674, 1, 0
      %v683 = vsel %vm675, 1, 0
      %v684 = vsel %vm676, 1, 0
      %v685 = vsel %vm677, 1, 0
      %v686 = vsel %vm678, 1, 0
      %v687 = vsel %vm679, 1, 0
      %v688 = vsel %vm680, 1, 0
      %v689 = vsel %vm681, 1, 0
      %v690 = vcvt.s32.f32 %v682
      %v691 = vcvt.s32.f32 %v683
      %v692 = vcvt.s32.f32 %v684
      %v693 = vcvt.s32.f32 %v685
      %v694 = vcvt.s32.f32 %v686
      %v695 = vcvt.s32.f32 %v687
      %v696 = vcvt.s32.f32 %v688
      %v697 = vcvt.s32.f32 %v689
      %v698 = vld [vmem:[%s524] sm:$0xff]
      %v699 = vld [vmem:[%s524 + $0x8] sm:$0xff]
      %v700 = vld [vmem:[%s524 + $0x10] sm:$0xff]
      %v701 = vld [vmem:[%s524 + $0x18] sm:$0xff]
      %v702 = vld [vmem:[%s524 + $0x20] sm:$0xff]
      %v703 = vld [vmem:[%s524 + $0x28] sm:$0xff]
      %v704 = vld [vmem:[%s524 + $0x30] sm:$0xff]
      %v705 = vld [vmem:[%s524 + $0x38] sm:$0xff]
      %v706 = vld [vmem:[%s1] sm:$0xff]
      %v707 = vld [vmem:[%s1 + $0x8] sm:$0xff]
      %716 = vrot.lane.b32.xlu0 %v698, 120
      %v717 = vpop.permute.xlu0 %716
      %718 = vrot.lane.b32.xlu0 %v699, 120
      %v719 = vpop.permute.xlu0 %718
      %720 = vrot.lane.b32.xlu0 %v700, 120
      %v721 = vpop.permute.xlu0 %720
      %722 = vrot.lane.b32.xlu0 %v701, 120
      %v723 = vpop.permute.xlu0 %722
      %724 = vrot.lane.b32.xlu0 %v702, 120
      %v725 = vpop.permute.xlu0 %724
      %726 = vrot.lane.b32.xlu0 %v703, 120
      %v727 = vpop.permute.xlu0 %726
      %728 = vrot.lane.b32.xlu0 %v704, 120
      %v729 = vpop.permute.xlu0 %728
      %730 = vrot.lane.b32.xlu0 %v705, 120
      %v731 = vpop.permute.xlu0 %730
      %v732 = vsel %vm535, %v717, 0
      %v734 = vsel %vm535, %v719, 0
      %v736 = vsel %vm535, %v721, 0
      %v738 = vsel %vm535, %v723, 0
      %v740 = vsel %vm535, %v725, 0
      %v742 = vsel %vm535, %v727, 0
      %v744 = vsel %vm535, %v729, 0
      %v746 = vsel %vm535, %v731, 0
      %748 = vmatprep.subr.mxu0 0.0
      %749 = vmatpush1.msra.mxu0 0.0
      %750 = vmatprep.subr.mxu0 0.0
      %751 = vmatpush1.msra.mxu0 0.0
      %752 = vmatprep.subr.mxu0 0.0
      %753 = vmatpush1.msra.mxu0 0.0
      %754 = vmatprep.subr.mxu0 0.0
      %755 = vmatpush1.msra.mxu0 0.0
      %756 = vmatprep.subr.mxu0 0.0
      %757 = vmatpush1.msra.mxu0 0.0
      %758 = vmatprep.subr.mxu0 0.0
      %759 = vmatpush1.msra.mxu0 0.0
      %760 = vmatprep.subr.mxu0 0.0
      %761 = vmatpush1.msra.mxu0 0.0
      %762 = vmatprep.subr.mxu0 0.0
      %763 = vmatpush1.msra.mxu0 0.0
      %764 = vmatprep.subr.mxu0 0.0
      %765 = vmatpush1.msra.mxu0 0.0
      %766 = vmatprep.subr.mxu0 0.0
      %767 = vmatpush1.msra.mxu0 0.0
      %768 = vmatprep.subr.mxu0 0.0
      %769 = vmatpush1.msra.mxu0 0.0
      %770 = vmatprep.subr.mxu0 0.0
      %771 = vmatpush1.msra.mxu0 0.0
      %772 = vmatprep.subr.mxu0 0.0
      %773 = vmatpush1.msra.mxu0 0.0
      %774 = vmatprep.subr.mxu0 0.0
      %775 = vmatpush1.msra.mxu0 0.0
      %776 = vmatprep.subr.mxu0 0.0
      %777 = vmatpush1.msra.mxu0 0.0
      %778 = vmatprep.subr.mxu0 0.0
      %779 = vmatpush1.msra.mxu0 %v707
      %780 = vmatprep.subr.mxu0 0.0
      %781 = vmatpush2.msra.mxu0 0.0
      %782 = vmatprep.subr.mxu0 0.0
      %783 = vmatpush2.msra.mxu0 0.0
      %784 = vmatprep.subr.mxu0 0.0
      %785 = vmatpush2.msra.mxu0 0.0
      %786 = vmatprep.subr.mxu0 0.0
      %787 = vmatpush2.msra.mxu0 0.0
      %788 = vmatprep.subr.mxu0 0.0
      %789 = vmatpush2.msra.mxu0 0.0
      %790 = vmatprep.subr.mxu0 0.0
      %791 = vmatpush2.msra.mxu0 0.0
      %792 = vmatprep.subr.mxu0 0.0
      %793 = vmatpush2.msra.mxu0 0.0
      %794 = vmatprep.subr.mxu0 0.0
      %795 = vmatpush2.msra.mxu0 0.0
      %796 = vmatprep.subr.mxu0 0.0
      %797 = vmatpush2.msra.mxu0 0.0
      %798 = vmatprep.subr.mxu0 0.0
      %799 = vmatpush2.msra.mxu0 0.0
      %800 = vmatprep.subr.mxu0 0.0
      %801 = vmatpush2.msra.mxu0 0.0
      %802 = vmatprep.subr.mxu0 0.0
      %803 = vmatpush2.msra.mxu0 0.0
      %804 = vmatprep.subr.mxu0 0.0
      %805 = vmatpush2.msra.mxu0 0.0
      %806 = vmatprep.subr.mxu0 0.0
      %807 = vmatpush2.msra.mxu0 0.0
      %808 = vmatprep.subr.mxu0 0.0
      %809 = vmatpush2.msra.mxu0 0.0
      %810 = vmatprep.subr.mxu0 0.0
      %811 = vmatpush2.msra.mxu0 0.0
      %812 = vmatprep.mubr.f32.mxu0 0.0
      %813 = vmatmul.mubr.f32.gmra.mxu0 %v732
      %v814 = vpop.f32.mrf.mxu0
      %v815 = vadd.f32 0.0, %v814
      %v816 = vpop.f32.mrf.mxu0
      %817 = vmatprep.mubr.f32.mxu0 0.0
      %818 = vmatmul.mubr.f32.gmra.mxu0 %v734
      %v819 = vpop.f32.mrf.mxu0
      %v820 = vadd.f32 0.0, %v819
      %v821 = vpop.f32.mrf.mxu0
      %822 = vmatprep.mubr.f32.mxu0 0.0
      %823 = vmatmul.mubr.f32.gmra.mxu0 %v736
      %v824 = vpop.f32.mrf.mxu0
      %v825 = vadd.f32 0.0, %v824
      %v826 = vpop.f32.mrf.mxu0
      %827 = vmatprep.mubr.f32.mxu0 0.0
      %828 = vmatmul.mubr.f32.gmra.mxu0 %v738
      %v829 = vpop.f32.mrf.mxu0
      %v830 = vadd.f32 0.0, %v829
      %v831 = vpop.f32.mrf.mxu0
      %832 = vmatprep.mubr.f32.mxu0 0.0
      %833 = vmatmul.mubr.f32.gmra.mxu0 %v740
      %v834 = vpop.f32.mrf.mxu0
      %v835 = vadd.f32 0.0, %v834
      %v836 = vpop.f32.mrf.mxu0
      %837 = vmatprep.mubr.f32.mxu0 0.0
      %838 = vmatmul.mubr.f32.gmra.mxu0 %v742
      %v839 = vpop.f32.mrf.mxu0
      %v840 = vadd.f32 0.0, %v839
      %v841 = vpop.f32.mrf.mxu0
      %842 = vmatprep.mubr.f32.mxu0 0.0
      %843 = vmatmul.mubr.f32.gmra.mxu0 %v744
      %v844 = vpop.f32.mrf.mxu0
      %v845 = vadd.f32 0.0, %v844
      %v846 = vpop.f32.mrf.mxu0
      %847 = vmatprep.mubr.f32.mxu0 0.0
      %848 = vmatmul.mubr.f32.gmra.mxu0 %v746
      %v849 = vpop.f32.mrf.mxu0
      %v850 = vadd.f32 0.0, %v849
      %v851 = vpop.f32.mrf.mxu0
      %852 = vdwg.mxu0
      %v853 = vsel %vm535, %v698, 0
      %v855 = vsel %vm535, %v699, 0
      %v857 = vsel %vm535, %v700, 0
      %v859 = vsel %vm535, %v701, 0
      %v861 = vsel %vm535, %v702, 0
      %v863 = vsel %vm535, %v703, 0
      %v865 = vsel %vm535, %v704, 0
      %v867 = vsel %vm535, %v705, 0
      %869 = vmatprep.subr.mxu0 0.0
      %870 = vmatpush1.msra.mxu0 0.0
      %871 = vmatprep.subr.mxu0 0.0
      %872 = vmatpush1.msra.mxu0 0.0
      %873 = vmatprep.subr.mxu0 0.0
      %874 = vmatpush1.msra.mxu0 0.0
      %875 = vmatprep.subr.mxu0 0.0
      %876 = vmatpush1.msra.mxu0 0.0
      %877 = vmatprep.subr.mxu0 0.0
      %878 = vmatpush1.msra.mxu0 0.0
      %879 = vmatprep.subr.mxu0 0.0
      %880 = vmatpush1.msra.mxu0 0.0
      %881 = vmatprep.subr.mxu0 0.0
      %882 = vmatpush1.msra.mxu0 0.0
      %883 = vmatprep.subr.mxu0 0.0
      %884 = vmatpush1.msra.mxu0 0.0
      %885 = vmatprep.subr.mxu0 0.0
      %886 = vmatpush1.msra.mxu0 0.0
      %887 = vmatprep.subr.mxu0 0.0
      %888 = vmatpush1.msra.mxu0 0.0
      %889 = vmatprep.subr.mxu0 0.0
      %890 = vmatpush1.msra.mxu0 0.0
      %891 = vmatprep.subr.mxu0 0.0
      %892 = vmatpush1.msra.mxu0 0.0
      %893 = vmatprep.subr.mxu0 0.0
      %894 = vmatpush1.msra.mxu0 0.0
      %895 = vmatprep.subr.mxu0 0.0
      %896 = vmatpush1.msra.mxu0 0.0
      %897 = vmatprep.subr.mxu0 0.0
      %898 = vmatpush1.msra.mxu0 0.0
      %899 = vmatprep.subr.mxu0 0.0
      %900 = vmatpush1.msra.mxu0 %v706
      %901 = vmatprep.subr.mxu0 0.0
      %902 = vmatpush2.msra.mxu0 0.0
      %903 = vmatprep.subr.mxu0 0.0
      %904 = vmatpush2.msra.mxu0 0.0
      %905 = vmatprep.subr.mxu0 0.0
      %906 = vmatpush2.msra.mxu0 0.0
      %907 = vmatprep.subr.mxu0 0.0
      %908 = vmatpush2.msra.mxu0 0.0
      %909 = vmatprep.subr.mxu0 0.0
      %910 = vmatpush2.msra.mxu0 0.0
      %911 = vmatprep.subr.mxu0 0.0
      %912 = vmatpush2.msra.mxu0 0.0
      %913 = vmatprep.subr.mxu0 0.0
      %914 = vmatpush2.msra.mxu0 0.0
      %915 = vmatprep.subr.mxu0 0.0
      %916 = vmatpush2.msra.mxu0 0.0
      %917 = vmatprep.subr.mxu0 0.0
      %918 = vmatpush2.msra.mxu0 0.0
      %919 = vmatprep.subr.mxu0 0.0
      %920 = vmatpush2.msra.mxu0 0.0
      %921 = vmatprep.subr.mxu0 0.0
      %922 = vmatpush2.msra.mxu0 0.0
      %923 = vmatprep.subr.mxu0 0.0
      %924 = vmatpush2.msra.mxu0 0.0
      %925 = vmatprep.subr.mxu0 0.0
      %926 = vmatpush2.msra.mxu0 0.0
      %927 = vmatprep.subr.mxu0 0.0
      %928 = vmatpush2.msra.mxu0 0.0
      %929 = vmatprep.subr.mxu0 0.0
      %930 = vmatpush2.msra.mxu0 0.0
      %931 = vmatprep.subr.mxu0 0.0
      %932 = vmatpush2.msra.mxu0 0.0
      %933 = vmatprep.mubr.f32.mxu0 0.0
      %934 = vmatmul.mubr.f32.gmra.mxu0 %v853
      %v935 = vpop.f32.mrf.mxu0
      %v936 = vadd.f32 %v815, %v935
      %v937 = vpop.f32.mrf.mxu0
      %938 = vmatprep.mubr.f32.mxu0 0.0
      %939 = vmatmul.mubr.f32.gmra.mxu0 %v855
      %v940 = vpop.f32.mrf.mxu0
      %v941 = vadd.f32 %v820, %v940
      %v942 = vpop.f32.mrf.mxu0
      %943 = vmatprep.mubr.f32.mxu0 0.0
      %944 = vmatmul.mubr.f32.gmra.mxu0 %v857
      %v945 = vpop.f32.mrf.mxu0
      %v946 = vadd.f32 %v825, %v945
      %v947 = vpop.f32.mrf.mxu0
      %948 = vmatprep.mubr.f32.mxu0 0.0
      %949 = vmatmul.mubr.f32.gmra.mxu0 %v859
      %v950 = vpop.f32.mrf.mxu0
      %v951 = vadd.f32 %v830, %v950
      %v952 = vpop.f32.mrf.mxu0
      %953 = vmatprep.mubr.f32.mxu0 0.0
      %954 = vmatmul.mubr.f32.gmra.mxu0 %v861
      %v955 = vpop.f32.mrf.mxu0
      %v956 = vadd.f32 %v835, %v955
      %v957 = vpop.f32.mrf.mxu0
      %958 = vmatprep.mubr.f32.mxu0 0.0
      %959 = vmatmul.mubr.f32.gmra.mxu0 %v863
      %v960 = vpop.f32.mrf.mxu0
      %v961 = vadd.f32 %v840, %v960
      %v962 = vpop.f32.mrf.mxu0
      %963 = vmatprep.mubr.f32.mxu0 0.0
      %964 = vmatmul.mubr.f32.gmra.mxu0 %v865
      %v965 = vpop.f32.mrf.mxu0
      %v966 = vadd.f32 %v845, %v965
      %v967 = vpop.f32.mrf.mxu0
      %968 = vmatprep.mubr.f32.mxu0 0.0
      %969 = vmatmul.mubr.f32.gmra.mxu0 %v867
      %v970 = vpop.f32.mrf.mxu0
      %v971 = vadd.f32 %v850, %v970
      %v972 = vpop.f32.mrf.mxu0
      %973 = vdwg.mxu0
      %v974 = vld [vmem:[%s2] sm:$0x1]
      %v976 = vlaneseq
      %v977 = vshrl.u32 %v976, 7
      %v978 = vsub.s32 0, %v977
      %v979 = vrot.slane %v974, %v978
      %v981 = vadd.f32 %v936, %v979
      %v982 = vadd.f32 %v941, %v979
      %v983 = vadd.f32 %v946, %v979
      %v984 = vadd.f32 %v951, %v979
      %v985 = vadd.f32 %v956, %v979
      %v986 = vadd.f32 %v961, %v979
      %v987 = vadd.f32 %v966, %v979
      %v988 = vadd.f32 %v971, %v979
      %v989 = vld [vmem:[%s3] sm:$0xff]
      %v990 = vld [vmem:[%s3 + $0x8] sm:$0xff]
      %v991 = vld [vmem:[%s3 + $0x10] sm:$0xff]
      %v992 = vld [vmem:[%s3 + $0x18] sm:$0xff]
      %v993 = vld [vmem:[%s3 + $0x20] sm:$0xff]
      %v994 = vld [vmem:[%s3 + $0x28] sm:$0xff]
      %v995 = vld [vmem:[%s3 + $0x30] sm:$0xff]
      %v996 = vld [vmem:[%s3 + $0x38] sm:$0xff]
      %v997 = vld [vmem:[%s3 + $0x40] sm:$0xff]
      %998 = vst.msk [vmem:[#allocation2 + $0x10] sm:$0xff] %vm535, %v981
      %999 = vst.msk [vmem:[#allocation2 + $0x18] sm:$0xff] %vm535, %v982
      %1000 = vst.msk [vmem:[#allocation2 + $0x20] sm:$0xff] %vm535, %v983
      %1001 = vst.msk [vmem:[#allocation2 + $0x28] sm:$0xff] %vm535, %v984
      %1002 = vst.msk [vmem:[#allocation2 + $0x30] sm:$0xff] %vm535, %v985
      %1003 = vst.msk [vmem:[#allocation2 + $0x38] sm:$0xff] %vm535, %v986
      %1004 = vst.msk [vmem:[#allocation2 + $0x40] sm:$0xff] %vm535, %v987
      %1005 = vst.msk [vmem:[#allocation2 + $0x48] sm:$0xff] %vm535, %v988
      %v1006 = vld [vmem:[#allocation2 + $0x7] sm:$0xff]
      %v1007 = vld [vmem:[#allocation2 + $0xf] sm:$0xff]
      %v1008 = vld [vmem:[#allocation2 + $0x17] sm:$0xff]
      %v1009 = vld [vmem:[#allocation2 + $0x1f] sm:$0xff]
      %v1010 = vld [vmem:[#allocation2 + $0x27] sm:$0xff]
      %v1011 = vld [vmem:[#allocation2 + $0x2f] sm:$0xff]
      %v1012 = vld [vmem:[#allocation2 + $0x37] sm:$0xff]
      %v1013 = vld [vmem:[#allocation2 + $0x3f] sm:$0xff]
      %v1014 = vmul.f32 %v1006, %v666
      %v1015 = vmul.f32 %v1007, %v667
      %v1016 = vmul.f32 %v1008, %v668
      %v1017 = vmul.f32 %v1009, %v669
      %v1018 = vmul.f32 %v1010, %v670
      %v1019 = vmul.f32 %v1011, %v671
      %v1020 = vmul.f32 %v1012, %v672
      %v1021 = vmul.f32 %v1013, %v673
      %v1022 = vld [vmem:[#allocation2 + $0x8] sm:$0xff]
      %v1023 = vld [vmem:[#allocation2 + $0x10] sm:$0xff]
      %v1024 = vld [vmem:[#allocation2 + $0x18] sm:$0xff]
      %v1025 = vld [vmem:[#allocation2 + $0x20] sm:$0xff]
      %v1026 = vld [vmem:[#allocation2 + $0x28] sm:$0xff]
      %v1027 = vld [vmem:[#allocation2 + $0x30] sm:$0xff]
      %v1028 = vld [vmem:[#allocation2 + $0x38] sm:$0xff]
      %v1029 = vld [vmem:[#allocation2 + $0x40] sm:$0xff]
      %v1030 = vld [vmem:[#allocation2 + $0x9] sm:$0xff]
      %v1031 = vld [vmem:[#allocation2 + $0x11] sm:$0xff]
      %v1032 = vld [vmem:[#allocation2 + $0x19] sm:$0xff]
      %v1033 = vld [vmem:[#allocation2 + $0x21] sm:$0xff]
      %v1034 = vld [vmem:[#allocation2 + $0x29] sm:$0xff]
      %v1035 = vld [vmem:[#allocation2 + $0x31] sm:$0xff]
      %v1036 = vld [vmem:[#allocation2 + $0x39] sm:$0xff]
      %v1037 = vld [vmem:[#allocation2 + $0x41] sm:$0xff]
      %v1038 = vmul.f32 %v1030, %v690
      %v1039 = vmul.f32 %v1031, %v691
      %v1040 = vmul.f32 %v1032, %v692
      %v1041 = vmul.f32 %v1033, %v693
      %v1042 = vmul.f32 %v1034, %v694
      %v1043 = vmul.f32 %v1035, %v695
      %v1044 = vmul.f32 %v1036, %v696
      %v1045 = vmul.f32 %v1037, %v697
      %v1046 = vld [vmem:[#allocation2 + $0x47] sm:$0xff]
      %v1047 = vmul.f32 %v1007, %v666
      %v1048 = vmul.f32 %v1008, %v667
      %v1049 = vmul.f32 %v1009, %v668
      %v1050 = vmul.f32 %v1010, %v669
      %v1051 = vmul.f32 %v1011, %v670
      %v1052 = vmul.f32 %v1012, %v671
      %v1053 = vmul.f32 %v1013, %v672
      %v1054 = vmul.f32 %v1046, %v673
      %v1055 = vld [vmem:[#allocation2 + $0x48] sm:$0xff]
      %v1056 = vld [vmem:[#allocation2 + $0x49] sm:$0xff]
      %v1057 = vmul.f32 %v1031, %v690
      %v1058 = vmul.f32 %v1032, %v691
      %v1059 = vmul.f32 %v1033, %v692
      %v1060 = vmul.f32 %v1034, %v693
      %v1061 = vmul.f32 %v1035, %v694
      %v1062 = vmul.f32 %v1036, %v695
      %v1063 = vmul.f32 %v1037, %v696
      %v1064 = vmul.f32 %v1056, %v697
      %v1065 = vld [vmem:[#allocation2 + $0x4f] sm:$0xff]
      %v1066 = vmul.f32 %v1008, %v666
      %v1067 = vmul.f32 %v1009, %v667
      %v1068 = vmul.f32 %v1010, %v668
      %v1069 = vmul.f32 %v1011, %v669
      %v1070 = vmul.f32 %v1012, %v670
      %v1071 = vmul.f32 %v1013, %v671
      %v1072 = vmul.f32 %v1046, %v672
      %v1073 = vmul.f32 %v1065, %v673
      %v1074 = vld [vmem:[#allocation2 + $0x50] sm:$0xff]
      %v1075 = vld [vmem:[#allocation2 + $0x51] sm:$0xff]
      %v1076 = vmul.f32 %v1032, %v690
      %v1077 = vmul.f32 %v1033, %v691
      %v1078 = vmul.f32 %v1034, %v692
      %v1079 = vmul.f32 %v1035, %v693
      %v1080 = vmul.f32 %v1036, %v694
      %v1081 = vmul.f32 %v1037, %v695
      %v1082 = vmul.f32 %v1056, %v696
      %v1083 = vmul.f32 %v1075, %v697
      %1092 = vrot.lane.b32.xlu0 %v1022, 8
      %v1093 = vpop.permute.xlu0 %1092
      %1094 = vrot.lane.b32.xlu0 %v1023, 8
      %v1095 = vpop.permute.xlu0 %1094
      %1096 = vrot.lane.b32.xlu0 %v1024, 8
      %v1097 = vpop.permute.xlu0 %1096
      %1098 = vrot.lane.b32.xlu0 %v1025, 8
      %v1099 = vpop.permute.xlu0 %1098
      %1100 = vrot.lane.b32.xlu0 %v1026, 8
      %v1101 = vpop.permute.xlu0 %1100
      %1102 = vrot.lane.b32.xlu0 %v1027, 8
      %v1103 = vpop.permute.xlu0 %1102
      %1104 = vrot.lane.b32.xlu0 %v1028, 8
      %v1105 = vpop.permute.xlu0 %1104
      %1106 = vrot.lane.b32.xlu0 %v1029, 8
      %v1107 = vpop.permute.xlu0 %1106
      %1124 = vrot.lane.b32.xlu0 %v1038, 16
      %v1125 = vpop.permute.xlu0 %1124
      %1126 = vrot.lane.b32.xlu0 %v1039, 16
      %v1127 = vpop.permute.xlu0 %1126
      %1128 = vrot.lane.b32.xlu0 %v1040, 16
      %v1129 = vpop.permute.xlu0 %1128
      %1130 = vrot.lane.b32.xlu0 %v1041, 16
      %v1131 = vpop.permute.xlu0 %1130
      %1132 = vrot.lane.b32.xlu0 %v1042, 16
      %v1133 = vpop.permute.xlu0 %1132
      %1134 = vrot.lane.b32.xlu0 %v1043, 16
      %v1135 = vpop.permute.xlu0 %1134
      %1136 = vrot.lane.b32.xlu0 %v1044, 16
      %v1137 = vpop.permute.xlu0 %1136
      %1138 = vrot.lane.b32.xlu0 %v1045, 16
      %v1139 = vpop.permute.xlu0 %1138
      %1156 = vrot.lane.b32.xlu0 %v1047, 24
      %v1157 = vpop.permute.xlu0 %1156
      %1158 = vrot.lane.b32.xlu0 %v1048, 24
      %v1159 = vpop.permute.xlu0 %1158
      %1160 = vrot.lane.b32.xlu0 %v1049, 24
      %v1161 = vpop.permute.xlu0 %1160
      %1162 = vrot.lane.b32.xlu0 %v1050, 24
      %v1163 = vpop.permute.xlu0 %1162
      %1164 = vrot.lane.b32.xlu0 %v1051, 24
      %v1165 = vpop.permute.xlu0 %1164
      %1166 = vrot.lane.b32.xlu0 %v1052, 24
      %v1167 = vpop.permute.xlu0 %1166
      %1168 = vrot.lane.b32.xlu0 %v1053, 24
      %v1169 = vpop.permute.xlu0 %1168
      %1170 = vrot.lane.b32.xlu0 %v1054, 24
      %v1171 = vpop.permute.xlu0 %1170
      %1181 = vrot.lane.b32.xlu0 %v1023, 32
      %v1182 = vpop.permute.xlu0 %1181
      %1183 = vrot.lane.b32.xlu0 %v1024, 32
      %v1184 = vpop.permute.xlu0 %1183
      %1185 = vrot.lane.b32.xlu0 %v1025, 32
      %v1186 = vpop.permute.xlu0 %1185
      %1187 = vrot.lane.b32.xlu0 %v1026, 32
      %v1188 = vpop.permute.xlu0 %1187
      %1189 = vrot.lane.b32.xlu0 %v1027, 32
      %v1190 = vpop.permute.xlu0 %1189
      %1191 = vrot.lane.b32.xlu0 %v1028, 32
      %v1192 = vpop.permute.xlu0 %1191
      %1193 = vrot.lane.b32.xlu0 %v1029, 32
      %v1194 = vpop.permute.xlu0 %1193
      %1195 = vrot.lane.b32.xlu0 %v1055, 32
      %v1196 = vpop.permute.xlu0 %1195
      %1213 = vrot.lane.b32.xlu0 %v1057, 40
      %v1214 = vpop.permute.xlu0 %1213
      %1215 = vrot.lane.b32.xlu0 %v1058, 40
      %v1216 = vpop.permute.xlu0 %1215
      %1217 = vrot.lane.b32.xlu0 %v1059, 40
      %v1218 = vpop.permute.xlu0 %1217
      %1219 = vrot.lane.b32.xlu0 %v1060, 40
      %v1220 = vpop.permute.xlu0 %1219
      %1221 = vrot.lane.b32.xlu0 %v1061, 40
      %v1222 = vpop.permute.xlu0 %1221
      %1223 = vrot.lane.b32.xlu0 %v1062, 40
      %v1224 = vpop.permute.xlu0 %1223
      %1225 = vrot.lane.b32.xlu0 %v1063, 40
      %v1226 = vpop.permute.xlu0 %1225
      %1227 = vrot.lane.b32.xlu0 %v1064, 40
      %v1228 = vpop.permute.xlu0 %1227
      %1245 = vrot.lane.b32.xlu0 %v1066, 48
      %v1246 = vpop.permute.xlu0 %1245
      %1247 = vrot.lane.b32.xlu0 %v1067, 48
      %v1248 = vpop.permute.xlu0 %1247
      %1249 = vrot.lane.b32.xlu0 %v1068, 48
      %v1250 = vpop.permute.xlu0 %1249
      %1251 = vrot.lane.b32.xlu0 %v1069, 48
      %v1252 = vpop.permute.xlu0 %1251
      %1253 = vrot.lane.b32.xlu0 %v1070, 48
      %v1254 = vpop.permute.xlu0 %1253
      %1255 = vrot.lane.b32.xlu0 %v1071, 48
      %v1256 = vpop.permute.xlu0 %1255
      %1257 = vrot.lane.b32.xlu0 %v1072, 48
      %v1258 = vpop.permute.xlu0 %1257
      %1259 = vrot.lane.b32.xlu0 %v1073, 48
      %v1260 = vpop.permute.xlu0 %1259
      %1270 = vrot.lane.b32.xlu0 %v1024, 56
      %v1271 = vpop.permute.xlu0 %1270
      %1272 = vrot.lane.b32.xlu0 %v1025, 56
      %v1273 = vpop.permute.xlu0 %1272
      %1274 = vrot.lane.b32.xlu0 %v1026, 56
      %v1275 = vpop.permute.xlu0 %1274
      %1276 = vrot.lane.b32.xlu0 %v1027, 56
      %v1277 = vpop.permute.xlu0 %1276
      %1278 = vrot.lane.b32.xlu0 %v1028, 56
      %v1279 = vpop.permute.xlu0 %1278
      %1280 = vrot.lane.b32.xlu0 %v1029, 56
      %v1281 = vpop.permute.xlu0 %1280
      %1282 = vrot.lane.b32.xlu0 %v1055, 56
      %v1283 = vpop.permute.xlu0 %1282
      %1284 = vrot.lane.b32.xlu0 %v1074, 56
      %v1285 = vpop.permute.xlu0 %1284
      %1302 = vrot.lane.b32.xlu0 %v1076, 64
      %v1303 = vpop.permute.xlu0 %1302
      %1304 = vrot.lane.b32.xlu0 %v1077, 64
      %v1305 = vpop.permute.xlu0 %1304
      %1306 = vrot.lane.b32.xlu0 %v1078, 64
      %v1307 = vpop.permute.xlu0 %1306
      %1308 = vrot.lane.b32.xlu0 %v1079, 64
      %v1309 = vpop.permute.xlu0 %1308
      %1310 = vrot.lane.b32.xlu0 %v1080, 64
      %v1311 = vpop.permute.xlu0 %1310
      %1312 = vrot.lane.b32.xlu0 %v1081, 64
      %v1313 = vpop.permute.xlu0 %1312
      %1314 = vrot.lane.b32.xlu0 %v1082, 64
      %v1315 = vpop.permute.xlu0 %1314
      %1316 = vrot.lane.b32.xlu0 %v1083, 64
      %v1317 = vpop.permute.xlu0 %1316
      %v1326 = vsel %vm535, %v1014, %v1093
      %v1327 = vsel %vm535, %v1015, %v1095
      %v1328 = vsel %vm535, %v1016, %v1097
      %v1329 = vsel %vm535, %v1017, %v1099
      %v1330 = vsel %vm535, %v1018, %v1101
      %v1331 = vsel %vm535, %v1019, %v1103
      %v1332 = vsel %vm535, %v1020, %v1105
      %v1333 = vsel %vm535, %v1021, %v1107
      %vm1334 = vcmask 130048
      %v1335 = vsel %vm1334, %v1326, %v1125
      %v1336 = vsel %vm1334, %v1327, %v1127
      %v1337 = vsel %vm1334, %v1328, %v1129
      %v1338 = vsel %vm1334, %v1329, %v1131
      %v1339 = vsel %vm1334, %v1330, %v1133
      %v1340 = vsel %vm1334, %v1331, %v1135
      %v1341 = vsel %vm1334, %v1332, %v1137
      %v1342 = vsel %vm1334, %v1333, %v1139
      %vm1343 = vcmask 195584
      %v1344 = vsel %vm1343, %v1335, %v1157
      %v1345 = vsel %vm1343, %v1336, %v1159
      %v1346 = vsel %vm1343, %v1337, %v1161
      %v1347 = vsel %vm1343, %v1338, %v1163
      %v1348 = vsel %vm1343, %v1339, %v1165
      %v1349 = vsel %vm1343, %v1340, %v1167
      %v1350 = vsel %vm1343, %v1341, %v1169
      %v1351 = vsel %vm1343, %v1342, %v1171
      %v1352 = vsel %vm540, %v1344, %v1182
      %v1353 = vsel %vm540, %v1345, %v1184
      %v1354 = vsel %vm540, %v1346, %v1186
      %v1355 = vsel %vm540, %v1347, %v1188
      %v1356 = vsel %vm540, %v1348, %v1190
      %v1357 = vsel %vm540, %v1349, %v1192
      %v1358 = vsel %vm540, %v1350, %v1194
      %v1359 = vsel %vm540, %v1351, %v1196
      %vm1360 = vcmask 326656
      %v1361 = vsel %vm1360, %v1352, %v1214
      %v1362 = vsel %vm1360, %v1353, %v1216
      %v1363 = vsel %vm1360, %v1354, %v1218
      %v1364 = vsel %vm1360, %v1355, %v1220
      %v1365 = vsel %vm1360, %v1356, %v1222
      %v1366 = vsel %vm1360, %v1357, %v1224
      %v1367 = vsel %vm1360, %v1358, %v1226
      %v1368 = vsel %vm1360, %v1359, %v1228
      %vm1369 = vcmask 392192
      %v1370 = vsel %vm1369, %v1361, %v1246
      %v1371 = vsel %vm1369, %v1362, %v1248
      %v1372 = vsel %vm1369, %v1363, %v1250
      %v1373 = vsel %vm1369, %v1364, %v1252
      %v1374 = vsel %vm1369, %v1365, %v1254
      %v1375 = vsel %vm1369, %v1366, %v1256
      %v1376 = vsel %vm1369, %v1367, %v1258
      %v1377 = vsel %vm1369, %v1368, %v1260
      %vm1378 = vcmask 457728
      %v1379 = vsel %vm1378, %v1370, %v1271
      %v1380 = vsel %vm1378, %v1371, %v1273
      %v1381 = vsel %vm1378, %v1372, %v1275
      %v1382 = vsel %vm1378, %v1373, %v1277
      %v1383 = vsel %vm1378, %v1374, %v1279
      %v1384 = vsel %vm1378, %v1375, %v1281
      %v1385 = vsel %vm1378, %v1376, %v1283
      %v1386 = vsel %vm1378, %v1377, %v1285
      %vm1387 = vcmask 523264
      %v1388 = vsel %vm1387, %v1379, %v1303
      %v1389 = vsel %vm1387, %v1380, %v1305
      %v1390 = vsel %vm1387, %v1381, %v1307
      %v1391 = vsel %vm1387, %v1382, %v1309
      %v1392 = vsel %vm1387, %v1383, %v1311
      %v1393 = vsel %vm1387, %v1384, %v1313
      %v1394 = vsel %vm1387, %v1385, %v1315
      %v1395 = vsel %vm1387, %v1386, %v1317
      %v1396 = vld [vmem:[%s4] sm:$0x1]
      %v1398 = vlaneseq
      %v1399 = vshrl.u32 %v1398, 7
      %v1400 = vsub.s32 0, %v1399
      %v1401 = vrot.slane %v1396, %v1400
      %vm1403 = vcmask 588800
      %v1405 = vsel %vm1403, %v1388, 0
      %v1408 = vsel %vm1403, %v1389, 0
      %v1411 = vsel %vm1403, %v1390, 0
      %v1414 = vsel %vm1403, %v1391, 0
      %v1417 = vsel %vm1403, %v1392, 0
      %v1420 = vsel %vm1403, %v1393, 0
      %v1423 = vsel %vm1403, %v1394, 0
      %v1426 = vsel %vm1403, %v1395, 0
      %1428 = vmatprep.subr.mxu0 0.0
      %1429 = vmatpush1.msra.mxu0 0.0
      %1430 = vmatprep.subr.mxu0 0.0
      %1431 = vmatpush1.msra.mxu0 0.0
      %1432 = vmatprep.subr.mxu0 0.0
      %1433 = vmatpush1.msra.mxu0 0.0
      %1434 = vmatprep.subr.mxu0 0.0
      %1435 = vmatpush1.msra.mxu0 0.0
      %1436 = vmatprep.subr.mxu0 0.0
      %1437 = vmatpush1.msra.mxu0 0.0
      %1438 = vmatprep.subr.mxu0 0.0
      %1439 = vmatpush1.msra.mxu0 0.0
      %1440 = vmatprep.subr.mxu0 0.0
      %1441 = vmatpush1.msra.mxu0 0.0
      %1442 = vmatprep.subr.mxu0 0.0
      %1443 = vmatpush1.msra.mxu0 %v997
      %1444 = vmatprep.subr.mxu0 0.0
      %1445 = vmatpush1.msra.mxu0 %v996
      %1446 = vmatprep.subr.mxu0 0.0
      %1447 = vmatpush1.msra.mxu0 %v995
      %1448 = vmatprep.subr.mxu0 0.0
      %1449 = vmatpush1.msra.mxu0 %v994
      %1450 = vmatprep.subr.mxu0 0.0
      %1451 = vmatpush1.msra.mxu0 %v993
      %1452 = vmatprep.subr.mxu0 0.0
      %1453 = vmatpush1.msra.mxu0 %v992
      %1454 = vmatprep.subr.mxu0 0.0
      %1455 = vmatpush1.msra.mxu0 %v991
      %1456 = vmatprep.subr.mxu0 0.0
      %1457 = vmatpush1.msra.mxu0 %v990
      %1458 = vmatprep.subr.mxu0 0.0
      %1459 = vmatpush1.msra.mxu0 %v989
      %1460 = vmatprep.subr.mxu0 0.0
      %1461 = vmatpush2.msra.mxu0 0.0
      %1462 = vmatprep.subr.mxu0 0.0
      %1463 = vmatpush2.msra.mxu0 0.0
      %1464 = vmatprep.subr.mxu0 0.0
      %1465 = vmatpush2.msra.mxu0 0.0
      %1466 = vmatprep.subr.mxu0 0.0
      %1467 = vmatpush2.msra.mxu0 0.0
      %1468 = vmatprep.subr.mxu0 0.0
      %1469 = vmatpush2.msra.mxu0 0.0
      %1470 = vmatprep.subr.mxu0 0.0
      %1471 = vmatpush2.msra.mxu0 0.0
      %1472 = vmatprep.subr.mxu0 0.0
      %1473 = vmatpush2.msra.mxu0 0.0
      %1474 = vmatprep.subr.mxu0 0.0
      %1475 = vmatpush2.msra.mxu0 0.0
      %1476 = vmatprep.subr.mxu0 0.0
      %1477 = vmatpush2.msra.mxu0 0.0
      %1478 = vmatprep.subr.mxu0 0.0
      %1479 = vmatpush2.msra.mxu0 0.0
      %1480 = vmatprep.subr.mxu0 0.0
      %1481 = vmatpush2.msra.mxu0 0.0
      %1482 = vmatprep.subr.mxu0 0.0
      %1483 = vmatpush2.msra.mxu0 0.0
      %1484 = vmatprep.subr.mxu0 0.0
      %1485 = vmatpush2.msra.mxu0 0.0
      %1486 = vmatprep.subr.mxu0 0.0
      %1487 = vmatpush2.msra.mxu0 0.0
      %1488 = vmatprep.subr.mxu0 0.0
      %1489 = vmatpush2.msra.mxu0 0.0
      %1490 = vmatprep.subr.mxu0 0.0
      %1491 = vmatpush2.msra.mxu0 0.0
      %1492 = vmatprep.mubr.f32.mxu0 0.0
      %1493 = vmatmul.mubr.f32.gmra.mxu0 %v1405
      %v1494 = vpop.f32.mrf.mxu0
      %v1495 = vadd.f32 %v1401, %v1494
      %v1496 = vpop.f32.mrf.mxu0
      %1497 = vmatprep.mubr.f32.mxu0 0.0
      %1498 = vmatmul.mubr.f32.gmra.mxu0 %v1408
      %v1499 = vpop.f32.mrf.mxu0
      %v1500 = vadd.f32 %v1401, %v1499
      %v1501 = vpop.f32.mrf.mxu0
      %1502 = vmatprep.mubr.f32.mxu0 0.0
      %1503 = vmatmul.mubr.f32.gmra.mxu0 %v1411
      %v1504 = vpop.f32.mrf.mxu0
      %v1505 = vadd.f32 %v1401, %v1504
      %v1506 = vpop.f32.mrf.mxu0
      %1507 = vmatprep.mubr.f32.mxu0 0.0
      %1508 = vmatmul.mubr.f32.gmra.mxu0 %v1414
      %v1509 = vpop.f32.mrf.mxu0
      %v1510 = vadd.f32 %v1401, %v1509
      %v1511 = vpop.f32.mrf.mxu0
      %1512 = vmatprep.mubr.f32.mxu0 0.0
      %1513 = vmatmul.mubr.f32.gmra.mxu0 %v1417
      %v1514 = vpop.f32.mrf.mxu0
      %v1515 = vadd.f32 %v1401, %v1514
      %v1516 = vpop.f32.mrf.mxu0
      %1517 = vmatprep.mubr.f32.mxu0 0.0
      %1518 = vmatmul.mubr.f32.gmra.mxu0 %v1420
      %v1519 = vpop.f32.mrf.mxu0
      %v1520 = vadd.f32 %v1401, %v1519
      %v1521 = vpop.f32.mrf.mxu0
      %1522 = vmatprep.mubr.f32.mxu0 0.0
      %1523 = vmatmul.mubr.f32.gmra.mxu0 %v1423
      %v1524 = vpop.f32.mrf.mxu0
      %v1525 = vadd.f32 %v1401, %v1524
      %v1526 = vpop.f32.mrf.mxu0
      %1527 = vmatprep.mubr.f32.mxu0 0.0
      %1528 = vmatmul.mubr.f32.gmra.mxu0 %v1426
      %v1529 = vpop.f32.mrf.mxu0
      %v1530 = vadd.f32 %v1401, %v1529
      %v1531 = vpop.f32.mrf.mxu0
      %1532 = vdwg.mxu0
      %v1533 = vld [vmem:[%s5] sm:$0x1]
      %v1535 = vlaneseq
      %v1536 = vshrl.u32 %v1535, 7
      %v1537 = vsub.s32 0, %v1536
      %v1538 = vrot.slane %v1533, %v1537
      %v1540 = vmul.f32 %v1495, %v1538
      %v1541 = vmul.f32 %v1500, %v1538
      %v1542 = vmul.f32 %v1505, %v1538
      %v1543 = vmul.f32 %v1510, %v1538
      %v1544 = vmul.f32 %v1515, %v1538
      %v1545 = vmul.f32 %v1520, %v1538
      %v1546 = vmul.f32 %v1525, %v1538
      %v1547 = vmul.f32 %v1530, %v1538
      %v1548 = vmax.f32 %v1540, 0.0
      %v1549 = vmax.f32 %v1541, 0.0
      %v1550 = vmax.f32 %v1542, 0.0
      %v1551 = vmax.f32 %v1543, 0.0
      %v1552 = vmax.f32 %v1544, 0.0
      %v1553 = vmax.f32 %v1545, 0.0
      %v1554 = vmax.f32 %v1546, 0.0
      %v1555 = vmax.f32 %v1547, 0.0
      %v1556 = vld [vmem:[%s6] sm:$0xff]
      %v1557 = vld [vmem:[%s6 + $0x8] sm:$0xff]
      %v1558 = vld [vmem:[%s6 + $0x10] sm:$0xff]
      %v1559 = vld [vmem:[%s6 + $0x18] sm:$0xff]
      %v1560 = vld [vmem:[%s7] sm:$0x1]
      %v1562 = vlaneseq
      %v1563 = vshrl.u32 %v1562, 7
      %v1564 = vsub.s32 0, %v1563
      %v1565 = vrot.slane %v1560, %v1564
      %v1568 = vsel %vm540, %v1548, 0
      %v1571 = vsel %vm540, %v1549, 0
      %v1574 = vsel %vm540, %v1550, 0
      %v1577 = vsel %vm540, %v1551, 0
      %v1580 = vsel %vm540, %v1552, 0
      %v1583 = vsel %vm540, %v1553, 0
      %v1586 = vsel %vm540, %v1554, 0
      %v1589 = vsel %vm540, %v1555, 0
      %1591 = vmatprep.subr.mxu0 0.0
      %1592 = vmatpush1.msra.mxu0 0.0
      %1593 = vmatprep.subr.mxu0 0.0
      %1594 = vmatpush1.msra.mxu0 0.0
      %1595 = vmatprep.subr.mxu0 0.0
      %1596 = vmatpush1.msra.mxu0 0.0
      %1597 = vmatprep.subr.mxu0 0.0
      %1598 = vmatpush1.msra.mxu0 0.0
      %1599 = vmatprep.subr.mxu0 0.0
      %1600 = vmatpush1.msra.mxu0 0.0
      %1601 = vmatprep.subr.mxu0 0.0
      %1602 = vmatpush1.msra.mxu0 0.0
      %1603 = vmatprep.subr.mxu0 0.0
      %1604 = vmatpush1.msra.mxu0 0.0
      %1605 = vmatprep.subr.mxu0 0.0
      %1606 = vmatpush1.msra.mxu0 0.0
      %1607 = vmatprep.subr.mxu0 0.0
      %1608 = vmatpush1.msra.mxu0 0.0
      %1609 = vmatprep.subr.mxu0 0.0
      %1610 = vmatpush1.msra.mxu0 0.0
      %1611 = vmatprep.subr.mxu0 0.0
      %1612 = vmatpush1.msra.mxu0 0.0
      %1613 = vmatprep.subr.mxu0 0.0
      %1614 = vmatpush1.msra.mxu0 0.0
      %1615 = vmatprep.subr.mxu0 0.0
      %1616 = vmatpush1.msra.mxu0 %v1559
      %1617 = vmatprep.subr.mxu0 0.0
      %1618 = vmatpush1.msra.mxu0 %v1558
      %1619 = vmatprep.subr.mxu0 0.0
      %1620 = vmatpush1.msra.mxu0 %v1557
      %1621 = vmatprep.subr.mxu0 0.0
      %1622 = vmatpush1.msra.mxu0 %v1556
      %1623 = vmatprep.subr.mxu0 0.0
      %1624 = vmatpush2.msra.mxu0 0.0
      %1625 = vmatprep.subr.mxu0 0.0
      %1626 = vmatpush2.msra.mxu0 0.0
      %1627 = vmatprep.subr.mxu0 0.0
      %1628 = vmatpush2.msra.mxu0 0.0
      %1629 = vmatprep.subr.mxu0 0.0
      %1630 = vmatpush2.msra.mxu0 0.0
      %1631 = vmatprep.subr.mxu0 0.0
      %1632 = vmatpush2.msra.mxu0 0.0
      %1633 = vmatprep.subr.mxu0 0.0
      %1634 = vmatpush2.msra.mxu0 0.0
      %1635 = vmatprep.subr.mxu0 0.0
      %1636 = vmatpush2.msra.mxu0 0.0
      %1637 = vmatprep.subr.mxu0 0.0
      %1638 = vmatpush2.msra.mxu0 0.0
      %1639 = vmatprep.subr.mxu0 0.0
      %1640 = vmatpush2.msra.mxu0 0.0
      %1641 = vmatprep.subr.mxu0 0.0
      %1642 = vmatpush2.msra.mxu0 0.0
      %1643 = vmatprep.subr.mxu0 0.0
      %1644 = vmatpush2.msra.mxu0 0.0
      %1645 = vmatprep.subr.mxu0 0.0
      %1646 = vmatpush2.msra.mxu0 0.0
      %1647 = vmatprep.subr.mxu0 0.0
      %1648 = vmatpush2.msra.mxu0 0.0
      %1649 = vmatprep.subr.mxu0 0.0
      %1650 = vmatpush2.msra.mxu0 0.0
      %1651 = vmatprep.subr.mxu0 0.0
      %1652 = vmatpush2.msra.mxu0 0.0
      %1653 = vmatprep.subr.mxu0 0.0
      %1654 = vmatpush2.msra.mxu0 0.0
      %1655 = vmatprep.mubr.f32.mxu0 0.0
      %1656 = vmatmul.mubr.f32.gmra.mxu0 %v1568
      %v1657 = vpop.f32.mrf.mxu0
      %v1658 = vadd.f32 %v1565, %v1657
      %v1659 = vpop.f32.mrf.mxu0
      %1660 = vmatprep.mubr.f32.mxu0 0.0
      %1661 = vmatmul.mubr.f32.gmra.mxu0 %v1571
      %v1662 = vpop.f32.mrf.mxu0
      %v1663 = vadd.f32 %v1565, %v1662
      %v1664 = vpop.f32.mrf.mxu0
      %1665 = vmatprep.mubr.f32.mxu0 0.0
      %1666 = vmatmul.mubr.f32.gmra.mxu0 %v1574
      %v1667 = vpop.f32.mrf.mxu0
      %v1668 = vadd.f32 %v1565, %v1667
      %v1669 = vpop.f32.mrf.mxu0
      %1670 = vmatprep.mubr.f32.mxu0 0.0
      %1671 = vmatmul.mubr.f32.gmra.mxu0 %v1577
      %v1672 = vpop.f32.mrf.mxu0
      %v1673 = vadd.f32 %v1565, %v1672
      %v1674 = vpop.f32.mrf.mxu0
      %1675 = vmatprep.mubr.f32.mxu0 0.0
      %1676 = vmatmul.mubr.f32.gmra.mxu0 %v1580
      %v1677 = vpop.f32.mrf.mxu0
      %v1678 = vadd.f32 %v1565, %v1677
      %v1679 = vpop.f32.mrf.mxu0
      %1680 = vmatprep.mubr.f32.mxu0 0.0
      %1681 = vmatmul.mubr.f32.gmra.mxu0 %v1583
      %v1682 = vpop.f32.mrf.mxu0
      %v1683 = vadd.f32 %v1565, %v1682
      %v1684 = vpop.f32.mrf.mxu0
      %1685 = vmatprep.mubr.f32.mxu0 0.0
      %1686 = vmatmul.mubr.f32.gmra.mxu0 %v1586
      %v1687 = vpop.f32.mrf.mxu0
      %v1688 = vadd.f32 %v1565, %v1687
      %v1689 = vpop.f32.mrf.mxu0
      %1690 = vmatprep.mubr.f32.mxu0 0.0
      %1691 = vmatmul.mubr.f32.gmra.mxu0 %v1589
      %v1692 = vpop.f32.mrf.mxu0
      %v1693 = vadd.f32 %v1565, %v1692
      %v1694 = vpop.f32.mrf.mxu0
      %1695 = vdwg.mxu0
      %v1696 = vld [vmem:[%s8] sm:$0x1]
      %v1698 = vlaneseq
      %v1699 = vshrl.u32 %v1698, 7
      %v1700 = vsub.s32 0, %v1699
      %v1701 = vrot.slane %v1696, %v1700
      %v1703 = vmul.f32 %v1658, %v1701
      %v1704 = vmul.f32 %v1663, %v1701
      %v1705 = vmul.f32 %v1668, %v1701
      %v1706 = vmul.f32 %v1673, %v1701
      %v1707 = vmul.f32 %v1678, %v1701
      %v1708 = vmul.f32 %v1683, %v1701
      %v1709 = vmul.f32 %v1688, %v1701
      %v1710 = vmul.f32 %v1693, %v1701
      %v1711 = vmax.f32 %v1703, 0.0
      %v1712 = vmax.f32 %v1704, 0.0
      %v1713 = vmax.f32 %v1705, 0.0
      %v1714 = vmax.f32 %v1706, 0.0
      %v1715 = vmax.f32 %v1707, 0.0
      %v1716 = vmax.f32 %v1708, 0.0
      %v1717 = vmax.f32 %v1709, 0.0
      %v1718 = vmax.f32 %v1710, 0.0
      %v1719 = vld [vmem:[%s9] sm:$0xff]
      %v1720 = vld [vmem:[%s9 + $0x8] sm:$0xff]
      %v1721 = vld [vmem:[%s9 + $0x10] sm:$0xff]
      %v1722 = vld [vmem:[%s9 + $0x18] sm:$0xff]
      %v1723 = vld [vmem:[%s9 + $0x20] sm:$0xff]
      %v1724 = vld [vmem:[%s9 + $0x28] sm:$0xff]
      %v1725 = vld [vmem:[%s9 + $0x30] sm:$0xff]
      %v1726 = vld [vmem:[%s9 + $0x38] sm:$0xff]
      %v1727 = vld [vmem:[%s9 + $0x40] sm:$0xff]
      %v1728 = vld [vmem:[%s9 + $0x48] sm:$0xff]
      %v1729 = vld [vmem:[%s9 + $0x50] sm:$0xff]
      %v1730 = vld [vmem:[%s9 + $0x58] sm:$0xff]
      %v1731 = vld [vmem:[%s9 + $0x60] sm:$0xff]
      %v1732 = vld [vmem:[%s9 + $0x68] sm:$0xff]
      %v1733 = vld [vmem:[%s9 + $0x70] sm:$0xff]
      %v1734 = vld [vmem:[%s9 + $0x78] sm:$0xff]
      %v1735 = vld [vmem:[%s9 + $0x80] sm:$0xff]
      %v1736 = vld [vmem:[%s9 + $0x88] sm:$0xff]
      %v1737 = vld [vmem:[%s9 + $0x90] sm:$0xff]
      %v1738 = vld [vmem:[%s9 + $0x98] sm:$0xff]
      %v1739 = vld [vmem:[%s9 + $0xa0] sm:$0xff]
      %v1740 = vld [vmem:[%s9 + $0xa8] sm:$0xff]
      %v1741 = vld [vmem:[%s9 + $0xb0] sm:$0xff]
      %v1742 = vld [vmem:[%s9 + $0xb8] sm:$0xff]
      %v1743 = vld [vmem:[%s9 + $0xc0] sm:$0xff]
      %v1744 = vld [vmem:[%s9 + $0xc8] sm:$0xff]
      %v1745 = vld [vmem:[%s9 + $0xd0] sm:$0xff]
      %v1746 = vld [vmem:[%s9 + $0xd8] sm:$0xff]
      %v1747 = vld [vmem:[%s9 + $0xe0] sm:$0xff]
      %v1748 = vld [vmem:[%s9 + $0xe8] sm:$0xff]
      %v1749 = vld [vmem:[%s9 + $0xf0] sm:$0xff]
      %v1750 = vld [vmem:[%s9 + $0xf8] sm:$0xff]
      %v1751 = vld [vmem:[%s9 + $0x100] sm:$0xff]
      %v1752 = vld [vmem:[%s9 + $0x108] sm:$0xff]
      %v1753 = vld [vmem:[%s9 + $0x110] sm:$0xff]
      %v1754 = vld [vmem:[%s9 + $0x118] sm:$0xff]
      %1755 = vst.msk [vmem:[#allocation3 + $0x10] sm:$0xff] %vm540, %v1711
      %1756 = vst.msk [vmem:[#allocation3 + $0x18] sm:$0xff] %vm540, %v1712
      %1757 = vst.msk [vmem:[#allocation3 + $0x20] sm:$0xff] %vm540, %v1713
      %1758 = vst.msk [vmem:[#allocation3 + $0x28] sm:$0xff] %vm540, %v1714
      %1759 = vst.msk [vmem:[#allocation3 + $0x30] sm:$0xff] %vm540, %v1715
      %1760 = vst.msk [vmem:[#allocation3 + $0x38] sm:$0xff] %vm540, %v1716
      %1761 = vst.msk [vmem:[#allocation3 + $0x40] sm:$0xff] %vm540, %v1717
      %1762 = vst.msk [vmem:[#allocation3 + $0x48] sm:$0xff] %vm540, %v1718
      %v1763 = vld [vmem:[#allocation3 + $0x7] sm:$0xff]
      %v1764 = vld [vmem:[#allocation3 + $0xf] sm:$0xff]
      %v1765 = vld [vmem:[#allocation3 + $0x17] sm:$0xff]
      %v1766 = vld [vmem:[#allocation3 + $0x1f] sm:$0xff]
      %v1767 = vld [vmem:[#allocation3 + $0x27] sm:$0xff]
      %v1768 = vld [vmem:[#allocation3 + $0x2f] sm:$0xff]
      %v1769 = vld [vmem:[#allocation3 + $0x37] sm:$0xff]
      %v1770 = vld [vmem:[#allocation3 + $0x3f] sm:$0xff]
      %v1771 = vmul.f32 %v1763, %v666
      %v1772 = vmul.f32 %v1764, %v667
      %v1773 = vmul.f32 %v1765, %v668
      %v1774 = vmul.f32 %v1766, %v669
      %v1775 = vmul.f32 %v1767, %v670
      %v1776 = vmul.f32 %v1768, %v671
      %v1777 = vmul.f32 %v1769, %v672
      %v1778 = vmul.f32 %v1770, %v673
      %v1779 = vld [vmem:[#allocation3 + $0x8] sm:$0xff]
      %v1780 = vld [vmem:[#allocation3 + $0x10] sm:$0xff]
      %v1781 = vld [vmem:[#allocation3 + $0x18] sm:$0xff]
      %v1782 = vld [vmem:[#allocation3 + $0x20] sm:$0xff]
      %v1783 = vld [vmem:[#allocation3 + $0x28] sm:$0xff]
      %v1784 = vld [vmem:[#allocation3 + $0x30] sm:$0xff]
      %v1785 = vld [vmem:[#allocation3 + $0x38] sm:$0xff]
      %v1786 = vld [vmem:[#allocation3 + $0x40] sm:$0xff]
      %v1787 = vld [vmem:[#allocation3 + $0x9] sm:$0xff]
      %v1788 = vld [vmem:[#allocation3 + $0x11] sm:$0xff]
      %v1789 = vld [vmem:[#allocation3 + $0x19] sm:$0xff]
      %v1790 = vld [vmem:[#allocation3 + $0x21] sm:$0xff]
      %v1791 = vld [vmem:[#allocation3 + $0x29] sm:$0xff]
      %v1792 = vld [vmem:[#allocation3 + $0x31] sm:$0xff]
      %v1793 = vld [vmem:[#allocation3 + $0x39] sm:$0xff]
      %v1794 = vld [vmem:[#allocation3 + $0x41] sm:$0xff]
      %v1795 = vmul.f32 %v1787, %v690
      %v1796 = vmul.f32 %v1788, %v691
      %v1797 = vmul.f32 %v1789, %v692
      %v1798 = vmul.f32 %v1790, %v693
      %v1799 = vmul.f32 %v1791, %v694
      %v1800 = vmul.f32 %v1792, %v695
      %v1801 = vmul.f32 %v1793, %v696
      %v1802 = vmul.f32 %v1794, %v697
      %v1803 = vld [vmem:[#allocation3 + $0x47] sm:$0xff]
      %v1804 = vmul.f32 %v1764, %v666
      %v1805 = vmul.f32 %v1765, %v667
      %v1806 = vmul.f32 %v1766, %v668
      %v1807 = vmul.f32 %v1767, %v669
      %v1808 = vmul.f32 %v1768, %v670
      %v1809 = vmul.f32 %v1769, %v671
      %v1810 = vmul.f32 %v1770, %v672
      %v1811 = vmul.f32 %v1803, %v673
      %v1812 = vld [vmem:[#allocation3 + $0x48] sm:$0xff]
      %v1813 = vld [vmem:[#allocation3 + $0x49] sm:$0xff]
      %v1814 = vmul.f32 %v1788, %v690
      %v1815 = vmul.f32 %v1789, %v691
      %v1816 = vmul.f32 %v1790, %v692
      %v1817 = vmul.f32 %v1791, %v693
      %v1818 = vmul.f32 %v1792, %v694
      %v1819 = vmul.f32 %v1793, %v695
      %v1820 = vmul.f32 %v1794, %v696
      %v1821 = vmul.f32 %v1813, %v697
      %v1822 = vld [vmem:[#allocation3 + $0x4f] sm:$0xff]
      %v1823 = vmul.f32 %v1765, %v666
      %v1824 = vmul.f32 %v1766, %v667
      %v1825 = vmul.f32 %v1767, %v668
      %v1826 = vmul.f32 %v1768, %v669
      %v1827 = vmul.f32 %v1769, %v670
      %v1828 = vmul.f32 %v1770, %v671
      %v1829 = vmul.f32 %v1803, %v672
      %v1830 = vmul.f32 %v1822, %v673
      %v1831 = vld [vmem:[#allocation3 + $0x50] sm:$0xff]
      %v1832 = vld [vmem:[#allocation3 + $0x51] sm:$0xff]
      %v1833 = vmul.f32 %v1789, %v690
      %v1834 = vmul.f32 %v1790, %v691
      %v1835 = vmul.f32 %v1791, %v692
      %v1836 = vmul.f32 %v1792, %v693
      %v1837 = vmul.f32 %v1793, %v694
      %v1838 = vmul.f32 %v1794, %v695
      %v1839 = vmul.f32 %v1813, %v696
      %v1840 = vmul.f32 %v1832, %v697
      %1849 = vrot.lane.b32.xlu0 %v1779, 32
      %v1850 = vpop.permute.xlu0 %1849
      %1851 = vrot.lane.b32.xlu0 %v1780, 32
      %v1852 = vpop.permute.xlu0 %1851
      %1853 = vrot.lane.b32.xlu0 %v1781, 32
      %v1854 = vpop.permute.xlu0 %1853
      %1855 = vrot.lane.b32.xlu0 %v1782, 32
      %v1856 = vpop.permute.xlu0 %1855
      %1857 = vrot.lane.b32.xlu0 %v1783, 32
      %v1858 = vpop.permute.xlu0 %1857
      %1859 = vrot.lane.b32.xlu0 %v1784, 32
      %v1860 = vpop.permute.xlu0 %1859
      %1861 = vrot.lane.b32.xlu0 %v1785, 32
      %v1862 = vpop.permute.xlu0 %1861
      %1863 = vrot.lane.b32.xlu0 %v1786, 32
      %v1864 = vpop.permute.xlu0 %1863
      %1881 = vrot.lane.b32.xlu0 %v1795, 64
      %v1882 = vpop.permute.xlu0 %1881
      %1883 = vrot.lane.b32.xlu0 %v1796, 64
      %v1884 = vpop.permute.xlu0 %1883
      %1885 = vrot.lane.b32.xlu0 %v1797, 64
      %v1886 = vpop.permute.xlu0 %1885
      %1887 = vrot.lane.b32.xlu0 %v1798, 64
      %v1888 = vpop.permute.xlu0 %1887
      %1889 = vrot.lane.b32.xlu0 %v1799, 64
      %v1890 = vpop.permute.xlu0 %1889
      %1891 = vrot.lane.b32.xlu0 %v1800, 64
      %v1892 = vpop.permute.xlu0 %1891
      %1893 = vrot.lane.b32.xlu0 %v1801, 64
      %v1894 = vpop.permute.xlu0 %1893
      %1895 = vrot.lane.b32.xlu0 %v1802, 64
      %v1896 = vpop.permute.xlu0 %1895
      %1913 = vrot.lane.b32.xlu0 %v1804, 96
      %v1914 = vpop.permute.xlu0 %1913
      %1915 = vrot.lane.b32.xlu0 %v1805, 96
      %v1916 = vpop.permute.xlu0 %1915
      %1917 = vrot.lane.b32.xlu0 %v1806, 96
      %v1918 = vpop.permute.xlu0 %1917
      %1919 = vrot.lane.b32.xlu0 %v1807, 96
      %v1920 = vpop.permute.xlu0 %1919
      %1921 = vrot.lane.b32.xlu0 %v1808, 96
      %v1922 = vpop.permute.xlu0 %1921
      %1923 = vrot.lane.b32.xlu0 %v1809, 96
      %v1924 = vpop.permute.xlu0 %1923
      %1925 = vrot.lane.b32.xlu0 %v1810, 96
      %v1926 = vpop.permute.xlu0 %1925
      %1927 = vrot.lane.b32.xlu0 %v1811, 96
      %v1928 = vpop.permute.xlu0 %1927
      %1945 = vrot.lane.b32.xlu0 %v1814, 32
      %v1946 = vpop.permute.xlu0 %1945
      %1947 = vrot.lane.b32.xlu0 %v1815, 32
      %v1948 = vpop.permute.xlu0 %1947
      %1949 = vrot.lane.b32.xlu0 %v1816, 32
      %v1950 = vpop.permute.xlu0 %1949
      %1951 = vrot.lane.b32.xlu0 %v1817, 32
      %v1952 = vpop.permute.xlu0 %1951
      %1953 = vrot.lane.b32.xlu0 %v1818, 32
      %v1954 = vpop.permute.xlu0 %1953
      %1955 = vrot.lane.b32.xlu0 %v1819, 32
      %v1956 = vpop.permute.xlu0 %1955
      %1957 = vrot.lane.b32.xlu0 %v1820, 32
      %v1958 = vpop.permute.xlu0 %1957
      %1959 = vrot.lane.b32.xlu0 %v1821, 32
      %v1960 = vpop.permute.xlu0 %1959
      %1977 = vrot.lane.b32.xlu0 %v1823, 64
      %v1978 = vpop.permute.xlu0 %1977
      %1979 = vrot.lane.b32.xlu0 %v1824, 64
      %v1980 = vpop.permute.xlu0 %1979
      %1981 = vrot.lane.b32.xlu0 %v1825, 64
      %v1982 = vpop.permute.xlu0 %1981
      %1983 = vrot.lane.b32.xlu0 %v1826, 64
      %v1984 = vpop.permute.xlu0 %1983
      %1985 = vrot.lane.b32.xlu0 %v1827, 64
      %v1986 = vpop.permute.xlu0 %1985
      %1987 = vrot.lane.b32.xlu0 %v1828, 64
      %v1988 = vpop.permute.xlu0 %1987
      %1989 = vrot.lane.b32.xlu0 %v1829, 64
      %v1990 = vpop.permute.xlu0 %1989
      %1991 = vrot.lane.b32.xlu0 %v1830, 64
      %v1992 = vpop.permute.xlu0 %1991
      %2003 = vrot.lane.b32.xlu0 %v1781, 96
      %v2004 = vpop.permute.xlu0 %2003
      %2005 = vrot.lane.b32.xlu0 %v1782, 96
      %v2006 = vpop.permute.xlu0 %2005
      %2007 = vrot.lane.b32.xlu0 %v1783, 96
      %v2008 = vpop.permute.xlu0 %2007
      %2009 = vrot.lane.b32.xlu0 %v1784, 96
      %v2010 = vpop.permute.xlu0 %2009
      %2011 = vrot.lane.b32.xlu0 %v1785, 96
      %v2012 = vpop.permute.xlu0 %2011
      %2013 = vrot.lane.b32.xlu0 %v1786, 96
      %v2014 = vpop.permute.xlu0 %2013
      %2015 = vrot.lane.b32.xlu0 %v1812, 96
      %v2016 = vpop.permute.xlu0 %2015
      %2017 = vrot.lane.b32.xlu0 %v1831, 96
      %v2018 = vpop.permute.xlu0 %2017
      %v2027 = vsel %vm540, %v1771, %v1850
      %v2028 = vsel %vm540, %v1772, %v1852
      %v2029 = vsel %vm540, %v1773, %v1854
      %v2030 = vsel %vm540, %v1774, %v1856
      %v2031 = vsel %vm540, %v1775, %v1858
      %v2032 = vsel %vm540, %v1776, %v1860
      %v2033 = vsel %vm540, %v1777, %v1862
      %v2034 = vsel %vm540, %v1778, %v1864
      %v2035 = vsel %vm1387, %v2027, %v1882
      %v2036 = vsel %vm1387, %v2028, %v1884
      %v2037 = vsel %vm1387, %v2029, %v1886
      %v2038 = vsel %vm1387, %v2030, %v1888
      %v2039 = vsel %vm1387, %v2031, %v1890
      %v2040 = vsel %vm1387, %v2032, %v1892
      %v2041 = vsel %vm1387, %v2033, %v1894
      %v2042 = vsel %vm1387, %v2034, %v1896
      %vm2043 = vcmask 785408
      %v2044 = vsel %vm2043, %v2035, %v1914
      %v2045 = vsel %vm2043, %v2036, %v1916
      %v2046 = vsel %vm2043, %v2037, %v1918
      %v2047 = vsel %vm2043, %v2038, %v1920
      %v2048 = vsel %vm2043, %v2039, %v1922
      %v2049 = vsel %vm2043, %v2040, %v1924
      %v2050 = vsel %vm2043, %v2041, %v1926
      %v2051 = vsel %vm2043, %v2042, %v1928
      %v2052 = vsel %vm540, %v1780, %v1946
      %v2053 = vsel %vm540, %v1781, %v1948
      %v2054 = vsel %vm540, %v1782, %v1950
      %v2055 = vsel %vm540, %v1783, %v1952
      %v2056 = vsel %vm540, %v1784, %v1954
      %v2057 = vsel %vm540, %v1785, %v1956
      %v2058 = vsel %vm540, %v1786, %v1958
      %v2059 = vsel %vm540, %v1812, %v1960
      %v2060 = vsel %vm1387, %v2052, %v1978
      %v2061 = vsel %vm1387, %v2053, %v1980
      %v2062 = vsel %vm1387, %v2054, %v1982
      %v2063 = vsel %vm1387, %v2055, %v1984
      %v2064 = vsel %vm1387, %v2056, %v1986
      %v2065 = vsel %vm1387, %v2057, %v1988
      %v2066 = vsel %vm1387, %v2058, %v1990
      %v2067 = vsel %vm1387, %v2059, %v1992
      %v2068 = vsel %vm2043, %v2060, %v2004
      %v2069 = vsel %vm2043, %v2061, %v2006
      %v2070 = vsel %vm2043, %v2062, %v2008
      %v2071 = vsel %vm2043, %v2063, %v2010
      %v2072 = vsel %vm2043, %v2064, %v2012
      %v2073 = vsel %vm2043, %v2065, %v2014
      %v2074 = vsel %vm2043, %v2066, %v2016
      %v2075 = vsel %vm2043, %v2067, %v2018
      %v2076 = vld [vmem:[%s10] sm:$0x1]
      %v2078 = vlaneseq
      %v2079 = vshrl.u32 %v2078, 7
      %v2080 = vsub.s32 0, %v2079
      %v2081 = vrot.slane %v2076, %v2080
      %v2084 = vsel %vm540, %v1833, 0
      %v2087 = vsel %vm540, %v1834, 0
      %v2090 = vsel %vm540, %v1835, 0
      %v2093 = vsel %vm540, %v1836, 0
      %v2096 = vsel %vm540, %v1837, 0
      %v2099 = vsel %vm540, %v1838, 0
      %v2102 = vsel %vm540, %v1839, 0
      %v2105 = vsel %vm540, %v1840, 0
      %2107 = vmatprep.subr.mxu0 0.0
      %2108 = vmatpush1.msra.mxu0 %v1734
      %2109 = vmatprep.subr.mxu0 0.0
      %2110 = vmatpush1.msra.mxu0 %v1733
      %2111 = vmatprep.subr.mxu0 0.0
      %2112 = vmatpush1.msra.mxu0 %v1732
      %2113 = vmatprep.subr.mxu0 0.0
      %2114 = vmatpush1.msra.mxu0 %v1731
      %2115 = vmatprep.subr.mxu0 0.0
      %2116 = vmatpush1.msra.mxu0 %v1730
      %2117 = vmatprep.subr.mxu0 0.0
      %2118 = vmatpush1.msra.mxu0 %v1729
      %2119 = vmatprep.subr.mxu0 0.0
      %2120 = vmatpush1.msra.mxu0 %v1728
      %2121 = vmatprep.subr.mxu0 0.0
      %2122 = vmatpush1.msra.mxu0 %v1727
      %2123 = vmatprep.subr.mxu0 0.0
      %2124 = vmatpush1.msra.mxu0 %v1726
      %2125 = vmatprep.subr.mxu0 0.0
      %2126 = vmatpush1.msra.mxu0 %v1725
      %2127 = vmatprep.subr.mxu0 0.0
      %2128 = vmatpush1.msra.mxu0 %v1724
      %2129 = vmatprep.subr.mxu0 0.0
      %2130 = vmatpush1.msra.mxu0 %v1723
      %2131 = vmatprep.subr.mxu0 0.0
      %2132 = vmatpush1.msra.mxu0 %v1722
      %2133 = vmatprep.subr.mxu0 0.0
      %2134 = vmatpush1.msra.mxu0 %v1721
      %2135 = vmatprep.subr.mxu0 0.0
      %2136 = vmatpush1.msra.mxu0 %v1720
      %2137 = vmatprep.subr.mxu0 0.0
      %2138 = vmatpush1.msra.mxu0 %v1719
      %2139 = vmatprep.subr.mxu0 0.0
      %2140 = vmatpush2.msra.mxu0 %v1750
      %2141 = vmatprep.subr.mxu0 0.0
      %2142 = vmatpush2.msra.mxu0 %v1749
      %2143 = vmatprep.subr.mxu0 0.0
      %2144 = vmatpush2.msra.mxu0 %v1748
      %2145 = vmatprep.subr.mxu0 0.0
      %2146 = vmatpush2.msra.mxu0 %v1747
      %2147 = vmatprep.subr.mxu0 0.0
      %2148 = vmatpush2.msra.mxu0 %v1746
      %2149 = vmatprep.subr.mxu0 0.0
      %2150 = vmatpush2.msra.mxu0 %v1745
      %2151 = vmatprep.subr.mxu0 0.0
      %2152 = vmatpush2.msra.mxu0 %v1744
      %2153 = vmatprep.subr.mxu0 0.0
      %2154 = vmatpush2.msra.mxu0 %v1743
      %2155 = vmatprep.subr.mxu0 0.0
      %2156 = vmatpush2.msra.mxu0 %v1742
      %2157 = vmatprep.subr.mxu0 0.0
      %2158 = vmatpush2.msra.mxu0 %v1741
      %2159 = vmatprep.subr.mxu0 0.0
      %2160 = vmatpush2.msra.mxu0 %v1740
      %2161 = vmatprep.subr.mxu0 0.0
      %2162 = vmatpush2.msra.mxu0 %v1739
      %2163 = vmatprep.subr.mxu0 0.0
      %2164 = vmatpush2.msra.mxu0 %v1738
      %2165 = vmatprep.subr.mxu0 0.0
      %2166 = vmatpush2.msra.mxu0 %v1737
      %2167 = vmatprep.subr.mxu0 0.0
      %2168 = vmatpush2.msra.mxu0 %v1736
      %2169 = vmatprep.subr.mxu0 0.0
      %2170 = vmatpush2.msra.mxu0 %v1735
      %2171 = vmatprep.mubr.f32.mxu0 %v2068
      %2172 = vmatmul.mubr.f32.gmra.mxu0 %v2044
      %v2173 = vpop.f32.mrf.mxu0
      %v2174 = vadd.f32 %v2081, %v2173
      %v2175 = vpop.f32.mrf.mxu0
      %2176 = vmatprep.mubr.f32.mxu0 %v2069
      %2177 = vmatmul.mubr.f32.gmra.mxu0 %v2045
      %v2178 = vpop.f32.mrf.mxu0
      %v2179 = vadd.f32 %v2081, %v2178
      %v2180 = vpop.f32.mrf.mxu0
      %2181 = vmatprep.mubr.f32.mxu0 %v2070
      %2182 = vmatmul.mubr.f32.gmra.mxu0 %v2046
      %v2183 = vpop.f32.mrf.mxu0
      %v2184 = vadd.f32 %v2081, %v2183
      %v2185 = vpop.f32.mrf.mxu0
      %2186 = vmatprep.mubr.f32.mxu0 %v2071
      %2187 = vmatmul.mubr.f32.gmra.mxu0 %v2047
      %v2188 = vpop.f32.mrf.mxu0
      %v2189 = vadd.f32 %v2081, %v2188
      %v2190 = vpop.f32.mrf.mxu0
      %2191 = vmatprep.mubr.f32.mxu0 %v2072
      %2192 = vmatmul.mubr.f32.gmra.mxu0 %v2048
      %v2193 = vpop.f32.mrf.mxu0
      %v2194 = vadd.f32 %v2081, %v2193
      %v2195 = vpop.f32.mrf.mxu0
      %2196 = vmatprep.mubr.f32.mxu0 %v2073
      %2197 = vmatmul.mubr.f32.gmra.mxu0 %v2049
      %v2198 = vpop.f32.mrf.mxu0
      %v2199 = vadd.f32 %v2081, %v2198
      %v2200 = vpop.f32.mrf.mxu0
      %2201 = vmatprep.mubr.f32.mxu0 %v2074
      %2202 = vmatmul.mubr.f32.gmra.mxu0 %v2050
      %v2203 = vpop.f32.mrf.mxu0
      %v2204 = vadd.f32 %v2081, %v2203
      %v2205 = vpop.f32.mrf.mxu0
      %2206 = vmatprep.mubr.f32.mxu0 %v2075
      %2207 = vmatmul.mubr.f32.gmra.mxu0 %v2051
      %v2208 = vpop.f32.mrf.mxu0
      %v2209 = vadd.f32 %v2081, %v2208
      %v2210 = vpop.f32.mrf.mxu0
      %2211 = vdwg.mxu0
      %2212 = vmatprep.subr.mxu0 0.0
      %2213 = vmatpush1.msra.mxu0 0.0
      %2214 = vmatprep.subr.mxu0 0.0
      %2215 = vmatpush1.msra.mxu0 0.0
      %2216 = vmatprep.subr.mxu0 0.0
      %2217 = vmatpush1.msra.mxu0 0.0
      %2218 = vmatprep.subr.mxu0 0.0
      %2219 = vmatpush1.msra.mxu0 0.0
      %2220 = vmatprep.subr.mxu0 0.0
      %2221 = vmatpush1.msra.mxu0 0.0
      %2222 = vmatprep.subr.mxu0 0.0
      %2223 = vmatpush1.msra.mxu0 0.0
      %2224 = vmatprep.subr.mxu0 0.0
      %2225 = vmatpush1.msra.mxu0 0.0
      %2226 = vmatprep.subr.mxu0 0.0
      %2227 = vmatpush1.msra.mxu0 0.0
      %2228 = vmatprep.subr.mxu0 0.0
      %2229 = vmatpush1.msra.mxu0 0.0
      %2230 = vmatprep.subr.mxu0 0.0
      %2231 = vmatpush1.msra.mxu0 0.0
      %2232 = vmatprep.subr.mxu0 0.0
      %2233 = vmatpush1.msra.mxu0 0.0
      %2234 = vmatprep.subr.mxu0 0.0
      %2235 = vmatpush1.msra.mxu0 0.0
      %2236 = vmatprep.subr.mxu0 0.0
      %2237 = vmatpush1.msra.mxu0 %v1754
      %2238 = vmatprep.subr.mxu0 0.0
      %2239 = vmatpush1.msra.mxu0 %v1753
      %2240 = vmatprep.subr.mxu0 0.0
      %2241 = vmatpush1.msra.mxu0 %v1752
      %2242 = vmatprep.subr.mxu0 0.0
      %2243 = vmatpush1.msra.mxu0 %v1751
      %2244 = vmatprep.subr.mxu0 0.0
      %2245 = vmatpush2.msra.mxu0 0.0
      %2246 = vmatprep.subr.mxu0 0.0
      %2247 = vmatpush2.msra.mxu0 0.0
      %2248 = vmatprep.subr.mxu0 0.0
      %2249 = vmatpush2.msra.mxu0 0.0
      %2250 = vmatprep.subr.mxu0 0.0
      %2251 = vmatpush2.msra.mxu0 0.0
      %2252 = vmatprep.subr.mxu0 0.0
      %2253 = vmatpush2.msra.mxu0 0.0
      %2254 = vmatprep.subr.mxu0 0.0
      %2255 = vmatpush2.msra.mxu0 0.0
      %2256 = vmatprep.subr.mxu0 0.0
      %2257 = vmatpush2.msra.mxu0 0.0
      %2258 = vmatprep.subr.mxu0 0.0
      %2259 = vmatpush2.msra.mxu0 0.0
      %2260 = vmatprep.subr.mxu0 0.0
      %2261 = vmatpush2.msra.mxu0 0.0
      %2262 = vmatprep.subr.mxu0 0.0
      %2263 = vmatpush2.msra.mxu0 0.0
      %2264 = vmatprep.subr.mxu0 0.0
      %2265 = vmatpush2.msra.mxu0 0.0
      %2266 = vmatprep.subr.mxu0 0.0
      %2267 = vmatpush2.msra.mxu0 0.0
      %2268 = vmatprep.subr.mxu0 0.0
      %2269 = vmatpush2.msra.mxu0 0.0
      %2270 = vmatprep.subr.mxu0 0.0
      %2271 = vmatpush2.msra.mxu0 0.0
      %2272 = vmatprep.subr.mxu0 0.0
      %2273 = vmatpush2.msra.mxu0 0.0
      %2274 = vmatprep.subr.mxu0 0.0
      %2275 = vmatpush2.msra.mxu0 0.0
      %2276 = vmatprep.mubr.f32.mxu0 0.0
      %2277 = vmatmul.mubr.f32.gmra.mxu0 %v2084
      %v2278 = vpop.f32.mrf.mxu0
      %v2279 = vadd.f32 %v2174, %v2278
      %v2280 = vpop.f32.mrf.mxu0
      %2281 = vmatprep.mubr.f32.mxu0 0.0
      %2282 = vmatmul.mubr.f32.gmra.mxu0 %v2087
      %v2283 = vpop.f32.mrf.mxu0
      %v2284 = vadd.f32 %v2179, %v2283
      %v2285 = vpop.f32.mrf.mxu0
      %2286 = vmatprep.mubr.f32.mxu0 0.0
      %2287 = vmatmul.mubr.f32.gmra.mxu0 %v2090
      %v2288 = vpop.f32.mrf.mxu0
      %v2289 = vadd.f32 %v2184, %v2288
      %v2290 = vpop.f32.mrf.mxu0
      %2291 = vmatprep.mubr.f32.mxu0 0.0
      %2292 = vmatmul.mubr.f32.gmra.mxu0 %v2093
      %v2293 = vpop.f32.mrf.mxu0
      %v2294 = vadd.f32 %v2189, %v2293
      %v2295 = vpop.f32.mrf.mxu0
      %2296 = vmatprep.mubr.f32.mxu0 0.0
      %2297 = vmatmul.mubr.f32.gmra.mxu0 %v2096
      %v2298 = vpop.f32.mrf.mxu0
      %v2299 = vadd.f32 %v2194, %v2298
      %v2300 = vpop.f32.mrf.mxu0
      %2301 = vmatprep.mubr.f32.mxu0 0.0
      %2302 = vmatmul.mubr.f32.gmra.mxu0 %v2099
      %v2303 = vpop.f32.mrf.mxu0
      %v2304 = vadd.f32 %v2199, %v2303
      %v2305 = vpop.f32.mrf.mxu0
      %2306 = vmatprep.mubr.f32.mxu0 0.0
      %2307 = vmatmul.mubr.f32.gmra.mxu0 %v2102
      %v2308 = vpop.f32.mrf.mxu0
      %v2309 = vadd.f32 %v2204, %v2308
      %v2310 = vpop.f32.mrf.mxu0
      %2311 = vmatprep.mubr.f32.mxu0 0.0
      %2312 = vmatmul.mubr.f32.gmra.mxu0 %v2105
      %v2313 = vpop.f32.mrf.mxu0
      %v2314 = vadd.f32 %v2209, %v2313
      %v2315 = vpop.f32.mrf.mxu0
      %2316 = vdwg.mxu0
      %v2317 = vld [vmem:[%s11] sm:$0x1]
      %v2319 = vlaneseq
      %v2320 = vshrl.u32 %v2319, 7
      %v2321 = vsub.s32 0, %v2320
      %v2322 = vrot.slane %v2317, %v2321
      %v2324 = vmul.f32 %v2279, %v2322
      %v2325 = vmul.f32 %v2284, %v2322
      %v2326 = vmul.f32 %v2289, %v2322
      %v2327 = vmul.f32 %v2294, %v2322
      %v2328 = vmul.f32 %v2299, %v2322
      %v2329 = vmul.f32 %v2304, %v2322
      %v2330 = vmul.f32 %v2309, %v2322
      %v2331 = vmul.f32 %v2314, %v2322
      %v2332 = vadd.f32 %v2324, 2.0
      %v2333 = vadd.f32 %v2325, 2.0
      %v2334 = vadd.f32 %v2326, 2.0
      %v2335 = vadd.f32 %v2327, 2.0
      %v2336 = vadd.f32 %v2328, 2.0
      %v2337 = vadd.f32 %v2329, 2.0
      %v2338 = vadd.f32 %v2330, 2.0
      %v2339 = vadd.f32 %v2331, 2.0
      %v2340 = vmin.f32 %v2332, 0.0
      %v2341 = vmin.f32 %v2333, 0.0
      %v2342 = vmin.f32 %v2334, 0.0
      %v2343 = vmin.f32 %v2335, 0.0
      %v2344 = vmin.f32 %v2336, 0.0
      %v2345 = vmin.f32 %v2337, 0.0
      %v2346 = vmin.f32 %v2338, 0.0
      %v2347 = vmin.f32 %v2339, 0.0
      %v2348 = vand.u32 2147483647, %v2332
      %v2349 = vand.u32 2147483647, %v2333
      %v2350 = vand.u32 2147483647, %v2334
      %v2351 = vand.u32 2147483647, %v2335
      %v2352 = vand.u32 2147483647, %v2336
      %v2353 = vand.u32 2147483647, %v2337
      %v2354 = vand.u32 2147483647, %v2338
      %v2355 = vand.u32 2147483647, %v2339
      %v2356 = vsub.f32 0.0, %v2348
      %v2357 = vsub.f32 0.0, %v2349
      %v2358 = vsub.f32 0.0, %v2350
      %v2359 = vsub.f32 0.0, %v2351
      %v2360 = vsub.f32 0.0, %v2352
      %v2361 = vsub.f32 0.0, %v2353
      %v2362 = vsub.f32 0.0, %v2354
      %v2363 = vsub.f32 0.0, %v2355
      %v2364 = vmul.f32 %v2356, 1.442695
      %v2365 = vpow.pop %v2364
      %v2366 = vmul.f32 %v2357, 1.442695
      %v2367 = vpow.pop %v2366
      %v2368 = vmul.f32 %v2358, 1.442695
      %v2369 = vpow.pop %v2368
      %v2370 = vmul.f32 %v2359, 1.442695
      %v2371 = vpow.pop %v2370
      %v2372 = vmul.f32 %v2360, 1.442695
      %v2373 = vpow.pop %v2372
      %v2374 = vmul.f32 %v2361, 1.442695
      %v2375 = vpow.pop %v2374
      %v2376 = vmul.f32 %v2362, 1.442695
      %v2377 = vpow.pop %v2376
      %v2378 = vmul.f32 %v2363, 1.442695
      %v2379 = vpow.pop %v2378
      %v2380 = vadd.f32 %v2365, 1.0
      %v2381 = vadd.f32 %v2367, 1.0
      %v2382 = vadd.f32 %v2369, 1.0
      %v2383 = vadd.f32 %v2371, 1.0
      %v2384 = vadd.f32 %v2373, 1.0
      %v2385 = vadd.f32 %v2375, 1.0
      %v2386 = vadd.f32 %v2377, 1.0
      %v2387 = vadd.f32 %v2379, 1.0
      %v2388 = vlog2.pop %v2380
      %v2389 = vmul.f32 %v2388, 0.6931472
      %v2390 = vlog2.pop %v2381
      %v2391 = vmul.f32 %v2390, 0.6931472
      %v2392 = vlog2.pop %v2382
      %v2393 = vmul.f32 %v2392, 0.6931472
      %v2394 = vlog2.pop %v2383
      %v2395 = vmul.f32 %v2394, 0.6931472
      %v2396 = vlog2.pop %v2384
      %v2397 = vmul.f32 %v2396, 0.6931472
      %v2398 = vlog2.pop %v2385
      %v2399 = vmul.f32 %v2398, 0.6931472
      %v2400 = vlog2.pop %v2386
      %v2401 = vmul.f32 %v2400, 0.6931472
      %v2402 = vlog2.pop %v2387
      %v2403 = vmul.f32 %v2402, 0.6931472
      %v2404 = vsub.f32 %v2340, %v2389
      %v2405 = vsub.f32 %v2341, %v2391
      %v2406 = vsub.f32 %v2342, %v2393
      %v2407 = vsub.f32 %v2343, %v2395
      %v2408 = vsub.f32 %v2344, %v2397
      %v2409 = vsub.f32 %v2345, %v2399
      %v2410 = vsub.f32 %v2346, %v2401
      %v2411 = vsub.f32 %v2347, %v2403
      %2420 = vrot.lane.b32.xlu0 %v2324, 8
      %v2421 = vpop.permute.xlu0 %2420
      %2422 = vrot.lane.b32.xlu0 %v2325, 8
      %v2423 = vpop.permute.xlu0 %2422
      %2424 = vrot.lane.b32.xlu0 %v2326, 8
      %v2425 = vpop.permute.xlu0 %2424
      %2426 = vrot.lane.b32.xlu0 %v2327, 8
      %v2427 = vpop.permute.xlu0 %2426
      %2428 = vrot.lane.b32.xlu0 %v2328, 8
      %v2429 = vpop.permute.xlu0 %2428
      %2430 = vrot.lane.b32.xlu0 %v2329, 8
      %v2431 = vpop.permute.xlu0 %2430
      %2432 = vrot.lane.b32.xlu0 %v2330, 8
      %v2433 = vpop.permute.xlu0 %2432
      %2434 = vrot.lane.b32.xlu0 %v2331, 8
      %v2435 = vpop.permute.xlu0 %2434
      %v2444 = vadd.f32 %v981, %v2421
      %v2445 = vadd.f32 %v982, %v2423
      %v2446 = vadd.f32 %v983, %v2425
      %v2447 = vadd.f32 %v984, %v2427
      %v2448 = vadd.f32 %v985, %v2429
      %v2449 = vadd.f32 %v986, %v2431
      %v2450 = vadd.f32 %v987, %v2433
      %v2451 = vadd.f32 %v988, %v2435
      %v2452 = vmul.f32 %v2404, 1.442695
      %v2453 = vpow.pop %v2452
      %v2454 = vmul.f32 %v2405, 1.442695
      %v2455 = vpow.pop %v2454
      %v2456 = vmul.f32 %v2406, 1.442695
      %v2457 = vpow.pop %v2456
      %v2458 = vmul.f32 %v2407, 1.442695
      %v2459 = vpow.pop %v2458
      %v2460 = vmul.f32 %v2408, 1.442695
      %v2461 = vpow.pop %v2460
      %v2462 = vmul.f32 %v2409, 1.442695
      %v2463 = vpow.pop %v2462
      %v2464 = vmul.f32 %v2410, 1.442695
      %v2465 = vpow.pop %v2464
      %v2466 = vmul.f32 %v2411, 1.442695
      %v2467 = vpow.pop %v2466
      %v2468 = vmul.f32 %v2444, %v2453
      %v2469 = vmul.f32 %v2445, %v2455
      %v2470 = vmul.f32 %v2446, %v2457
      %v2471 = vmul.f32 %v2447, %v2459
      %v2472 = vmul.f32 %v2448, %v2461
      %v2473 = vmul.f32 %v2449, %v2463
      %v2474 = vmul.f32 %v2450, %v2465
      %v2475 = vmul.f32 %v2451, %v2467
      %2484 = vrot.lane.b32.xlu0 %v2404, 120
      %v2485 = vpop.permute.xlu0 %2484
      %2486 = vrot.lane.b32.xlu0 %v2405, 120
      %v2487 = vpop.permute.xlu0 %2486
      %2488 = vrot.lane.b32.xlu0 %v2406, 120
      %v2489 = vpop.permute.xlu0 %2488
      %2490 = vrot.lane.b32.xlu0 %v2407, 120
      %v2491 = vpop.permute.xlu0 %2490
      %2492 = vrot.lane.b32.xlu0 %v2408, 120
      %v2493 = vpop.permute.xlu0 %2492
      %2494 = vrot.lane.b32.xlu0 %v2409, 120
      %v2495 = vpop.permute.xlu0 %2494
      %2496 = vrot.lane.b32.xlu0 %v2410, 120
      %v2497 = vpop.permute.xlu0 %2496
      %2498 = vrot.lane.b32.xlu0 %v2411, 120
      %v2499 = vpop.permute.xlu0 %2498
      %v2508 = vsel %vm535, %v2485, 0.0
      %2509 = vadd.xlane.f32.xlu0 %v2508
      %v2510 = vpop.xlane.xlu0 %2509
      %v2511 = vsel %vm535, %v2487, 0.0
      %2512 = vadd.xlane.f32.xlu0 %v2511
      %v2513 = vpop.xlane.xlu0 %2512
      %v2514 = vsel %vm535, %v2489, 0.0
      %2515 = vadd.xlane.f32.xlu0 %v2514
      %v2516 = vpop.xlane.xlu0 %2515
      %v2517 = vsel %vm535, %v2491, 0.0
      %2518 = vadd.xlane.f32.xlu0 %v2517
      %v2519 = vpop.xlane.xlu0 %2518
      %v2520 = vsel %vm535, %v2493, 0.0
      %2521 = vadd.xlane.f32.xlu0 %v2520
      %v2522 = vpop.xlane.xlu0 %2521
      %v2523 = vsel %vm535, %v2495, 0.0
      %2524 = vadd.xlane.f32.xlu0 %v2523
      %v2525 = vpop.xlane.xlu0 %2524
      %v2526 = vsel %vm535, %v2497, 0.0
      %2527 = vadd.xlane.f32.xlu0 %v2526
      %v2528 = vpop.xlane.xlu0 %2527
      %v2529 = vsel %vm535, %v2499, 0.0
      %2530 = vadd.xlane.f32.xlu0 %v2529
      %v2531 = vpop.xlane.xlu0 %2530
      %v2532 = vadd.f32 %v2510, 0.0
      %v2533 = vadd.f32 %v2513, 0.0
      %v2534 = vadd.f32 %v2516, 0.0
      %v2535 = vadd.f32 %v2519, 0.0
      %v2536 = vadd.f32 %v2522, 0.0
      %v2537 = vadd.f32 %v2525, 0.0
      %v2538 = vadd.f32 %v2528, 0.0
      %v2539 = vadd.f32 %v2531, 0.0
      %s2540 = scalar_lea.vmem %s1, 16
      %v2541 = vld [vmem:[%s2540] sm:$0xff]
      %v2542 = vld [vmem:[%s2540 + $0x8] sm:$0xff]
      %2551 = vrot.lane.b32.xlu0 %v2468, 120
      %v2552 = vpop.permute.xlu0 %2551
      %2553 = vrot.lane.b32.xlu0 %v2469, 120
      %v2554 = vpop.permute.xlu0 %2553
      %2555 = vrot.lane.b32.xlu0 %v2470, 120
      %v2556 = vpop.permute.xlu0 %2555
      %2557 = vrot.lane.b32.xlu0 %v2471, 120
      %v2558 = vpop.permute.xlu0 %2557
      %2559 = vrot.lane.b32.xlu0 %v2472, 120
      %v2560 = vpop.permute.xlu0 %2559
      %2561 = vrot.lane.b32.xlu0 %v2473, 120
      %v2562 = vpop.permute.xlu0 %2561
      %2563 = vrot.lane.b32.xlu0 %v2474, 120
      %v2564 = vpop.permute.xlu0 %2563
      %2565 = vrot.lane.b32.xlu0 %v2475, 120
      %v2566 = vpop.permute.xlu0 %2565
      %v2567 = vsel %vm535, %v2552, 0
      %v2569 = vsel %vm535, %v2554, 0
      %v2571 = vsel %vm535, %v2556, 0
      %v2573 = vsel %vm535, %v2558, 0
      %v2575 = vsel %vm535, %v2560, 0
      %v2577 = vsel %vm535, %v2562, 0
      %v2579 = vsel %vm535, %v2564, 0
      %v2581 = vsel %vm535, %v2566, 0
      %2583 = vmatprep.subr.mxu0 0.0
      %2584 = vmatpush1.msra.mxu0 0.0
      %2585 = vmatprep.subr.mxu0 0.0
      %2586 = vmatpush1.msra.mxu0 0.0
      %2587 = vmatprep.subr.mxu0 0.0
      %2588 = vmatpush1.msra.mxu0 0.0
      %2589 = vmatprep.subr.mxu0 0.0
      %2590 = vmatpush1.msra.mxu0 0.0
      %2591 = vmatprep.subr.mxu0 0.0
      %2592 = vmatpush1.msra.mxu0 0.0
      %2593 = vmatprep.subr.mxu0 0.0
      %2594 = vmatpush1.msra.mxu0 0.0
      %2595 = vmatprep.subr.mxu0 0.0
      %2596 = vmatpush1.msra.mxu0 0.0
      %2597 = vmatprep.subr.mxu0 0.0
      %2598 = vmatpush1.msra.mxu0 0.0
      %2599 = vmatprep.subr.mxu0 0.0
      %2600 = vmatpush1.msra.mxu0 0.0
      %2601 = vmatprep.subr.mxu0 0.0
      %2602 = vmatpush1.msra.mxu0 0.0
      %2603 = vmatprep.subr.mxu0 0.0
      %2604 = vmatpush1.msra.mxu0 0.0
      %2605 = vmatprep.subr.mxu0 0.0
      %2606 = vmatpush1.msra.mxu0 0.0
      %2607 = vmatprep.subr.mxu0 0.0
      %2608 = vmatpush1.msra.mxu0 0.0
      %2609 = vmatprep.subr.mxu0 0.0
      %2610 = vmatpush1.msra.mxu0 0.0
      %2611 = vmatprep.subr.mxu0 0.0
      %2612 = vmatpush1.msra.mxu0 0.0
      %2613 = vmatprep.subr.mxu0 0.0
      %2614 = vmatpush1.msra.mxu0 %v2542
      %2615 = vmatprep.subr.mxu0 0.0
      %2616 = vmatpush2.msra.mxu0 0.0
      %2617 = vmatprep.subr.mxu0 0.0
      %2618 = vmatpush2.msra.mxu0 0.0
      %2619 = vmatprep.subr.mxu0 0.0
      %2620 = vmatpush2.msra.mxu0 0.0
      %2621 = vmatprep.subr.mxu0 0.0
      %2622 = vmatpush2.msra.mxu0 0.0
      %2623 = vmatprep.subr.mxu0 0.0
      %2624 = vmatpush2.msra.mxu0 0.0
      %2625 = vmatprep.subr.mxu0 0.0
      %2626 = vmatpush2.msra.mxu0 0.0
      %2627 = vmatprep.subr.mxu0 0.0
      %2628 = vmatpush2.msra.mxu0 0.0
      %2629 = vmatprep.subr.mxu0 0.0
      %2630 = vmatpush2.msra.mxu0 0.0
      %2631 = vmatprep.subr.mxu0 0.0
      %2632 = vmatpush2.msra.mxu0 0.0
      %2633 = vmatprep.subr.mxu0 0.0
      %2634 = vmatpush2.msra.mxu0 0.0
      %2635 = vmatprep.subr.mxu0 0.0
      %2636 = vmatpush2.msra.mxu0 0.0
      %2637 = vmatprep.subr.mxu0 0.0
      %2638 = vmatpush2.msra.mxu0 0.0
      %2639 = vmatprep.subr.mxu0 0.0
      %2640 = vmatpush2.msra.mxu0 0.0
      %2641 = vmatprep.subr.mxu0 0.0
      %2642 = vmatpush2.msra.mxu0 0.0
      %2643 = vmatprep.subr.mxu0 0.0
      %2644 = vmatpush2.msra.mxu0 0.0
      %2645 = vmatprep.subr.mxu0 0.0
      %2646 = vmatpush2.msra.mxu0 0.0
      %2647 = vmatprep.mubr.f32.mxu0 0.0
      %2648 = vmatmul.mubr.f32.gmra.mxu0 %v2567
      %v2649 = vpop.f32.mrf.mxu0
      %v2650 = vadd.f32 0.0, %v2649
      %v2651 = vpop.f32.mrf.mxu0
      %2652 = vmatprep.mubr.f32.mxu0 0.0
      %2653 = vmatmul.mubr.f32.gmra.mxu0 %v2569
      %v2654 = vpop.f32.mrf.mxu0
      %v2655 = vadd.f32 0.0, %v2654
      %v2656 = vpop.f32.mrf.mxu0
      %2657 = vmatprep.mubr.f32.mxu0 0.0
      %2658 = vmatmul.mubr.f32.gmra.mxu0 %v2571
      %v2659 = vpop.f32.mrf.mxu0
      %v2660 = vadd.f32 0.0, %v2659
      %v2661 = vpop.f32.mrf.mxu0
      %2662 = vmatprep.mubr.f32.mxu0 0.0
      %2663 = vmatmul.mubr.f32.gmra.mxu0 %v2573
      %v2664 = vpop.f32.mrf.mxu0
      %v2665 = vadd.f32 0.0, %v2664
      %v2666 = vpop.f32.mrf.mxu0
      %2667 = vmatprep.mubr.f32.mxu0 0.0
      %2668 = vmatmul.mubr.f32.gmra.mxu0 %v2575
      %v2669 = vpop.f32.mrf.mxu0
      %v2670 = vadd.f32 0.0, %v2669
      %v2671 = vpop.f32.mrf.mxu0
      %2672 = vmatprep.mubr.f32.mxu0 0.0
      %2673 = vmatmul.mubr.f32.gmra.mxu0 %v2577
      %v2674 = vpop.f32.mrf.mxu0
      %v2675 = vadd.f32 0.0, %v2674
      %v2676 = vpop.f32.mrf.mxu0
      %2677 = vmatprep.mubr.f32.mxu0 0.0
      %2678 = vmatmul.mubr.f32.gmra.mxu0 %v2579
      %v2679 = vpop.f32.mrf.mxu0
      %v2680 = vadd.f32 0.0, %v2679
      %v2681 = vpop.f32.mrf.mxu0
      %2682 = vmatprep.mubr.f32.mxu0 0.0
      %2683 = vmatmul.mubr.f32.gmra.mxu0 %v2581
      %v2684 = vpop.f32.mrf.mxu0
      %v2685 = vadd.f32 0.0, %v2684
      %v2686 = vpop.f32.mrf.mxu0
      %2687 = vdwg.mxu0
      %v2689 = vsel %vm535, %v981, 0
      %v2692 = vsel %vm535, %v982, 0
      %v2695 = vsel %vm535, %v983, 0
      %v2698 = vsel %vm535, %v984, 0
      %v2701 = vsel %vm535, %v985, 0
      %v2704 = vsel %vm535, %v986, 0
      %v2707 = vsel %vm535, %v987, 0
      %v2710 = vsel %vm535, %v988, 0
      %2712 = vmatprep.subr.mxu0 0.0
      %2713 = vmatpush1.msra.mxu0 0.0
      %2714 = vmatprep.subr.mxu0 0.0
      %2715 = vmatpush1.msra.mxu0 0.0
      %2716 = vmatprep.subr.mxu0 0.0
      %2717 = vmatpush1.msra.mxu0 0.0
      %2718 = vmatprep.subr.mxu0 0.0
      %2719 = vmatpush1.msra.mxu0 0.0
      %2720 = vmatprep.subr.mxu0 0.0
      %2721 = vmatpush1.msra.mxu0 0.0
      %2722 = vmatprep.subr.mxu0 0.0
      %2723 = vmatpush1.msra.mxu0 0.0
      %2724 = vmatprep.subr.mxu0 0.0
      %2725 = vmatpush1.msra.mxu0 0.0
      %2726 = vmatprep.subr.mxu0 0.0
      %2727 = vmatpush1.msra.mxu0 0.0
      %2728 = vmatprep.subr.mxu0 0.0
      %2729 = vmatpush1.msra.mxu0 0.0
      %2730 = vmatprep.subr.mxu0 0.0
      %2731 = vmatpush1.msra.mxu0 0.0
      %2732 = vmatprep.subr.mxu0 0.0
      %2733 = vmatpush1.msra.mxu0 0.0
      %2734 = vmatprep.subr.mxu0 0.0
      %2735 = vmatpush1.msra.mxu0 0.0
      %2736 = vmatprep.subr.mxu0 0.0
      %2737 = vmatpush1.msra.mxu0 0.0
      %2738 = vmatprep.subr.mxu0 0.0
      %2739 = vmatpush1.msra.mxu0 0.0
      %2740 = vmatprep.subr.mxu0 0.0
      %2741 = vmatpush1.msra.mxu0 0.0
      %2742 = vmatprep.subr.mxu0 0.0
      %2743 = vmatpush1.msra.mxu0 %v2541
      %2744 = vmatprep.subr.mxu0 0.0
      %2745 = vmatpush2.msra.mxu0 0.0
      %2746 = vmatprep.subr.mxu0 0.0
      %2747 = vmatpush2.msra.mxu0 0.0
      %2748 = vmatprep.subr.mxu0 0.0
      %2749 = vmatpush2.msra.mxu0 0.0
      %2750 = vmatprep.subr.mxu0 0.0
      %2751 = vmatpush2.msra.mxu0 0.0
      %2752 = vmatprep.subr.mxu0 0.0
      %2753 = vmatpush2.msra.mxu0 0.0
      %2754 = vmatprep.subr.mxu0 0.0
      %2755 = vmatpush2.msra.mxu0 0.0
      %2756 = vmatprep.subr.mxu0 0.0
      %2757 = vmatpush2.msra.mxu0 0.0
      %2758 = vmatprep.subr.mxu0 0.0
      %2759 = vmatpush2.msra.mxu0 0.0
      %2760 = vmatprep.subr.mxu0 0.0
      %2761 = vmatpush2.msra.mxu0 0.0
      %2762 = vmatprep.subr.mxu0 0.0
      %2763 = vmatpush2.msra.mxu0 0.0
      %2764 = vmatprep.subr.mxu0 0.0
      %2765 = vmatpush2.msra.mxu0 0.0
      %2766 = vmatprep.subr.mxu0 0.0
      %2767 = vmatpush2.msra.mxu0 0.0
      %2768 = vmatprep.subr.mxu0 0.0
      %2769 = vmatpush2.msra.mxu0 0.0
      %2770 = vmatprep.subr.mxu0 0.0
      %2771 = vmatpush2.msra.mxu0 0.0
      %2772 = vmatprep.subr.mxu0 0.0
      %2773 = vmatpush2.msra.mxu0 0.0
      %2774 = vmatprep.subr.mxu0 0.0
      %2775 = vmatpush2.msra.mxu0 0.0
      %2776 = vmatprep.mubr.f32.mxu0 0.0
      %2777 = vmatmul.mubr.f32.gmra.mxu0 %v2689
      %v2778 = vpop.f32.mrf.mxu0
      %v2779 = vadd.f32 %v2650, %v2778
      %v2780 = vpop.f32.mrf.mxu0
      %2781 = vmatprep.mubr.f32.mxu0 0.0
      %2782 = vmatmul.mubr.f32.gmra.mxu0 %v2692
      %v2783 = vpop.f32.mrf.mxu0
      %v2784 = vadd.f32 %v2655, %v2783
      %v2785 = vpop.f32.mrf.mxu0
      %2786 = vmatprep.mubr.f32.mxu0 0.0
      %2787 = vmatmul.mubr.f32.gmra.mxu0 %v2695
      %v2788 = vpop.f32.mrf.mxu0
      %v2789 = vadd.f32 %v2660, %v2788
      %v2790 = vpop.f32.mrf.mxu0
      %2791 = vmatprep.mubr.f32.mxu0 0.0
      %2792 = vmatmul.mubr.f32.gmra.mxu0 %v2698
      %v2793 = vpop.f32.mrf.mxu0
      %v2794 = vadd.f32 %v2665, %v2793
      %v2795 = vpop.f32.mrf.mxu0
      %2796 = vmatprep.mubr.f32.mxu0 0.0
      %2797 = vmatmul.mubr.f32.gmra.mxu0 %v2701
      %v2798 = vpop.f32.mrf.mxu0
      %v2799 = vadd.f32 %v2670, %v2798
      %v2800 = vpop.f32.mrf.mxu0
      %2801 = vmatprep.mubr.f32.mxu0 0.0
      %2802 = vmatmul.mubr.f32.gmra.mxu0 %v2704
      %v2803 = vpop.f32.mrf.mxu0
      %v2804 = vadd.f32 %v2675, %v2803
      %v2805 = vpop.f32.mrf.mxu0
      %2806 = vmatprep.mubr.f32.mxu0 0.0
      %2807 = vmatmul.mubr.f32.gmra.mxu0 %v2707
      %v2808 = vpop.f32.mrf.mxu0
      %v2809 = vadd.f32 %v2680, %v2808
      %v2810 = vpop.f32.mrf.mxu0
      %2811 = vmatprep.mubr.f32.mxu0 0.0
      %2812 = vmatmul.mubr.f32.gmra.mxu0 %v2710
      %v2813 = vpop.f32.mrf.mxu0
      %v2814 = vadd.f32 %v2685, %v2813
      %v2815 = vpop.f32.mrf.mxu0
      %2816 = vdwg.mxu0
      %s2817 = scalar_lea.vmem %s2, 1
      %v2818 = vld [vmem:[%s2817] sm:$0x1]
      %v2820 = vlaneseq
      %v2821 = vshrl.u32 %v2820, 7
      %v2822 = vsub.s32 0, %v2821
      %v2823 = vrot.slane %v2818, %v2822
      %v2825 = vadd.f32 %v2779, %v2823
      %v2826 = vadd.f32 %v2784, %v2823
      %v2827 = vadd.f32 %v2789, %v2823
      %v2828 = vadd.f32 %v2794, %v2823
      %v2829 = vadd.f32 %v2799, %v2823
      %v2830 = vadd.f32 %v2804, %v2823
      %v2831 = vadd.f32 %v2809, %v2823
      %v2832 = vadd.f32 %v2814, %v2823
      %s2833 = scalar_lea.vmem %s3, 72
      %v2834 = vld [vmem:[%s2833] sm:$0xff]
      %v2835 = vld [vmem:[%s2833 + $0x8] sm:$0xff]
      %v2836 = vld [vmem:[%s2833 + $0x10] sm:$0xff]
      %v2837 = vld [vmem:[%s2833 + $0x18] sm:$0xff]
      %v2838 = vld [vmem:[%s2833 + $0x20] sm:$0xff]
      %v2839 = vld [vmem:[%s2833 + $0x28] sm:$0xff]
      %v2840 = vld [vmem:[%s2833 + $0x30] sm:$0xff]
      %v2841 = vld [vmem:[%s2833 + $0x38] sm:$0xff]
      %v2842 = vld [vmem:[%s2833 + $0x40] sm:$0xff]
      %2843 = vst.msk [vmem:[#allocation2 + $0x10] sm:$0xff] %vm535, %v2825
      %2844 = vst.msk [vmem:[#allocation2 + $0x18] sm:$0xff] %vm535, %v2826
      %2845 = vst.msk [vmem:[#allocation2 + $0x20] sm:$0xff] %vm535, %v2827
      %2846 = vst.msk [vmem:[#allocation2 + $0x28] sm:$0xff] %vm535, %v2828
      %2847 = vst.msk [vmem:[#allocation2 + $0x30] sm:$0xff] %vm535, %v2829
      %2848 = vst.msk [vmem:[#allocation2 + $0x38] sm:$0xff] %vm535, %v2830
      %2849 = vst.msk [vmem:[#allocation2 + $0x40] sm:$0xff] %vm535, %v2831
      %2850 = vst.msk [vmem:[#allocation2 + $0x48] sm:$0xff] %vm535, %v2832
      %v2851 = vld [vmem:[#allocation2 + $0x7] sm:$0xff]
      %v2852 = vld [vmem:[#allocation2 + $0xf] sm:$0xff]
      %v2853 = vld [vmem:[#allocation2 + $0x17] sm:$0xff]
      %v2854 = vld [vmem:[#allocation2 + $0x1f] sm:$0xff]
      %v2855 = vld [vmem:[#allocation2 + $0x27] sm:$0xff]
      %v2856 = vld [vmem:[#allocation2 + $0x2f] sm:$0xff]
      %v2857 = vld [vmem:[#allocation2 + $0x37] sm:$0xff]
      %v2858 = vld [vmem:[#allocation2 + $0x3f] sm:$0xff]
      %v2859 = vmul.f32 %v2851, %v666
      %v2860 = vmul.f32 %v2852, %v667
      %v2861 = vmul.f32 %v2853, %v668
      %v2862 = vmul.f32 %v2854, %v669
      %v2863 = vmul.f32 %v2855, %v670
      %v2864 = vmul.f32 %v2856, %v671
      %v2865 = vmul.f32 %v2857, %v672
      %v2866 = vmul.f32 %v2858, %v673
      %v2867 = vld [vmem:[#allocation2 + $0x8] sm:$0xff]
      %v2868 = vld [vmem:[#allocation2 + $0x10] sm:$0xff]
      %v2869 = vld [vmem:[#allocation2 + $0x18] sm:$0xff]
      %v2870 = vld [vmem:[#allocation2 + $0x20] sm:$0xff]
      %v2871 = vld [vmem:[#allocation2 + $0x28] sm:$0xff]
      %v2872 = vld [vmem:[#allocation2 + $0x30] sm:$0xff]
      %v2873 = vld [vmem:[#allocation2 + $0x38] sm:$0xff]
      %v2874 = vld [vmem:[#allocation2 + $0x40] sm:$0xff]
      %v2875 = vld [vmem:[#allocation2 + $0x9] sm:$0xff]
      %v2876 = vld [vmem:[#allocation2 + $0x11] sm:$0xff]
      %v2877 = vld [vmem:[#allocation2 + $0x19] sm:$0xff]
      %v2878 = vld [vmem:[#allocation2 + $0x21] sm:$0xff]
      %v2879 = vld [vmem:[#allocation2 + $0x29] sm:$0xff]
      %v2880 = vld [vmem:[#allocation2 + $0x31] sm:$0xff]
      %v2881 = vld [vmem:[#allocation2 + $0x39] sm:$0xff]
      %v2882 = vld [vmem:[#allocation2 + $0x41] sm:$0xff]
      %v2883 = vmul.f32 %v2875, %v690
      %v2884 = vmul.f32 %v2876, %v691
      %v2885 = vmul.f32 %v2877, %v692
      %v2886 = vmul.f32 %v2878, %v693
      %v2887 = vmul.f32 %v2879, %v694
      %v2888 = vmul.f32 %v2880, %v695
      %v2889 = vmul.f32 %v2881, %v696
      %v2890 = vmul.f32 %v2882, %v697
      %v2891 = vld [vmem:[#allocation2 + $0x47] sm:$0xff]
      %v2892 = vmul.f32 %v2852, %v666
      %v2893 = vmul.f32 %v2853, %v667
      %v2894 = vmul.f32 %v2854, %v668
      %v2895 = vmul.f32 %v2855, %v669
      %v2896 = vmul.f32 %v2856, %v670
      %v2897 = vmul.f32 %v2857, %v671
      %v2898 = vmul.f32 %v2858, %v672
      %v2899 = vmul.f32 %v2891, %v673
      %v2900 = vld [vmem:[#allocation2 + $0x48] sm:$0xff]
      %v2901 = vld [vmem:[#allocation2 + $0x49] sm:$0xff]
      %v2902 = vmul.f32 %v2876, %v690
      %v2903 = vmul.f32 %v2877, %v691
      %v2904 = vmul.f32 %v2878, %v692
      %v2905 = vmul.f32 %v2879, %v693
      %v2906 = vmul.f32 %v2880, %v694
      %v2907 = vmul.f32 %v2881, %v695
      %v2908 = vmul.f32 %v2882, %v696
      %v2909 = vmul.f32 %v2901, %v697
      %v2910 = vld [vmem:[#allocation2 + $0x4f] sm:$0xff]
      %v2911 = vmul.f32 %v2853, %v666
      %v2912 = vmul.f32 %v2854, %v667
      %v2913 = vmul.f32 %v2855, %v668
      %v2914 = vmul.f32 %v2856, %v669
      %v2915 = vmul.f32 %v2857, %v670
      %v2916 = vmul.f32 %v2858, %v671
      %v2917 = vmul.f32 %v2891, %v672
      %v2918 = vmul.f32 %v2910, %v673
      %v2919 = vld [vmem:[#allocation2 + $0x50] sm:$0xff]
      %v2920 = vld [vmem:[#allocation2 + $0x51] sm:$0xff]
      %v2921 = vmul.f32 %v2877, %v690
      %v2922 = vmul.f32 %v2878, %v691
      %v2923 = vmul.f32 %v2879, %v692
      %v2924 = vmul.f32 %v2880, %v693
      %v2925 = vmul.f32 %v2881, %v694
      %v2926 = vmul.f32 %v2882, %v695
      %v2927 = vmul.f32 %v2901, %v696
      %v2928 = vmul.f32 %v2920, %v697
      %2937 = vrot.lane.b32.xlu0 %v2867, 8
      %v2938 = vpop.permute.xlu0 %2937
      %2939 = vrot.lane.b32.xlu0 %v2868, 8
      %v2940 = vpop.permute.xlu0 %2939
      %2941 = vrot.lane.b32.xlu0 %v2869, 8
      %v2942 = vpop.permute.xlu0 %2941
      %2943 = vrot.lane.b32.xlu0 %v2870, 8
      %v2944 = vpop.permute.xlu0 %2943
      %2945 = vrot.lane.b32.xlu0 %v2871, 8
      %v2946 = vpop.permute.xlu0 %2945
      %2947 = vrot.lane.b32.xlu0 %v2872, 8
      %v2948 = vpop.permute.xlu0 %2947
      %2949 = vrot.lane.b32.xlu0 %v2873, 8
      %v2950 = vpop.permute.xlu0 %2949
      %2951 = vrot.lane.b32.xlu0 %v2874, 8
      %v2952 = vpop.permute.xlu0 %2951
      %2969 = vrot.lane.b32.xlu0 %v2883, 16
      %v2970 = vpop.permute.xlu0 %2969
      %2971 = vrot.lane.b32.xlu0 %v2884, 16
      %v2972 = vpop.permute.xlu0 %2971
      %2973 = vrot.lane.b32.xlu0 %v2885, 16
      %v2974 = vpop.permute.xlu0 %2973
      %2975 = vrot.lane.b32.xlu0 %v2886, 16
      %v2976 = vpop.permute.xlu0 %2975
      %2977 = vrot.lane.b32.xlu0 %v2887, 16
      %v2978 = vpop.permute.xlu0 %2977
      %2979 = vrot.lane.b32.xlu0 %v2888, 16
      %v2980 = vpop.permute.xlu0 %2979
      %2981 = vrot.lane.b32.xlu0 %v2889, 16
      %v2982 = vpop.permute.xlu0 %2981
      %2983 = vrot.lane.b32.xlu0 %v2890, 16
      %v2984 = vpop.permute.xlu0 %2983
      %3001 = vrot.lane.b32.xlu0 %v2892, 24
      %v3002 = vpop.permute.xlu0 %3001
      %3003 = vrot.lane.b32.xlu0 %v2893, 24
      %v3004 = vpop.permute.xlu0 %3003
      %3005 = vrot.lane.b32.xlu0 %v2894, 24
      %v3006 = vpop.permute.xlu0 %3005
      %3007 = vrot.lane.b32.xlu0 %v2895, 24
      %v3008 = vpop.permute.xlu0 %3007
      %3009 = vrot.lane.b32.xlu0 %v2896, 24
      %v3010 = vpop.permute.xlu0 %3009
      %3011 = vrot.lane.b32.xlu0 %v2897, 24
      %v3012 = vpop.permute.xlu0 %3011
      %3013 = vrot.lane.b32.xlu0 %v2898, 24
      %v3014 = vpop.permute.xlu0 %3013
      %3015 = vrot.lane.b32.xlu0 %v2899, 24
      %v3016 = vpop.permute.xlu0 %3015
      %3026 = vrot.lane.b32.xlu0 %v2868, 32
      %v3027 = vpop.permute.xlu0 %3026
      %3028 = vrot.lane.b32.xlu0 %v2869, 32
      %v3029 = vpop.permute.xlu0 %3028
      %3030 = vrot.lane.b32.xlu0 %v2870, 32
      %v3031 = vpop.permute.xlu0 %3030
      %3032 = vrot.lane.b32.xlu0 %v2871, 32
      %v3033 = vpop.permute.xlu0 %3032
      %3034 = vrot.lane.b32.xlu0 %v2872, 32
      %v3035 = vpop.permute.xlu0 %3034
      %3036 = vrot.lane.b32.xlu0 %v2873, 32
      %v3037 = vpop.permute.xlu0 %3036
      %3038 = vrot.lane.b32.xlu0 %v2874, 32
      %v3039 = vpop.permute.xlu0 %3038
      %3040 = vrot.lane.b32.xlu0 %v2900, 32
      %v3041 = vpop.permute.xlu0 %3040
      %3058 = vrot.lane.b32.xlu0 %v2902, 40
      %v3059 = vpop.permute.xlu0 %3058
      %3060 = vrot.lane.b32.xlu0 %v2903, 40
      %v3061 = vpop.permute.xlu0 %3060
      %3062 = vrot.lane.b32.xlu0 %v2904, 40
      %v3063 = vpop.permute.xlu0 %3062
      %3064 = vrot.lane.b32.xlu0 %v2905, 40
      %v3065 = vpop.permute.xlu0 %3064
      %3066 = vrot.lane.b32.xlu0 %v2906, 40
      %v3067 = vpop.permute.xlu0 %3066
      %3068 = vrot.lane.b32.xlu0 %v2907, 40
      %v3069 = vpop.permute.xlu0 %3068
      %3070 = vrot.lane.b32.xlu0 %v2908, 40
      %v3071 = vpop.permute.xlu0 %3070
      %3072 = vrot.lane.b32.xlu0 %v2909, 40
      %v3073 = vpop.permute.xlu0 %3072
      %3090 = vrot.lane.b32.xlu0 %v2911, 48
      %v3091 = vpop.permute.xlu0 %3090
      %3092 = vrot.lane.b32.xlu0 %v2912, 48
      %v3093 = vpop.permute.xlu0 %3092
      %3094 = vrot.lane.b32.xlu0 %v2913, 48
      %v3095 = vpop.permute.xlu0 %3094
      %3096 = vrot.lane.b32.xlu0 %v2914, 48
      %v3097 = vpop.permute.xlu0 %3096
      %3098 = vrot.lane.b32.xlu0 %v2915, 48
      %v3099 = vpop.permute.xlu0 %3098
      %3100 = vrot.lane.b32.xlu0 %v2916, 48
      %v3101 = vpop.permute.xlu0 %3100
      %3102 = vrot.lane.b32.xlu0 %v2917, 48
      %v3103 = vpop.permute.xlu0 %3102
      %3104 = vrot.lane.b32.xlu0 %v2918, 48
      %v3105 = vpop.permute.xlu0 %3104
      %3115 = vrot.lane.b32.xlu0 %v2869, 56
      %v3116 = vpop.permute.xlu0 %3115
      %3117 = vrot.lane.b32.xlu0 %v2870, 56
      %v3118 = vpop.permute.xlu0 %3117
      %3119 = vrot.lane.b32.xlu0 %v2871, 56
      %v3120 = vpop.permute.xlu0 %3119
      %3121 = vrot.lane.b32.xlu0 %v2872, 56
      %v3122 = vpop.permute.xlu0 %3121
      %3123 = vrot.lane.b32.xlu0 %v2873, 56
      %v3124 = vpop.permute.xlu0 %3123
      %3125 = vrot.lane.b32.xlu0 %v2874, 56
      %v3126 = vpop.permute.xlu0 %3125
      %3127 = vrot.lane.b32.xlu0 %v2900, 56
      %v3128 = vpop.permute.xlu0 %3127
      %3129 = vrot.lane.b32.xlu0 %v2919, 56
      %v3130 = vpop.permute.xlu0 %3129
      %3147 = vrot.lane.b32.xlu0 %v2921, 64
      %v3148 = vpop.permute.xlu0 %3147
      %3149 = vrot.lane.b32.xlu0 %v2922, 64
      %v3150 = vpop.permute.xlu0 %3149
      %3151 = vrot.lane.b32.xlu0 %v2923, 64
      %v3152 = vpop.permute.xlu0 %3151
      %3153 = vrot.lane.b32.xlu0 %v2924, 64
      %v3154 = vpop.permute.xlu0 %3153
      %3155 = vrot.lane.b32.xlu0 %v2925, 64
      %v3156 = vpop.permute.xlu0 %3155
      %3157 = vrot.lane.b32.xlu0 %v2926, 64
      %v3158 = vpop.permute.xlu0 %3157
      %3159 = vrot.lane.b32.xlu0 %v2927, 64
      %v3160 = vpop.permute.xlu0 %3159
      %3161 = vrot.lane.b32.xlu0 %v2928, 64
      %v3162 = vpop.permute.xlu0 %3161
      %v3171 = vsel %vm535, %v2859, %v2938
      %v3172 = vsel %vm535, %v2860, %v2940
      %v3173 = vsel %vm535, %v2861, %v2942
      %v3174 = vsel %vm535, %v2862, %v2944
      %v3175 = vsel %vm535, %v2863, %v2946
      %v3176 = vsel %vm535, %v2864, %v2948
      %v3177 = vsel %vm535, %v2865, %v2950
      %v3178 = vsel %vm535, %v2866, %v2952
      %v3179 = vsel %vm1334, %v3171, %v2970
      %v3180 = vsel %vm1334, %v3172, %v2972
      %v3181 = vsel %vm1334, %v3173, %v2974
      %v3182 = vsel %vm1334, %v3174, %v2976
      %v3183 = vsel %vm1334, %v3175, %v2978
      %v3184 = vsel %vm1334, %v3176, %v2980
      %v3185 = vsel %vm1334, %v3177, %v2982
      %v3186 = vsel %vm1334, %v3178, %v2984
      %v3187 = vsel %vm1343, %v3179, %v3002
      %v3188 = vsel %vm1343, %v3180, %v3004
      %v3189 = vsel %vm1343, %v3181, %v3006
      %v3190 = vsel %vm1343, %v3182, %v3008
      %v3191 = vsel %vm1343, %v3183, %v3010
      %v3192 = vsel %vm1343, %v3184, %v3012
      %v3193 = vsel %vm1343, %v3185, %v3014
      %v3194 = vsel %vm1343, %v3186, %v3016
      %v3195 = vsel %vm540, %v3187, %v3027
      %v3196 = vsel %vm540, %v3188, %v3029
      %v3197 = vsel %vm540, %v3189, %v3031
      %v3198 = vsel %vm540, %v3190, %v3033
      %v3199 = vsel %vm540, %v3191, %v3035
      %v3200 = vsel %vm540, %v3192, %v3037
      %v3201 = vsel %vm540, %v3193, %v3039
      %v3202 = vsel %vm540, %v3194, %v3041
      %v3203 = vsel %vm1360, %v3195, %v3059
      %v3204 = vsel %vm1360, %v3196, %v3061
      %v3205 = vsel %vm1360, %v3197, %v3063
      %v3206 = vsel %vm1360, %v3198, %v3065
      %v3207 = vsel %vm1360, %v3199, %v3067
      %v3208 = vsel %vm1360, %v3200, %v3069
      %v3209 = vsel %vm1360, %v3201, %v3071
      %v3210 = vsel %vm1360, %v3202, %v3073
      %v3211 = vsel %vm1369, %v3203, %v3091
      %v3212 = vsel %vm1369, %v3204, %v3093
      %v3213 = vsel %vm1369, %v3205, %v3095
      %v3214 = vsel %vm1369, %v3206, %v3097
      %v3215 = vsel %vm1369, %v3207, %v3099
      %v3216 = vsel %vm1369, %v3208, %v3101
      %v3217 = vsel %vm1369, %v3209, %v3103
      %v3218 = vsel %vm1369, %v3210, %v3105
      %v3219 = vsel %vm1378, %v3211, %v3116
      %v3220 = vsel %vm1378, %v3212, %v3118
      %v3221 = vsel %vm1378, %v3213, %v3120
      %v3222 = vsel %vm1378, %v3214, %v3122
      %v3223 = vsel %vm1378, %v3215, %v3124
      %v3224 = vsel %vm1378, %v3216, %v3126
      %v3225 = vsel %vm1378, %v3217, %v3128
      %v3226 = vsel %vm1378, %v3218, %v3130
      %v3227 = vsel %vm1387, %v3219, %v3148
      %v3228 = vsel %vm1387, %v3220, %v3150
      %v3229 = vsel %vm1387, %v3221, %v3152
      %v3230 = vsel %vm1387, %v3222, %v3154
      %v3231 = vsel %vm1387, %v3223, %v3156
      %v3232 = vsel %vm1387, %v3224, %v3158
      %v3233 = vsel %vm1387, %v3225, %v3160
      %v3234 = vsel %vm1387, %v3226, %v3162
      %s3235 = scalar_lea.vmem %s4, 1
      %v3236 = vld [vmem:[%s3235] sm:$0x1]
      %v3238 = vlaneseq
      %v3239 = vshrl.u32 %v3238, 7
      %v3240 = vsub.s32 0, %v3239
      %v3241 = vrot.slane %v3236, %v3240
      %v3244 = vsel %vm1403, %v3227, 0
      %v3247 = vsel %vm1403, %v3228, 0
      %v3250 = vsel %vm1403, %v3229, 0
      %v3253 = vsel %vm1403, %v3230, 0
      %v3256 = vsel %vm1403, %v3231, 0
      %v3259 = vsel %vm1403, %v3232, 0
      %v3262 = vsel %vm1403, %v3233, 0
      %v3265 = vsel %vm1403, %v3234, 0
      %3267 = vmatprep.subr.mxu0 0.0
      %3268 = vmatpush1.msra.mxu0 0.0
      %3269 = vmatprep.subr.mxu0 0.0
      %3270 = vmatpush1.msra.mxu0 0.0
      %3271 = vmatprep.subr.mxu0 0.0
      %3272 = vmatpush1.msra.mxu0 0.0
      %3273 = vmatprep.subr.mxu0 0.0
      %3274 = vmatpush1.msra.mxu0 0.0
      %3275 = vmatprep.subr.mxu0 0.0
      %3276 = vmatpush1.msra.mxu0 0.0
      %3277 = vmatprep.subr.mxu0 0.0
      %3278 = vmatpush1.msra.mxu0 0.0
      %3279 = vmatprep.subr.mxu0 0.0
      %3280 = vmatpush1.msra.mxu0 0.0
      %3281 = vmatprep.subr.mxu0 0.0
      %3282 = vmatpush1.msra.mxu0 %v2842
      %3283 = vmatprep.subr.mxu0 0.0
      %3284 = vmatpush1.msra.mxu0 %v2841
      %3285 = vmatprep.subr.mxu0 0.0
      %3286 = vmatpush1.msra.mxu0 %v2840
      %3287 = vmatprep.subr.mxu0 0.0
      %3288 = vmatpush1.msra.mxu0 %v2839
      %3289 = vmatprep.subr.mxu0 0.0
      %3290 = vmatpush1.msra.mxu0 %v2838
      %3291 = vmatprep.subr.mxu0 0.0
      %3292 = vmatpush1.msra.mxu0 %v2837
      %3293 = vmatprep.subr.mxu0 0.0
      %3294 = vmatpush1.msra.mxu0 %v2836
      %3295 = vmatprep.subr.mxu0 0.0
      %3296 = vmatpush1.msra.mxu0 %v2835
      %3297 = vmatprep.subr.mxu0 0.0
      %3298 = vmatpush1.msra.mxu0 %v2834
      %3299 = vmatprep.subr.mxu0 0.0
      %3300 = vmatpush2.msra.mxu0 0.0
      %3301 = vmatprep.subr.mxu0 0.0
      %3302 = vmatpush2.msra.mxu0 0.0
      %3303 = vmatprep.subr.mxu0 0.0
      %3304 = vmatpush2.msra.mxu0 0.0
      %3305 = vmatprep.subr.mxu0 0.0
      %3306 = vmatpush2.msra.mxu0 0.0
      %3307 = vmatprep.subr.mxu0 0.0
      %3308 = vmatpush2.msra.mxu0 0.0
      %3309 = vmatprep.subr.mxu0 0.0
      %3310 = vmatpush2.msra.mxu0 0.0
      %3311 = vmatprep.subr.mxu0 0.0
      %3312 = vmatpush2.msra.mxu0 0.0
      %3313 = vmatprep.subr.mxu0 0.0
      %3314 = vmatpush2.msra.mxu0 0.0
      %3315 = vmatprep.subr.mxu0 0.0
      %3316 = vmatpush2.msra.mxu0 0.0
      %3317 = vmatprep.subr.mxu0 0.0
      %3318 = vmatpush2.msra.mxu0 0.0
      %3319 = vmatprep.subr.mxu0 0.0
      %3320 = vmatpush2.msra.mxu0 0.0
      %3321 = vmatprep.subr.mxu0 0.0
      %3322 = vmatpush2.msra.mxu0 0.0
      %3323 = vmatprep.subr.mxu0 0.0
      %3324 = vmatpush2.msra.mxu0 0.0
      %3325 = vmatprep.subr.mxu0 0.0
      %3326 = vmatpush2.msra.mxu0 0.0
      %3327 = vmatprep.subr.mxu0 0.0
      %3328 = vmatpush2.msra.mxu0 0.0
      %3329 = vmatprep.subr.mxu0 0.0
      %3330 = vmatpush2.msra.mxu0 0.0
      %3331 = vmatprep.mubr.f32.mxu0 0.0
      %3332 = vmatmul.mubr.f32.gmra.mxu0 %v3244
      %v3333 = vpop.f32.mrf.mxu0
      %v3334 = vadd.f32 %v3241, %v3333
      %v3335 = vpop.f32.mrf.mxu0
      %3336 = vmatprep.mubr.f32.mxu0 0.0
      %3337 = vmatmul.mubr.f32.gmra.mxu0 %v3247
      %v3338 = vpop.f32.mrf.mxu0
      %v3339 = vadd.f32 %v3241, %v3338
      %v3340 = vpop.f32.mrf.mxu0
      %3341 = vmatprep.mubr.f32.mxu0 0.0
      %3342 = vmatmul.mubr.f32.gmra.mxu0 %v3250
      %v3343 = vpop.f32.mrf.mxu0
      %v3344 = vadd.f32 %v3241, %v3343
      %v3345 = vpop.f32.mrf.mxu0
      %3346 = vmatprep.mubr.f32.mxu0 0.0
      %3347 = vmatmul.mubr.f32.gmra.mxu0 %v3253
      %v3348 = vpop.f32.mrf.mxu0
      %v3349 = vadd.f32 %v3241, %v3348
      %v3350 = vpop.f32.mrf.mxu0
      %3351 = vmatprep.mubr.f32.mxu0 0.0
      %3352 = vmatmul.mubr.f32.gmra.mxu0 %v3256
      %v3353 = vpop.f32.mrf.mxu0
      %v3354 = vadd.f32 %v3241, %v3353
      %v3355 = vpop.f32.mrf.mxu0
      %3356 = vmatprep.mubr.f32.mxu0 0.0
      %3357 = vmatmul.mubr.f32.gmra.mxu0 %v3259
      %v3358 = vpop.f32.mrf.mxu0
      %v3359 = vadd.f32 %v3241, %v3358
      %v3360 = vpop.f32.mrf.mxu0
      %3361 = vmatprep.mubr.f32.mxu0 0.0
      %3362 = vmatmul.mubr.f32.gmra.mxu0 %v3262
      %v3363 = vpop.f32.mrf.mxu0
      %v3364 = vadd.f32 %v3241, %v3363
      %v3365 = vpop.f32.mrf.mxu0
      %3366 = vmatprep.mubr.f32.mxu0 0.0
      %3367 = vmatmul.mubr.f32.gmra.mxu0 %v3265
      %v3368 = vpop.f32.mrf.mxu0
      %v3369 = vadd.f32 %v3241, %v3368
      %v3370 = vpop.f32.mrf.mxu0
      %3371 = vdwg.mxu0
      %s3372 = scalar_lea.vmem %s5, 1
      %v3373 = vld [vmem:[%s3372] sm:$0x1]
      %v3375 = vlaneseq
      %v3376 = vshrl.u32 %v3375, 7
      %v3377 = vsub.s32 0, %v3376
      %v3378 = vrot.slane %v3373, %v3377
      %v3380 = vmul.f32 %v3334, %v3378
      %v3381 = vmul.f32 %v3339, %v3378
      %v3382 = vmul.f32 %v3344, %v3378
      %v3383 = vmul.f32 %v3349, %v3378
      %v3384 = vmul.f32 %v3354, %v3378
      %v3385 = vmul.f32 %v3359, %v3378
      %v3386 = vmul.f32 %v3364, %v3378
      %v3387 = vmul.f32 %v3369, %v3378
      %v3388 = vmax.f32 %v3380, 0.0
      %v3389 = vmax.f32 %v3381, 0.0
      %v3390 = vmax.f32 %v3382, 0.0
      %v3391 = vmax.f32 %v3383, 0.0
      %v3392 = vmax.f32 %v3384, 0.0
      %v3393 = vmax.f32 %v3385, 0.0
      %v3394 = vmax.f32 %v3386, 0.0
      %v3395 = vmax.f32 %v3387, 0.0
      %s3396 = scalar_lea.vmem %s6, 32
      %v3397 = vld [vmem:[%s3396] sm:$0xff]
      %v3398 = vld [vmem:[%s3396 + $0x8] sm:$0xff]
      %v3399 = vld [vmem:[%s3396 + $0x10] sm:$0xff]
      %v3400 = vld [vmem:[%s3396 + $0x18] sm:$0xff]
      %s3401 = scalar_lea.vmem %s7, 1
      %v3402 = vld [vmem:[%s3401] sm:$0x1]
      %v3404 = vlaneseq
      %v3405 = vshrl.u32 %v3404, 7
      %v3406 = vsub.s32 0, %v3405
      %v3407 = vrot.slane %v3402, %v3406
      %v3410 = vsel %vm540, %v3388, 0
      %v3413 = vsel %vm540, %v3389, 0
      %v3416 = vsel %vm540, %v3390, 0
      %v3419 = vsel %vm540, %v3391, 0
      %v3422 = vsel %vm540, %v3392, 0
      %v3425 = vsel %vm540, %v3393, 0
      %v3428 = vsel %vm540, %v3394, 0
      %v3431 = vsel %vm540, %v3395, 0
      %3433 = vmatprep.subr.mxu0 0.0
      %3434 = vmatpush1.msra.mxu0 0.0
      %3435 = vmatprep.subr.mxu0 0.0
      %3436 = vmatpush1.msra.mxu0 0.0
      %3437 = vmatprep.subr.mxu0 0.0
      %3438 = vmatpush1.msra.mxu0 0.0
      %3439 = vmatprep.subr.mxu0 0.0
      %3440 = vmatpush1.msra.mxu0 0.0
      %3441 = vmatprep.subr.mxu0 0.0
      %3442 = vmatpush1.msra.mxu0 0.0
      %3443 = vmatprep.subr.mxu0 0.0
      %3444 = vmatpush1.msra.mxu0 0.0
      %3445 = vmatprep.subr.mxu0 0.0
      %3446 = vmatpush1.msra.mxu0 0.0
      %3447 = vmatprep.subr.mxu0 0.0
      %3448 = vmatpush1.msra.mxu0 0.0
      %3449 = vmatprep.subr.mxu0 0.0
      %3450 = vmatpush1.msra.mxu0 0.0
      %3451 = vmatprep.subr.mxu0 0.0
      %3452 = vmatpush1.msra.mxu0 0.0
      %3453 = vmatprep.subr.mxu0 0.0
      %3454 = vmatpush1.msra.mxu0 0.0
      %3455 = vmatprep.subr.mxu0 0.0
      %3456 = vmatpush1.msra.mxu0 0.0
      %3457 = vmatprep.subr.mxu0 0.0
      %3458 = vmatpush1.msra.mxu0 %v3400
      %3459 = vmatprep.subr.mxu0 0.0
      %3460 = vmatpush1.msra.mxu0 %v3399
      %3461 = vmatprep.subr.mxu0 0.0
      %3462 = vmatpush1.msra.mxu0 %v3398
      %3463 = vmatprep.subr.mxu0 0.0
      %3464 = vmatpush1.msra.mxu0 %v3397
      %3465 = vmatprep.subr.mxu0 0.0
      %3466 = vmatpush2.msra.mxu0 0.0
      %3467 = vmatprep.subr.mxu0 0.0
      %3468 = vmatpush2.msra.mxu0 0.0
      %3469 = vmatprep.subr.mxu0 0.0
      %3470 = vmatpush2.msra.mxu0 0.0
      %3471 = vmatprep.subr.mxu0 0.0
      %3472 = vmatpush2.msra.mxu0 0.0
      %3473 = vmatprep.subr.mxu0 0.0
      %3474 = vmatpush2.msra.mxu0 0.0
      %3475 = vmatprep.subr.mxu0 0.0
      %3476 = vmatpush2.msra.mxu0 0.0
      %3477 = vmatprep.subr.mxu0 0.0
      %3478 = vmatpush2.msra.mxu0 0.0
      %3479 = vmatprep.subr.mxu0 0.0
      %3480 = vmatpush2.msra.mxu0 0.0
      %3481 = vmatprep.subr.mxu0 0.0
      %3482 = vmatpush2.msra.mxu0 0.0
      %3483 = vmatprep.subr.mxu0 0.0
      %3484 = vmatpush2.msra.mxu0 0.0
      %3485 = vmatprep.subr.mxu0 0.0
      %3486 = vmatpush2.msra.mxu0 0.0
      %3487 = vmatprep.subr.mxu0 0.0
      %3488 = vmatpush2.msra.mxu0 0.0
      %3489 = vmatprep.subr.mxu0 0.0
      %3490 = vmatpush2.msra.mxu0 0.0
      %3491 = vmatprep.subr.mxu0 0.0
      %3492 = vmatpush2.msra.mxu0 0.0
      %3493 = vmatprep.subr.mxu0 0.0
      %3494 = vmatpush2.msra.mxu0 0.0
      %3495 = vmatprep.subr.mxu0 0.0
      %3496 = vmatpush2.msra.mxu0 0.0
      %3497 = vmatprep.mubr.f32.mxu0 0.0
      %3498 = vmatmul.mubr.f32.gmra.mxu0 %v3410
      %v3499 = vpop.f32.mrf.mxu0
      %v3500 = vadd.f32 %v3407, %v3499
      %v3501 = vpop.f32.mrf.mxu0
      %3502 = vmatprep.mubr.f32.mxu0 0.0
      %3503 = vmatmul.mubr.f32.gmra.mxu0 %v3413
      %v3504 = vpop.f32.mrf.mxu0
      %v3505 = vadd.f32 %v3407, %v3504
      %v3506 = vpop.f32.mrf.mxu0
      %3507 = vmatprep.mubr.f32.mxu0 0.0
      %3508 = vmatmul.mubr.f32.gmra.mxu0 %v3416
      %v3509 = vpop.f32.mrf.mxu0
      %v3510 = vadd.f32 %v3407, %v3509
      %v3511 = vpop.f32.mrf.mxu0
      %3512 = vmatprep.mubr.f32.mxu0 0.0
      %3513 = vmatmul.mubr.f32.gmra.mxu0 %v3419
      %v3514 = vpop.f32.mrf.mxu0
      %v3515 = vadd.f32 %v3407, %v3514
      %v3516 = vpop.f32.mrf.mxu0
      %3517 = vmatprep.mubr.f32.mxu0 0.0
      %3518 = vmatmul.mubr.f32.gmra.mxu0 %v3422
      %v3519 = vpop.f32.mrf.mxu0
      %v3520 = vadd.f32 %v3407, %v3519
      %v3521 = vpop.f32.mrf.mxu0
      %3522 = vmatprep.mubr.f32.mxu0 0.0
      %3523 = vmatmul.mubr.f32.gmra.mxu0 %v3425
      %v3524 = vpop.f32.mrf.mxu0
      %v3525 = vadd.f32 %v3407, %v3524
      %v3526 = vpop.f32.mrf.mxu0
      %3527 = vmatprep.mubr.f32.mxu0 0.0
      %3528 = vmatmul.mubr.f32.gmra.mxu0 %v3428
      %v3529 = vpop.f32.mrf.mxu0
      %v3530 = vadd.f32 %v3407, %v3529
      %v3531 = vpop.f32.mrf.mxu0
      %3532 = vmatprep.mubr.f32.mxu0 0.0
      %3533 = vmatmul.mubr.f32.gmra.mxu0 %v3431
      %v3534 = vpop.f32.mrf.mxu0
      %v3535 = vadd.f32 %v3407, %v3534
      %v3536 = vpop.f32.mrf.mxu0
      %3537 = vdwg.mxu0
      %s3538 = scalar_lea.vmem %s8, 1
      %v3539 = vld [vmem:[%s3538] sm:$0x1]
      %v3541 = vlaneseq
      %v3542 = vshrl.u32 %v3541, 7
      %v3543 = vsub.s32 0, %v3542
      %v3544 = vrot.slane %v3539, %v3543
      %v3546 = vmul.f32 %v3500, %v3544
      %v3547 = vmul.f32 %v3505, %v3544
      %v3548 = vmul.f32 %v3510, %v3544
      %v3549 = vmul.f32 %v3515, %v3544
      %v3550 = vmul.f32 %v3520, %v3544
      %v3551 = vmul.f32 %v3525, %v3544
      %v3552 = vmul.f32 %v3530, %v3544
      %v3553 = vmul.f32 %v3535, %v3544
      %v3554 = vmax.f32 %v3546, 0.0
      %v3555 = vmax.f32 %v3547, 0.0
      %v3556 = vmax.f32 %v3548, 0.0
      %v3557 = vmax.f32 %v3549, 0.0
      %v3558 = vmax.f32 %v3550, 0.0
      %v3559 = vmax.f32 %v3551, 0.0
      %v3560 = vmax.f32 %v3552, 0.0
      %v3561 = vmax.f32 %v3553, 0.0
      %s3562 = scalar_lea.vmem %s9, 288
      %v3563 = vld [vmem:[%s3562] sm:$0xff]
      %v3564 = vld [vmem:[%s3562 + $0x8] sm:$0xff]
      %v3565 = vld [vmem:[%s3562 + $0x10] sm:$0xff]
      %v3566 = vld [vmem:[%s3562 + $0x18] sm:$0xff]
      %v3567 = vld [vmem:[%s3562 + $0x20] sm:$0xff]
      %v3568 = vld [vmem:[%s3562 + $0x28] sm:$0xff]
      %v3569 = vld [vmem:[%s3562 + $0x30] sm:$0xff]
      %v3570 = vld [vmem:[%s3562 + $0x38] sm:$0xff]
      %v3571 = vld [vmem:[%s3562 + $0x40] sm:$0xff]
      %v3572 = vld [vmem:[%s3562 + $0x48] sm:$0xff]
      %v3573 = vld [vmem:[%s3562 + $0x50] sm:$0xff]
      %v3574 = vld [vmem:[%s3562 + $0x58] sm:$0xff]
      %v3575 = vld [vmem:[%s3562 + $0x60] sm:$0xff]
      %v3576 = vld [vmem:[%s3562 + $0x68] sm:$0xff]
      %v3577 = vld [vmem:[%s3562 + $0x70] sm:$0xff]
      %v3578 = vld [vmem:[%s3562 + $0x78] sm:$0xff]
      %v3579 = vld [vmem:[%s3562 + $0x80] sm:$0xff]
      %v3580 = vld [vmem:[%s3562 + $0x88] sm:$0xff]
      %v3581 = vld [vmem:[%s3562 + $0x90] sm:$0xff]
      %v3582 = vld [vmem:[%s3562 + $0x98] sm:$0xff]
      %v3583 = vld [vmem:[%s3562 + $0xa0] sm:$0xff]
      %v3584 = vld [vmem:[%s3562 + $0xa8] sm:$0xff]
      %v3585 = vld [vmem:[%s3562 + $0xb0] sm:$0xff]
      %v3586 = vld [vmem:[%s3562 + $0xb8] sm:$0xff]
      %v3587 = vld [vmem:[%s3562 + $0xc0] sm:$0xff]
      %v3588 = vld [vmem:[%s3562 + $0xc8] sm:$0xff]
      %v3589 = vld [vmem:[%s3562 + $0xd0] sm:$0xff]
      %v3590 = vld [vmem:[%s3562 + $0xd8] sm:$0xff]
      %v3591 = vld [vmem:[%s3562 + $0xe0] sm:$0xff]
      %v3592 = vld [vmem:[%s3562 + $0xe8] sm:$0xff]
      %v3593 = vld [vmem:[%s3562 + $0xf0] sm:$0xff]
      %v3594 = vld [vmem:[%s3562 + $0xf8] sm:$0xff]
      %v3595 = vld [vmem:[%s3562 + $0x100] sm:$0xff]
      %v3596 = vld [vmem:[%s3562 + $0x108] sm:$0xff]
      %v3597 = vld [vmem:[%s3562 + $0x110] sm:$0xff]
      %v3598 = vld [vmem:[%s3562 + $0x118] sm:$0xff]
      %3599 = vst.msk [vmem:[#allocation3 + $0x10] sm:$0xff] %vm540, %v3554
      %3600 = vst.msk [vmem:[#allocation3 + $0x18] sm:$0xff] %vm540, %v3555
      %3601 = vst.msk [vmem:[#allocation3 + $0x20] sm:$0xff] %vm540, %v3556
      %3602 = vst.msk [vmem:[#allocation3 + $0x28] sm:$0xff] %vm540, %v3557
      %3603 = vst.msk [vmem:[#allocation3 + $0x30] sm:$0xff] %vm540, %v3558
      %3604 = vst.msk [vmem:[#allocation3 + $0x38] sm:$0xff] %vm540, %v3559
      %3605 = vst.msk [vmem:[#allocation3 + $0x40] sm:$0xff] %vm540, %v3560
      %3606 = vst.msk [vmem:[#allocation3 + $0x48] sm:$0xff] %vm540, %v3561
      %v3607 = vld [vmem:[#allocation3 + $0x7] sm:$0xff]
      %v3608 = vld [vmem:[#allocation3 + $0xf] sm:$0xff]
      %v3609 = vld [vmem:[#allocation3 + $0x17] sm:$0xff]
      %v3610 = vld [vmem:[#allocation3 + $0x1f] sm:$0xff]
      %v3611 = vld [vmem:[#allocation3 + $0x27] sm:$0xff]
      %v3612 = vld [vmem:[#allocation3 + $0x2f] sm:$0xff]
      %v3613 = vld [vmem:[#allocation3 + $0x37] sm:$0xff]
      %v3614 = vld [vmem:[#allocation3 + $0x3f] sm:$0xff]
      %v3615 = vmul.f32 %v3607, %v666
      %v3616 = vmul.f32 %v3608, %v667
      %v3617 = vmul.f32 %v3609, %v668
      %v3618 = vmul.f32 %v3610, %v669
      %v3619 = vmul.f32 %v3611, %v670
      %v3620 = vmul.f32 %v3612, %v671
      %v3621 = vmul.f32 %v3613, %v672
      %v3622 = vmul.f32 %v3614, %v673
      %v3623 = vld [vmem:[#allocation3 + $0x8] sm:$0xff]
      %v3624 = vld [vmem:[#allocation3 + $0x10] sm:$0xff]
      %v3625 = vld [vmem:[#allocation3 + $0x18] sm:$0xff]
      %v3626 = vld [vmem:[#allocation3 + $0x20] sm:$0xff]
      %v3627 = vld [vmem:[#allocation3 + $0x28] sm:$0xff]
      %v3628 = vld [vmem:[#allocation3 + $0x30] sm:$0xff]
      %v3629 = vld [vmem:[#allocation3 + $0x38] sm:$0xff]
      %v3630 = vld [vmem:[#allocation3 + $0x40] sm:$0xff]
      %v3631 = vld [vmem:[#allocation3 + $0x9] sm:$0xff]
      %v3632 = vld [vmem:[#allocation3 + $0x11] sm:$0xff]
      %v3633 = vld [vmem:[#allocation3 + $0x19] sm:$0xff]
      %v3634 = vld [vmem:[#allocation3 + $0x21] sm:$0xff]
      %v3635 = vld [vmem:[#allocation3 + $0x29] sm:$0xff]
      %v3636 = vld [vmem:[#allocation3 + $0x31] sm:$0xff]
      %v3637 = vld [vmem:[#allocation3 + $0x39] sm:$0xff]
      %v3638 = vld [vmem:[#allocation3 + $0x41] sm:$0xff]
      %v3639 = vmul.f32 %v3631, %v690
      %v3640 = vmul.f32 %v3632, %v691
      %v3641 = vmul.f32 %v3633, %v692
      %v3642 = vmul.f32 %v3634, %v693
      %v3643 = vmul.f32 %v3635, %v694
      %v3644 = vmul.f32 %v3636, %v695
      %v3645 = vmul.f32 %v3637, %v696
      %v3646 = vmul.f32 %v3638, %v697
      %v3647 = vld [vmem:[#allocation3 + $0x47] sm:$0xff]
      %v3648 = vmul.f32 %v3608, %v666
      %v3649 = vmul.f32 %v3609, %v667
      %v3650 = vmul.f32 %v3610, %v668
      %v3651 = vmul.f32 %v3611, %v669
      %v3652 = vmul.f32 %v3612, %v670
      %v3653 = vmul.f32 %v3613, %v671
      %v3654 = vmul.f32 %v3614, %v672
      %v3655 = vmul.f32 %v3647, %v673
      %v3656 = vld [vmem:[#allocation3 + $0x48] sm:$0xff]
      %v3657 = vld [vmem:[#allocation3 + $0x49] sm:$0xff]
      %v3658 = vmul.f32 %v3632, %v690
      %v3659 = vmul.f32 %v3633, %v691
      %v3660 = vmul.f32 %v3634, %v692
      %v3661 = vmul.f32 %v3635, %v693
      %v3662 = vmul.f32 %v3636, %v694
      %v3663 = vmul.f32 %v3637, %v695
      %v3664 = vmul.f32 %v3638, %v696
      %v3665 = vmul.f32 %v3657, %v697
      %v3666 = vld [vmem:[#allocation3 + $0x4f] sm:$0xff]
      %v3667 = vmul.f32 %v3609, %v666
      %v3668 = vmul.f32 %v3610, %v667
      %v3669 = vmul.f32 %v3611, %v668
      %v3670 = vmul.f32 %v3612, %v669
      %v3671 = vmul.f32 %v3613, %v670
      %v3672 = vmul.f32 %v3614, %v671
      %v3673 = vmul.f32 %v3647, %v672
      %v3674 = vmul.f32 %v3666, %v673
      %v3675 = vld [vmem:[#allocation3 + $0x50] sm:$0xff]
      %v3676 = vld [vmem:[#allocation3 + $0x51] sm:$0xff]
      %v3677 = vmul.f32 %v3633, %v690
      %v3678 = vmul.f32 %v3634, %v691
      %v3679 = vmul.f32 %v3635, %v692
      %v3680 = vmul.f32 %v3636, %v693
      %v3681 = vmul.f32 %v3637, %v694
      %v3682 = vmul.f32 %v3638, %v695
      %v3683 = vmul.f32 %v3657, %v696
      %v3684 = vmul.f32 %v3676, %v697
      %3693 = vrot.lane.b32.xlu0 %v3623, 32
      %v3694 = vpop.permute.xlu0 %3693
      %3695 = vrot.lane.b32.xlu0 %v3624, 32
      %v3696 = vpop.permute.xlu0 %3695
      %3697 = vrot.lane.b32.xlu0 %v3625, 32
      %v3698 = vpop.permute.xlu0 %3697
      %3699 = vrot.lane.b32.xlu0 %v3626, 32
      %v3700 = vpop.permute.xlu0 %3699
      %3701 = vrot.lane.b32.xlu0 %v3627, 32
      %v3702 = vpop.permute.xlu0 %3701
      %3703 = vrot.lane.b32.xlu0 %v3628, 32
      %v3704 = vpop.permute.xlu0 %3703
      %3705 = vrot.lane.b32.xlu0 %v3629, 32
      %v3706 = vpop.permute.xlu0 %3705
      %3707 = vrot.lane.b32.xlu0 %v3630, 32
      %v3708 = vpop.permute.xlu0 %3707
      %3725 = vrot.lane.b32.xlu0 %v3639, 64
      %v3726 = vpop.permute.xlu0 %3725
      %3727 = vrot.lane.b32.xlu0 %v3640, 64
      %v3728 = vpop.permute.xlu0 %3727
      %3729 = vrot.lane.b32.xlu0 %v3641, 64
      %v3730 = vpop.permute.xlu0 %3729
      %3731 = vrot.lane.b32.xlu0 %v3642, 64
      %v3732 = vpop.permute.xlu0 %3731
      %3733 = vrot.lane.b32.xlu0 %v3643, 64
      %v3734 = vpop.permute.xlu0 %3733
      %3735 = vrot.lane.b32.xlu0 %v3644, 64
      %v3736 = vpop.permute.xlu0 %3735
      %3737 = vrot.lane.b32.xlu0 %v3645, 64
      %v3738 = vpop.permute.xlu0 %3737
      %3739 = vrot.lane.b32.xlu0 %v3646, 64
      %v3740 = vpop.permute.xlu0 %3739
      %3757 = vrot.lane.b32.xlu0 %v3648, 96
      %v3758 = vpop.permute.xlu0 %3757
      %3759 = vrot.lane.b32.xlu0 %v3649, 96
      %v3760 = vpop.permute.xlu0 %3759
      %3761 = vrot.lane.b32.xlu0 %v3650, 96
      %v3762 = vpop.permute.xlu0 %3761
      %3763 = vrot.lane.b32.xlu0 %v3651, 96
      %v3764 = vpop.permute.xlu0 %3763
      %3765 = vrot.lane.b32.xlu0 %v3652, 96
      %v3766 = vpop.permute.xlu0 %3765
      %3767 = vrot.lane.b32.xlu0 %v3653, 96
      %v3768 = vpop.permute.xlu0 %3767
      %3769 = vrot.lane.b32.xlu0 %v3654, 96
      %v3770 = vpop.permute.xlu0 %3769
      %3771 = vrot.lane.b32.xlu0 %v3655, 96
      %v3772 = vpop.permute.xlu0 %3771
      %3789 = vrot.lane.b32.xlu0 %v3658, 32
      %v3790 = vpop.permute.xlu0 %3789
      %3791 = vrot.lane.b32.xlu0 %v3659, 32
      %v3792 = vpop.permute.xlu0 %3791
      %3793 = vrot.lane.b32.xlu0 %v3660, 32
      %v3794 = vpop.permute.xlu0 %3793
      %3795 = vrot.lane.b32.xlu0 %v3661, 32
      %v3796 = vpop.permute.xlu0 %3795
      %3797 = vrot.lane.b32.xlu0 %v3662, 32
      %v3798 = vpop.permute.xlu0 %3797
      %3799 = vrot.lane.b32.xlu0 %v3663, 32
      %v3800 = vpop.permute.xlu0 %3799
      %3801 = vrot.lane.b32.xlu0 %v3664, 32
      %v3802 = vpop.permute.xlu0 %3801
      %3803 = vrot.lane.b32.xlu0 %v3665, 32
      %v3804 = vpop.permute.xlu0 %3803
      %3821 = vrot.lane.b32.xlu0 %v3667, 64
      %v3822 = vpop.permute.xlu0 %3821
      %3823 = vrot.lane.b32.xlu0 %v3668, 64
      %v3824 = vpop.permute.xlu0 %3823
      %3825 = vrot.lane.b32.xlu0 %v3669, 64
      %v3826 = vpop.permute.xlu0 %3825
      %3827 = vrot.lane.b32.xlu0 %v3670, 64
      %v3828 = vpop.permute.xlu0 %3827
      %3829 = vrot.lane.b32.xlu0 %v3671, 64
      %v3830 = vpop.permute.xlu0 %3829
      %3831 = vrot.lane.b32.xlu0 %v3672, 64
      %v3832 = vpop.permute.xlu0 %3831
      %3833 = vrot.lane.b32.xlu0 %v3673, 64
      %v3834 = vpop.permute.xlu0 %3833
      %3835 = vrot.lane.b32.xlu0 %v3674, 64
      %v3836 = vpop.permute.xlu0 %3835
      %3847 = vrot.lane.b32.xlu0 %v3625, 96
      %v3848 = vpop.permute.xlu0 %3847
      %3849 = vrot.lane.b32.xlu0 %v3626, 96
      %v3850 = vpop.permute.xlu0 %3849
      %3851 = vrot.lane.b32.xlu0 %v3627, 96
      %v3852 = vpop.permute.xlu0 %3851
      %3853 = vrot.lane.b32.xlu0 %v3628, 96
      %v3854 = vpop.permute.xlu0 %3853
      %3855 = vrot.lane.b32.xlu0 %v3629, 96
      %v3856 = vpop.permute.xlu0 %3855
      %3857 = vrot.lane.b32.xlu0 %v3630, 96
      %v3858 = vpop.permute.xlu0 %3857
      %3859 = vrot.lane.b32.xlu0 %v3656, 96
      %v3860 = vpop.permute.xlu0 %3859
      %3861 = vrot.lane.b32.xlu0 %v3675, 96
      %v3862 = vpop.permute.xlu0 %3861
      %v3871 = vsel %vm540, %v3615, %v3694
      %v3872 = vsel %vm540, %v3616, %v3696
      %v3873 = vsel %vm540, %v3617, %v3698
      %v3874 = vsel %vm540, %v3618, %v3700
      %v3875 = vsel %vm540, %v3619, %v3702
      %v3876 = vsel %vm540, %v3620, %v3704
      %v3877 = vsel %vm540, %v3621, %v3706
      %v3878 = vsel %vm540, %v3622, %v3708
      %v3879 = vsel %vm1387, %v3871, %v3726
      %v3880 = vsel %vm1387, %v3872, %v3728
      %v3881 = vsel %vm1387, %v3873, %v3730
      %v3882 = vsel %vm1387, %v3874, %v3732
      %v3883 = vsel %vm1387, %v3875, %v3734
      %v3884 = vsel %vm1387, %v3876, %v3736
      %v3885 = vsel %vm1387, %v3877, %v3738
      %v3886 = vsel %vm1387, %v3878, %v3740
      %v3887 = vsel %vm2043, %v3879, %v3758
      %v3888 = vsel %vm2043, %v3880, %v3760
      %v3889 = vsel %vm2043, %v3881, %v3762
      %v3890 = vsel %vm2043, %v3882, %v3764
      %v3891 = vsel %vm2043, %v3883, %v3766
      %v3892 = vsel %vm2043, %v3884, %v3768
      %v3893 = vsel %vm2043, %v3885, %v3770
      %v3894 = vsel %vm2043, %v3886, %v3772
      %v3895 = vsel %vm540, %v3624, %v3790
      %v3896 = vsel %vm540, %v3625, %v3792
      %v3897 = vsel %vm540, %v3626, %v3794
      %v3898 = vsel %vm540, %v3627, %v3796
      %v3899 = vsel %vm540, %v3628, %v3798
      %v3900 = vsel %vm540, %v3629, %v3800
      %v3901 = vsel %vm540, %v3630, %v3802
      %v3902 = vsel %vm540, %v3656, %v3804
      %v3903 = vsel %vm1387, %v3895, %v3822
      %v3904 = vsel %vm1387, %v3896, %v3824
      %v3905 = vsel %vm1387, %v3897, %v3826
      %v3906 = vsel %vm1387, %v3898, %v3828
      %v3907 = vsel %vm1387, %v3899, %v3830
      %v3908 = vsel %vm1387, %v3900, %v3832
      %v3909 = vsel %vm1387, %v3901, %v3834
      %v3910 = vsel %vm1387, %v3902, %v3836
      %v3911 = vsel %vm2043, %v3903, %v3848
      %v3912 = vsel %vm2043, %v3904, %v3850
      %v3913 = vsel %vm2043, %v3905, %v3852
      %v3914 = vsel %vm2043, %v3906, %v3854
      %v3915 = vsel %vm2043, %v3907, %v3856
      %v3916 = vsel %vm2043, %v3908, %v3858
      %v3917 = vsel %vm2043, %v3909, %v3860
      %v3918 = vsel %vm2043, %v3910, %v3862
      %s3919 = scalar_lea.vmem %s10, 1
      %v3920 = vld [vmem:[%s3919] sm:$0x1]
      %v3922 = vlaneseq
      %v3923 = vshrl.u32 %v3922, 7
      %v3924 = vsub.s32 0, %v3923
      %v3925 = vrot.slane %v3920, %v3924
      %v3928 = vsel %vm540, %v3677, 0
      %v3931 = vsel %vm540, %v3678, 0
      %v3934 = vsel %vm540, %v3679, 0
      %v3937 = vsel %vm540, %v3680, 0
      %v3940 = vsel %vm540, %v3681, 0
      %v3943 = vsel %vm540, %v3682, 0
      %v3946 = vsel %vm540, %v3683, 0
      %v3949 = vsel %vm540, %v3684, 0
      %3951 = vmatprep.subr.mxu0 0.0
      %3952 = vmatpush1.msra.mxu0 %v3578
      %3953 = vmatprep.subr.mxu0 0.0
      %3954 = vmatpush1.msra.mxu0 %v3577
      %3955 = vmatprep.subr.mxu0 0.0
      %3956 = vmatpush1.msra.mxu0 %v3576
      %3957 = vmatprep.subr.mxu0 0.0
      %3958 = vmatpush1.msra.mxu0 %v3575
      %3959 = vmatprep.subr.mxu0 0.0
      %3960 = vmatpush1.msra.mxu0 %v3574
      %3961 = vmatprep.subr.mxu0 0.0
      %3962 = vmatpush1.msra.mxu0 %v3573
      %3963 = vmatprep.subr.mxu0 0.0
      %3964 = vmatpush1.msra.mxu0 %v3572
      %3965 = vmatprep.subr.mxu0 0.0
      %3966 = vmatpush1.msra.mxu0 %v3571
      %3967 = vmatprep.subr.mxu0 0.0
      %3968 = vmatpush1.msra.mxu0 %v3570
      %3969 = vmatprep.subr.mxu0 0.0
      %3970 = vmatpush1.msra.mxu0 %v3569
      %3971 = vmatprep.subr.mxu0 0.0
      %3972 = vmatpush1.msra.mxu0 %v3568
      %3973 = vmatprep.subr.mxu0 0.0
      %3974 = vmatpush1.msra.mxu0 %v3567
      %3975 = vmatprep.subr.mxu0 0.0
      %3976 = vmatpush1.msra.mxu0 %v3566
      %3977 = vmatprep.subr.mxu0 0.0
      %3978 = vmatpush1.msra.mxu0 %v3565
      %3979 = vmatprep.subr.mxu0 0.0
      %3980 = vmatpush1.msra.mxu0 %v3564
      %3981 = vmatprep.subr.mxu0 0.0
      %3982 = vmatpush1.msra.mxu0 %v3563
      %3983 = vmatprep.subr.mxu0 0.0
      %3984 = vmatpush2.msra.mxu0 %v3594
      %3985 = vmatprep.subr.mxu0 0.0
      %3986 = vmatpush2.msra.mxu0 %v3593
      %3987 = vmatprep.subr.mxu0 0.0
      %3988 = vmatpush2.msra.mxu0 %v3592
      %3989 = vmatprep.subr.mxu0 0.0
      %3990 = vmatpush2.msra.mxu0 %v3591
      %3991 = vmatprep.subr.mxu0 0.0
      %3992 = vmatpush2.msra.mxu0 %v3590
      %3993 = vmatprep.subr.mxu0 0.0
      %3994 = vmatpush2.msra.mxu0 %v3589
      %3995 = vmatprep.subr.mxu0 0.0
      %3996 = vmatpush2.msra.mxu0 %v3588
      %3997 = vmatprep.subr.mxu0 0.0
      %3998 = vmatpush2.msra.mxu0 %v3587
      %3999 = vmatprep.subr.mxu0 0.0
      %4000 = vmatpush2.msra.mxu0 %v3586
      %4001 = vmatprep.subr.mxu0 0.0
      %4002 = vmatpush2.msra.mxu0 %v3585
      %4003 = vmatprep.subr.mxu0 0.0
      %4004 = vmatpush2.msra.mxu0 %v3584
      %4005 = vmatprep.subr.mxu0 0.0
      %4006 = vmatpush2.msra.mxu0 %v3583
      %4007 = vmatprep.subr.mxu0 0.0
      %4008 = vmatpush2.msra.mxu0 %v3582
      %4009 = vmatprep.subr.mxu0 0.0
      %4010 = vmatpush2.msra.mxu0 %v3581
      %4011 = vmatprep.subr.mxu0 0.0
      %4012 = vmatpush2.msra.mxu0 %v3580
      %4013 = vmatprep.subr.mxu0 0.0
      %4014 = vmatpush2.msra.mxu0 %v3579
      %4015 = vmatprep.mubr.f32.mxu0 %v3911
      %4016 = vmatmul.mubr.f32.gmra.mxu0 %v3887
      %v4017 = vpop.f32.mrf.mxu0
      %v4018 = vadd.f32 %v3925, %v4017
      %v4019 = vpop.f32.mrf.mxu0
      %4020 = vmatprep.mubr.f32.mxu0 %v3912
      %4021 = vmatmul.mubr.f32.gmra.mxu0 %v3888
      %v4022 = vpop.f32.mrf.mxu0
      %v4023 = vadd.f32 %v3925, %v4022
      %v4024 = vpop.f32.mrf.mxu0
      %4025 = vmatprep.mubr.f32.mxu0 %v3913
      %4026 = vmatmul.mubr.f32.gmra.mxu0 %v3889
      %v4027 = vpop.f32.mrf.mxu0
      %v4028 = vadd.f32 %v3925, %v4027
      %v4029 = vpop.f32.mrf.mxu0
      %4030 = vmatprep.mubr.f32.mxu0 %v3914
      %4031 = vmatmul.mubr.f32.gmra.mxu0 %v3890
      %v4032 = vpop.f32.mrf.mxu0
      %v4033 = vadd.f32 %v3925, %v4032
      %v4034 = vpop.f32.mrf.mxu0
      %4035 = vmatprep.mubr.f32.mxu0 %v3915
      %4036 = vmatmul.mubr.f32.gmra.mxu0 %v3891
      %v4037 = vpop.f32.mrf.mxu0
      %v4038 = vadd.f32 %v3925, %v4037
      %v4039 = vpop.f32.mrf.mxu0
      %4040 = vmatprep.mubr.f32.mxu0 %v3916
      %4041 = vmatmul.mubr.f32.gmra.mxu0 %v3892
      %v4042 = vpop.f32.mrf.mxu0
      %v4043 = vadd.f32 %v3925, %v4042
      %v4044 = vpop.f32.mrf.mxu0
      %4045 = vmatprep.mubr.f32.mxu0 %v3917
      %4046 = vmatmul.mubr.f32.gmra.mxu0 %v3893
      %v4047 = vpop.f32.mrf.mxu0
      %v4048 = vadd.f32 %v3925, %v4047
      %v4049 = vpop.f32.mrf.mxu0
      %4050 = vmatprep.mubr.f32.mxu0 %v3918
      %4051 = vmatmul.mubr.f32.gmra.mxu0 %v3894
      %v4052 = vpop.f32.mrf.mxu0
      %v4053 = vadd.f32 %v3925, %v4052
      %v4054 = vpop.f32.mrf.mxu0
      %4055 = vdwg.mxu0
      %4056 = vmatprep.subr.mxu0 0.0
      %4057 = vmatpush1.msra.mxu0 0.0
      %4058 = vmatprep.subr.mxu0 0.0
      %4059 = vmatpush1.msra.mxu0 0.0
      %4060 = vmatprep.subr.mxu0 0.0
      %4061 = vmatpush1.msra.mxu0 0.0
      %4062 = vmatprep.subr.mxu0 0.0
      %4063 = vmatpush1.msra.mxu0 0.0
      %4064 = vmatprep.subr.mxu0 0.0
      %4065 = vmatpush1.msra.mxu0 0.0
      %4066 = vmatprep.subr.mxu0 0.0
      %4067 = vmatpush1.msra.mxu0 0.0
      %4068 = vmatprep.subr.mxu0 0.0
      %4069 = vmatpush1.msra.mxu0 0.0
      %4070 = vmatprep.subr.mxu0 0.0
      %4071 = vmatpush1.msra.mxu0 0.0
      %4072 = vmatprep.subr.mxu0 0.0
      %4073 = vmatpush1.msra.mxu0 0.0
      %4074 = vmatprep.subr.mxu0 0.0
      %4075 = vmatpush1.msra.mxu0 0.0
      %4076 = vmatprep.subr.mxu0 0.0
      %4077 = vmatpush1.msra.mxu0 0.0
      %4078 = vmatprep.subr.mxu0 0.0
      %4079 = vmatpush1.msra.mxu0 0.0
      %4080 = vmatprep.subr.mxu0 0.0
      %4081 = vmatpush1.msra.mxu0 %v3598
      %4082 = vmatprep.subr.mxu0 0.0
      %4083 = vmatpush1.msra.mxu0 %v3597
      %4084 = vmatprep.subr.mxu0 0.0
      %4085 = vmatpush1.msra.mxu0 %v3596
      %4086 = vmatprep.subr.mxu0 0.0
      %4087 = vmatpush1.msra.mxu0 %v3595
      %4088 = vmatprep.subr.mxu0 0.0
      %4089 = vmatpush2.msra.mxu0 0.0
      %4090 = vmatprep.subr.mxu0 0.0
      %4091 = vmatpush2.msra.mxu0 0.0
      %4092 = vmatprep.subr.mxu0 0.0
      %4093 = vmatpush2.msra.mxu0 0.0
      %4094 = vmatprep.subr.mxu0 0.0
      %4095 = vmatpush2.msra.mxu0 0.0
      %4096 = vmatprep.subr.mxu0 0.0
      %4097 = vmatpush2.msra.mxu0 0.0
      %4098 = vmatprep.subr.mxu0 0.0
      %4099 = vmatpush2.msra.mxu0 0.0
      %4100 = vmatprep.subr.mxu0 0.0
      %4101 = vmatpush2.msra.mxu0 0.0
      %4102 = vmatprep.subr.mxu0 0.0
      %4103 = vmatpush2.msra.mxu0 0.0
      %4104 = vmatprep.subr.mxu0 0.0
      %4105 = vmatpush2.msra.mxu0 0.0
      %4106 = vmatprep.subr.mxu0 0.0
      %4107 = vmatpush2.msra.mxu0 0.0
      %4108 = vmatprep.subr.mxu0 0.0
      %4109 = vmatpush2.msra.mxu0 0.0
      %4110 = vmatprep.subr.mxu0 0.0
      %4111 = vmatpush2.msra.mxu0 0.0
      %4112 = vmatprep.subr.mxu0 0.0
      %4113 = vmatpush2.msra.mxu0 0.0
      %4114 = vmatprep.subr.mxu0 0.0
      %4115 = vmatpush2.msra.mxu0 0.0
      %4116 = vmatprep.subr.mxu0 0.0
      %4117 = vmatpush2.msra.mxu0 0.0
      %4118 = vmatprep.subr.mxu0 0.0
      %4119 = vmatpush2.msra.mxu0 0.0
      %4120 = vmatprep.mubr.f32.mxu0 0.0
      %4121 = vmatmul.mubr.f32.gmra.mxu0 %v3928
      %v4122 = vpop.f32.mrf.mxu0
      %v4123 = vadd.f32 %v4018, %v4122
      %v4124 = vpop.f32.mrf.mxu0
      %4125 = vmatprep.mubr.f32.mxu0 0.0
      %4126 = vmatmul.mubr.f32.gmra.mxu0 %v3931
      %v4127 = vpop.f32.mrf.mxu0
      %v4128 = vadd.f32 %v4023, %v4127
      %v4129 = vpop.f32.mrf.mxu0
      %4130 = vmatprep.mubr.f32.mxu0 0.0
      %4131 = vmatmul.mubr.f32.gmra.mxu0 %v3934
      %v4132 = vpop.f32.mrf.mxu0
      %v4133 = vadd.f32 %v4028, %v4132
      %v4134 = vpop.f32.mrf.mxu0
      %4135 = vmatprep.mubr.f32.mxu0 0.0
      %4136 = vmatmul.mubr.f32.gmra.mxu0 %v3937
      %v4137 = vpop.f32.mrf.mxu0
      %v4138 = vadd.f32 %v4033, %v4137
      %v4139 = vpop.f32.mrf.mxu0
      %4140 = vmatprep.mubr.f32.mxu0 0.0
      %4141 = vmatmul.mubr.f32.gmra.mxu0 %v3940
      %v4142 = vpop.f32.mrf.mxu0
      %v4143 = vadd.f32 %v4038, %v4142
      %v4144 = vpop.f32.mrf.mxu0
      %4145 = vmatprep.mubr.f32.mxu0 0.0
      %4146 = vmatmul.mubr.f32.gmra.mxu0 %v3943
      %v4147 = vpop.f32.mrf.mxu0
      %v4148 = vadd.f32 %v4043, %v4147
      %v4149 = vpop.f32.mrf.mxu0
      %4150 = vmatprep.mubr.f32.mxu0 0.0
      %4151 = vmatmul.mubr.f32.gmra.mxu0 %v3946
      %v4152 = vpop.f32.mrf.mxu0
      %v4153 = vadd.f32 %v4048, %v4152
      %v4154 = vpop.f32.mrf.mxu0
      %4155 = vmatprep.mubr.f32.mxu0 0.0
      %4156 = vmatmul.mubr.f32.gmra.mxu0 %v3949
      %v4157 = vpop.f32.mrf.mxu0
      %v4158 = vadd.f32 %v4053, %v4157
      %v4159 = vpop.f32.mrf.mxu0
      %4160 = vdwg.mxu0
      %s4161 = scalar_lea.vmem %s11, 1
      %v4162 = vld [vmem:[%s4161] sm:$0x1]
      %v4164 = vlaneseq
      %v4165 = vshrl.u32 %v4164, 7
      %v4166 = vsub.s32 0, %v4165
      %v4167 = vrot.slane %v4162, %v4166
      %v4169 = vmul.f32 %v4123, %v4167
      %v4170 = vmul.f32 %v4128, %v4167
      %v4171 = vmul.f32 %v4133, %v4167
      %v4172 = vmul.f32 %v4138, %v4167
      %v4173 = vmul.f32 %v4143, %v4167
      %v4174 = vmul.f32 %v4148, %v4167
      %v4175 = vmul.f32 %v4153, %v4167
      %v4176 = vmul.f32 %v4158, %v4167
      %v4177 = vadd.f32 %v4169, 2.0
      %v4178 = vadd.f32 %v4170, 2.0
      %v4179 = vadd.f32 %v4171, 2.0
      %v4180 = vadd.f32 %v4172, 2.0
      %v4181 = vadd.f32 %v4173, 2.0
      %v4182 = vadd.f32 %v4174, 2.0
      %v4183 = vadd.f32 %v4175, 2.0
      %v4184 = vadd.f32 %v4176, 2.0
      %v4185 = vmin.f32 %v4177, 0.0
      %v4186 = vmin.f32 %v4178, 0.0
      %v4187 = vmin.f32 %v4179, 0.0
      %v4188 = vmin.f32 %v4180, 0.0
      %v4189 = vmin.f32 %v4181, 0.0
      %v4190 = vmin.f32 %v4182, 0.0
      %v4191 = vmin.f32 %v4183, 0.0
      %v4192 = vmin.f32 %v4184, 0.0
      %v4193 = vand.u32 2147483647, %v4177
      %v4194 = vand.u32 2147483647, %v4178
      %v4195 = vand.u32 2147483647, %v4179
      %v4196 = vand.u32 2147483647, %v4180
      %v4197 = vand.u32 2147483647, %v4181
      %v4198 = vand.u32 2147483647, %v4182
      %v4199 = vand.u32 2147483647, %v4183
      %v4200 = vand.u32 2147483647, %v4184
      %v4201 = vsub.f32 0.0, %v4193
      %v4202 = vsub.f32 0.0, %v4194
      %v4203 = vsub.f32 0.0, %v4195
      %v4204 = vsub.f32 0.0, %v4196
      %v4205 = vsub.f32 0.0, %v4197
      %v4206 = vsub.f32 0.0, %v4198
      %v4207 = vsub.f32 0.0, %v4199
      %v4208 = vsub.f32 0.0, %v4200
      %v4209 = vmul.f32 %v4201, 1.442695
      %v4210 = vpow.pop %v4209
      %v4211 = vmul.f32 %v4202, 1.442695
      %v4212 = vpow.pop %v4211
      %v4213 = vmul.f32 %v4203, 1.442695
      %v4214 = vpow.pop %v4213
      %v4215 = vmul.f32 %v4204, 1.442695
      %v4216 = vpow.pop %v4215
      %v4217 = vmul.f32 %v4205, 1.442695
      %v4218 = vpow.pop %v4217
      %v4219 = vmul.f32 %v4206, 1.442695
      %v4220 = vpow.pop %v4219
      %v4221 = vmul.f32 %v4207, 1.442695
      %v4222 = vpow.pop %v4221
      %v4223 = vmul.f32 %v4208, 1.442695
      %v4224 = vpow.pop %v4223
      %v4225 = vadd.f32 %v4210, 1.0
      %v4226 = vadd.f32 %v4212, 1.0
      %v4227 = vadd.f32 %v4214, 1.0
      %v4228 = vadd.f32 %v4216, 1.0
      %v4229 = vadd.f32 %v4218, 1.0
      %v4230 = vadd.f32 %v4220, 1.0
      %v4231 = vadd.f32 %v4222, 1.0
      %v4232 = vadd.f32 %v4224, 1.0
      %v4233 = vlog2.pop %v4225
      %v4234 = vmul.f32 %v4233, 0.6931472
      %v4235 = vlog2.pop %v4226
      %v4236 = vmul.f32 %v4235, 0.6931472
      %v4237 = vlog2.pop %v4227
      %v4238 = vmul.f32 %v4237, 0.6931472
      %v4239 = vlog2.pop %v4228
      %v4240 = vmul.f32 %v4239, 0.6931472
      %v4241 = vlog2.pop %v4229
      %v4242 = vmul.f32 %v4241, 0.6931472
      %v4243 = vlog2.pop %v4230
      %v4244 = vmul.f32 %v4243, 0.6931472
      %v4245 = vlog2.pop %v4231
      %v4246 = vmul.f32 %v4245, 0.6931472
      %v4247 = vlog2.pop %v4232
      %v4248 = vmul.f32 %v4247, 0.6931472
      %v4249 = vsub.f32 %v4185, %v4234
      %v4250 = vsub.f32 %v4186, %v4236
      %v4251 = vsub.f32 %v4187, %v4238
      %v4252 = vsub.f32 %v4188, %v4240
      %v4253 = vsub.f32 %v4189, %v4242
      %v4254 = vsub.f32 %v4190, %v4244
      %v4255 = vsub.f32 %v4191, %v4246
      %v4256 = vsub.f32 %v4192, %v4248
      %4265 = vrot.lane.b32.xlu0 %v4169, 8
      %v4266 = vpop.permute.xlu0 %4265
      %4267 = vrot.lane.b32.xlu0 %v4170, 8
      %v4268 = vpop.permute.xlu0 %4267
      %4269 = vrot.lane.b32.xlu0 %v4171, 8
      %v4270 = vpop.permute.xlu0 %4269
      %4271 = vrot.lane.b32.xlu0 %v4172, 8
      %v4272 = vpop.permute.xlu0 %4271
      %4273 = vrot.lane.b32.xlu0 %v4173, 8
      %v4274 = vpop.permute.xlu0 %4273
      %4275 = vrot.lane.b32.xlu0 %v4174, 8
      %v4276 = vpop.permute.xlu0 %4275
      %4277 = vrot.lane.b32.xlu0 %v4175, 8
      %v4278 = vpop.permute.xlu0 %4277
      %4279 = vrot.lane.b32.xlu0 %v4176, 8
      %v4280 = vpop.permute.xlu0 %4279
      %v4289 = vadd.f32 %v2825, %v4266
      %v4290 = vadd.f32 %v2826, %v4268
      %v4291 = vadd.f32 %v2827, %v4270
      %v4292 = vadd.f32 %v2828, %v4272
      %v4293 = vadd.f32 %v2829, %v4274
      %v4294 = vadd.f32 %v2830, %v4276
      %v4295 = vadd.f32 %v2831, %v4278
      %v4296 = vadd.f32 %v2832, %v4280
      %v4297 = vmul.f32 %v4249, 1.442695
      %v4298 = vpow.pop %v4297
      %v4299 = vmul.f32 %v4250, 1.442695
      %v4300 = vpow.pop %v4299
      %v4301 = vmul.f32 %v4251, 1.442695
      %v4302 = vpow.pop %v4301
      %v4303 = vmul.f32 %v4252, 1.442695
      %v4304 = vpow.pop %v4303
      %v4305 = vmul.f32 %v4253, 1.442695
      %v4306 = vpow.pop %v4305
      %v4307 = vmul.f32 %v4254, 1.442695
      %v4308 = vpow.pop %v4307
      %v4309 = vmul.f32 %v4255, 1.442695
      %v4310 = vpow.pop %v4309
      %v4311 = vmul.f32 %v4256, 1.442695
      %v4312 = vpow.pop %v4311
      %v4313 = vmul.f32 %v4289, %v4298
      %v4314 = vmul.f32 %v4290, %v4300
      %v4315 = vmul.f32 %v4291, %v4302
      %v4316 = vmul.f32 %v4292, %v4304
      %v4317 = vmul.f32 %v4293, %v4306
      %v4318 = vmul.f32 %v4294, %v4308
      %v4319 = vmul.f32 %v4295, %v4310
      %v4320 = vmul.f32 %v4296, %v4312
      %4329 = vrot.lane.b32.xlu0 %v4249, 120
      %v4330 = vpop.permute.xlu0 %4329
      %4331 = vrot.lane.b32.xlu0 %v4250, 120
      %v4332 = vpop.permute.xlu0 %4331
      %4333 = vrot.lane.b32.xlu0 %v4251, 120
      %v4334 = vpop.permute.xlu0 %4333
      %4335 = vrot.lane.b32.xlu0 %v4252, 120
      %v4336 = vpop.permute.xlu0 %4335
      %4337 = vrot.lane.b32.xlu0 %v4253, 120
      %v4338 = vpop.permute.xlu0 %4337
      %4339 = vrot.lane.b32.xlu0 %v4254, 120
      %v4340 = vpop.permute.xlu0 %4339
      %4341 = vrot.lane.b32.xlu0 %v4255, 120
      %v4342 = vpop.permute.xlu0 %4341
      %4343 = vrot.lane.b32.xlu0 %v4256, 120
      %v4344 = vpop.permute.xlu0 %4343
      %v4353 = vsel %vm535, %v4330, 0.0
      %4354 = vadd.xlane.f32.xlu0 %v4353
      %v4355 = vpop.xlane.xlu0 %4354
      %v4356 = vsel %vm535, %v4332, 0.0
      %4357 = vadd.xlane.f32.xlu0 %v4356
      %v4358 = vpop.xlane.xlu0 %4357
      %v4359 = vsel %vm535, %v4334, 0.0
      %4360 = vadd.xlane.f32.xlu0 %v4359
      %v4361 = vpop.xlane.xlu0 %4360
      %v4362 = vsel %vm535, %v4336, 0.0
      %4363 = vadd.xlane.f32.xlu0 %v4362
      %v4364 = vpop.xlane.xlu0 %4363
      %v4365 = vsel %vm535, %v4338, 0.0
      %4366 = vadd.xlane.f32.xlu0 %v4365
      %v4367 = vpop.xlane.xlu0 %4366
      %v4368 = vsel %vm535, %v4340, 0.0
      %4369 = vadd.xlane.f32.xlu0 %v4368
      %v4370 = vpop.xlane.xlu0 %4369
      %v4371 = vsel %vm535, %v4342, 0.0
      %4372 = vadd.xlane.f32.xlu0 %v4371
      %v4373 = vpop.xlane.xlu0 %4372
      %v4374 = vsel %vm535, %v4344, 0.0
      %4375 = vadd.xlane.f32.xlu0 %v4374
      %v4376 = vpop.xlane.xlu0 %4375
      %v4377 = vadd.f32 %v2532, %v4355
      %v4378 = vadd.f32 %v2533, %v4358
      %v4379 = vadd.f32 %v2534, %v4361
      %v4380 = vadd.f32 %v2535, %v4364
      %v4381 = vadd.f32 %v2536, %v4367
      %v4382 = vadd.f32 %v2537, %v4370
      %v4383 = vadd.f32 %v2538, %v4373
      %v4384 = vadd.f32 %v2539, %v4376
      %v4385 = vld [vmem:[%s12] sm:$0xff]
      %v4386 = vld [vmem:[%s12 + $0x8] sm:$0xff]
      %v4387 = vld [vmem:[%s12 + $0x10] sm:$0xff]
      %v4388 = vld [vmem:[%s12 + $0x18] sm:$0xff]
      %v4389 = vld [vmem:[%s12 + $0x20] sm:$0xff]
      %v4390 = vld [vmem:[%s12 + $0x28] sm:$0xff]
      %v4391 = vld [vmem:[%s12 + $0x30] sm:$0xff]
      %v4392 = vld [vmem:[%s12 + $0x38] sm:$0xff]
      %v4393 = vld [vmem:[%s12 + $0x40] sm:$0xff]
      %4394 = vst.msk [vmem:[#allocation2 + $0x10] sm:$0xff] %vm535, %v2825
      %4395 = vst.msk [vmem:[#allocation2 + $0x18] sm:$0xff] %vm535, %v2826
      %4396 = vst.msk [vmem:[#allocation2 + $0x20] sm:$0xff] %vm535, %v2827
      %4397 = vst.msk [vmem:[#allocation2 + $0x28] sm:$0xff] %vm535, %v2828
      %4398 = vst.msk [vmem:[#allocation2 + $0x30] sm:$0xff] %vm535, %v2829
      %4399 = vst.msk [vmem:[#allocation2 + $0x38] sm:$0xff] %vm535, %v2830
      %4400 = vst.msk [vmem:[#allocation2 + $0x40] sm:$0xff] %vm535, %v2831
      %4401 = vst.msk [vmem:[#allocation2 + $0x48] sm:$0xff] %vm535, %v2832
      %v4402 = vld [vmem:[#allocation2 + $0x7] sm:$0xff]
      %v4403 = vld [vmem:[#allocation2 + $0xf] sm:$0xff]
      %v4404 = vld [vmem:[#allocation2 + $0x17] sm:$0xff]
      %v4405 = vld [vmem:[#allocation2 + $0x1f] sm:$0xff]
      %v4406 = vld [vmem:[#allocation2 + $0x27] sm:$0xff]
      %v4407 = vld [vmem:[#allocation2 + $0x2f] sm:$0xff]
      %v4408 = vld [vmem:[#allocation2 + $0x37] sm:$0xff]
      %v4409 = vld [vmem:[#allocation2 + $0x3f] sm:$0xff]
      %v4410 = vmul.f32 %v4402, %v666
      %v4411 = vmul.f32 %v4403, %v667
      %v4412 = vmul.f32 %v4404, %v668
      %v4413 = vmul.f32 %v4405, %v669
      %v4414 = vmul.f32 %v4406, %v670
      %v4415 = vmul.f32 %v4407, %v671
      %v4416 = vmul.f32 %v4408, %v672
      %v4417 = vmul.f32 %v4409, %v673
      %v4418 = vld [vmem:[#allocation2 + $0x8] sm:$0xff]
      %v4419 = vld [vmem:[#allocation2 + $0x10] sm:$0xff]
      %v4420 = vld [vmem:[#allocation2 + $0x18] sm:$0xff]
      %v4421 = vld [vmem:[#allocation2 + $0x20] sm:$0xff]
      %v4422 = vld [vmem:[#allocation2 + $0x28] sm:$0xff]
      %v4423 = vld [vmem:[#allocation2 + $0x30] sm:$0xff]
      %v4424 = vld [vmem:[#allocation2 + $0x38] sm:$0xff]
      %v4425 = vld [vmem:[#allocation2 + $0x40] sm:$0xff]
      %v4426 = vld [vmem:[#allocation2 + $0x9] sm:$0xff]
      %v4427 = vld [vmem:[#allocation2 + $0x11] sm:$0xff]
      %v4428 = vld [vmem:[#allocation2 + $0x19] sm:$0xff]
      %v4429 = vld [vmem:[#allocation2 + $0x21] sm:$0xff]
      %v4430 = vld [vmem:[#allocation2 + $0x29] sm:$0xff]
      %v4431 = vld [vmem:[#allocation2 + $0x31] sm:$0xff]
      %v4432 = vld [vmem:[#allocation2 + $0x39] sm:$0xff]
      %v4433 = vld [vmem:[#allocation2 + $0x41] sm:$0xff]
      %v4434 = vmul.f32 %v4426, %v690
      %v4435 = vmul.f32 %v4427, %v691
      %v4436 = vmul.f32 %v4428, %v692
      %v4437 = vmul.f32 %v4429, %v693
      %v4438 = vmul.f32 %v4430, %v694
      %v4439 = vmul.f32 %v4431, %v695
      %v4440 = vmul.f32 %v4432, %v696
      %v4441 = vmul.f32 %v4433, %v697
      %v4442 = vld [vmem:[#allocation2 + $0x47] sm:$0xff]
      %v4443 = vmul.f32 %v4403, %v666
      %v4444 = vmul.f32 %v4404, %v667
      %v4445 = vmul.f32 %v4405, %v668
      %v4446 = vmul.f32 %v4406, %v669
      %v4447 = vmul.f32 %v4407, %v670
      %v4448 = vmul.f32 %v4408, %v671
      %v4449 = vmul.f32 %v4409, %v672
      %v4450 = vmul.f32 %v4442, %v673
      %v4451 = vld [vmem:[#allocation2 + $0x48] sm:$0xff]
      %v4452 = vld [vmem:[#allocation2 + $0x49] sm:$0xff]
      %v4453 = vmul.f32 %v4427, %v690
      %v4454 = vmul.f32 %v4428, %v691
      %v4455 = vmul.f32 %v4429, %v692
      %v4456 = vmul.f32 %v4430, %v693
      %v4457 = vmul.f32 %v4431, %v694
      %v4458 = vmul.f32 %v4432, %v695
      %v4459 = vmul.f32 %v4433, %v696
      %v4460 = vmul.f32 %v4452, %v697
      %v4461 = vld [vmem:[#allocation2 + $0x4f] sm:$0xff]
      %v4462 = vmul.f32 %v4404, %v666
      %v4463 = vmul.f32 %v4405, %v667
      %v4464 = vmul.f32 %v4406, %v668
      %v4465 = vmul.f32 %v4407, %v669
      %v4466 = vmul.f32 %v4408, %v670
      %v4467 = vmul.f32 %v4409, %v671
      %v4468 = vmul.f32 %v4442, %v672
      %v4469 = vmul.f32 %v4461, %v673
      %v4470 = vld [vmem:[#allocation2 + $0x50] sm:$0xff]
      %v4471 = vld [vmem:[#allocation2 + $0x51] sm:$0xff]
      %v4472 = vmul.f32 %v4428, %v690
      %v4473 = vmul.f32 %v4429, %v691
      %v4474 = vmul.f32 %v4430, %v692
      %v4475 = vmul.f32 %v4431, %v693
      %v4476 = vmul.f32 %v4432, %v694
      %v4477 = vmul.f32 %v4433, %v695
      %v4478 = vmul.f32 %v4452, %v696
      %v4479 = vmul.f32 %v4471, %v697
      %4488 = vrot.lane.b32.xlu0 %v4418, 8
      %v4489 = vpop.permute.xlu0 %4488
      %4490 = vrot.lane.b32.xlu0 %v4419, 8
      %v4491 = vpop.permute.xlu0 %4490
      %4492 = vrot.lane.b32.xlu0 %v4420, 8
      %v4493 = vpop.permute.xlu0 %4492
      %4494 = vrot.lane.b32.xlu0 %v4421, 8
      %v4495 = vpop.permute.xlu0 %4494
      %4496 = vrot.lane.b32.xlu0 %v4422, 8
      %v4497 = vpop.permute.xlu0 %4496
      %4498 = vrot.lane.b32.xlu0 %v4423, 8
      %v4499 = vpop.permute.xlu0 %4498
      %4500 = vrot.lane.b32.xlu0 %v4424, 8
      %v4501 = vpop.permute.xlu0 %4500
      %4502 = vrot.lane.b32.xlu0 %v4425, 8
      %v4503 = vpop.permute.xlu0 %4502
      %4520 = vrot.lane.b32.xlu0 %v4434, 16
      %v4521 = vpop.permute.xlu0 %4520
      %4522 = vrot.lane.b32.xlu0 %v4435, 16
      %v4523 = vpop.permute.xlu0 %4522
      %4524 = vrot.lane.b32.xlu0 %v4436, 16
      %v4525 = vpop.permute.xlu0 %4524
      %4526 = vrot.lane.b32.xlu0 %v4437, 16
      %v4527 = vpop.permute.xlu0 %4526
      %4528 = vrot.lane.b32.xlu0 %v4438, 16
      %v4529 = vpop.permute.xlu0 %4528
      %4530 = vrot.lane.b32.xlu0 %v4439, 16
      %v4531 = vpop.permute.xlu0 %4530
      %4532 = vrot.lane.b32.xlu0 %v4440, 16
      %v4533 = vpop.permute.xlu0 %4532
      %4534 = vrot.lane.b32.xlu0 %v4441, 16
      %v4535 = vpop.permute.xlu0 %4534
      %4552 = vrot.lane.b32.xlu0 %v4443, 24
      %v4553 = vpop.permute.xlu0 %4552
      %4554 = vrot.lane.b32.xlu0 %v4444, 24
      %v4555 = vpop.permute.xlu0 %4554
      %4556 = vrot.lane.b32.xlu0 %v4445, 24
      %v4557 = vpop.permute.xlu0 %4556
      %4558 = vrot.lane.b32.xlu0 %v4446, 24
      %v4559 = vpop.permute.xlu0 %4558
      %4560 = vrot.lane.b32.xlu0 %v4447, 24
      %v4561 = vpop.permute.xlu0 %4560
      %4562 = vrot.lane.b32.xlu0 %v4448, 24
      %v4563 = vpop.permute.xlu0 %4562
      %4564 = vrot.lane.b32.xlu0 %v4449, 24
      %v4565 = vpop.permute.xlu0 %4564
      %4566 = vrot.lane.b32.xlu0 %v4450, 24
      %v4567 = vpop.permute.xlu0 %4566
      %4577 = vrot.lane.b32.xlu0 %v4419, 32
      %v4578 = vpop.permute.xlu0 %4577
      %4579 = vrot.lane.b32.xlu0 %v4420, 32
      %v4580 = vpop.permute.xlu0 %4579
      %4581 = vrot.lane.b32.xlu0 %v4421, 32
      %v4582 = vpop.permute.xlu0 %4581
      %4583 = vrot.lane.b32.xlu0 %v4422, 32
      %v4584 = vpop.permute.xlu0 %4583
      %4585 = vrot.lane.b32.xlu0 %v4423, 32
      %v4586 = vpop.permute.xlu0 %4585
      %4587 = vrot.lane.b32.xlu0 %v4424, 32
      %v4588 = vpop.permute.xlu0 %4587
      %4589 = vrot.lane.b32.xlu0 %v4425, 32
      %v4590 = vpop.permute.xlu0 %4589
      %4591 = vrot.lane.b32.xlu0 %v4451, 32
      %v4592 = vpop.permute.xlu0 %4591
      %4609 = vrot.lane.b32.xlu0 %v4453, 40
      %v4610 = vpop.permute.xlu0 %4609
      %4611 = vrot.lane.b32.xlu0 %v4454, 40
      %v4612 = vpop.permute.xlu0 %4611
      %4613 = vrot.lane.b32.xlu0 %v4455, 40
      %v4614 = vpop.permute.xlu0 %4613
      %4615 = vrot.lane.b32.xlu0 %v4456, 40
      %v4616 = vpop.permute.xlu0 %4615
      %4617 = vrot.lane.b32.xlu0 %v4457, 40
      %v4618 = vpop.permute.xlu0 %4617
      %4619 = vrot.lane.b32.xlu0 %v4458, 40
      %v4620 = vpop.permute.xlu0 %4619
      %4621 = vrot.lane.b32.xlu0 %v4459, 40
      %v4622 = vpop.permute.xlu0 %4621
      %4623 = vrot.lane.b32.xlu0 %v4460, 40
      %v4624 = vpop.permute.xlu0 %4623
      %4641 = vrot.lane.b32.xlu0 %v4462, 48
      %v4642 = vpop.permute.xlu0 %4641
      %4643 = vrot.lane.b32.xlu0 %v4463, 48
      %v4644 = vpop.permute.xlu0 %4643
      %4645 = vrot.lane.b32.xlu0 %v4464, 48
      %v4646 = vpop.permute.xlu0 %4645
      %4647 = vrot.lane.b32.xlu0 %v4465, 48
      %v4648 = vpop.permute.xlu0 %4647
      %4649 = vrot.lane.b32.xlu0 %v4466, 48
      %v4650 = vpop.permute.xlu0 %4649
      %4651 = vrot.lane.b32.xlu0 %v4467, 48
      %v4652 = vpop.permute.xlu0 %4651
      %4653 = vrot.lane.b32.xlu0 %v4468, 48
      %v4654 = vpop.permute.xlu0 %4653
      %4655 = vrot.lane.b32.xlu0 %v4469, 48
      %v4656 = vpop.permute.xlu0 %4655
      %4666 = vrot.lane.b32.xlu0 %v4420, 56
      %v4667 = vpop.permute.xlu0 %4666
      %4668 = vrot.lane.b32.xlu0 %v4421, 56
      %v4669 = vpop.permute.xlu0 %4668
      %4670 = vrot.lane.b32.xlu0 %v4422, 56
      %v4671 = vpop.permute.xlu0 %4670
      %4672 = vrot.lane.b32.xlu0 %v4423, 56
      %v4673 = vpop.permute.xlu0 %4672
      %4674 = vrot.lane.b32.xlu0 %v4424, 56
      %v4675 = vpop.permute.xlu0 %4674
      %4676 = vrot.lane.b32.xlu0 %v4425, 56
      %v4677 = vpop.permute.xlu0 %4676
      %4678 = vrot.lane.b32.xlu0 %v4451, 56
      %v4679 = vpop.permute.xlu0 %4678
      %4680 = vrot.lane.b32.xlu0 %v4470, 56
      %v4681 = vpop.permute.xlu0 %4680
      %4698 = vrot.lane.b32.xlu0 %v4472, 64
      %v4699 = vpop.permute.xlu0 %4698
      %4700 = vrot.lane.b32.xlu0 %v4473, 64
      %v4701 = vpop.permute.xlu0 %4700
      %4702 = vrot.lane.b32.xlu0 %v4474, 64
      %v4703 = vpop.permute.xlu0 %4702
      %4704 = vrot.lane.b32.xlu0 %v4475, 64
      %v4705 = vpop.permute.xlu0 %4704
      %4706 = vrot.lane.b32.xlu0 %v4476, 64
      %v4707 = vpop.permute.xlu0 %4706
      %4708 = vrot.lane.b32.xlu0 %v4477, 64
      %v4709 = vpop.permute.xlu0 %4708
      %4710 = vrot.lane.b32.xlu0 %v4478, 64
      %v4711 = vpop.permute.xlu0 %4710
      %4712 = vrot.lane.b32.xlu0 %v4479, 64
      %v4713 = vpop.permute.xlu0 %4712
      %v4722 = vsel %vm535, %v4410, %v4489
      %v4723 = vsel %vm535, %v4411, %v4491
      %v4724 = vsel %vm535, %v4412, %v4493
      %v4725 = vsel %vm535, %v4413, %v4495
      %v4726 = vsel %vm535, %v4414, %v4497
      %v4727 = vsel %vm535, %v4415, %v4499
      %v4728 = vsel %vm535, %v4416, %v4501
      %v4729 = vsel %vm535, %v4417, %v4503
      %v4730 = vsel %vm1334, %v4722, %v4521
      %v4731 = vsel %vm1334, %v4723, %v4523
      %v4732 = vsel %vm1334, %v4724, %v4525
      %v4733 = vsel %vm1334, %v4725, %v4527
      %v4734 = vsel %vm1334, %v4726, %v4529
      %v4735 = vsel %vm1334, %v4727, %v4531
      %v4736 = vsel %vm1334, %v4728, %v4533
      %v4737 = vsel %vm1334, %v4729, %v4535
      %v4738 = vsel %vm1343, %v4730, %v4553
      %v4739 = vsel %vm1343, %v4731, %v4555
      %v4740 = vsel %vm1343, %v4732, %v4557
      %v4741 = vsel %vm1343, %v4733, %v4559
      %v4742 = vsel %vm1343, %v4734, %v4561
      %v4743 = vsel %vm1343, %v4735, %v4563
      %v4744 = vsel %vm1343, %v4736, %v4565
      %v4745 = vsel %vm1343, %v4737, %v4567
      %v4746 = vsel %vm540, %v4738, %v4578
      %v4747 = vsel %vm540, %v4739, %v4580
      %v4748 = vsel %vm540, %v4740, %v4582
      %v4749 = vsel %vm540, %v4741, %v4584
      %v4750 = vsel %vm540, %v4742, %v4586
      %v4751 = vsel %vm540, %v4743, %v4588
      %v4752 = vsel %vm540, %v4744, %v4590
      %v4753 = vsel %vm540, %v4745, %v4592
      %v4754 = vsel %vm1360, %v4746, %v4610
      %v4755 = vsel %vm1360, %v4747, %v4612
      %v4756 = vsel %vm1360, %v4748, %v4614
      %v4757 = vsel %vm1360, %v4749, %v4616
      %v4758 = vsel %vm1360, %v4750, %v4618
      %v4759 = vsel %vm1360, %v4751, %v4620
      %v4760 = vsel %vm1360, %v4752, %v4622
      %v4761 = vsel %vm1360, %v4753, %v4624
      %v4762 = vsel %vm1369, %v4754, %v4642
      %v4763 = vsel %vm1369, %v4755, %v4644
      %v4764 = vsel %vm1369, %v4756, %v4646
      %v4765 = vsel %vm1369, %v4757, %v4648
      %v4766 = vsel %vm1369, %v4758, %v4650
      %v4767 = vsel %vm1369, %v4759, %v4652
      %v4768 = vsel %vm1369, %v4760, %v4654
      %v4769 = vsel %vm1369, %v4761, %v4656
      %v4770 = vsel %vm1378, %v4762, %v4667
      %v4771 = vsel %vm1378, %v4763, %v4669
      %v4772 = vsel %vm1378, %v4764, %v4671
      %v4773 = vsel %vm1378, %v4765, %v4673
      %v4774 = vsel %vm1378, %v4766, %v4675
      %v4775 = vsel %vm1378, %v4767, %v4677
      %v4776 = vsel %vm1378, %v4768, %v4679
      %v4777 = vsel %vm1378, %v4769, %v4681
      %v4778 = vsel %vm1387, %v4770, %v4699
      %v4779 = vsel %vm1387, %v4771, %v4701
      %v4780 = vsel %vm1387, %v4772, %v4703
      %v4781 = vsel %vm1387, %v4773, %v4705
      %v4782 = vsel %vm1387, %v4774, %v4707
      %v4783 = vsel %vm1387, %v4775, %v4709
      %v4784 = vsel %vm1387, %v4776, %v4711
      %v4785 = vsel %vm1387, %v4777, %v4713
      %v4786 = vld [vmem:[%s13] sm:$0x1]
      %v4788 = vlaneseq
      %v4789 = vshrl.u32 %v4788, 7
      %v4790 = vsub.s32 0, %v4789
      %v4791 = vrot.slane %v4786, %v4790
      %v4794 = vsel %vm1403, %v4778, 0
      %v4797 = vsel %vm1403, %v4779, 0
      %v4800 = vsel %vm1403, %v4780, 0
      %v4803 = vsel %vm1403, %v4781, 0
      %v4806 = vsel %vm1403, %v4782, 0
      %v4809 = vsel %vm1403, %v4783, 0
      %v4812 = vsel %vm1403, %v4784, 0
      %v4815 = vsel %vm1403, %v4785, 0
      %4817 = vmatprep.subr.mxu0 0.0
      %4818 = vmatpush1.msra.mxu0 0.0
      %4819 = vmatprep.subr.mxu0 0.0
      %4820 = vmatpush1.msra.mxu0 0.0
      %4821 = vmatprep.subr.mxu0 0.0
      %4822 = vmatpush1.msra.mxu0 0.0
      %4823 = vmatprep.subr.mxu0 0.0
      %4824 = vmatpush1.msra.mxu0 0.0
      %4825 = vmatprep.subr.mxu0 0.0
      %4826 = vmatpush1.msra.mxu0 0.0
      %4827 = vmatprep.subr.mxu0 0.0
      %4828 = vmatpush1.msra.mxu0 0.0
      %4829 = vmatprep.subr.mxu0 0.0
      %4830 = vmatpush1.msra.mxu0 0.0
      %4831 = vmatprep.subr.mxu0 0.0
      %4832 = vmatpush1.msra.mxu0 %v4393
      %4833 = vmatprep.subr.mxu0 0.0
      %4834 = vmatpush1.msra.mxu0 %v4392
      %4835 = vmatprep.subr.mxu0 0.0
      %4836 = vmatpush1.msra.mxu0 %v4391
      %4837 = vmatprep.subr.mxu0 0.0
      %4838 = vmatpush1.msra.mxu0 %v4390
      %4839 = vmatprep.subr.mxu0 0.0
      %4840 = vmatpush1.msra.mxu0 %v4389
      %4841 = vmatprep.subr.mxu0 0.0
      %4842 = vmatpush1.msra.mxu0 %v4388
      %4843 = vmatprep.subr.mxu0 0.0
      %4844 = vmatpush1.msra.mxu0 %v4387
      %4845 = vmatprep.subr.mxu0 0.0
      %4846 = vmatpush1.msra.mxu0 %v4386
      %4847 = vmatprep.subr.mxu0 0.0
      %4848 = vmatpush1.msra.mxu0 %v4385
      %4849 = vmatprep.subr.mxu0 0.0
      %4850 = vmatpush2.msra.mxu0 0.0
      %4851 = vmatprep.subr.mxu0 0.0
      %4852 = vmatpush2.msra.mxu0 0.0
      %4853 = vmatprep.subr.mxu0 0.0
      %4854 = vmatpush2.msra.mxu0 0.0
      %4855 = vmatprep.subr.mxu0 0.0
      %4856 = vmatpush2.msra.mxu0 0.0
      %4857 = vmatprep.subr.mxu0 0.0
      %4858 = vmatpush2.msra.mxu0 0.0
      %4859 = vmatprep.subr.mxu0 0.0
      %4860 = vmatpush2.msra.mxu0 0.0
      %4861 = vmatprep.subr.mxu0 0.0
      %4862 = vmatpush2.msra.mxu0 0.0
      %4863 = vmatprep.subr.mxu0 0.0
      %4864 = vmatpush2.msra.mxu0 0.0
      %4865 = vmatprep.subr.mxu0 0.0
      %4866 = vmatpush2.msra.mxu0 0.0
      %4867 = vmatprep.subr.mxu0 0.0
      %4868 = vmatpush2.msra.mxu0 0.0
      %4869 = vmatprep.subr.mxu0 0.0
      %4870 = vmatpush2.msra.mxu0 0.0
      %4871 = vmatprep.subr.mxu0 0.0
      %4872 = vmatpush2.msra.mxu0 0.0
      %4873 = vmatprep.subr.mxu0 0.0
      %4874 = vmatpush2.msra.mxu0 0.0
      %4875 = vmatprep.subr.mxu0 0.0
      %4876 = vmatpush2.msra.mxu0 0.0
      %4877 = vmatprep.subr.mxu0 0.0
      %4878 = vmatpush2.msra.mxu0 0.0
      %4879 = vmatprep.subr.mxu0 0.0
      %4880 = vmatpush2.msra.mxu0 0.0
      %4881 = vmatprep.mubr.f32.mxu0 0.0
      %4882 = vmatmul.mubr.f32.gmra.mxu0 %v4794
      %v4883 = vpop.f32.mrf.mxu0
      %v4884 = vadd.f32 %v4791, %v4883
      %v4885 = vpop.f32.mrf.mxu0
      %4886 = vmatprep.mubr.f32.mxu0 0.0
      %4887 = vmatmul.mubr.f32.gmra.mxu0 %v4797
      %v4888 = vpop.f32.mrf.mxu0
      %v4889 = vadd.f32 %v4791, %v4888
      %v4890 = vpop.f32.mrf.mxu0
      %4891 = vmatprep.mubr.f32.mxu0 0.0
      %4892 = vmatmul.mubr.f32.gmra.mxu0 %v4800
      %v4893 = vpop.f32.mrf.mxu0
      %v4894 = vadd.f32 %v4791, %v4893
      %v4895 = vpop.f32.mrf.mxu0
      %4896 = vmatprep.mubr.f32.mxu0 0.0
      %4897 = vmatmul.mubr.f32.gmra.mxu0 %v4803
      %v4898 = vpop.f32.mrf.mxu0
      %v4899 = vadd.f32 %v4791, %v4898
      %v4900 = vpop.f32.mrf.mxu0
      %4901 = vmatprep.mubr.f32.mxu0 0.0
      %4902 = vmatmul.mubr.f32.gmra.mxu0 %v4806
      %v4903 = vpop.f32.mrf.mxu0
      %v4904 = vadd.f32 %v4791, %v4903
      %v4905 = vpop.f32.mrf.mxu0
      %4906 = vmatprep.mubr.f32.mxu0 0.0
      %4907 = vmatmul.mubr.f32.gmra.mxu0 %v4809
      %v4908 = vpop.f32.mrf.mxu0
      %v4909 = vadd.f32 %v4791, %v4908
      %v4910 = vpop.f32.mrf.mxu0
      %4911 = vmatprep.mubr.f32.mxu0 0.0
      %4912 = vmatmul.mubr.f32.gmra.mxu0 %v4812
      %v4913 = vpop.f32.mrf.mxu0
      %v4914 = vadd.f32 %v4791, %v4913
      %v4915 = vpop.f32.mrf.mxu0
      %4916 = vmatprep.mubr.f32.mxu0 0.0
      %4917 = vmatmul.mubr.f32.gmra.mxu0 %v4815
      %v4918 = vpop.f32.mrf.mxu0
      %v4919 = vadd.f32 %v4791, %v4918
      %v4920 = vpop.f32.mrf.mxu0
      %4921 = vdwg.mxu0
      %v4922 = vld [vmem:[%s14] sm:$0x1]
      %v4924 = vlaneseq
      %v4925 = vshrl.u32 %v4924, 7
      %v4926 = vsub.s32 0, %v4925
      %v4927 = vrot.slane %v4922, %v4926
      %v4929 = vmul.f32 %v4884, %v4927
      %v4930 = vmul.f32 %v4889, %v4927
      %v4931 = vmul.f32 %v4894, %v4927
      %v4932 = vmul.f32 %v4899, %v4927
      %v4933 = vmul.f32 %v4904, %v4927
      %v4934 = vmul.f32 %v4909, %v4927
      %v4935 = vmul.f32 %v4914, %v4927
      %v4936 = vmul.f32 %v4919, %v4927
      %v4937 = vmul.f32 %v4929, 2.0
      %v4938 = vmul.f32 %v4930, 2.0
      %v4939 = vmul.f32 %v4931, 2.0
      %v4940 = vmul.f32 %v4932, 2.0
      %v4941 = vmul.f32 %v4933, 2.0
      %v4942 = vmul.f32 %v4934, 2.0
      %v4943 = vmul.f32 %v4935, 2.0
      %v4944 = vmul.f32 %v4936, 2.0
      %4953 = vrot.lane.b32.xlu0 %v4929, 8
      %v4954 = vpop.permute.xlu0 %4953
      %4955 = vrot.lane.b32.xlu0 %v4930, 8
      %v4956 = vpop.permute.xlu0 %4955
      %4957 = vrot.lane.b32.xlu0 %v4931, 8
      %v4958 = vpop.permute.xlu0 %4957
      %4959 = vrot.lane.b32.xlu0 %v4932, 8
      %v4960 = vpop.permute.xlu0 %4959
      %4961 = vrot.lane.b32.xlu0 %v4933, 8
      %v4962 = vpop.permute.xlu0 %4961
      %4963 = vrot.lane.b32.xlu0 %v4934, 8
      %v4964 = vpop.permute.xlu0 %4963
      %4965 = vrot.lane.b32.xlu0 %v4935, 8
      %v4966 = vpop.permute.xlu0 %4965
      %4967 = vrot.lane.b32.xlu0 %v4936, 8
      %v4968 = vpop.permute.xlu0 %4967
      %v4977 = vsub.f32 %v4313, %v4954
      %v4978 = vsub.f32 %v4314, %v4956
      %v4979 = vsub.f32 %v4315, %v4958
      %v4980 = vsub.f32 %v4316, %v4960
      %v4981 = vsub.f32 %v4317, %v4962
      %v4982 = vsub.f32 %v4318, %v4964
      %v4983 = vsub.f32 %v4319, %v4966
      %v4984 = vsub.f32 %v4320, %v4968
      %v4985 = vmul.f32 %v4977, %v4977
      %v4986 = vmul.f32 %v4978, %v4978
      %v4987 = vmul.f32 %v4979, %v4979
      %v4988 = vmul.f32 %v4980, %v4980
      %v4989 = vmul.f32 %v4981, %v4981
      %v4990 = vmul.f32 %v4982, %v4982
      %v4991 = vmul.f32 %v4983, %v4983
      %v4992 = vmul.f32 %v4984, %v4984
      %v4993 = vmul.f32 %v4929, -2.0
      %v4994 = vmul.f32 %v4930, -2.0
      %v4995 = vmul.f32 %v4931, -2.0
      %v4996 = vmul.f32 %v4932, -2.0
      %v4997 = vmul.f32 %v4933, -2.0
      %v4998 = vmul.f32 %v4934, -2.0
      %v4999 = vmul.f32 %v4935, -2.0
      %v5000 = vmul.f32 %v4936, -2.0
      %v5001 = vmul.f32 %v4993, 1.442695
      %v5002 = vpow.pop %v5001
      %v5003 = vmul.f32 %v4994, 1.442695
      %v5004 = vpow.pop %v5003
      %v5005 = vmul.f32 %v4995, 1.442695
      %v5006 = vpow.pop %v5005
      %v5007 = vmul.f32 %v4996, 1.442695
      %v5008 = vpow.pop %v5007
      %v5009 = vmul.f32 %v4997, 1.442695
      %v5010 = vpow.pop %v5009
      %v5011 = vmul.f32 %v4998, 1.442695
      %v5012 = vpow.pop %v5011
      %v5013 = vmul.f32 %v4999, 1.442695
      %v5014 = vpow.pop %v5013
      %v5015 = vmul.f32 %v5000, 1.442695
      %v5016 = vpow.pop %v5015
      %v5017 = vmul.f32 %v4985, %v5002
      %v5018 = vmul.f32 %v4986, %v5004
      %v5019 = vmul.f32 %v4987, %v5006
      %v5020 = vmul.f32 %v4988, %v5008
      %v5021 = vmul.f32 %v4989, %v5010
      %v5022 = vmul.f32 %v4990, %v5012
      %v5023 = vmul.f32 %v4991, %v5014
      %v5024 = vmul.f32 %v4992, %v5016
      %v5025 = vadd.f32 %v4937, %v5017
      %v5026 = vadd.f32 %v4938, %v5018
      %v5027 = vadd.f32 %v4939, %v5019
      %v5028 = vadd.f32 %v4940, %v5020
      %v5029 = vadd.f32 %v4941, %v5021
      %v5030 = vadd.f32 %v4942, %v5022
      %v5031 = vadd.f32 %v4943, %v5023
      %v5032 = vadd.f32 %v4944, %v5024
      %v5033 = vadd.f32 %v5025, 1.837877
      %v5034 = vadd.f32 %v5026, 1.837877
      %v5035 = vadd.f32 %v5027, 1.837877
      %v5036 = vadd.f32 %v5028, 1.837877
      %v5037 = vadd.f32 %v5029, 1.837877
      %v5038 = vadd.f32 %v5030, 1.837877
      %v5039 = vadd.f32 %v5031, 1.837877
      %v5040 = vadd.f32 %v5032, 1.837877
      %v5041 = vmul.f32 %v5033, -0.5
      %v5042 = vmul.f32 %v5034, -0.5
      %v5043 = vmul.f32 %v5035, -0.5
      %v5044 = vmul.f32 %v5036, -0.5
      %v5045 = vmul.f32 %v5037, -0.5
      %v5046 = vmul.f32 %v5038, -0.5
      %v5047 = vmul.f32 %v5039, -0.5
      %v5048 = vmul.f32 %v5040, -0.5
      %5057 = vrot.lane.b32.xlu0 %v5041, 120
      %v5058 = vpop.permute.xlu0 %5057
      %5059 = vrot.lane.b32.xlu0 %v5042, 120
      %v5060 = vpop.permute.xlu0 %5059
      %5061 = vrot.lane.b32.xlu0 %v5043, 120
      %v5062 = vpop.permute.xlu0 %5061
      %5063 = vrot.lane.b32.xlu0 %v5044, 120
      %v5064 = vpop.permute.xlu0 %5063
      %5065 = vrot.lane.b32.xlu0 %v5045, 120
      %v5066 = vpop.permute.xlu0 %5065
      %5067 = vrot.lane.b32.xlu0 %v5046, 120
      %v5068 = vpop.permute.xlu0 %5067
      %5069 = vrot.lane.b32.xlu0 %v5047, 120
      %v5070 = vpop.permute.xlu0 %5069
      %5071 = vrot.lane.b32.xlu0 %v5048, 120
      %v5072 = vpop.permute.xlu0 %5071
      %v5081 = vsel %vm535, %v5058, 0.0
      %5082 = vadd.xlane.f32.xlu0 %v5081
      %v5083 = vpop.xlane.xlu0 %5082
      %v5084 = vsel %vm535, %v5060, 0.0
      %5085 = vadd.xlane.f32.xlu0 %v5084
      %v5086 = vpop.xlane.xlu0 %5085
      %v5087 = vsel %vm535, %v5062, 0.0
      %5088 = vadd.xlane.f32.xlu0 %v5087
      %v5089 = vpop.xlane.xlu0 %5088
      %v5090 = vsel %vm535, %v5064, 0.0
      %5091 = vadd.xlane.f32.xlu0 %v5090
      %v5092 = vpop.xlane.xlu0 %5091
      %v5093 = vsel %vm535, %v5066, 0.0
      %5094 = vadd.xlane.f32.xlu0 %v5093
      %v5095 = vpop.xlane.xlu0 %5094
      %v5096 = vsel %vm535, %v5068, 0.0
      %5097 = vadd.xlane.f32.xlu0 %v5096
      %v5098 = vpop.xlane.xlu0 %5097
      %v5099 = vsel %vm535, %v5070, 0.0
      %5100 = vadd.xlane.f32.xlu0 %v5099
      %v5101 = vpop.xlane.xlu0 %5100
      %v5102 = vsel %vm535, %v5072, 0.0
      %5103 = vadd.xlane.f32.xlu0 %v5102
      %v5104 = vpop.xlane.xlu0 %5103
      %v5105 = vadd.f32 %v4377, %v5083
      %v5106 = vadd.f32 %v4378, %v5086
      %v5107 = vadd.f32 %v4379, %v5089
      %v5108 = vadd.f32 %v4380, %v5092
      %v5109 = vadd.f32 %v4381, %v5095
      %v5110 = vadd.f32 %v4382, %v5098
      %v5111 = vadd.f32 %v4383, %v5101
      %v5112 = vadd.f32 %v4384, %v5104
      %5113 = vst.msk [vmem:[%s529] sm:$0xff] %vm535, %v2825
      %5114 = vst.msk [vmem:[%s529 + $0x8] sm:$0xff] %vm535, %v2826
      %5115 = vst.msk [vmem:[%s529 + $0x10] sm:$0xff] %vm535, %v2827
      %5116 = vst.msk [vmem:[%s529 + $0x18] sm:$0xff] %vm535, %v2828
      %5117 = vst.msk [vmem:[%s529 + $0x20] sm:$0xff] %vm535, %v2829
      %5118 = vst.msk [vmem:[%s529 + $0x28] sm:$0xff] %vm535, %v2830
      %5119 = vst.msk [vmem:[%s529 + $0x30] sm:$0xff] %vm535, %v2831
      %5120 = vst.msk [vmem:[%s529 + $0x38] sm:$0xff] %vm535, %v2832
      %vm5121 = vcmask 7168
      %5122 = vst.msk [vmem:[%s534] sm:$0xff] %vm5121, %v5105
      %5123 = vst.msk [vmem:[%s534 + $0x8] sm:$0xff] %vm5121, %v5106
      %5124 = vst.msk [vmem:[%s534 + $0x10] sm:$0xff] %vm5121, %v5107
      %5125 = vst.msk [vmem:[%s534 + $0x18] sm:$0xff] %vm5121, %v5108
      %5126 = vst.msk [vmem:[%s534 + $0x20] sm:$0xff] %vm5121, %v5109
      %5127 = vst.msk [vmem:[%s534 + $0x28] sm:$0xff] %vm5121, %v5110
      %5128 = vst.msk [vmem:[%s534 + $0x30] sm:$0xff] %vm5121, %v5111
      %5129 = vst.msk [vmem:[%s534 + $0x38] sm:$0xff] %vm5121, %v5112
      %p5130 = scmp.lt.s32.totalorder %s28, 1
      %s5131 = scalar_select %p5130, %s28, 1
      %s5132 = smul.addr %s5131, 8
      %s5133 = smul.addr %s5132, 8
      %s5134 = scalar_lea.vmem %s15, %s5133
      %p5135 = scmp.lt.s32.totalorder %s28, 1
      %s5136 = scalar_select %p5135, %s28, 1
      %s5137 = smul.addr %s5136, 8
      %s5138 = smul.addr %s5137, 8
      %s5139 = scalar_lea.vmem %s16, %s5138
      // Predicated region
      $region81: #{_lambda_.2} parent=79 // pred_check
        %p5140 = pneg %p366
      $region82: #{_lambda_.2} parent=79 // pred_check_branch
        %5142 = sbr.rel (%p5140) target = $region84
      $region83: #{_lambda_.2} parent=79 // pred_region
        _
      $region84: #{_lambda_.2} parent=79 // pred_fallthru
        _
      // Predicated region
      $region85: #{_lambda_.2} parent=79 // pred_check
        %p5143 = pneg %p392
      $region86: #{_lambda_.2} parent=79 // pred_check_branch
        %5145 = sbr.rel (%p5143) target = $region88
      $region87: #{_lambda_.2} parent=79 // pred_region
        _
      $region88: #{_lambda_.2} parent=79 // pred_fallthru
        _
    $region80: #{_lambda_.2} parent=5 // pred_fallthru
      _
    %p5146 = scmp.le.s32.totalorder 2, %s23
    // Predicated region
    $region89: #{_lambda_.2} parent=5 // pred_check
      %p5147 = pneg %p5146
    $region90: #{_lambda_.2} parent=5 // pred_check_branch
      %5149 = sbr.rel (%p5147) target = $region92
    $region91: #{_lambda_.2} parent=5 // pred_region
      %s5150 = ssub.s32 %s23, 2
      // Predicated region
      $region93: #{_lambda_.2} parent=91 // pred_check
        %p5151 = pneg %p372
      $region94: #{_lambda_.2} parent=91 // pred_check_branch
        %5153 = sbr.rel (%p5151) target = $region96
      $region95: #{_lambda_.2} parent=91 // pred_region
        %p5154 = scmp.lt.s32.totalorder %s29, 1
        %s5155 = scalar_select %p5154, %s29, 1
        %s5156 = smul.addr %s5155, 8
        %s5157 = smul.addr %s5156, 8
        %s5158 = scalar_lea.vmem %s15, %s5157
      $region96: #{_lambda_.2} parent=91 // pred_fallthru
        _
      // Predicated region
      $region97: #{_lambda_.2} parent=91 // pred_check
        %p5159 = pneg %p398
      $region98: #{_lambda_.2} parent=91 // pred_check_branch
        %5161 = sbr.rel (%p5159) target = $region100
      $region99: #{_lambda_.2} parent=91 // pred_region
        %p5162 = scmp.lt.s32.totalorder %s29, 1
        %s5163 = scalar_select %p5162, %s29, 1
        %s5164 = smul.addr %s5163, 8
        %s5165 = smul.addr %s5164, 8
        %s5166 = scalar_lea.vmem %s16, %s5165
      $region100: #{_lambda_.2} parent=91 // pred_fallthru
        _
    $region92: #{_lambda_.2} parent=5 // pred_fallthru
      _
  $region6: #{_lambda_.2} parent=0 // loop_footer
    %s27 = sadd.s32 1, %s23
  $region7: #{_lambda_.2} parent=0 // loop_footer_branch
    %22 = sbr.rel target = $region3
  $region8: #{_lambda_.2} parent=0 // loop_exit
    _

</llo_original>
